<compile_context>
chip_gen: v5e
topology: v5e:2x2
jax: 0.10.0
libtpu: 0.0.40
codegen_flags: <defaults>
</compile_context>

<pallas_src>
import math
from functools import partial

import numpy as np
import jax
import jax.numpy as jnp
from jax.experimental import pallas as pl
from jax.experimental.pallas import tpu as pltpu

_VMEM_LIMIT = 48 * 1024 * 1024          # <= 64 MiB so it is also valid on v7x
_SQRT2_INV = 1.0 / math.sqrt(2.0)


# ------------------------------ tiling helpers ------------------------------

def _pick_tile(dim, target, align):
    """Largest tile <= target that is a multiple of `align` and divides `dim`.
    Falls back to the full dim (always a legal Pallas block)."""
    t = (min(target, dim) // align) * align
    while t >= align:
        if dim % t == 0:
            return t
        t -= align
    return dim


def _pick_lead(dim, target):
    for t in range(min(target, dim), 0, -1):
        if dim % t == 0:
            return t
    return 1


# ------------------------------ kernel helpers ------------------------------

def _ln_f32(x, g, b, eps=1e-5):
    """Row-wise LayerNorm in f32 (matches the fp16-safe LayerNorm subclass)."""
    x = x.astype(jnp.float32)
    mu = jnp.mean(x, axis=-1, keepdims=True)
    var = jnp.mean(jnp.square(x - mu), axis=-1, keepdims=True)
    return (x - mu) * jax.lax.rsqrt(var + eps) * g.astype(jnp.float32) + b.astype(jnp.float32)


def _apply_act(y, act):
    if act == "gelu":            # exact erf-GELU (torch nn.GELU default), f32
        return 0.5 * y * (1.0 + jax.lax.erf(y * _SQRT2_INV))
    if act == "quick_gelu":      # QuickGELU: x * sigmoid(1.702 x), f32
        return y * jax.nn.sigmoid(1.702 * y)
    return y


def _mm(a, b):
    """MXU matmul: bf16 inputs, f32 accumulation."""
    return jnp.dot(a.astype(jnp.bfloat16), b.astype(jnp.bfloat16),
                   preferred_element_type=jnp.float32)


# ------------------------------ Pallas kernels ------------------------------

def _linear_kernel(*refs, act, nk, n_res):
    """K-tiled linear: grid=(M/tm, N/tn, K/tk); optional fused residual adds."""
    x_ref, w_ref, b_ref = refs[:3]
    res_refs = refs[3:3 + n_res]
    o_ref, acc_ref = refs[3 + n_res], refs[4 + n_res]
    k = pl.program_id(2)

    @pl.when(k == 0)
    def _init():
        acc_ref[...] = jnp.zeros_like(acc_ref)

    acc_ref[...] += _mm(x_ref[...], w_ref[...])

    @pl.when(k == nk - 1)
    def _fin():
        y = _apply_act(acc_ref[...] + b_ref[...].astype(jnp.float32), act)
        for r in res_refs:
            y = y + r[...].astype(jnp.float32)
        o_ref[...] = y.astype(o_ref.dtype)


def _ln_linear_kernel(*refs, act, n_res):
    """LayerNorm prologue fused into a (whole-K) linear; optional residual adds."""
    x_ref, g_ref, beta_ref, w_ref, b_ref = refs[:5]
    res_refs = refs[5:5 + n_res]
    o_ref = refs[5 + n_res]
    xn = _ln_f32(x_ref[...], g_ref[...], beta_ref[...])
    y = _apply_act(_mm(xn, w_ref[...]) + b_ref[...].astype(jnp.float32), act)
    for r in res_refs:
        y = y + r[...].astype(jnp.float32)
    o_ref[...] = y.astype(o_ref.dtype)


def _adapter_kernel(*refs, ln, res):
    """Adapter: down -> GELU -> up, with optional fused input LN and residual add."""
    idx = 0
    x_ref = refs[idx]; idx += 1
    if ln:
        g_ref, beta_ref = refs[idx], refs[idx + 1]; idx += 2
        x = _ln_f32(x_ref[...], g_ref[...], beta_ref[...])
    else:
        x = x_ref[...].astype(jnp.float32)
    dw_ref, db_ref, uw_ref, ub_ref = refs[idx:idx + 4]; idx += 4
    h = _apply_act(_mm(x, dw_ref[...]) + db_ref[...].astype(jnp.float32), "gelu")
    y = _mm(h, uw_ref[...]) + ub_ref[...].astype(jnp.float32)
    if res:
        y = y + refs[idx][...].astype(jnp.float32); idx += 1
    o_ref = refs[idx]
    o_ref[...] = y.astype(o_ref.dtype)


def _mlp_kernel(*refs, nh, fuse_adapter, fuse_residual):
    """LN2 -> fc1 -> QuickGELU -> fc2 with a grid loop over the 4E hidden dim.
    Optionally fuses a parallel adapter branch (same LN2 input) and a residual add,
    both seeded into the f32 accumulator at h == 0."""
    x_ref, g_ref, beta_ref, w1_ref, b1_ref, w2_ref, b2_ref = refs[:7]
    idx = 7
    if fuse_adapter:
        dw_ref, db_ref, uw_ref, ub_ref = refs[idx:idx + 4]; idx += 4
    if fuse_residual:
        res_ref = refs[idx]; idx += 1
    o_ref, acc_ref = refs[idx], refs[idx + 1]

    h = pl.program_id(1)
    xn = _ln_f32(x_ref[...], g_ref[...], beta_ref[...])            # LN2 prologue, f32

    @pl.when(h == 0)
    def _init():
        init = jnp.zeros(acc_ref.shape, jnp.float32)
        if fuse_residual:
            init = init + res_ref[...].astype(jnp.float32)
        if fuse_adapter:                                           # s_adapter_mlp branch
            ah = _apply_act(_mm(xn, dw_ref[...]) + db_ref[...].astype(jnp.float32), "gelu")
            init = init + _mm(ah, uw_ref[...]) + ub_ref[...].astype(jnp.float32)
        acc_ref[...] = init

    hid = _mm(xn, w1_ref[...]) + b1_ref[...].astype(jnp.float32)   # fc1 chunk
    hid = _apply_act(hid, "quick_gelu")                            # f32
    acc_ref[...] += _mm(hid, w2_ref[...])                          # fc2 partial sum

    @pl.when(h == nh - 1)
    def _fin():
        o_ref[...] = (acc_ref[...] + b2_ref[...].astype(jnp.float32)).astype(o_ref.dtype)


def _layernorm_kernel(x_ref, g_ref, b_ref, o_ref):
    o_ref[...] = _ln_f32(x_ref[...], g_ref[...], b_ref[...]).astype(o_ref.dtype)


def _attn_kernel(qkv_ref, o_ref, *, num_heads, head_dim, scale):
    qkv = qkv_ref[...]                                    # (gbb, N, 3*D)
    D = num_heads * head_dim
    outs = []
    for h in range(num_heads):                            # static head loop
        q = qkv[..., h * head_dim:(h + 1) * head_dim].astype(jnp.bfloat16)
        k = qkv[..., D + h * head_dim:D + (h + 1) * head_dim].astype(jnp.bfloat16)
        v = qkv[..., 2 * D + h * head_dim:2 * D + (h + 1) * head_dim].astype(jnp.bfloat16)
        # q @ k^T without materializing a transpose (contract last dims, batch dim 0)
        s = jax.lax.dot_general(q, k, (((2,), (2,)), ((0,), (0,))),
                                preferred_element_type=jnp.float32) * scale
        s = s - jnp.max(s, axis=-1, keepdims=True)        # softmax in f32
        p = jnp.exp(s)
        p = p * pl.reciprocal(jnp.sum(p, axis=-1, keepdims=True), approx=True)
        o_h = jax.lax.dot_general(p.astype(jnp.bfloat16), v, (((2,), (1,)), ((0,), (0,))),
                                  preferred_element_type=jnp.float32)
        outs.append(o_h)
    # heads concatenated along the lane dim -> output already in (N, D) proj layout
    o_ref[...] = jnp.concatenate(outs, axis=-1).astype(o_ref.dtype)


# ------------------------------ kernel wrappers ------------------------------

def linear(x, w, b, act=None, ln=None, residuals=(), tm=256, tn=512, tk=512):
    """x:(M,K) @ w:(K,N) + b, with optional fused activation, fused input LayerNorm
    and fused residual adds (each residual is an (M,N) array added to the output)."""
    M, K = x.shape
    N = w.shape[1]
    tm = _pick_tile(M, tm, 8)
    b2 = b.reshape(1, N)
    res = [r.reshape(M, N) for r in residuals]
    n_res = len(res)
    cp = pltpu.CompilerParams

    if ln is not None:
        tn = _pick_tile(N, max(tn, 768), 128)     # wider tiles: fewer LN recomputes / x re-reads
        g, beta = ln
        res_specs = [pl.BlockSpec((tm, tn), lambda i, j: (i, j)) for _ in res]
        return pl.pallas_call(
            partial(_ln_linear_kernel, act=act, n_res=n_res),
            out_shape=jax.ShapeDtypeStruct((M, N), x.dtype),
            grid=(M // tm, N // tn),
            in_specs=[
                pl.BlockSpec((tm, K), lambda i, j: (i, 0)),
                pl.BlockSpec((1, K), lambda i, j: (0, 0)),
                pl.BlockSpec((1, K), lambda i, j: (0, 0)),
                pl.BlockSpec((K, tn), lambda i, j: (0, j)),
                pl.BlockSpec((1, tn), lambda i, j: (0, j)),
            ] + res_specs,
            out_specs=pl.BlockSpec((tm, tn), lambda i, j: (i, j)),
            compiler_params=cp(dimension_semantics=("parallel", "parallel"),
                               vmem_limit_bytes=_VMEM_LIMIT),
        )(x, g.reshape(1, K), beta.reshape(1, K), w, b2, *res)

    tn = _pick_tile(N, tn, 128)
    tk = _pick_tile(K, tk, 128)
    nk = K // tk
    res_specs = [pl.BlockSpec((tm, tn), lambda i, j, k: (i, j)) for _ in res]
    return pl.pallas_call(
        partial(_linear_kernel, act=act, nk=nk, n_res=n_res),
        out_shape=jax.ShapeDtypeStruct((M, N), x.dtype),
        grid=(M // tm, N // tn, nk),
        in_specs=[
            pl.BlockSpec((tm, tk), lambda i, j, k: (i, k)),
            pl.BlockSpec((tk, tn), lambda i, j, k: (k, j)),
            pl.BlockSpec((1, tn), lambda i, j, k: (0, j)),
        ] + res_specs,
        out_specs=pl.BlockSpec((tm, tn), lambda i, j, k: (i, j)),
        scratch_shapes=[pltpu.VMEM((tm, tn), jnp.float32)],
        compiler_params=cp(dimension_semantics=("parallel", "parallel", "arbitrary"),
                           vmem_limit_bytes=_VMEM_LIMIT),
    )(x, w, b2, *res)


def layernorm(x, g, b):
    """Row-tiled LayerNorm over the last dim. x: (M, D)."""
    M, D = x.shape
    tm = _pick_tile(M, 512, 8)
    return pl.pallas_call(
        _layernorm_kernel,
        out_shape=jax.ShapeDtypeStruct((M, D), x.dtype),
        grid=(M // tm,),
        in_specs=[
            pl.BlockSpec((tm, D), lambda i: (i, 0)),
            pl.BlockSpec((1, D), lambda i: (0, 0)),
            pl.BlockSpec((1, D), lambda i: (0, 0)),
        ],
        out_specs=pl.BlockSpec((tm, D), lambda i: (i, 0)),
        compiler_params=pltpu.CompilerParams(dimension_semantics=("parallel",)),
    )(x, g.reshape(1, D), b.reshape(1, D))


def adapter_forward(p, x, ln=None, residual=None):
    """Adapter: up(GELU(down(x))) * 1.0 fused in one kernel; optional fused input LN
    and fused residual add (bottleneck never leaves VMEM)."""
    GB, N, D = x.shape
    M = GB * N
    xf = x.reshape(M, D)
    bneck = p["down_w"].shape[1]
    tm = _pick_tile(M, 256, 8)

    inputs = [xf]
    in_specs = [pl.BlockSpec((tm, D), lambda i: (i, 0))]
    if ln is not None:
        g, beta = ln
        inputs += [g.reshape(1, D), beta.reshape(1, D)]
        in_specs += [pl.BlockSpec((1, D), lambda i: (0, 0)),
                     pl.BlockSpec((1, D), lambda i: (0, 0))]
    inputs += [p["down_w"], p["down_b"].reshape(1, bneck),
               p["up_w"], p["up_b"].reshape(1, D)]
    in_specs += [pl.BlockSpec((D, bneck), lambda i: (0, 0)),
                 pl.BlockSpec((1, bneck), lambda i: (0, 0)),
                 pl.BlockSpec((bneck, D), lambda i: (0, 0)),
                 pl.BlockSpec((1, D), lambda i: (0, 0))]
    if residual is not None:
        inputs.append(residual.reshape(M, D))
        in_specs.append(pl.BlockSpec((tm, D), lambda i: (i, 0)))

    out = pl.pallas_call(
        partial(_adapter_kernel, ln=ln is not None, res=residual is not None),
        out_shape=jax.ShapeDtypeStruct((M, D), x.dtype),
        grid=(M // tm,),
        in_specs=in_specs,
        out_specs=pl.BlockSpec((tm, D), lambda i: (i, 0)),
        compiler_params=pltpu.CompilerParams(dimension_semantics=("parallel",),
                                             vmem_limit_bytes=_VMEM_LIMIT),
    )(*inputs)
    return out.reshape(GB, N, D)


def mlp_forward(p, x, ln, adapter=None, residual=None):
    """LN2 -> fc1 -> QuickGELU -> fc2 fused; hidden (4E) never leaves VMEM.
    Optionally fuses a parallel adapter branch (s_adapter_mlp) and a residual add."""
    GB, N, D = x.shape
    M = GB * N
    xf = x.reshape(M, D)
    Hd = p["fc1_w"].shape[1]
    tm = _pick_tile(M, 256, 8)
    th = _pick_tile(Hd, 512, 128)
    nh = Hd // th
    g, beta = ln

    inputs = [xf, g.reshape(1, D), beta.reshape(1, D),
              p["fc1_w"], p["fc1_b"].reshape(1, Hd), p["fc2_w"], p["fc2_b"].reshape(1, D)]
    in_specs = [
        pl.BlockSpec((tm, D), lambda i, h: (i, 0)),
        pl.BlockSpec((1, D), lambda i, h: (0, 0)),
        pl.BlockSpec((1, D), lambda i, h: (0, 0)),
        pl.BlockSpec((D, th), lambda i, h: (0, h)),
        pl.BlockSpec((1, th), lambda i, h: (0, h)),
        pl.BlockSpec((th, D), lambda i, h: (h, 0)),
        pl.BlockSpec((1, D), lambda i, h: (0, 0)),
    ]
    fuse_adapter = adapter is not None
    fuse_residual = residual is not None
    if fuse_adapter:
        bneck = adapter["down_w"].shape[1]
        inputs += [adapter["down_w"], adapter["down_b"].reshape(1, bneck),
                   adapter["up_w"], adapter["up_b"].reshape(1, D)]
        in_specs += [pl.BlockSpec((D, bneck), lambda i, h: (0, 0)),
                     pl.BlockSpec((1, bneck), lambda i, h: (0, 0)),
                     pl.BlockSpec((bneck, D), lambda i, h: (0, 0)),
                     pl.BlockSpec((1, D), lambda i, h: (0, 0))]
    if fuse_residual:
        inputs.append(residual.reshape(M, D))
        in_specs.append(pl.BlockSpec((tm, D), lambda i, h: (i, 0)))

    out = pl.pallas_call(
        partial(_mlp_kernel, nh=nh, fuse_adapter=fuse_adapter, fuse_residual=fuse_residual),
        out_shape=jax.ShapeDtypeStruct((M, D), x.dtype),
        grid=(M // tm, nh),
        in_specs=in_specs,
        out_specs=pl.BlockSpec((tm, D), lambda i, h: (i, 0)),
        scratch_shapes=[pltpu.VMEM((tm, D), jnp.float32)],
        compiler_params=pltpu.CompilerParams(
            dimension_semantics=("parallel", "arbitrary"),
            vmem_limit_bytes=_VMEM_LIMIT),
    )(*inputs)
    return out.reshape(GB, N, D)


def attention_core(qkv, num_heads, scale):
    """softmax(q k^T * scale) v for all heads; consumes (GB, N, 3D), emits (GB, N, D)."""
    GB, N, D3 = qkv.shape
    D = D3 // 3
    gbb = _pick_lead(GB, 4)
    return pl.pallas_call(
        partial(_attn_kernel, num_heads=num_heads, head_dim=D // num_heads, scale=scale),
        out_shape=jax.ShapeDtypeStruct((GB, N, D), qkv.dtype),
        grid=(GB // gbb,),
        in_specs=[pl.BlockSpec((gbb, N, D3), lambda i: (i, 0, 0))],
        out_specs=pl.BlockSpec((gbb, N, D), lambda i: (i, 0, 0)),
        compiler_params=pltpu.CompilerParams(dimension_semantics=("parallel",),
                                             vmem_limit_bytes=_VMEM_LIMIT),
    )(qkv)


def attention_forward(p, x, num_heads, ln=None, residuals=()):
    """QKV linear (optional fused LN) -> attention core -> proj linear with the residual
    streams fused into the proj kernel's epilogue."""
    GB, N, D = x.shape
    hd = D // num_heads
    qkv = linear(x.reshape(-1, D), p["qkv_w"], p["qkv_b"], ln=ln)      # (GB*N, 3D)
    o = attention_core(qkv.reshape(GB, N, 3 * D), num_heads, hd ** (-0.5))
    res_flat = [r.reshape(-1, D) for r in residuals]
    o = linear(o.reshape(-1, D), p["proj_w"], p["proj_b"], residuals=res_flat)
    return o.reshape(GB, N, D)


# ------------------------------- glue (JAX) ---------------------------------

def _resize_axis(n_in, n_out):
    src = (np.arange(n_out, dtype=np.float64) + 0.5) * (n_in / n_out) - 0.5
    src = np.clip(src, 0.0, n_in - 1)
    lo = np.floor(src).astype(np.int32)
    hi = np.minimum(lo + 1, n_in - 1)
    frac = (src - lo).astype(np.float32)
    return lo, hi, frac


def bilinear_resize(img, out_h, out_w):
    """F.interpolate(mode='bilinear', align_corners=False, antialias=False); gather
    indices are host-side numpy constants."""
    h_in, w_in = img.shape[-2], img.shape[-1]
    ylo, yhi, yf = _resize_axis(h_in, out_h)
    xlo, xhi, xf = _resize_axis(w_in, out_w)
    top = jnp.take(img, ylo, axis=-2)
    bot = jnp.take(img, yhi, axis=-2)
    rows = top * (1.0 - yf)[:, None] + bot * yf[:, None]
    left = jnp.take(rows, xlo, axis=-1)
    right = jnp.take(rows, xhi, axis=-1)
    return left * (1.0 - xf) + right * xf


def _np_bilinear_resize(img, out_h, out_w):
    h_in, w_in = img.shape[-2], img.shape[-1]
    ylo, yhi, yf = _resize_axis(h_in, out_h)
    xlo, xhi, xf = _resize_axis(w_in, out_w)
    top = np.take(img, ylo, axis=-2)
    bot = np.take(img, yhi, axis=-2)
    rows = top * (1.0 - yf)[:, None] + bot * yf[:, None]
    left = np.take(rows, xlo, axis=-1)
    right = np.take(rows, xhi, axis=-1)
    return left * (1.0 - xf) + right * xf


def temporal_positional_embedding_np(Tt, N, channels):
    """TemporalPositionalEmbedding.forward (4-D branch); data-independent, so it is
    precomputed on host with numpy."""
    # TODO(synk): torchvision transforms.Resize may antialias tensor inputs in newer
    # versions; the non-antialiased bilinear path is replicated here.
    resize_shape = int(math.sqrt(N - 1))
    nfw = 4
    width = 16 // nfw
    vals = np.arange(1, 16 * Tt + 1, dtype=np.float64)                 # temp[:, i] = i + 1
    temp = np.broadcast_to(vals[:, None, None], (16 * Tt, width, width))
    temp = temp.reshape(Tt, nfw, nfw, width, width).transpose(0, 1, 3, 2, 4).reshape(Tt, 16, 16)
    temp = _np_bilinear_resize(temp, resize_shape, resize_shape)
    emb = temp.reshape(Tt, -1)
    emb = np.concatenate([np.zeros((Tt, 1)), emb], axis=1).reshape(-1)  # (Tt*N,)
    inv_freq = 1.0 / (10000.0 ** (np.arange(0, channels, 2, dtype=np.float64) / channels))
    e = np.einsum("i,j->ij", emb, inv_freq)
    e = np.stack([np.sin(e), np.cos(e)], axis=-1).reshape(Tt, N, channels)
    return jnp.asarray(e, dtype=jnp.float32)


# ----------------------------- model components -----------------------------

def block_forward(p, x, num_heads, num_frames=9):
    T, Ts = num_frames, 8
    Tt = T - Ts
    GB, N, D = x.shape
    B = GB // T
    x4 = x.reshape(B, T, N, D)
    x_t_res = x4[:, :Tt].reshape(-1, N, D)
    x_s_res = x4[:, Tt:].reshape(-1, N, D)
    ln1 = (p["ln1_g"], p["ln1_b"])
    ln2 = (p["ln2_g"], p["ln2_b"])

    # temporal path (LN1 fused into the first adapter; residual adds fused into adapters)
    x_t = adapter_forward(p["t_ad_attn_b"], x_t_res, ln=ln1)
    x_t = attention_forward(p, x_t, num_heads)
    x_t = adapter_forward(p["t_ad_attn"], x_t, residual=x_t_res)       # + x_t_residual
    m_t = mlp_forward(p, x_t, ln=ln2)
    x_t = adapter_forward(p["t_ad_mlp"], m_t, residual=x_t)            # + x_t_residual2

    # spatial path (LN1 fused into adapter + QKV; attn residuals fused into proj;
    # LN2 + s_adapter_mlp + residual fused into the MLP kernel)
    x_s_adapt = adapter_forward(p["s_ad_attn"], x_s_res, ln=ln1)
    x_s = attention_forward(p, x_s_res, num_heads, ln=ln1,
                            residuals=(x_s_adapt, x_s_res))
    x_s = mlp_forward(p, x_s, ln=ln2, adapter=p["s_ad_mlp"], residual=x_s)

    return jnp.concatenate(
        [x_t.reshape(B, Tt, N, D), x_s.reshape(B, Ts, N, D)], axis=1
    ).reshape(-1, N, D)


def vit_forward(params, x, cfg):
    B, C, T, H, W = x.shape
    E = cfg["embed_dim"]
    psz = cfg["patch_size"]
    num_heads = cfg["num_heads"]

    t = list(range(31))
    t_t = t[::-2][::-1]          # [0, 2, ..., 30]  (16 frames)
    t_s = t[::-4][::-1]          # [2, 6, ..., 30]  (8 frames)
    x_T = x[:, :, t_t]           # (B, C, 16, H, W)
    x_S = x[:, :, t_s]           # (B, C, 8,  H, W)

    # 'b c (th tw) h w -> b c (th h) (tw w)', th=4, then bilinear down to (H, W)
    x_T = x_T.reshape(B, C, 4, 4, H, W).transpose(0, 1, 2, 4, 3, 5).reshape(B, C, 4 * H, 4 * W)
    x_T = bilinear_resize(x_T, H, W)[:, :, None]            # (B, C, 1, H, W)
    xv = jnp.concatenate([x_T, x_S], axis=2)                # (B, C, 9, H, W)

    # PatchEmbed: Conv2d(k=stride=patch, no bias) == patch extraction + tiled matmul
    # TODO(synk): patch extraction (reshape/transpose) is left to XLA; it could be
    # folded into the matmul kernel via Element/strided index maps.
    Tn = xv.shape[2]
    GB = B * Tn
    xf = xv.transpose(0, 2, 1, 3, 4).reshape(GB, C, H, W)    # '(b t) c h w'
    Hp, Wp = H // psz, W // psz
    patches = xf.reshape(GB, C, Hp, psz, Wp, psz).transpose(0, 2, 4, 1, 3, 5)
    patches = patches.reshape(GB * Hp * Wp, C * psz * psz)
    wflat = params["patch_w"].reshape(E, -1).T
    xe = linear(patches, wflat, jnp.zeros((E,), x.dtype)).reshape(GB, Hp * Wp, E)

    # prepend cls token
    cls = jnp.broadcast_to(params["cls_token"].astype(xe.dtype), (GB, 1, E))
    xe = jnp.concatenate([cls, xe], axis=1)                  # (GB, N, E)
    N = xe.shape[1]

    # w-adapter positional embeddings (temporal PE precomputed on host)
    Tt, Ts = 1, 8
    x4 = xe.reshape(B, Tn, N, E)
    xt_part = x4[:, :Tt] + params["tpe"][None] + params["spe"][None, None]
    xs_part = (x4[:, Tt:].reshape(-1, N, E) + params["pos_embed"]).reshape(B, Ts, N, E)
    xe = jnp.concatenate([xt_part, xs_part], axis=1).reshape(-1, N, E)

    # transformer blocks
    for bp in params["blocks"]:
        xe = block_forward(bp, xe, num_heads, num_frames=Tn)

    # final norm: only the cls rows are consumed downstream (LayerNorm is row-wise)
    cls_out = layernorm(xe[:, 0], params["norm_g"], params["norm_b"])  # (GB, E)

    # I3DHead: AdaptiveAvgPool3d((1,1,1)) -> mean over T; dropout inactive; fc_cls
    pooled = jnp.mean(cls_out.reshape(B, Tn, E), axis=1)               # (B, E)
    logits = linear(pooled, params["head_w"], params["head_b"])
    return logits


# -------------------------------- parameters --------------------------------

def init_params(key, *, embed_dim, depth, num_heads, num_classes, in_chans, patch_size, img_size):
    E = embed_dim
    bneck = int(0.25 * E)
    Npatch = (img_size // patch_size) ** 2
    N = Npatch + 1
    keys = iter(jax.random.split(key, 512))

    def nrm(shape, std=0.02):
        return std * jax.random.normal(next(keys), shape, dtype=jnp.float32)

    # NOTE: adapters use small random up-proj weights (instead of the module's
    # zero "lora" init) so the adapter compute path is actually exercised.
    def adapter_p():
        return {
            "down_w": nrm((E, bneck)), "down_b": jnp.zeros((bneck,), jnp.float32),
            "up_w": nrm((bneck, E)), "up_b": jnp.zeros((E,), jnp.float32),
        }

    params = {
        "patch_w": nrm((E, in_chans, patch_size, patch_size)),
        "cls_token": nrm((1, 1, E), std=E ** -0.5),
        "pos_embed": nrm((1, N, E), std=E ** -0.5),
        "spe": nrm((N, E), std=E ** -0.5),
        "tpe": temporal_positional_embedding_np(1, N, E),     # data-independent constant
        "norm_g": jnp.ones((E,), jnp.float32), "norm_b": jnp.zeros((E,), jnp.float32),
        "head_w": nrm((E, num_classes), std=0.01), "head_b": nrm((num_classes,), std=0.01),
        "blocks": [],
    }
    for _ in range(depth):
        params["blocks"].append({
            "ln1_g": jnp.ones((E,), jnp.float32), "ln1_b": jnp.zeros((E,), jnp.float32),
            "ln2_g": jnp.ones((E,), jnp.float32), "ln2_b": jnp.zeros((E,), jnp.float32),
            "qkv_w": nrm((E, 3 * E)), "qkv_b": jnp.zeros((3 * E,), jnp.float32),  # qkv_bias=False
            "proj_w": nrm((E, E)), "proj_b": jnp.zeros((E,), jnp.float32),
            "fc1_w": nrm((E, 4 * E)), "fc1_b": jnp.zeros((4 * E,), jnp.float32),
            "fc2_w": nrm((4 * E, E)), "fc2_b": jnp.zeros((E,), jnp.float32),
            "t_ad_attn_b": adapter_p(), "s_ad_attn": adapter_p(), "t_ad_attn": adapter_p(),
            "s_ad_mlp": adapter_p(), "t_ad_mlp": adapter_p(),
        })
    return params


# ------------------------------------ main -----------------------------------

if __name__ == "__main__":
    cfg = dict(img_size=32, patch_size=16, in_chans=3, embed_dim=32,
               depth=2, num_heads=4, num_classes=7, all_frames=31)
    key = jax.random.PRNGKey(0)
    kp, kx = jax.random.split(key)
    params = init_params(
        kp,
        embed_dim=cfg["embed_dim"], depth=cfg["depth"], num_heads=cfg["num_heads"],
        num_classes=cfg["num_classes"], in_chans=cfg["in_chans"],
        patch_size=cfg["patch_size"], img_size=cfg["img_size"],
    )

    B = 2
    x = jax.random.normal(
        kx, (B, cfg["in_chans"], cfg["all_frames"], cfg["img_size"], cfg["img_size"]),
        dtype=jnp.float32,
    )

    fwd = jax.jit(lambda p, xx: vit_forward(p, xx, cfg))
    out = fwd(params, x)
    jax.block_until_ready(out)
    assert out.shape == (B, cfg["num_classes"])
    print("KERNEL_OK")
</pallas_src>

<mosaic_0001>
module attributes {stable_mosaic.version = 11 : i64} {
  func.func @_linear_kernel(%arg0: i32, %arg1: i32, %arg2: i32, %arg3: memref<72x384xf32, #tpu.memory_space<vmem>>, %arg4: memref<384x32xf32, #tpu.memory_space<vmem>>, %arg5: memref<1x32xf32, #tpu.memory_space<vmem>>, %arg6: memref<72x32xf32, #tpu.memory_space<vmem>>, %arg7: memref<72x32xf32, #tpu.memory_space<vmem>>) attributes {dimension_semantics = [#tpu.dimension_semantics<parallel>, #tpu.dimension_semantics<parallel>, #tpu.dimension_semantics<arbitrary>], iteration_bounds = array<i64: 1, 1, 2>, scalar_prefetch = 0 : i64, scratch_operands = 1 : i64, tpu.core_type = #tpu.core_type<tc>, window_params = [{transform_indices = @transform_0, window_bounds = array<i64: 72, 384>}, {transform_indices = @transform_1, window_bounds = array<i64: 384, 32>}, {transform_indices = @transform_2, window_bounds = array<i64: 1, 32>}, {transform_indices = @transform_3, window_bounds = array<i64: 72, 32>}]} {
    %c0_i32 = arith.constant 0 : i32
    %0 = arith.cmpi eq, %arg2, %c0_i32 : i32
    %1 = arith.extui %0 : i1 to i32
    %c0_i32_0 = arith.constant 0 : i32
    %2 = arith.cmpi ne, %1, %c0_i32_0 : i32
    scf.if %2 {
      %cst_9 = arith.constant 0.000000e+00 : f32
      %14 = vector.broadcast %cst_9 : f32 to vector<72x32xf32>
      %c0_10 = arith.constant 0 : index
      %c0_11 = arith.constant 0 : index
      %15 = vector.load %arg7[%c0_10, %c0_11] : memref<72x32xf32, #tpu.memory_space<vmem>>, vector<72x32xf32>
      tpu.vector_store %arg7[%c0_10, %c0_11], %14 {strides = array<i32>} : memref<72x32xf32, #tpu.memory_space<vmem>>, vector<72x32xf32>,
    } else {
    }
    %c0 = arith.constant 0 : index
    %c0_1 = arith.constant 0 : index
    %3 = vector.load %arg7[%c0, %c0_1] : memref<72x32xf32, #tpu.memory_space<vmem>>, vector<72x32xf32>
    %c0_2 = arith.constant 0 : index
    %c0_3 = arith.constant 0 : index
    %4 = vector.load %arg3[%c0_2, %c0_3] : memref<72x384xf32, #tpu.memory_space<vmem>>, vector<72x384xf32>
    %c0_4 = arith.constant 0 : index
    %c0_5 = arith.constant 0 : index
    %5 = vector.load %arg4[%c0_4, %c0_5] : memref<384x32xf32, #tpu.memory_space<vmem>>, vector<384x32xf32>
    %6 = arith.truncf %4 : vector<72x384xf32> to vector<72x384xbf16>
    %7 = arith.truncf %5 : vector<384x32xf32> to vector<384x32xbf16>
    %cst = arith.constant dense<0.000000e+00> : vector<72x32xf32>
    %8 = tpu.matmul %6, %7, %cst {dimension_numbers = #tpu.dot_dimension_numbers<[1], [0], [0], [1], [0, 0, 1, 1], [], []>} : vector<72x384xbf16>, vector<384x32xbf16>, vector<72x32xf32> -> vector<72x32xf32>
    %9 = arith.addf %3, %8 : vector<72x32xf32>
    %c0_6 = arith.constant 0 : index
    %c0_7 = arith.constant 0 : index
    %10 = vector.load %arg7[%c0_6, %c0_7] : memref<72x32xf32, #tpu.memory_space<vmem>>, vector<72x32xf32>
    tpu.vector_store %arg7[%c0_6, %c0_7], %9 {strides = array<i32>} : memref<72x32xf32, #tpu.memory_space<vmem>>, vector<72x32xf32>,
    %c1_i32 = arith.constant 1 : i32
    %11 = arith.cmpi eq, %arg2, %c1_i32 : i32
    %12 = arith.extui %11 : i1 to i32
    %c0_i32_8 = arith.constant 0 : i32
    %13 = arith.cmpi ne, %12, %c0_i32_8 : i32
    scf.if %13 {
      %c0_9 = arith.constant 0 : index
      %c0_10 = arith.constant 0 : index
      %14 = vector.load %arg7[%c0_9, %c0_10] : memref<72x32xf32, #tpu.memory_space<vmem>>, vector<72x32xf32>
      %c0_11 = arith.constant 0 : index
      %c0_12 = arith.constant 0 : index
      %15 = vector.load %arg5[%c0_11, %c0_12] : memref<1x32xf32, #tpu.memory_space<vmem>>, vector<1x32xf32>
      %16 = vector.broadcast %15 : vector<1x32xf32> to vector<72x32xf32>
      %17 = arith.addf %14, %16 : vector<72x32xf32>
      %c0_13 = arith.constant 0 : index
      %c0_14 = arith.constant 0 : index
      %18 = vector.load %arg6[%c0_13, %c0_14] : memref<72x32xf32, #tpu.memory_space<vmem>>, vector<72x32xf32>
      tpu.vector_store %arg6[%c0_13, %c0_14], %17 {strides = array<i32>} : memref<72x32xf32, #tpu.memory_space<vmem>>, vector<72x32xf32>,
    } else {
    }
    return
  }
  func.func @transform_0(%arg0: i32, %arg1: i32, %arg2: i32) -> (i32, i32) {
    %c0_i32 = arith.constant 0 : i32
    return %arg0, %arg2 : i32, i32
  }
  func.func @transform_1(%arg0: i32, %arg1: i32, %arg2: i32) -> (i32, i32) {
    %c0_i32 = arith.constant 0 : i32
    return %arg2, %arg1 : i32, i32
  }
  func.func @transform_2(%arg0: i32, %arg1: i32, %arg2: i32) -> (i32, i32) {
    %c0_i32 = arith.constant 0 : i32
    %c0_i32_0 = arith.constant 0 : i32
    return %c0_i32, %arg1 : i32, i32
  }
  func.func @transform_3(%arg0: i32, %arg1: i32, %arg2: i32) -> (i32, i32) {
    %c0_i32 = arith.constant 0 : i32
    return %arg0, %arg1 : i32, i32
  }
}

module attributes {stable_mosaic.version = 11 : i64} {
  func.func @_adapter_kernel(%arg0: i32, %arg1: memref<10x32xf32, #tpu.memory_space<vmem>>, %arg2: memref<1x32xf32, #tpu.memory_space<vmem>>, %arg3: memref<1x32xf32, #tpu.memory_space<vmem>>, %arg4: memref<32x8xf32, #tpu.memory_space<vmem>>, %arg5: memref<1x8xf32, #tpu.memory_space<vmem>>, %arg6: memref<8x32xf32, #tpu.memory_space<vmem>>, %arg7: memref<1x32xf32, #tpu.memory_space<vmem>>, %arg8: memref<10x32xf32, #tpu.memory_space<vmem>>) attributes {dimension_semantics = [#tpu.dimension_semantics<parallel>], iteration_bounds = array<i64: 1>, scalar_prefetch = 0 : i64, scratch_operands = 0 : i64, tpu.core_type = #tpu.core_type<tc>, window_params = [{transform_indices = @transform_0, window_bounds = array<i64: 10, 32>}, {pipeline_mode = #tpu.pipeline_mode<synchronous>, transform_indices = @transform_1, window_bounds = array<i64: 1, 32>}, {pipeline_mode = #tpu.pipeline_mode<synchronous>, transform_indices = @transform_2, window_bounds = array<i64: 1, 32>}, {pipeline_mode = #tpu.pipeline_mode<synchronous>, transform_indices = @transform_3, window_bounds = array<i64: 32, 8>}, {pipeline_mode = #tpu.pipeline_mode<synchronous>, transform_indices = @transform_4, window_bounds = array<i64: 1, 8>}, {pipeline_mode = #tpu.pipeline_mode<synchronous>, transform_indices = @transform_5, window_bounds = array<i64: 8, 32>}, {pipeline_mode = #tpu.pipeline_mode<synchronous>, transform_indices = @transform_6, window_bounds = array<i64: 1, 32>}, {transform_indices = @transform_7, window_bounds = array<i64: 10, 32>}]} {
    %c0 = arith.constant 0 : index
    %c0_0 = arith.constant 0 : index
    %0 = vector.load %arg1[%c0, %c0_0] : memref<10x32xf32, #tpu.memory_space<vmem>>, vector<10x32xf32>
    %c0_1 = arith.constant 0 : index
    %c0_2 = arith.constant 0 : index
    %1 = vector.load %arg2[%c0_1, %c0_2] : memref<1x32xf32, #tpu.memory_space<vmem>>, vector<1x32xf32>
    %c0_3 = arith.constant 0 : index
    %c0_4 = arith.constant 0 : index
    %2 = vector.load %arg3[%c0_3, %c0_4] : memref<1x32xf32, #tpu.memory_space<vmem>>, vector<1x32xf32>
    %cst = arith.constant dense<0.000000e+00> : vector<10xf32>
    %3 = vector.multi_reduction <add>, %0, %cst [1] : vector<10x32xf32> to vector<10xf32>
    %4 = vector.shape_cast %3 : vector<10xf32> to vector<10x1xf32>
    %cst_5 = arith.constant 3.200000e+01 : f32
    %5 = vector.broadcast %cst_5 : f32 to vector<10x1xf32>
    %6 = arith.divf %4, %5 : vector<10x1xf32>
    %7 = vector.broadcast %6 : vector<10x1xf32> to vector<10x32xf32>
    %8 = arith.subf %0, %7 : vector<10x32xf32>
    %9 = arith.mulf %8, %8 : vector<10x32xf32>
    %cst_6 = arith.constant dense<0.000000e+00> : vector<10xf32>
    %10 = vector.multi_reduction <add>, %9, %cst_6 [1] : vector<10x32xf32> to vector<10xf32>
    %11 = vector.shape_cast %10 : vector<10xf32> to vector<10x1xf32>
    %cst_7 = arith.constant 3.200000e+01 : f32
    %12 = vector.broadcast %cst_7 : f32 to vector<10x1xf32>
    %13 = arith.divf %11, %12 : vector<10x1xf32>
    %14 = vector.broadcast %6 : vector<10x1xf32> to vector<10x32xf32>
    %15 = arith.subf %0, %14 : vector<10x32xf32>
    %cst_8 = arith.constant 9.99999974E-6 : f32
    %16 = vector.broadcast %cst_8 : f32 to vector<10x1xf32>
    %17 = arith.addf %13, %16 : vector<10x1xf32>
    %18 = math.rsqrt %17 : vector<10x1xf32>
    %19 = vector.broadcast %18 : vector<10x1xf32> to vector<10x32xf32>
    %20 = arith.mulf %15, %19 : vector<10x32xf32>
    %21 = vector.broadcast %1 : vector<1x32xf32> to vector<10x32xf32>
    %22 = arith.mulf %20, %21 : vector<10x32xf32>
    %23 = vector.broadcast %2 : vector<1x32xf32> to vector<10x32xf32>
    %24 = arith.addf %22, %23 : vector<10x32xf32>
    %c0_9 = arith.constant 0 : index
    %c0_10 = arith.constant 0 : index
    %25 = vector.load %arg4[%c0_9, %c0_10] : memref<32x8xf32, #tpu.memory_space<vmem>>, vector<32x8xf32>
    %26 = arith.truncf %24 : vector<10x32xf32> to vector<10x32xbf16>
    %27 = arith.truncf %25 : vector<32x8xf32> to vector<32x8xbf16>
    %cst_11 = arith.constant dense<0.000000e+00> : vector<10x8xf32>
    %28 = tpu.matmul %26, %27, %cst_11 {dimension_numbers = #tpu.dot_dimension_numbers<[1], [0], [0], [1], [0, 0, 1, 1], [], []>} : vector<10x32xbf16>, vector<32x8xbf16>, vector<10x8xf32> -> vector<10x8xf32>
    %c0_12 = arith.constant 0 : index
    %c0_13 = arith.constant 0 : index
    %29 = vector.load %arg5[%c0_12, %c0_13] : memref<1x8xf32, #tpu.memory_space<vmem>>, vector<1x8xf32>
    %30 = vector.broadcast %29 : vector<1x8xf32> to vector<10x8xf32>
    %31 = arith.addf %28, %30 : vector<10x8xf32>
    %cst_14 = arith.constant 5.000000e-01 : f32
    %32 = vector.broadcast %cst_14 : f32 to vector<10x8xf32>
    %33 = arith.mulf %32, %31 : vector<10x8xf32>
    %cst_15 = arith.constant 0.707106769 : f32
    %34 = vector.broadcast %cst_15 : f32 to vector<10x8xf32>
    %35 = arith.mulf %31, %34 : vector<10x8xf32>
    %36 = math.erf %35 : vector<10x8xf32>
    %cst_16 = arith.constant 1.000000e+00 : f32
    %37 = vector.broadcast %cst_16 : f32 to vector<10x8xf32>
    %38 = arith.addf %37, %36 : vector<10x8xf32>
    %39 = arith.mulf %33, %38 : vector<10x8xf32>
    %c0_17 = arith.constant 0 : index
    %c0_18 = arith.constant 0 : index
    %40 = vector.load %arg6[%c0_17, %c0_18] : memref<8x32xf32, #tpu.memory_space<vmem>>, vector<8x32xf32>
    %41 = arith.truncf %39 : vector<10x8xf32> to vector<10x8xbf16>
    %42 = arith.truncf %40 : vector<8x32xf32> to vector<8x32xbf16>
    %cst_19 = arith.constant dense<0.000000e+00> : vector<10x32xf32>
    %43 = tpu.matmul %41, %42, %cst_19 {dimension_numbers = #tpu.dot_dimension_numbers<[1], [0], [0], [1], [0, 0, 1, 1], [], []>} : vector<10x8xbf16>, vector<8x32xbf16>, vector<10x32xf32> -> vector<10x32xf32>
    %c0_20 = arith.constant 0 : index
    %c0_21 = arith.constant 0 : index
    %44 = vector.load %arg7[%c0_20, %c0_21] : memref<1x32xf32, #tpu.memory_space<vmem>>, vector<1x32xf32>
    %45 = vector.broadcast %44 : vector<1x32xf32> to vector<10x32xf32>
    %46 = arith.addf %43, %45 : vector<10x32xf32>
    %c0_22 = arith.constant 0 : index
    %c0_23 = arith.constant 0 : index
    %47 = vector.load %arg8[%c0_22, %c0_23] : memref<10x32xf32, #tpu.memory_space<vmem>>, vector<10x32xf32>
    tpu.vector_store %arg8[%c0_22, %c0_23], %46 {strides = array<i32>} : memref<10x32xf32, #tpu.memory_space<vmem>>, vector<10x32xf32>,
    return
  }
  func.func @transform_0(%arg0: i32) -> (i32, i32) {
    %c0_i32 = arith.constant 0 : i32
    %c0_i32_0 = arith.constant 0 : i32
    return %arg0, %c0_i32 : i32, i32
  }
  func.func @transform_1(%arg0: i32) -> (i32, i32) {
    %c0_i32 = arith.constant 0 : i32
    %c0_i32_0 = arith.constant 0 : i32
    %c0_i32_1 = arith.constant 0 : i32
    return %c0_i32, %c0_i32_0 : i32, i32
  }
  func.func @transform_2(%arg0: i32) -> (i32, i32) {
    %c0_i32 = arith.constant 0 : i32
    %c0_i32_0 = arith.constant 0 : i32
    %c0_i32_1 = arith.constant 0 : i32
    return %c0_i32, %c0_i32_0 : i32, i32
  }
  func.func @transform_3(%arg0: i32) -> (i32, i32) {
    %c0_i32 = arith.constant 0 : i32
    %c0_i32_0 = arith.constant 0 : i32
    %c0_i32_1 = arith.constant 0 : i32
    return %c0_i32, %c0_i32_0 : i32, i32
  }
  func.func @transform_4(%arg0: i32) -> (i32, i32) {
    %c0_i32 = arith.constant 0 : i32
    %c0_i32_0 = arith.constant 0 : i32
    %c0_i32_1 = arith.constant 0 : i32
    return %c0_i32, %c0_i32_0 : i32, i32
  }
  func.func @transform_5(%arg0: i32) -> (i32, i32) {
    %c0_i32 = arith.constant 0 : i32
    %c0_i32_0 = arith.constant 0 : i32
    %c0_i32_1 = arith.constant 0 : i32
    return %c0_i32, %c0_i32_0 : i32, i32
  }
  func.func @transform_6(%arg0: i32) -> (i32, i32) {
    %c0_i32 = arith.constant 0 : i32
    %c0_i32_0 = arith.constant 0 : i32
    %c0_i32_1 = arith.constant 0 : i32
    return %c0_i32, %c0_i32_0 : i32, i32
  }
  func.func @transform_7(%arg0: i32) -> (i32, i32) {
    %c0_i32 = arith.constant 0 : i32
    %c0_i32_0 = arith.constant 0 : i32
    return %arg0, %c0_i32 : i32, i32
  }
}

module attributes {stable_mosaic.version = 11 : i64} {
  func.func @_linear_kernel(%arg0: i32, %arg1: i32, %arg2: i32, %arg3: memref<10x32xf32, #tpu.memory_space<vmem>>, %arg4: memref<32x96xf32, #tpu.memory_space<vmem>>, %arg5: memref<1x96xf32, #tpu.memory_space<vmem>>, %arg6: memref<10x96xf32, #tpu.memory_space<vmem>>, %arg7: memref<10x96xf32, #tpu.memory_space<vmem>>) attributes {dimension_semantics = [#tpu.dimension_semantics<parallel>, #tpu.dimension_semantics<parallel>, #tpu.dimension_semantics<arbitrary>], iteration_bounds = array<i64: 1, 1, 1>, scalar_prefetch = 0 : i64, scratch_operands = 1 : i64, tpu.core_type = #tpu.core_type<tc>, window_params = [{transform_indices = @transform_0, window_bounds = array<i64: 10, 32>}, {transform_indices = @transform_1, window_bounds = array<i64: 32, 96>}, {transform_indices = @transform_2, window_bounds = array<i64: 1, 96>}, {transform_indices = @transform_3, window_bounds = array<i64: 10, 96>}]} {
    %c0_i32 = arith.constant 0 : i32
    %0 = arith.cmpi eq, %arg2, %c0_i32 : i32
    %1 = arith.extui %0 : i1 to i32
    %c0_i32_0 = arith.constant 0 : i32
    %2 = arith.cmpi ne, %1, %c0_i32_0 : i32
    scf.if %2 {
      %cst_10 = arith.constant 0.000000e+00 : f32
      %14 = vector.broadcast %cst_10 : f32 to vector<10x96xf32>
      %c0_11 = arith.constant 0 : index
      %c0_12 = arith.constant 0 : index
      %15 = vector.load %arg7[%c0_11, %c0_12] : memref<10x96xf32, #tpu.memory_space<vmem>>, vector<10x96xf32>
      tpu.vector_store %arg7[%c0_11, %c0_12], %14 {strides = array<i32>} : memref<10x96xf32, #tpu.memory_space<vmem>>, vector<10x96xf32>,
    } else {
    }
    %c0 = arith.constant 0 : index
    %c0_1 = arith.constant 0 : index
    %3 = vector.load %arg7[%c0, %c0_1] : memref<10x96xf32, #tpu.memory_space<vmem>>, vector<10x96xf32>
    %c0_2 = arith.constant 0 : index
    %c0_3 = arith.constant 0 : index
    %4 = vector.load %arg3[%c0_2, %c0_3] : memref<10x32xf32, #tpu.memory_space<vmem>>, vector<10x32xf32>
    %c0_4 = arith.constant 0 : index
    %c0_5 = arith.constant 0 : index
    %5 = vector.load %arg4[%c0_4, %c0_5] : memref<32x96xf32, #tpu.memory_space<vmem>>, vector<32x96xf32>
    %6 = arith.truncf %4 : vector<10x32xf32> to vector<10x32xbf16>
    %7 = arith.truncf %5 : vector<32x96xf32> to vector<32x96xbf16>
    %cst = arith.constant dense<0.000000e+00> : vector<10x96xf32>
    %8 = tpu.matmul %6, %7, %cst {dimension_numbers = #tpu.dot_dimension_numbers<[1], [0], [0], [1], [0, 0, 1, 1], [], []>} : vector<10x32xbf16>, vector<32x96xbf16>, vector<10x96xf32> -> vector<10x96xf32>
    %9 = arith.addf %3, %8 : vector<10x96xf32>
    %c0_6 = arith.constant 0 : index
    %c0_7 = arith.constant 0 : index
    %10 = vector.load %arg7[%c0_6, %c0_7] : memref<10x96xf32, #tpu.memory_space<vmem>>, vector<10x96xf32>
    tpu.vector_store %arg7[%c0_6, %c0_7], %9 {strides = array<i32>} : memref<10x96xf32, #tpu.memory_space<vmem>>, vector<10x96xf32>,
    %c0_i32_8 = arith.constant 0 : i32
    %11 = arith.cmpi eq, %arg2, %c0_i32_8 : i32
    %12 = arith.extui %11 : i1 to i32
    %c0_i32_9 = arith.constant 0 : i32
    %13 = arith.cmpi ne, %12, %c0_i32_9 : i32
    scf.if %13 {
      %c0_10 = arith.constant 0 : index
      %c0_11 = arith.constant 0 : index
      %14 = vector.load %arg7[%c0_10, %c0_11] : memref<10x96xf32, #tpu.memory_space<vmem>>, vector<10x96xf32>
      %c0_12 = arith.constant 0 : index
      %c0_13 = arith.constant 0 : index
      %15 = vector.load %arg5[%c0_12, %c0_13] : memref<1x96xf32, #tpu.memory_space<vmem>>, vector<1x96xf32>
      %16 = vector.broadcast %15 : vector<1x96xf32> to vector<10x96xf32>
      %17 = arith.addf %14, %16 : vector<10x96xf32>
      %c0_14 = arith.constant 0 : index
      %c0_15 = arith.constant 0 : index
      %18 = vector.load %arg6[%c0_14, %c0_15] : memref<10x96xf32, #tpu.memory_space<vmem>>, vector<10x96xf32>
      tpu.vector_store %arg6[%c0_14, %c0_15], %17 {strides = array<i32>} : memref<10x96xf32, #tpu.memory_space<vmem>>, vector<10x96xf32>,
    } else {
    }
    return
  }
  func.func @transform_0(%arg0: i32, %arg1: i32, %arg2: i32) -> (i32, i32) {
    %c0_i32 = arith.constant 0 : i32
    return %arg0, %arg2 : i32, i32
  }
  func.func @transform_1(%arg0: i32, %arg1: i32, %arg2: i32) -> (i32, i32) {
    %c0_i32 = arith.constant 0 : i32
    return %arg2, %arg1 : i32, i32
  }
  func.func @transform_2(%arg0: i32, %arg1: i32, %arg2: i32) -> (i32, i32) {
    %c0_i32 = arith.constant 0 : i32
    %c0_i32_0 = arith.constant 0 : i32
    return %c0_i32, %arg1 : i32, i32
  }
  func.func @transform_3(%arg0: i32, %arg1: i32, %arg2: i32) -> (i32, i32) {
    %c0_i32 = arith.constant 0 : i32
    return %arg0, %arg1 : i32, i32
  }
}

module attributes {stable_mosaic.version = 11 : i64} {
  func.func @_linear_kernel(%arg0: i32, %arg1: i32, %arg2: i32, %arg3: memref<10x32xf32, #tpu.memory_space<vmem>>, %arg4: memref<32x32xf32, #tpu.memory_space<vmem>>, %arg5: memref<1x32xf32, #tpu.memory_space<vmem>>, %arg6: memref<10x32xf32, #tpu.memory_space<vmem>>, %arg7: memref<10x32xf32, #tpu.memory_space<vmem>>) attributes {dimension_semantics = [#tpu.dimension_semantics<parallel>, #tpu.dimension_semantics<parallel>, #tpu.dimension_semantics<arbitrary>], iteration_bounds = array<i64: 1, 1, 1>, scalar_prefetch = 0 : i64, scratch_operands = 1 : i64, tpu.core_type = #tpu.core_type<tc>, window_params = [{transform_indices = @transform_0, window_bounds = array<i64: 10, 32>}, {transform_indices = @transform_1, window_bounds = array<i64: 32, 32>}, {transform_indices = @transform_2, window_bounds = array<i64: 1, 32>}, {transform_indices = @transform_3, window_bounds = array<i64: 10, 32>}]} {
    %c0_i32 = arith.constant 0 : i32
    %0 = arith.cmpi eq, %arg2, %c0_i32 : i32
    %1 = arith.extui %0 : i1 to i32
    %c0_i32_0 = arith.constant 0 : i32
    %2 = arith.cmpi ne, %1, %c0_i32_0 : i32
    scf.if %2 {
      %cst_10 = arith.constant 0.000000e+00 : f32
      %14 = vector.broadcast %cst_10 : f32 to vector<10x32xf32>
      %c0_11 = arith.constant 0 : index
      %c0_12 = arith.constant 0 : index
      %15 = vector.load %arg7[%c0_11, %c0_12] : memref<10x32xf32, #tpu.memory_space<vmem>>, vector<10x32xf32>
      tpu.vector_store %arg7[%c0_11, %c0_12], %14 {strides = array<i32>} : memref<10x32xf32, #tpu.memory_space<vmem>>, vector<10x32xf32>,
    } else {
    }
    %c0 = arith.constant 0 : index
    %c0_1 = arith.constant 0 : index
    %3 = vector.load %arg7[%c0, %c0_1] : memref<10x32xf32, #tpu.memory_space<vmem>>, vector<10x32xf32>
    %c0_2 = arith.constant 0 : index
    %c0_3 = arith.constant 0 : index
    %4 = vector.load %arg3[%c0_2, %c0_3] : memref<10x32xf32, #tpu.memory_space<vmem>>, vector<10x32xf32>
    %c0_4 = arith.constant 0 : index
    %c0_5 = arith.constant 0 : index
    %5 = vector.load %arg4[%c0_4, %c0_5] : memref<32x32xf32, #tpu.memory_space<vmem>>, vector<32x32xf32>
    %6 = arith.truncf %4 : vector<10x32xf32> to vector<10x32xbf16>
    %7 = arith.truncf %5 : vector<32x32xf32> to vector<32x32xbf16>
    %cst = arith.constant dense<0.000000e+00> : vector<10x32xf32>
    %8 = tpu.matmul %6, %7, %cst {dimension_numbers = #tpu.dot_dimension_numbers<[1], [0], [0], [1], [0, 0, 1, 1], [], []>} : vector<10x32xbf16>, vector<32x32xbf16>, vector<10x32xf32> -> vector<10x32xf32>
    %9 = arith.addf %3, %8 : vector<10x32xf32>
    %c0_6 = arith.constant 0 : index
    %c0_7 = arith.constant 0 : index
    %10 = vector.load %arg7[%c0_6, %c0_7] : memref<10x32xf32, #tpu.memory_space<vmem>>, vector<10x32xf32>
    tpu.vector_store %arg7[%c0_6, %c0_7], %9 {strides = array<i32>} : memref<10x32xf32, #tpu.memory_space<vmem>>, vector<10x32xf32>,
    %c0_i32_8 = arith.constant 0 : i32
    %11 = arith.cmpi eq, %arg2, %c0_i32_8 : i32
    %12 = arith.extui %11 : i1 to i32
    %c0_i32_9 = arith.constant 0 : i32
    %13 = arith.cmpi ne, %12, %c0_i32_9 : i32
    scf.if %13 {
      %c0_10 = arith.constant 0 : index
      %c0_11 = arith.constant 0 : index
      %14 = vector.load %arg7[%c0_10, %c0_11] : memref<10x32xf32, #tpu.memory_space<vmem>>, vector<10x32xf32>
      %c0_12 = arith.constant 0 : index
      %c0_13 = arith.constant 0 : index
      %15 = vector.load %arg5[%c0_12, %c0_13] : memref<1x32xf32, #tpu.memory_space<vmem>>, vector<1x32xf32>
      %16 = vector.broadcast %15 : vector<1x32xf32> to vector<10x32xf32>
      %17 = arith.addf %14, %16 : vector<10x32xf32>
      %c0_14 = arith.constant 0 : index
      %c0_15 = arith.constant 0 : index
      %18 = vector.load %arg6[%c0_14, %c0_15] : memref<10x32xf32, #tpu.memory_space<vmem>>, vector<10x32xf32>
      tpu.vector_store %arg6[%c0_14, %c0_15], %17 {strides = array<i32>} : memref<10x32xf32, #tpu.memory_space<vmem>>, vector<10x32xf32>,
    } else {
    }
    return
  }
  func.func @transform_0(%arg0: i32, %arg1: i32, %arg2: i32) -> (i32, i32) {
    %c0_i32 = arith.constant 0 : i32
    return %arg0, %arg2 : i32, i32
  }
  func.func @transform_1(%arg0: i32, %arg1: i32, %arg2: i32) -> (i32, i32) {
    %c0_i32 = arith.constant 0 : i32
    return %arg2, %arg1 : i32, i32
  }
  func.func @transform_2(%arg0: i32, %arg1: i32, %arg2: i32) -> (i32, i32) {
    %c0_i32 = arith.constant 0 : i32
    %c0_i32_0 = arith.constant 0 : i32
    return %c0_i32, %arg1 : i32, i32
  }
  func.func @transform_3(%arg0: i32, %arg1: i32, %arg2: i32) -> (i32, i32) {
    %c0_i32 = arith.constant 0 : i32
    return %arg0, %arg1 : i32, i32
  }
}

module attributes {stable_mosaic.version = 11 : i64} {
  func.func @_attn_kernel(%arg0: i32, %arg1: memref<2x5x96xf32, #tpu.memory_space<vmem>>, %arg2: memref<2x5x32xf32, #tpu.memory_space<vmem>>) attributes {dimension_semantics = [#tpu.dimension_semantics<parallel>], iteration_bounds = array<i64: 1>, scalar_prefetch = 0 : i64, scratch_operands = 0 : i64, tpu.core_type = #tpu.core_type<tc>, window_params = [{transform_indices = @transform_0, window_bounds = array<i64: 2, 5, 96>}, {transform_indices = @transform_1, window_bounds = array<i64: 2, 5, 32>}]} {
    %c0 = arith.constant 0 : index
    %c0_0 = arith.constant 0 : index
    %c0_1 = arith.constant 0 : index
    %0 = vector.load %arg1[%c0, %c0_0, %c0_1] : memref<2x5x96xf32, #tpu.memory_space<vmem>>, vector<2x5x96xf32>
    %1 = vector.extract_strided_slice %0 {offsets = [0, 0, 0], sizes = [2, 5, 8], strides = [1, 1, 1]} : vector<2x5x96xf32> to vector<2x5x8xf32>
    %2 = arith.truncf %1 : vector<2x5x8xf32> to vector<2x5x8xbf16>
    %3 = vector.extract_strided_slice %0 {offsets = [0, 0, 32], sizes = [2, 5, 8], strides = [1, 1, 1]} : vector<2x5x96xf32> to vector<2x5x8xf32>
    %4 = arith.truncf %3 : vector<2x5x8xf32> to vector<2x5x8xbf16>
    %5 = vector.extract_strided_slice %0 {offsets = [0, 0, 64], sizes = [2, 5, 8], strides = [1, 1, 1]} : vector<2x5x96xf32> to vector<2x5x8xf32>
    %6 = arith.truncf %5 : vector<2x5x8xf32> to vector<2x5x8xbf16>
    %cst = arith.constant dense<0.000000e+00> : vector<2x5x5xf32>
    %7 = tpu.matmul %2, %4, %cst {dimension_numbers = #tpu.dot_dimension_numbers<[2], [2], [1], [1], [0, 0, 0, 1, 1, 1], [0], [0]>} : vector<2x5x8xbf16>, vector<2x5x8xbf16>, vector<2x5x5xf32> -> vector<2x5x5xf32>
    %cst_2 = arith.constant 0.353553385 : f32
    %8 = vector.broadcast %cst_2 : f32 to vector<2x5x5xf32>
    %9 = arith.mulf %7, %8 : vector<2x5x5xf32>
    %cst_3 = arith.constant dense<0xFF800000> : vector<2x5xf32>
    %10 = vector.multi_reduction <maximumf>, %9, %cst_3 [2] : vector<2x5x5xf32> to vector<2x5xf32>
    %11 = vector.shape_cast %10 : vector<2x5xf32> to vector<2x5x1xf32>
    %12 = vector.broadcast %11 : vector<2x5x1xf32> to vector<2x5x5xf32>
    %13 = arith.subf %9, %12 : vector<2x5x5xf32>
    %14 = math.exp %13 : vector<2x5x5xf32>
    %cst_4 = arith.constant dense<0.000000e+00> : vector<2x5xf32>
    %15 = vector.multi_reduction <add>, %14, %cst_4 [2] : vector<2x5x5xf32> to vector<2x5xf32>
    %16 = vector.shape_cast %15 : vector<2x5xf32> to vector<2x5x1xf32>
    %17 = tpu.reciprocal %16 {approx = true} : vector<2x5x1xf32> -> vector<2x5x1xf32>
    %18 = vector.broadcast %17 : vector<2x5x1xf32> to vector<2x5x5xf32>
    %19 = arith.mulf %14, %18 : vector<2x5x5xf32>
    %20 = arith.truncf %19 : vector<2x5x5xf32> to vector<2x5x5xbf16>
    %cst_5 = arith.constant dense<0.000000e+00> : vector<2x5x8xf32>
    %21 = tpu.matmul %20, %6, %cst_5 {dimension_numbers = #tpu.dot_dimension_numbers<[2], [1], [1], [2], [0, 0, 0, 1, 1, 2], [0], [0]>} : vector<2x5x5xbf16>, vector<2x5x8xbf16>, vector<2x5x8xf32> -> vector<2x5x8xf32>
    %22 = vector.extract_strided_slice %0 {offsets = [0, 0, 8], sizes = [2, 5, 8], strides = [1, 1, 1]} : vector<2x5x96xf32> to vector<2x5x8xf32>
    %23 = arith.truncf %22 : vector<2x5x8xf32> to vector<2x5x8xbf16>
    %24 = vector.extract_strided_slice %0 {offsets = [0, 0, 40], sizes = [2, 5, 8], strides = [1, 1, 1]} : vector<2x5x96xf32> to vector<2x5x8xf32>
    %25 = arith.truncf %24 : vector<2x5x8xf32> to vector<2x5x8xbf16>
    %26 = vector.extract_strided_slice %0 {offsets = [0, 0, 72], sizes = [2, 5, 8], strides = [1, 1, 1]} : vector<2x5x96xf32> to vector<2x5x8xf32>
    %27 = arith.truncf %26 : vector<2x5x8xf32> to vector<2x5x8xbf16>
    %cst_6 = arith.constant dense<0.000000e+00> : vector<2x5x5xf32>
    %28 = tpu.matmul %23, %25, %cst_6 {dimension_numbers = #tpu.dot_dimension_numbers<[2], [2], [1], [1], [0, 0, 0, 1, 1, 1], [0], [0]>} : vector<2x5x8xbf16>, vector<2x5x8xbf16>, vector<2x5x5xf32> -> vector<2x5x5xf32>
    %cst_7 = arith.constant 0.353553385 : f32
    %29 = vector.broadcast %cst_7 : f32 to vector<2x5x5xf32>
    %30 = arith.mulf %28, %29 : vector<2x5x5xf32>
    %cst_8 = arith.constant dense<0xFF800000> : vector<2x5xf32>
    %31 = vector.multi_reduction <maximumf>, %30, %cst_8 [2] : vector<2x5x5xf32> to vector<2x5xf32>
    %32 = vector.shape_cast %31 : vector<2x5xf32> to vector<2x5x1xf32>
    %33 = vector.broadcast %32 : vector<2x5x1xf32> to vector<2x5x5xf32>
    %34 = arith.subf %30, %33 : vector<2x5x5xf32>
    %35 = math.exp %34 : vector<2x5x5xf32>
    %cst_9 = arith.constant dense<0.000000e+00> : vector<2x5xf32>
    %36 = vector.multi_reduction <add>, %35, %cst_9 [2] : vector<2x5x5xf32> to vector<2x5xf32>
    %37 = vector.shape_cast %36 : vector<2x5xf32> to vector<2x5x1xf32>
    %38 = tpu.reciprocal %37 {approx = true} : vector<2x5x1xf32> -> vector<2x5x1xf32>
    %39 = vector.broadcast %38 : vector<2x5x1xf32> to vector<2x5x5xf32>
    %40 = arith.mulf %35, %39 : vector<2x5x5xf32>
    %41 = arith.truncf %40 : vector<2x5x5xf32> to vector<2x5x5xbf16>
    %cst_10 = arith.constant dense<0.000000e+00> : vector<2x5x8xf32>
    %42 = tpu.matmul %41, %27, %cst_10 {dimension_numbers = #tpu.dot_dimension_numbers<[2], [1], [1], [2], [0, 0, 0, 1, 1, 2], [0], [0]>} : vector<2x5x5xbf16>, vector<2x5x8xbf16>, vector<2x5x8xf32> -> vector<2x5x8xf32>
    %43 = vector.extract_strided_slice %0 {offsets = [0, 0, 16], sizes = [2, 5, 8], strides = [1, 1, 1]} : vector<2x5x96xf32> to vector<2x5x8xf32>
    %44 = arith.truncf %43 : vector<2x5x8xf32> to vector<2x5x8xbf16>
    %45 = vector.extract_strided_slice %0 {offsets = [0, 0, 48], sizes = [2, 5, 8], strides = [1, 1, 1]} : vector<2x5x96xf32> to vector<2x5x8xf32>
    %46 = arith.truncf %45 : vector<2x5x8xf32> to vector<2x5x8xbf16>
    %47 = vector.extract_strided_slice %0 {offsets = [0, 0, 80], sizes = [2, 5, 8], strides = [1, 1, 1]} : vector<2x5x96xf32> to vector<2x5x8xf32>
    %48 = arith.truncf %47 : vector<2x5x8xf32> to vector<2x5x8xbf16>
    %cst_11 = arith.constant dense<0.000000e+00> : vector<2x5x5xf32>
    %49 = tpu.matmul %44, %46, %cst_11 {dimension_numbers = #tpu.dot_dimension_numbers<[2], [2], [1], [1], [0, 0, 0, 1, 1, 1], [0], [0]>} : vector<2x5x8xbf16>, vector<2x5x8xbf16>, vector<2x5x5xf32> -> vector<2x5x5xf32>
    %cst_12 = arith.constant 0.353553385 : f32
    %50 = vector.broadcast %cst_12 : f32 to vector<2x5x5xf32>
    %51 = arith.mulf %49, %50 : vector<2x5x5xf32>
    %cst_13 = arith.constant dense<0xFF800000> : vector<2x5xf32>
    %52 = vector.multi_reduction <maximumf>, %51, %cst_13 [2] : vector<2x5x5xf32> to vector<2x5xf32>
    %53 = vector.shape_cast %52 : vector<2x5xf32> to vector<2x5x1xf32>
    %54 = vector.broadcast %53 : vector<2x5x1xf32> to vector<2x5x5xf32>
    %55 = arith.subf %51, %54 : vector<2x5x5xf32>
    %56 = math.exp %55 : vector<2x5x5xf32>
    %cst_14 = arith.constant dense<0.000000e+00> : vector<2x5xf32>
    %57 = vector.multi_reduction <add>, %56, %cst_14 [2] : vector<2x5x5xf32> to vector<2x5xf32>
    %58 = vector.shape_cast %57 : vector<2x5xf32> to vector<2x5x1xf32>
    %59 = tpu.reciprocal %58 {approx = true} : vector<2x5x1xf32> -> vector<2x5x1xf32>
    %60 = vector.broadcast %59 : vector<2x5x1xf32> to vector<2x5x5xf32>
    %61 = arith.mulf %56, %60 : vector<2x5x5xf32>
    %62 = arith.truncf %61 : vector<2x5x5xf32> to vector<2x5x5xbf16>
    %cst_15 = arith.constant dense<0.000000e+00> : vector<2x5x8xf32>
    %63 = tpu.matmul %62, %48, %cst_15 {dimension_numbers = #tpu.dot_dimension_numbers<[2], [1], [1], [2], [0, 0, 0, 1, 1, 2], [0], [0]>} : vector<2x5x5xbf16>, vector<2x5x8xbf16>, vector<2x5x8xf32> -> vector<2x5x8xf32>
    %64 = vector.extract_strided_slice %0 {offsets = [0, 0, 24], sizes = [2, 5, 8], strides = [1, 1, 1]} : vector<2x5x96xf32> to vector<2x5x8xf32>
    %65 = arith.truncf %64 : vector<2x5x8xf32> to vector<2x5x8xbf16>
    %66 = vector.extract_strided_slice %0 {offsets = [0, 0, 56], sizes = [2, 5, 8], strides = [1, 1, 1]} : vector<2x5x96xf32> to vector<2x5x8xf32>
    %67 = arith.truncf %66 : vector<2x5x8xf32> to vector<2x5x8xbf16>
    %68 = vector.extract_strided_slice %0 {offsets = [0, 0, 88], sizes = [2, 5, 8], strides = [1, 1, 1]} : vector<2x5x96xf32> to vector<2x5x8xf32>
    %69 = arith.truncf %68 : vector<2x5x8xf32> to vector<2x5x8xbf16>
    %cst_16 = arith.constant dense<0.000000e+00> : vector<2x5x5xf32>
    %70 = tpu.matmul %65, %67, %cst_16 {dimension_numbers = #tpu.dot_dimension_numbers<[2], [2], [1], [1], [0, 0, 0, 1, 1, 1], [0], [0]>} : vector<2x5x8xbf16>, vector<2x5x8xbf16>, vector<2x5x5xf32> -> vector<2x5x5xf32>
    %cst_17 = arith.constant 0.353553385 : f32
    %71 = vector.broadcast %cst_17 : f32 to vector<2x5x5xf32>
    %72 = arith.mulf %70, %71 : vector<2x5x5xf32>
    %cst_18 = arith.constant dense<0xFF800000> : vector<2x5xf32>
    %73 = vector.multi_reduction <maximumf>, %72, %cst_18 [2] : vector<2x5x5xf32> to vector<2x5xf32>
    %74 = vector.shape_cast %73 : vector<2x5xf32> to vector<2x5x1xf32>
    %75 = vector.broadcast %74 : vector<2x5x1xf32> to vector<2x5x5xf32>
    %76 = arith.subf %72, %75 : vector<2x5x5xf32>
    %77 = math.exp %76 : vector<2x5x5xf32>
    %cst_19 = arith.constant dense<0.000000e+00> : vector<2x5xf32>
    %78 = vector.multi_reduction <add>, %77, %cst_19 [2] : vector<2x5x5xf32> to vector<2x5xf32>
    %79 = vector.shape_cast %78 : vector<2x5xf32> to vector<2x5x1xf32>
    %80 = tpu.reciprocal %79 {approx = true} : vector<2x5x1xf32> -> vector<2x5x1xf32>
    %81 = vector.broadcast %80 : vector<2x5x1xf32> to vector<2x5x5xf32>
    %82 = arith.mulf %77, %81 : vector<2x5x5xf32>
    %83 = arith.truncf %82 : vector<2x5x5xf32> to vector<2x5x5xbf16>
    %cst_20 = arith.constant dense<0.000000e+00> : vector<2x5x8xf32>
    %84 = tpu.matmul %83, %69, %cst_20 {dimension_numbers = #tpu.dot_dimension_numbers<[2], [1], [1], [2], [0, 0, 0, 1, 1, 2], [0], [0]>} : vector<2x5x5xbf16>, vector<2x5x8xbf16>, vector<2x5x8xf32> -> vector<2x5x8xf32>
    %85 = tpu.concatenate %21, %42, %63, %84 in 2 : vector<2x5x8xf32>, vector<2x5x8xf32>, vector<2x5x8xf32>, vector<2x5x8xf32> -> vector<2x5x32xf32>
    %c0_21 = arith.constant 0 : index
    %c0_22 = arith.constant 0 : index
    %c0_23 = arith.constant 0 : index
    %86 = vector.load %arg2[%c0_21, %c0_22, %c0_23] : memref<2x5x32xf32, #tpu.memory_space<vmem>>, vector<2x5x32xf32>
    tpu.vector_store %arg2[%c0_21, %c0_22, %c0_23], %85 {strides = array<i32>} : memref<2x5x32xf32, #tpu.memory_space<vmem>>, vector<2x5x32xf32>,
    return
  }
  func.func @transform_0(%arg0: i32) -> (i32, i32, i32) {
    %c0_i32 = arith.constant 0 : i32
    %c0_i32_0 = arith.constant 0 : i32
    %c0_i32_1 = arith.constant 0 : i32
    return %arg0, %c0_i32, %c0_i32_0 : i32, i32, i32
  }
  func.func @transform_1(%arg0: i32) -> (i32, i32, i32) {
    %c0_i32 = arith.constant 0 : i32
    %c0_i32_0 = arith.constant 0 : i32
    %c0_i32_1 = arith.constant 0 : i32
    return %arg0, %c0_i32, %c0_i32_0 : i32, i32, i32
  }
}

module attributes {stable_mosaic.version = 11 : i64} {
  func.func @_mlp_kernel(%arg0: i32, %arg1: i32, %arg2: memref<10x32xf32, #tpu.memory_space<vmem>>, %arg3: memref<1x32xf32, #tpu.memory_space<vmem>>, %arg4: memref<1x32xf32, #tpu.memory_space<vmem>>, %arg5: memref<32x128xf32, #tpu.memory_space<vmem>>, %arg6: memref<1x128xf32, #tpu.memory_space<vmem>>, %arg7: memref<128x32xf32, #tpu.memory_space<vmem>>, %arg8: memref<1x32xf32, #tpu.memory_space<vmem>>, %arg9: memref<10x32xf32, #tpu.memory_space<vmem>>, %arg10: memref<10x32xf32, #tpu.memory_space<vmem>>) attributes {dimension_semantics = [#tpu.dimension_semantics<parallel>, #tpu.dimension_semantics<arbitrary>], iteration_bounds = array<i64: 1, 1>, scalar_prefetch = 0 : i64, scratch_operands = 1 : i64, tpu.core_type = #tpu.core_type<tc>, window_params = [{transform_indices = @transform_0, window_bounds = array<i64: 10, 32>}, {pipeline_mode = #tpu.pipeline_mode<synchronous>, transform_indices = @transform_1, window_bounds = array<i64: 1, 32>}, {pipeline_mode = #tpu.pipeline_mode<synchronous>, transform_indices = @transform_2, window_bounds = array<i64: 1, 32>}, {transform_indices = @transform_3, window_bounds = array<i64: 32, 128>}, {transform_indices = @transform_4, window_bounds = array<i64: 1, 128>}, {transform_indices = @transform_5, window_bounds = array<i64: 128, 32>}, {pipeline_mode = #tpu.pipeline_mode<synchronous>, transform_indices = @transform_6, window_bounds = array<i64: 1, 32>}, {transform_indices = @transform_7, window_bounds = array<i64: 10, 32>}]} {
    %c0 = arith.constant 0 : index
    %c0_0 = arith.constant 0 : index
    %0 = vector.load %arg2[%c0, %c0_0] : memref<10x32xf32, #tpu.memory_space<vmem>>, vector<10x32xf32>
    %c0_1 = arith.constant 0 : index
    %c0_2 = arith.constant 0 : index
    %1 = vector.load %arg3[%c0_1, %c0_2] : memref<1x32xf32, #tpu.memory_space<vmem>>, vector<1x32xf32>
    %c0_3 = arith.constant 0 : index
    %c0_4 = arith.constant 0 : index
    %2 = vector.load %arg4[%c0_3, %c0_4] : memref<1x32xf32, #tpu.memory_space<vmem>>, vector<1x32xf32>
    %cst = arith.constant dense<0.000000e+00> : vector<10xf32>
    %3 = vector.multi_reduction <add>, %0, %cst [1] : vector<10x32xf32> to vector<10xf32>
    %4 = vector.shape_cast %3 : vector<10xf32> to vector<10x1xf32>
    %cst_5 = arith.constant 3.200000e+01 : f32
    %5 = vector.broadcast %cst_5 : f32 to vector<10x1xf32>
    %6 = arith.divf %4, %5 : vector<10x1xf32>
    %7 = vector.broadcast %6 : vector<10x1xf32> to vector<10x32xf32>
    %8 = arith.subf %0, %7 : vector<10x32xf32>
    %9 = arith.mulf %8, %8 : vector<10x32xf32>
    %cst_6 = arith.constant dense<0.000000e+00> : vector<10xf32>
    %10 = vector.multi_reduction <add>, %9, %cst_6 [1] : vector<10x32xf32> to vector<10xf32>
    %11 = vector.shape_cast %10 : vector<10xf32> to vector<10x1xf32>
    %cst_7 = arith.constant 3.200000e+01 : f32
    %12 = vector.broadcast %cst_7 : f32 to vector<10x1xf32>
    %13 = arith.divf %11, %12 : vector<10x1xf32>
    %14 = vector.broadcast %6 : vector<10x1xf32> to vector<10x32xf32>
    %15 = arith.subf %0, %14 : vector<10x32xf32>
    %cst_8 = arith.constant 9.99999974E-6 : f32
    %16 = vector.broadcast %cst_8 : f32 to vector<10x1xf32>
    %17 = arith.addf %13, %16 : vector<10x1xf32>
    %18 = math.rsqrt %17 : vector<10x1xf32>
    %19 = vector.broadcast %18 : vector<10x1xf32> to vector<10x32xf32>
    %20 = arith.mulf %15, %19 : vector<10x32xf32>
    %21 = vector.broadcast %1 : vector<1x32xf32> to vector<10x32xf32>
    %22 = arith.mulf %20, %21 : vector<10x32xf32>
    %23 = vector.broadcast %2 : vector<1x32xf32> to vector<10x32xf32>
    %24 = arith.addf %22, %23 : vector<10x32xf32>
    %c0_i32 = arith.constant 0 : i32
    %25 = arith.cmpi eq, %arg1, %c0_i32 : i32
    %26 = arith.extui %25 : i1 to i32
    %c0_i32_9 = arith.constant 0 : i32
    %27 = arith.cmpi ne, %26, %c0_i32_9 : i32
    scf.if %27 {
      %cst_26 = arith.constant 0.000000e+00 : f32
      %53 = vector.broadcast %cst_26 : f32 to vector<10x32xf32>
      %c0_27 = arith.constant 0 : index
      %c0_28 = arith.constant 0 : index
      %54 = vector.load %arg10[%c0_27, %c0_28] : memref<10x32xf32, #tpu.memory_space<vmem>>, vector<10x32xf32>
      tpu.vector_store %arg10[%c0_27, %c0_28], %53 {strides = array<i32>} : memref<10x32xf32, #tpu.memory_space<vmem>>, vector<10x32xf32>,
    } else {
    }
    %c0_10 = arith.constant 0 : index
    %c0_11 = arith.constant 0 : index
    %28 = vector.load %arg5[%c0_10, %c0_11] : memref<32x128xf32, #tpu.memory_space<vmem>>, vector<32x128xf32>
    %29 = arith.truncf %24 : vector<10x32xf32> to vector<10x32xbf16>
    %30 = arith.truncf %28 : vector<32x128xf32> to vector<32x128xbf16>
    %cst_12 = arith.constant dense<0.000000e+00> : vector<10x128xf32>
    %31 = tpu.matmul %29, %30, %cst_12 {dimension_numbers = #tpu.dot_dimension_numbers<[1], [0], [0], [1], [0, 0, 1, 1], [], []>} : vector<10x32xbf16>, vector<32x128xbf16>, vector<10x128xf32> -> vector<10x128xf32>
    %c0_13 = arith.constant 0 : index
    %c0_14 = arith.constant 0 : index
    %32 = vector.load %arg6[%c0_13, %c0_14] : memref<1x128xf32, #tpu.memory_space<vmem>>, vector<1x128xf32>
    %33 = vector.broadcast %32 : vector<1x128xf32> to vector<10x128xf32>
    %34 = arith.addf %31, %33 : vector<10x128xf32>
    %cst_15 = arith.constant 1.702000e+00 : f32
    %35 = vector.broadcast %cst_15 : f32 to vector<10x128xf32>
    %36 = arith.mulf %35, %34 : vector<10x128xf32>
    %37 = arith.negf %36 : vector<10x128xf32>
    %38 = math.exp %37 : vector<10x128xf32>
    %cst_16 = arith.constant 1.000000e+00 : f32
    %39 = vector.broadcast %cst_16 : f32 to vector<10x128xf32>
    %40 = arith.addf %39, %38 : vector<10x128xf32>
    %41 = arith.divf %39, %40 : vector<10x128xf32>
    %42 = arith.mulf %34, %41 : vector<10x128xf32>
    %c0_17 = arith.constant 0 : index
    %c0_18 = arith.constant 0 : index
    %43 = vector.load %arg10[%c0_17, %c0_18] : memref<10x32xf32, #tpu.memory_space<vmem>>, vector<10x32xf32>
    %c0_19 = arith.constant 0 : index
    %c0_20 = arith.constant 0 : index
    %44 = vector.load %arg7[%c0_19, %c0_20] : memref<128x32xf32, #tpu.memory_space<vmem>>, vector<128x32xf32>
    %45 = arith.truncf %42 : vector<10x128xf32> to vector<10x128xbf16>
    %46 = arith.truncf %44 : vector<128x32xf32> to vector<128x32xbf16>
    %cst_21 = arith.constant dense<0.000000e+00> : vector<10x32xf32>
    %47 = tpu.matmul %45, %46, %cst_21 {dimension_numbers = #tpu.dot_dimension_numbers<[1], [0], [0], [1], [0, 0, 1, 1], [], []>} : vector<10x128xbf16>, vector<128x32xbf16>, vector<10x32xf32> -> vector<10x32xf32>
    %48 = arith.addf %43, %47 : vector<10x32xf32>
    %c0_22 = arith.constant 0 : index
    %c0_23 = arith.constant 0 : index
    %49 = vector.load %arg10[%c0_22, %c0_23] : memref<10x32xf32, #tpu.memory_space<vmem>>, vector<10x32xf32>
    tpu.vector_store %arg10[%c0_22, %c0_23], %48 {strides = array<i32>} : memref<10x32xf32, #tpu.memory_space<vmem>>, vector<10x32xf32>,
    %c0_i32_24 = arith.constant 0 : i32
    %50 = arith.cmpi eq, %arg1, %c0_i32_24 : i32
    %51 = arith.extui %50 : i1 to i32
    %c0_i32_25 = arith.constant 0 : i32
    %52 = arith.cmpi ne, %51, %c0_i32_25 : i32
    scf.if %52 {
      %c0_26 = arith.constant 0 : index
      %c0_27 = arith.constant 0 : index
      %53 = vector.load %arg10[%c0_26, %c0_27] : memref<10x32xf32, #tpu.memory_space<vmem>>, vector<10x32xf32>
      %c0_28 = arith.constant 0 : index
      %c0_29 = arith.constant 0 : index
      %54 = vector.load %arg8[%c0_28, %c0_29] : memref<1x32xf32, #tpu.memory_space<vmem>>, vector<1x32xf32>
      %55 = vector.broadcast %54 : vector<1x32xf32> to vector<10x32xf32>
      %56 = arith.addf %53, %55 : vector<10x32xf32>
      %c0_30 = arith.constant 0 : index
      %c0_31 = arith.constant 0 : index
      %57 = vector.load %arg9[%c0_30, %c0_31] : memref<10x32xf32, #tpu.memory_space<vmem>>, vector<10x32xf32>
      tpu.vector_store %arg9[%c0_30, %c0_31], %56 {strides = array<i32>} : memref<10x32xf32, #tpu.memory_space<vmem>>, vector<10x32xf32>,
    } else {
    }
    return
  }
  func.func @transform_0(%arg0: i32, %arg1: i32) -> (i32, i32) {
    %c0_i32 = arith.constant 0 : i32
    %c0_i32_0 = arith.constant 0 : i32
    return %arg0, %c0_i32 : i32, i32
  }
  func.func @transform_1(%arg0: i32, %arg1: i32) -> (i32, i32) {
    %c0_i32 = arith.constant 0 : i32
    %c0_i32_0 = arith.constant 0 : i32
    %c0_i32_1 = arith.constant 0 : i32
    return %c0_i32, %c0_i32_0 : i32, i32
  }
  func.func @transform_2(%arg0: i32, %arg1: i32) -> (i32, i32) {
    %c0_i32 = arith.constant 0 : i32
    %c0_i32_0 = arith.constant 0 : i32
    %c0_i32_1 = arith.constant 0 : i32
    return %c0_i32, %c0_i32_0 : i32, i32
  }
  func.func @transform_3(%arg0: i32, %arg1: i32) -> (i32, i32) {
    %c0_i32 = arith.constant 0 : i32
    %c0_i32_0 = arith.constant 0 : i32
    return %c0_i32, %arg1 : i32, i32
  }
  func.func @transform_4(%arg0: i32, %arg1: i32) -> (i32, i32) {
    %c0_i32 = arith.constant 0 : i32
    %c0_i32_0 = arith.constant 0 : i32
    return %c0_i32, %arg1 : i32, i32
  }
  func.func @transform_5(%arg0: i32, %arg1: i32) -> (i32, i32) {
    %c0_i32 = arith.constant 0 : i32
    %c0_i32_0 = arith.constant 0 : i32
    return %arg1, %c0_i32 : i32, i32
  }
  func.func @transform_6(%arg0: i32, %arg1: i32) -> (i32, i32) {
    %c0_i32 = arith.constant 0 : i32
    %c0_i32_0 = arith.constant 0 : i32
    %c0_i32_1 = arith.constant 0 : i32
    return %c0_i32, %c0_i32_0 : i32, i32
  }
  func.func @transform_7(%arg0: i32, %arg1: i32) -> (i32, i32) {
    %c0_i32 = arith.constant 0 : i32
    %c0_i32_0 = arith.constant 0 : i32
    return %arg0, %c0_i32 : i32, i32
  }
}

module attributes {stable_mosaic.version = 11 : i64} {
  func.func @_adapter_kernel(%arg0: i32, %arg1: memref<10x32xf32, #tpu.memory_space<vmem>>, %arg2: memref<32x8xf32, #tpu.memory_space<vmem>>, %arg3: memref<1x8xf32, #tpu.memory_space<vmem>>, %arg4: memref<8x32xf32, #tpu.memory_space<vmem>>, %arg5: memref<1x32xf32, #tpu.memory_space<vmem>>, %arg6: memref<10x32xf32, #tpu.memory_space<vmem>>, %arg7: memref<10x32xf32, #tpu.memory_space<vmem>>) attributes {dimension_semantics = [#tpu.dimension_semantics<parallel>], iteration_bounds = array<i64: 1>, scalar_prefetch = 0 : i64, scratch_operands = 0 : i64, tpu.core_type = #tpu.core_type<tc>, window_params = [{transform_indices = @transform_0, window_bounds = array<i64: 10, 32>}, {pipeline_mode = #tpu.pipeline_mode<synchronous>, transform_indices = @transform_1, window_bounds = array<i64: 32, 8>}, {pipeline_mode = #tpu.pipeline_mode<synchronous>, transform_indices = @transform_2, window_bounds = array<i64: 1, 8>}, {pipeline_mode = #tpu.pipeline_mode<synchronous>, transform_indices = @transform_3, window_bounds = array<i64: 8, 32>}, {pipeline_mode = #tpu.pipeline_mode<synchronous>, transform_indices = @transform_4, window_bounds = array<i64: 1, 32>}, {transform_indices = @transform_5, window_bounds = array<i64: 10, 32>}, {transform_indices = @transform_6, window_bounds = array<i64: 10, 32>}]} {
    %c0 = arith.constant 0 : index
    %c0_0 = arith.constant 0 : index
    %0 = vector.load %arg1[%c0, %c0_0] : memref<10x32xf32, #tpu.memory_space<vmem>>, vector<10x32xf32>
    %c0_1 = arith.constant 0 : index
    %c0_2 = arith.constant 0 : index
    %1 = vector.load %arg2[%c0_1, %c0_2] : memref<32x8xf32, #tpu.memory_space<vmem>>, vector<32x8xf32>
    %2 = arith.truncf %0 : vector<10x32xf32> to vector<10x32xbf16>
    %3 = arith.truncf %1 : vector<32x8xf32> to vector<32x8xbf16>
    %cst = arith.constant dense<0.000000e+00> : vector<10x8xf32>
    %4 = tpu.matmul %2, %3, %cst {dimension_numbers = #tpu.dot_dimension_numbers<[1], [0], [0], [1], [0, 0, 1, 1], [], []>} : vector<10x32xbf16>, vector<32x8xbf16>, vector<10x8xf32> -> vector<10x8xf32>
    %c0_3 = arith.constant 0 : index
    %c0_4 = arith.constant 0 : index
    %5 = vector.load %arg3[%c0_3, %c0_4] : memref<1x8xf32, #tpu.memory_space<vmem>>, vector<1x8xf32>
    %6 = vector.broadcast %5 : vector<1x8xf32> to vector<10x8xf32>
    %7 = arith.addf %4, %6 : vector<10x8xf32>
    %cst_5 = arith.constant 5.000000e-01 : f32
    %8 = vector.broadcast %cst_5 : f32 to vector<10x8xf32>
    %9 = arith.mulf %8, %7 : vector<10x8xf32>
    %cst_6 = arith.constant 0.707106769 : f32
    %10 = vector.broadcast %cst_6 : f32 to vector<10x8xf32>
    %11 = arith.mulf %7, %10 : vector<10x8xf32>
    %12 = math.erf %11 : vector<10x8xf32>
    %cst_7 = arith.constant 1.000000e+00 : f32
    %13 = vector.broadcast %cst_7 : f32 to vector<10x8xf32>
    %14 = arith.addf %13, %12 : vector<10x8xf32>
    %15 = arith.mulf %9, %14 : vector<10x8xf32>
    %c0_8 = arith.constant 0 : index
    %c0_9 = arith.constant 0 : index
    %16 = vector.load %arg4[%c0_8, %c0_9] : memref<8x32xf32, #tpu.memory_space<vmem>>, vector<8x32xf32>
    %17 = arith.truncf %15 : vector<10x8xf32> to vector<10x8xbf16>
    %18 = arith.truncf %16 : vector<8x32xf32> to vector<8x32xbf16>
    %cst_10 = arith.constant dense<0.000000e+00> : vector<10x32xf32>
    %19 = tpu.matmul %17, %18, %cst_10 {dimension_numbers = #tpu.dot_dimension_numbers<[1], [0], [0], [1], [0, 0, 1, 1], [], []>} : vector<10x8xbf16>, vector<8x32xbf16>, vector<10x32xf32> -> vector<10x32xf32>
    %c0_11 = arith.constant 0 : index
    %c0_12 = arith.constant 0 : index
    %20 = vector.load %arg5[%c0_11, %c0_12] : memref<1x32xf32, #tpu.memory_space<vmem>>, vector<1x32xf32>
    %21 = vector.broadcast %20 : vector<1x32xf32> to vector<10x32xf32>
    %22 = arith.addf %19, %21 : vector<10x32xf32>
    %c0_13 = arith.constant 0 : index
    %c0_14 = arith.constant 0 : index
    %23 = vector.load %arg6[%c0_13, %c0_14] : memref<10x32xf32, #tpu.memory_space<vmem>>, vector<10x32xf32>
    %24 = arith.addf %22, %23 : vector<10x32xf32>
    %c0_15 = arith.constant 0 : index
    %c0_16 = arith.constant 0 : index
    %25 = vector.load %arg7[%c0_15, %c0_16] : memref<10x32xf32, #tpu.memory_space<vmem>>, vector<10x32xf32>
    tpu.vector_store %arg7[%c0_15, %c0_16], %24 {strides = array<i32>} : memref<10x32xf32, #tpu.memory_space<vmem>>, vector<10x32xf32>,
    return
  }
  func.func @transform_0(%arg0: i32) -> (i32, i32) {
    %c0_i32 = arith.constant 0 : i32
    %c0_i32_0 = arith.constant 0 : i32
    return %arg0, %c0_i32 : i32, i32
  }
  func.func @transform_1(%arg0: i32) -> (i32, i32) {
    %c0_i32 = arith.constant 0 : i32
    %c0_i32_0 = arith.constant 0 : i32
    %c0_i32_1 = arith.constant 0 : i32
    return %c0_i32, %c0_i32_0 : i32, i32
  }
  func.func @transform_2(%arg0: i32) -> (i32, i32) {
    %c0_i32 = arith.constant 0 : i32
    %c0_i32_0 = arith.constant 0 : i32
    %c0_i32_1 = arith.constant 0 : i32
    return %c0_i32, %c0_i32_0 : i32, i32
  }
  func.func @transform_3(%arg0: i32) -> (i32, i32) {
    %c0_i32 = arith.constant 0 : i32
    %c0_i32_0 = arith.constant 0 : i32
    %c0_i32_1 = arith.constant 0 : i32
    return %c0_i32, %c0_i32_0 : i32, i32
  }
  func.func @transform_4(%arg0: i32) -> (i32, i32) {
    %c0_i32 = arith.constant 0 : i32
    %c0_i32_0 = arith.constant 0 : i32
    %c0_i32_1 = arith.constant 0 : i32
    return %c0_i32, %c0_i32_0 : i32, i32
  }
  func.func @transform_5(%arg0: i32) -> (i32, i32) {
    %c0_i32 = arith.constant 0 : i32
    %c0_i32_0 = arith.constant 0 : i32
    return %arg0, %c0_i32 : i32, i32
  }
  func.func @transform_6(%arg0: i32) -> (i32, i32) {
    %c0_i32 = arith.constant 0 : i32
    %c0_i32_0 = arith.constant 0 : i32
    return %arg0, %c0_i32 : i32, i32
  }
}

module attributes {stable_mosaic.version = 11 : i64} {
  func.func @_adapter_kernel(%arg0: i32, %arg1: memref<10x32xf32, #tpu.memory_space<vmem>>, %arg2: memref<1x32xf32, #tpu.memory_space<vmem>>, %arg3: memref<1x32xf32, #tpu.memory_space<vmem>>, %arg4: memref<32x8xf32, #tpu.memory_space<vmem>>, %arg5: memref<1x8xf32, #tpu.memory_space<vmem>>, %arg6: memref<8x32xf32, #tpu.memory_space<vmem>>, %arg7: memref<1x32xf32, #tpu.memory_space<vmem>>, %arg8: memref<10x32xf32, #tpu.memory_space<vmem>>) attributes {dimension_semantics = [#tpu.dimension_semantics<parallel>], iteration_bounds = array<i64: 1>, scalar_prefetch = 0 : i64, scratch_operands = 0 : i64, tpu.core_type = #tpu.core_type<tc>, window_params = [{transform_indices = @transform_0, window_bounds = array<i64: 10, 32>}, {pipeline_mode = #tpu.pipeline_mode<synchronous>, transform_indices = @transform_1, window_bounds = array<i64: 1, 32>}, {pipeline_mode = #tpu.pipeline_mode<synchronous>, transform_indices = @transform_2, window_bounds = array<i64: 1, 32>}, {pipeline_mode = #tpu.pipeline_mode<synchronous>, transform_indices = @transform_3, window_bounds = array<i64: 32, 8>}, {pipeline_mode = #tpu.pipeline_mode<synchronous>, transform_indices = @transform_4, window_bounds = array<i64: 1, 8>}, {pipeline_mode = #tpu.pipeline_mode<synchronous>, transform_indices = @transform_5, window_bounds = array<i64: 8, 32>}, {pipeline_mode = #tpu.pipeline_mode<synchronous>, transform_indices = @transform_6, window_bounds = array<i64: 1, 32>}, {transform_indices = @transform_7, window_bounds = array<i64: 10, 32>}]} {
    %c0 = arith.constant 0 : index
    %c0_0 = arith.constant 0 : index
    %0 = vector.load %arg1[%c0, %c0_0] : memref<10x32xf32, #tpu.memory_space<vmem>>, vector<10x32xf32>
    %c0_1 = arith.constant 0 : index
    %c0_2 = arith.constant 0 : index
    %1 = vector.load %arg2[%c0_1, %c0_2] : memref<1x32xf32, #tpu.memory_space<vmem>>, vector<1x32xf32>
    %c0_3 = arith.constant 0 : index
    %c0_4 = arith.constant 0 : index
    %2 = vector.load %arg3[%c0_3, %c0_4] : memref<1x32xf32, #tpu.memory_space<vmem>>, vector<1x32xf32>
    %cst = arith.constant dense<0.000000e+00> : vector<10xf32>
    %3 = vector.multi_reduction <add>, %0, %cst [1] : vector<10x32xf32> to vector<10xf32>
    %4 = vector.shape_cast %3 : vector<10xf32> to vector<10x1xf32>
    %cst_5 = arith.constant 3.200000e+01 : f32
    %5 = vector.broadcast %cst_5 : f32 to vector<10x1xf32>
    %6 = arith.divf %4, %5 : vector<10x1xf32>
    %7 = vector.broadcast %6 : vector<10x1xf32> to vector<10x32xf32>
    %8 = arith.subf %0, %7 : vector<10x32xf32>
    %9 = arith.mulf %8, %8 : vector<10x32xf32>
    %cst_6 = arith.constant dense<0.000000e+00> : vector<10xf32>
    %10 = vector.multi_reduction <add>, %9, %cst_6 [1] : vector<10x32xf32> to vector<10xf32>
    %11 = vector.shape_cast %10 : vector<10xf32> to vector<10x1xf32>
    %cst_7 = arith.constant 3.200000e+01 : f32
    %12 = vector.broadcast %cst_7 : f32 to vector<10x1xf32>
    %13 = arith.divf %11, %12 : vector<10x1xf32>
    %14 = vector.broadcast %6 : vector<10x1xf32> to vector<10x32xf32>
    %15 = arith.subf %0, %14 : vector<10x32xf32>
    %cst_8 = arith.constant 9.99999974E-6 : f32
    %16 = vector.broadcast %cst_8 : f32 to vector<10x1xf32>
    %17 = arith.addf %13, %16 : vector<10x1xf32>
    %18 = math.rsqrt %17 : vector<10x1xf32>
    %19 = vector.broadcast %18 : vector<10x1xf32> to vector<10x32xf32>
    %20 = arith.mulf %15, %19 : vector<10x32xf32>
    %21 = vector.broadcast %1 : vector<1x32xf32> to vector<10x32xf32>
    %22 = arith.mulf %20, %21 : vector<10x32xf32>
    %23 = vector.broadcast %2 : vector<1x32xf32> to vector<10x32xf32>
    %24 = arith.addf %22, %23 : vector<10x32xf32>
    %c0_9 = arith.constant 0 : index
    %c0_10 = arith.constant 0 : index
    %25 = vector.load %arg4[%c0_9, %c0_10] : memref<32x8xf32, #tpu.memory_space<vmem>>, vector<32x8xf32>
    %26 = arith.truncf %24 : vector<10x32xf32> to vector<10x32xbf16>
    %27 = arith.truncf %25 : vector<32x8xf32> to vector<32x8xbf16>
    %cst_11 = arith.constant dense<0.000000e+00> : vector<10x8xf32>
    %28 = tpu.matmul %26, %27, %cst_11 {dimension_numbers = #tpu.dot_dimension_numbers<[1], [0], [0], [1], [0, 0, 1, 1], [], []>} : vector<10x32xbf16>, vector<32x8xbf16>, vector<10x8xf32> -> vector<10x8xf32>
    %c0_12 = arith.constant 0 : index
    %c0_13 = arith.constant 0 : index
    %29 = vector.load %arg5[%c0_12, %c0_13] : memref<1x8xf32, #tpu.memory_space<vmem>>, vector<1x8xf32>
    %30 = vector.broadcast %29 : vector<1x8xf32> to vector<10x8xf32>
    %31 = arith.addf %28, %30 : vector<10x8xf32>
    %cst_14 = arith.constant 5.000000e-01 : f32
    %32 = vector.broadcast %cst_14 : f32 to vector<10x8xf32>
    %33 = arith.mulf %32, %31 : vector<10x8xf32>
    %cst_15 = arith.constant 0.707106769 : f32
    %34 = vector.broadcast %cst_15 : f32 to vector<10x8xf32>
    %35 = arith.mulf %31, %34 : vector<10x8xf32>
    %36 = math.erf %35 : vector<10x8xf32>
    %cst_16 = arith.constant 1.000000e+00 : f32
    %37 = vector.broadcast %cst_16 : f32 to vector<10x8xf32>
    %38 = arith.addf %37, %36 : vector<10x8xf32>
    %39 = arith.mulf %33, %38 : vector<10x8xf32>
    %c0_17 = arith.constant 0 : index
    %c0_18 = arith.constant 0 : index
    %40 = vector.load %arg6[%c0_17, %c0_18] : memref<8x32xf32, #tpu.memory_space<vmem>>, vector<8x32xf32>
    %41 = arith.truncf %39 : vector<10x8xf32> to vector<10x8xbf16>
    %42 = arith.truncf %40 : vector<8x32xf32> to vector<8x32xbf16>
    %cst_19 = arith.constant dense<0.000000e+00> : vector<10x32xf32>
    %43 = tpu.matmul %41, %42, %cst_19 {dimension_numbers = #tpu.dot_dimension_numbers<[1], [0], [0], [1], [0, 0, 1, 1], [], []>} : vector<10x8xbf16>, vector<8x32xbf16>, vector<10x32xf32> -> vector<10x32xf32>
    %c0_20 = arith.constant 0 : index
    %c0_21 = arith.constant 0 : index
    %44 = vector.load %arg7[%c0_20, %c0_21] : memref<1x32xf32, #tpu.memory_space<vmem>>, vector<1x32xf32>
    %45 = vector.broadcast %44 : vector<1x32xf32> to vector<10x32xf32>
    %46 = arith.addf %43, %45 : vector<10x32xf32>
    %c0_22 = arith.constant 0 : index
    %c0_23 = arith.constant 0 : index
    %47 = vector.load %arg8[%c0_22, %c0_23] : memref<10x32xf32, #tpu.memory_space<vmem>>, vector<10x32xf32>
    tpu.vector_store %arg8[%c0_22, %c0_23], %46 {strides = array<i32>} : memref<10x32xf32, #tpu.memory_space<vmem>>, vector<10x32xf32>,
    return
  }
  func.func @transform_0(%arg0: i32) -> (i32, i32) {
    %c0_i32 = arith.constant 0 : i32
    %c0_i32_0 = arith.constant 0 : i32
    return %arg0, %c0_i32 : i32, i32
  }
  func.func @transform_1(%arg0: i32) -> (i32, i32) {
    %c0_i32 = arith.constant 0 : i32
    %c0_i32_0 = arith.constant 0 : i32
    %c0_i32_1 = arith.constant 0 : i32
    return %c0_i32, %c0_i32_0 : i32, i32
  }
  func.func @transform_2(%arg0: i32) -> (i32, i32) {
    %c0_i32 = arith.constant 0 : i32
    %c0_i32_0 = arith.constant 0 : i32
    %c0_i32_1 = arith.constant 0 : i32
    return %c0_i32, %c0_i32_0 : i32, i32
  }
  func.func @transform_3(%arg0: i32) -> (i32, i32) {
    %c0_i32 = arith.constant 0 : i32
    %c0_i32_0 = arith.constant 0 : i32
    %c0_i32_1 = arith.constant 0 : i32
    return %c0_i32, %c0_i32_0 : i32, i32
  }
  func.func @transform_4(%arg0: i32) -> (i32, i32) {
    %c0_i32 = arith.constant 0 : i32
    %c0_i32_0 = arith.constant 0 : i32
    %c0_i32_1 = arith.constant 0 : i32
    return %c0_i32, %c0_i32_0 : i32, i32
  }
  func.func @transform_5(%arg0: i32) -> (i32, i32) {
    %c0_i32 = arith.constant 0 : i32
    %c0_i32_0 = arith.constant 0 : i32
    %c0_i32_1 = arith.constant 0 : i32
    return %c0_i32, %c0_i32_0 : i32, i32
  }
  func.func @transform_6(%arg0: i32) -> (i32, i32) {
    %c0_i32 = arith.constant 0 : i32
    %c0_i32_0 = arith.constant 0 : i32
    %c0_i32_1 = arith.constant 0 : i32
    return %c0_i32, %c0_i32_0 : i32, i32
  }
  func.func @transform_7(%arg0: i32) -> (i32, i32) {
    %c0_i32 = arith.constant 0 : i32
    %c0_i32_0 = arith.constant 0 : i32
    return %arg0, %c0_i32 : i32, i32
  }
}

module attributes {stable_mosaic.version = 11 : i64} {
  func.func @_ln_linear_kernel(%arg0: i32, %arg1: i32, %arg2: memref<80x32xf32, #tpu.memory_space<vmem>>, %arg3: memref<1x32xf32, #tpu.memory_space<vmem>>, %arg4: memref<1x32xf32, #tpu.memory_space<vmem>>, %arg5: memref<32x96xf32, #tpu.memory_space<vmem>>, %arg6: memref<1x96xf32, #tpu.memory_space<vmem>>, %arg7: memref<80x96xf32, #tpu.memory_space<vmem>>) attributes {dimension_semantics = [#tpu.dimension_semantics<parallel>, #tpu.dimension_semantics<parallel>], iteration_bounds = array<i64: 1, 1>, scalar_prefetch = 0 : i64, scratch_operands = 0 : i64, tpu.core_type = #tpu.core_type<tc>, window_params = [{transform_indices = @transform_0, window_bounds = array<i64: 80, 32>}, {pipeline_mode = #tpu.pipeline_mode<synchronous>, transform_indices = @transform_1, window_bounds = array<i64: 1, 32>}, {pipeline_mode = #tpu.pipeline_mode<synchronous>, transform_indices = @transform_2, window_bounds = array<i64: 1, 32>}, {transform_indices = @transform_3, window_bounds = array<i64: 32, 96>}, {transform_indices = @transform_4, window_bounds = array<i64: 1, 96>}, {transform_indices = @transform_5, window_bounds = array<i64: 80, 96>}]} {
    %c0 = arith.constant 0 : index
    %c0_0 = arith.constant 0 : index
    %0 = vector.load %arg2[%c0, %c0_0] : memref<80x32xf32, #tpu.memory_space<vmem>>, vector<80x32xf32>
    %c0_1 = arith.constant 0 : index
    %c0_2 = arith.constant 0 : index
    %1 = vector.load %arg3[%c0_1, %c0_2] : memref<1x32xf32, #tpu.memory_space<vmem>>, vector<1x32xf32>
    %c0_3 = arith.constant 0 : index
    %c0_4 = arith.constant 0 : index
    %2 = vector.load %arg4[%c0_3, %c0_4] : memref<1x32xf32, #tpu.memory_space<vmem>>, vector<1x32xf32>
    %cst = arith.constant dense<0.000000e+00> : vector<80xf32>
    %3 = vector.multi_reduction <add>, %0, %cst [1] : vector<80x32xf32> to vector<80xf32>
    %4 = vector.shape_cast %3 : vector<80xf32> to vector<80x1xf32>
    %cst_5 = arith.constant 3.200000e+01 : f32
    %5 = vector.broadcast %cst_5 : f32 to vector<80x1xf32>
    %6 = arith.divf %4, %5 : vector<80x1xf32>
    %7 = vector.broadcast %6 : vector<80x1xf32> to vector<80x32xf32>
    %8 = arith.subf %0, %7 : vector<80x32xf32>
    %9 = arith.mulf %8, %8 : vector<80x32xf32>
    %cst_6 = arith.constant dense<0.000000e+00> : vector<80xf32>
    %10 = vector.multi_reduction <add>, %9, %cst_6 [1] : vector<80x32xf32> to vector<80xf32>
    %11 = vector.shape_cast %10 : vector<80xf32> to vector<80x1xf32>
    %cst_7 = arith.constant 3.200000e+01 : f32
    %12 = vector.broadcast %cst_7 : f32 to vector<80x1xf32>
    %13 = arith.divf %11, %12 : vector<80x1xf32>
    %14 = vector.broadcast %6 : vector<80x1xf32> to vector<80x32xf32>
    %15 = arith.subf %0, %14 : vector<80x32xf32>
    %cst_8 = arith.constant 9.99999974E-6 : f32
    %16 = vector.broadcast %cst_8 : f32 to vector<80x1xf32>
    %17 = arith.addf %13, %16 : vector<80x1xf32>
    %18 = math.rsqrt %17 : vector<80x1xf32>
    %19 = vector.broadcast %18 : vector<80x1xf32> to vector<80x32xf32>
    %20 = arith.mulf %15, %19 : vector<80x32xf32>
    %21 = vector.broadcast %1 : vector<1x32xf32> to vector<80x32xf32>
    %22 = arith.mulf %20, %21 : vector<80x32xf32>
    %23 = vector.broadcast %2 : vector<1x32xf32> to vector<80x32xf32>
    %24 = arith.addf %22, %23 : vector<80x32xf32>
    %c0_9 = arith.constant 0 : index
    %c0_10 = arith.constant 0 : index
    %25 = vector.load %arg5[%c0_9, %c0_10] : memref<32x96xf32, #tpu.memory_space<vmem>>, vector<32x96xf32>
    %26 = arith.truncf %24 : vector<80x32xf32> to vector<80x32xbf16>
    %27 = arith.truncf %25 : vector<32x96xf32> to vector<32x96xbf16>
    %cst_11 = arith.constant dense<0.000000e+00> : vector<80x96xf32>
    %28 = tpu.matmul %26, %27, %cst_11 {dimension_numbers = #tpu.dot_dimension_numbers<[1], [0], [0], [1], [0, 0, 1, 1], [], []>} : vector<80x32xbf16>, vector<32x96xbf16>, vector<80x96xf32> -> vector<80x96xf32>
    %c0_12 = arith.constant 0 : index
    %c0_13 = arith.constant 0 : index
    %29 = vector.load %arg6[%c0_12, %c0_13] : memref<1x96xf32, #tpu.memory_space<vmem>>, vector<1x96xf32>
    %30 = vector.broadcast %29 : vector<1x96xf32> to vector<80x96xf32>
    %31 = arith.addf %28, %30 : vector<80x96xf32>
    %c0_14 = arith.constant 0 : index
    %c0_15 = arith.constant 0 : index
    %32 = vector.load %arg7[%c0_14, %c0_15] : memref<80x96xf32, #tpu.memory_space<vmem>>, vector<80x96xf32>
    tpu.vector_store %arg7[%c0_14, %c0_15], %31 {strides = array<i32>} : memref<80x96xf32, #tpu.memory_space<vmem>>, vector<80x96xf32>,
    return
  }
  func.func @transform_0(%arg0: i32, %arg1: i32) -> (i32, i32) {
    %c0_i32 = arith.constant 0 : i32
    %c0_i32_0 = arith.constant 0 : i32
    return %arg0, %c0_i32 : i32, i32
  }
  func.func @transform_1(%arg0: i32, %arg1: i32) -> (i32, i32) {
    %c0_i32 = arith.constant 0 : i32
    %c0_i32_0 = arith.constant 0 : i32
    %c0_i32_1 = arith.constant 0 : i32
    return %c0_i32, %c0_i32_0 : i32, i32
  }
  func.func @transform_2(%arg0: i32, %arg1: i32) -> (i32, i32) {
    %c0_i32 = arith.constant 0 : i32
    %c0_i32_0 = arith.constant 0 : i32
    %c0_i32_1 = arith.constant 0 : i32
    return %c0_i32, %c0_i32_0 : i32, i32
  }
  func.func @transform_3(%arg0: i32, %arg1: i32) -> (i32, i32) {
    %c0_i32 = arith.constant 0 : i32
    %c0_i32_0 = arith.constant 0 : i32
    return %c0_i32, %arg1 : i32, i32
  }
  func.func @transform_4(%arg0: i32, %arg1: i32) -> (i32, i32) {
    %c0_i32 = arith.constant 0 : i32
    %c0_i32_0 = arith.constant 0 : i32
    return %c0_i32, %arg1 : i32, i32
  }
  func.func @transform_5(%arg0: i32, %arg1: i32) -> (i32, i32) {
    %c0_i32 = arith.constant 0 : i32
    return %arg0, %arg1 : i32, i32
  }
}

module attributes {stable_mosaic.version = 11 : i64} {
  func.func @_adapter_kernel(%arg0: i32, %arg1: memref<10x32xf32, #tpu.memory_space<vmem>>, %arg2: memref<32x8xf32, #tpu.memory_space<vmem>>, %arg3: memref<1x8xf32, #tpu.memory_space<vmem>>, %arg4: memref<8x32xf32, #tpu.memory_space<vmem>>, %arg5: memref<1x32xf32, #tpu.memory_space<vmem>>, %arg6: memref<10x32xf32, #tpu.memory_space<vmem>>, %arg7: memref<10x32xf32, #tpu.memory_space<vmem>>) attributes {dimension_semantics = [#tpu.dimension_semantics<parallel>], iteration_bounds = array<i64: 1>, scalar_prefetch = 0 : i64, scratch_operands = 0 : i64, tpu.core_type = #tpu.core_type<tc>, window_params = [{transform_indices = @transform_0, window_bounds = array<i64: 10, 32>}, {pipeline_mode = #tpu.pipeline_mode<synchronous>, transform_indices = @transform_1, window_bounds = array<i64: 32, 8>}, {pipeline_mode = #tpu.pipeline_mode<synchronous>, transform_indices = @transform_2, window_bounds = array<i64: 1, 8>}, {pipeline_mode = #tpu.pipeline_mode<synchronous>, transform_indices = @transform_3, window_bounds = array<i64: 8, 32>}, {pipeline_mode = #tpu.pipeline_mode<synchronous>, transform_indices = @transform_4, window_bounds = array<i64: 1, 32>}, {transform_indices = @transform_5, window_bounds = array<i64: 10, 32>}, {transform_indices = @transform_6, window_bounds = array<i64: 10, 32>}]} {
    %c0 = arith.constant 0 : index
    %c0_0 = arith.constant 0 : index
    %0 = vector.load %arg1[%c0, %c0_0] : memref<10x32xf32, #tpu.memory_space<vmem>>, vector<10x32xf32>
    %c0_1 = arith.constant 0 : index
    %c0_2 = arith.constant 0 : index
    %1 = vector.load %arg2[%c0_1, %c0_2] : memref<32x8xf32, #tpu.memory_space<vmem>>, vector<32x8xf32>
    %2 = arith.truncf %0 : vector<10x32xf32> to vector<10x32xbf16>
    %3 = arith.truncf %1 : vector<32x8xf32> to vector<32x8xbf16>
    %cst = arith.constant dense<0.000000e+00> : vector<10x8xf32>
    %4 = tpu.matmul %2, %3, %cst {dimension_numbers = #tpu.dot_dimension_numbers<[1], [0], [0], [1], [0, 0, 1, 1], [], []>} : vector<10x32xbf16>, vector<32x8xbf16>, vector<10x8xf32> -> vector<10x8xf32>
    %c0_3 = arith.constant 0 : index
    %c0_4 = arith.constant 0 : index
    %5 = vector.load %arg3[%c0_3, %c0_4] : memref<1x8xf32, #tpu.memory_space<vmem>>, vector<1x8xf32>
    %6 = vector.broadcast %5 : vector<1x8xf32> to vector<10x8xf32>
    %7 = arith.addf %4, %6 : vector<10x8xf32>
    %cst_5 = arith.constant 5.000000e-01 : f32
    %8 = vector.broadcast %cst_5 : f32 to vector<10x8xf32>
    %9 = arith.mulf %8, %7 : vector<10x8xf32>
    %cst_6 = arith.constant 0.707106769 : f32
    %10 = vector.broadcast %cst_6 : f32 to vector<10x8xf32>
    %11 = arith.mulf %7, %10 : vector<10x8xf32>
    %12 = math.erf %11 : vector<10x8xf32>
    %cst_7 = arith.constant 1.000000e+00 : f32
    %13 = vector.broadcast %cst_7 : f32 to vector<10x8xf32>
    %14 = arith.addf %13, %12 : vector<10x8xf32>
    %15 = arith.mulf %9, %14 : vector<10x8xf32>
    %c0_8 = arith.constant 0 : index
    %c0_9 = arith.constant 0 : index
    %16 = vector.load %arg4[%c0_8, %c0_9] : memref<8x32xf32, #tpu.memory_space<vmem>>, vector<8x32xf32>
    %17 = arith.truncf %15 : vector<10x8xf32> to vector<10x8xbf16>
    %18 = arith.truncf %16 : vector<8x32xf32> to vector<8x32xbf16>
    %cst_10 = arith.constant dense<0.000000e+00> : vector<10x32xf32>
    %19 = tpu.matmul %17, %18, %cst_10 {dimension_numbers = #tpu.dot_dimension_numbers<[1], [0], [0], [1], [0, 0, 1, 1], [], []>} : vector<10x8xbf16>, vector<8x32xbf16>, vector<10x32xf32> -> vector<10x32xf32>
    %c0_11 = arith.constant 0 : index
    %c0_12 = arith.constant 0 : index
    %20 = vector.load %arg5[%c0_11, %c0_12] : memref<1x32xf32, #tpu.memory_space<vmem>>, vector<1x32xf32>
    %21 = vector.broadcast %20 : vector<1x32xf32> to vector<10x32xf32>
    %22 = arith.addf %19, %21 : vector<10x32xf32>
    %c0_13 = arith.constant 0 : index
    %c0_14 = arith.constant 0 : index
    %23 = vector.load %arg6[%c0_13, %c0_14] : memref<10x32xf32, #tpu.memory_space<vmem>>, vector<10x32xf32>
    %24 = arith.addf %22, %23 : vector<10x32xf32>
    %c0_15 = arith.constant 0 : index
    %c0_16 = arith.constant 0 : index
    %25 = vector.load %arg7[%c0_15, %c0_16] : memref<10x32xf32, #tpu.memory_space<vmem>>, vector<10x32xf32>
    tpu.vector_store %arg7[%c0_15, %c0_16], %24 {strides = array<i32>} : memref<10x32xf32, #tpu.memory_space<vmem>>, vector<10x32xf32>,
    return
  }
  func.func @transform_0(%arg0: i32) -> (i32, i32) {
    %c0_i32 = arith.constant 0 : i32
    %c0_i32_0 = arith.constant 0 : i32
    return %arg0, %c0_i32 : i32, i32
  }
  func.func @transform_1(%arg0: i32) -> (i32, i32) {
    %c0_i32 = arith.constant 0 : i32
    %c0_i32_0 = arith.constant 0 : i32
    %c0_i32_1 = arith.constant 0 : i32
    return %c0_i32, %c0_i32_0 : i32, i32
  }
  func.func @transform_2(%arg0: i32) -> (i32, i32) {
    %c0_i32 = arith.constant 0 : i32
    %c0_i32_0 = arith.constant 0 : i32
    %c0_i32_1 = arith.constant 0 : i32
    return %c0_i32, %c0_i32_0 : i32, i32
  }
  func.func @transform_3(%arg0: i32) -> (i32, i32) {
    %c0_i32 = arith.constant 0 : i32
    %c0_i32_0 = arith.constant 0 : i32
    %c0_i32_1 = arith.constant 0 : i32
    return %c0_i32, %c0_i32_0 : i32, i32
  }
  func.func @transform_4(%arg0: i32) -> (i32, i32) {
    %c0_i32 = arith.constant 0 : i32
    %c0_i32_0 = arith.constant 0 : i32
    %c0_i32_1 = arith.constant 0 : i32
    return %c0_i32, %c0_i32_0 : i32, i32
  }
  func.func @transform_5(%arg0: i32) -> (i32, i32) {
    %c0_i32 = arith.constant 0 : i32
    %c0_i32_0 = arith.constant 0 : i32
    return %arg0, %c0_i32 : i32, i32
  }
  func.func @transform_6(%arg0: i32) -> (i32, i32) {
    %c0_i32 = arith.constant 0 : i32
    %c0_i32_0 = arith.constant 0 : i32
    return %arg0, %c0_i32 : i32, i32
  }
}

module attributes {stable_mosaic.version = 11 : i64} {
  func.func @_attn_kernel(%arg0: i32, %arg1: memref<4x5x96xf32, #tpu.memory_space<vmem>>, %arg2: memref<4x5x32xf32, #tpu.memory_space<vmem>>) attributes {dimension_semantics = [#tpu.dimension_semantics<parallel>], iteration_bounds = array<i64: 4>, scalar_prefetch = 0 : i64, scratch_operands = 0 : i64, tpu.core_type = #tpu.core_type<tc>, window_params = [{transform_indices = @transform_0, window_bounds = array<i64: 4, 5, 96>}, {transform_indices = @transform_1, window_bounds = array<i64: 4, 5, 32>}]} {
    %c0 = arith.constant 0 : index
    %c0_0 = arith.constant 0 : index
    %c0_1 = arith.constant 0 : index
    %0 = vector.load %arg1[%c0, %c0_0, %c0_1] : memref<4x5x96xf32, #tpu.memory_space<vmem>>, vector<4x5x96xf32>
    %1 = vector.extract_strided_slice %0 {offsets = [0, 0, 0], sizes = [4, 5, 8], strides = [1, 1, 1]} : vector<4x5x96xf32> to vector<4x5x8xf32>
    %2 = arith.truncf %1 : vector<4x5x8xf32> to vector<4x5x8xbf16>
    %3 = vector.extract_strided_slice %0 {offsets = [0, 0, 32], sizes = [4, 5, 8], strides = [1, 1, 1]} : vector<4x5x96xf32> to vector<4x5x8xf32>
    %4 = arith.truncf %3 : vector<4x5x8xf32> to vector<4x5x8xbf16>
    %5 = vector.extract_strided_slice %0 {offsets = [0, 0, 64], sizes = [4, 5, 8], strides = [1, 1, 1]} : vector<4x5x96xf32> to vector<4x5x8xf32>
    %6 = arith.truncf %5 : vector<4x5x8xf32> to vector<4x5x8xbf16>
    %cst = arith.constant dense<0.000000e+00> : vector<4x5x5xf32>
    %7 = tpu.matmul %2, %4, %cst {dimension_numbers = #tpu.dot_dimension_numbers<[2], [2], [1], [1], [0, 0, 0, 1, 1, 1], [0], [0]>} : vector<4x5x8xbf16>, vector<4x5x8xbf16>, vector<4x5x5xf32> -> vector<4x5x5xf32>
    %cst_2 = arith.constant 0.353553385 : f32
    %8 = vector.broadcast %cst_2 : f32 to vector<4x5x5xf32>
    %9 = arith.mulf %7, %8 : vector<4x5x5xf32>
    %cst_3 = arith.constant dense<0xFF800000> : vector<4x5xf32>
    %10 = vector.multi_reduction <maximumf>, %9, %cst_3 [2] : vector<4x5x5xf32> to vector<4x5xf32>
    %11 = vector.shape_cast %10 : vector<4x5xf32> to vector<4x5x1xf32>
    %12 = vector.broadcast %11 : vector<4x5x1xf32> to vector<4x5x5xf32>
    %13 = arith.subf %9, %12 : vector<4x5x5xf32>
    %14 = math.exp %13 : vector<4x5x5xf32>
    %cst_4 = arith.constant dense<0.000000e+00> : vector<4x5xf32>
    %15 = vector.multi_reduction <add>, %14, %cst_4 [2] : vector<4x5x5xf32> to vector<4x5xf32>
    %16 = vector.shape_cast %15 : vector<4x5xf32> to vector<4x5x1xf32>
    %17 = tpu.reciprocal %16 {approx = true} : vector<4x5x1xf32> -> vector<4x5x1xf32>
    %18 = vector.broadcast %17 : vector<4x5x1xf32> to vector<4x5x5xf32>
    %19 = arith.mulf %14, %18 : vector<4x5x5xf32>
    %20 = arith.truncf %19 : vector<4x5x5xf32> to vector<4x5x5xbf16>
    %cst_5 = arith.constant dense<0.000000e+00> : vector<4x5x8xf32>
    %21 = tpu.matmul %20, %6, %cst_5 {dimension_numbers = #tpu.dot_dimension_numbers<[2], [1], [1], [2], [0, 0, 0, 1, 1, 2], [0], [0]>} : vector<4x5x5xbf16>, vector<4x5x8xbf16>, vector<4x5x8xf32> -> vector<4x5x8xf32>
    %22 = vector.extract_strided_slice %0 {offsets = [0, 0, 8], sizes = [4, 5, 8], strides = [1, 1, 1]} : vector<4x5x96xf32> to vector<4x5x8xf32>
    %23 = arith.truncf %22 : vector<4x5x8xf32> to vector<4x5x8xbf16>
    %24 = vector.extract_strided_slice %0 {offsets = [0, 0, 40], sizes = [4, 5, 8], strides = [1, 1, 1]} : vector<4x5x96xf32> to vector<4x5x8xf32>
    %25 = arith.truncf %24 : vector<4x5x8xf32> to vector<4x5x8xbf16>
    %26 = vector.extract_strided_slice %0 {offsets = [0, 0, 72], sizes = [4, 5, 8], strides = [1, 1, 1]} : vector<4x5x96xf32> to vector<4x5x8xf32>
    %27 = arith.truncf %26 : vector<4x5x8xf32> to vector<4x5x8xbf16>
    %cst_6 = arith.constant dense<0.000000e+00> : vector<4x5x5xf32>
    %28 = tpu.matmul %23, %25, %cst_6 {dimension_numbers = #tpu.dot_dimension_numbers<[2], [2], [1], [1], [0, 0, 0, 1, 1, 1], [0], [0]>} : vector<4x5x8xbf16>, vector<4x5x8xbf16>, vector<4x5x5xf32> -> vector<4x5x5xf32>
    %cst_7 = arith.constant 0.353553385 : f32
    %29 = vector.broadcast %cst_7 : f32 to vector<4x5x5xf32>
    %30 = arith.mulf %28, %29 : vector<4x5x5xf32>
    %cst_8 = arith.constant dense<0xFF800000> : vector<4x5xf32>
    %31 = vector.multi_reduction <maximumf>, %30, %cst_8 [2] : vector<4x5x5xf32> to vector<4x5xf32>
    %32 = vector.shape_cast %31 : vector<4x5xf32> to vector<4x5x1xf32>
    %33 = vector.broadcast %32 : vector<4x5x1xf32> to vector<4x5x5xf32>
    %34 = arith.subf %30, %33 : vector<4x5x5xf32>
    %35 = math.exp %34 : vector<4x5x5xf32>
    %cst_9 = arith.constant dense<0.000000e+00> : vector<4x5xf32>
    %36 = vector.multi_reduction <add>, %35, %cst_9 [2] : vector<4x5x5xf32> to vector<4x5xf32>
    %37 = vector.shape_cast %36 : vector<4x5xf32> to vector<4x5x1xf32>
    %38 = tpu.reciprocal %37 {approx = true} : vector<4x5x1xf32> -> vector<4x5x1xf32>
    %39 = vector.broadcast %38 : vector<4x5x1xf32> to vector<4x5x5xf32>
    %40 = arith.mulf %35, %39 : vector<4x5x5xf32>
    %41 = arith.truncf %40 : vector<4x5x5xf32> to vector<4x5x5xbf16>
    %cst_10 = arith.constant dense<0.000000e+00> : vector<4x5x8xf32>
    %42 = tpu.matmul %41, %27, %cst_10 {dimension_numbers = #tpu.dot_dimension_numbers<[2], [1], [1], [2], [0, 0, 0, 1, 1, 2], [0], [0]>} : vector<4x5x5xbf16>, vector<4x5x8xbf16>, vector<4x5x8xf32> -> vector<4x5x8xf32>
    %43 = vector.extract_strided_slice %0 {offsets = [0, 0, 16], sizes = [4, 5, 8], strides = [1, 1, 1]} : vector<4x5x96xf32> to vector<4x5x8xf32>
    %44 = arith.truncf %43 : vector<4x5x8xf32> to vector<4x5x8xbf16>
    %45 = vector.extract_strided_slice %0 {offsets = [0, 0, 48], sizes = [4, 5, 8], strides = [1, 1, 1]} : vector<4x5x96xf32> to vector<4x5x8xf32>
    %46 = arith.truncf %45 : vector<4x5x8xf32> to vector<4x5x8xbf16>
    %47 = vector.extract_strided_slice %0 {offsets = [0, 0, 80], sizes = [4, 5, 8], strides = [1, 1, 1]} : vector<4x5x96xf32> to vector<4x5x8xf32>
    %48 = arith.truncf %47 : vector<4x5x8xf32> to vector<4x5x8xbf16>
    %cst_11 = arith.constant dense<0.000000e+00> : vector<4x5x5xf32>
    %49 = tpu.matmul %44, %46, %cst_11 {dimension_numbers = #tpu.dot_dimension_numbers<[2], [2], [1], [1], [0, 0, 0, 1, 1, 1], [0], [0]>} : vector<4x5x8xbf16>, vector<4x5x8xbf16>, vector<4x5x5xf32> -> vector<4x5x5xf32>
    %cst_12 = arith.constant 0.353553385 : f32
    %50 = vector.broadcast %cst_12 : f32 to vector<4x5x5xf32>
    %51 = arith.mulf %49, %50 : vector<4x5x5xf32>
    %cst_13 = arith.constant dense<0xFF800000> : vector<4x5xf32>
    %52 = vector.multi_reduction <maximumf>, %51, %cst_13 [2] : vector<4x5x5xf32> to vector<4x5xf32>
    %53 = vector.shape_cast %52 : vector<4x5xf32> to vector<4x5x1xf32>
    %54 = vector.broadcast %53 : vector<4x5x1xf32> to vector<4x5x5xf32>
    %55 = arith.subf %51, %54 : vector<4x5x5xf32>
    %56 = math.exp %55 : vector<4x5x5xf32>
    %cst_14 = arith.constant dense<0.000000e+00> : vector<4x5xf32>
    %57 = vector.multi_reduction <add>, %56, %cst_14 [2] : vector<4x5x5xf32> to vector<4x5xf32>
    %58 = vector.shape_cast %57 : vector<4x5xf32> to vector<4x5x1xf32>
    %59 = tpu.reciprocal %58 {approx = true} : vector<4x5x1xf32> -> vector<4x5x1xf32>
    %60 = vector.broadcast %59 : vector<4x5x1xf32> to vector<4x5x5xf32>
    %61 = arith.mulf %56, %60 : vector<4x5x5xf32>
    %62 = arith.truncf %61 : vector<4x5x5xf32> to vector<4x5x5xbf16>
    %cst_15 = arith.constant dense<0.000000e+00> : vector<4x5x8xf32>
    %63 = tpu.matmul %62, %48, %cst_15 {dimension_numbers = #tpu.dot_dimension_numbers<[2], [1], [1], [2], [0, 0, 0, 1, 1, 2], [0], [0]>} : vector<4x5x5xbf16>, vector<4x5x8xbf16>, vector<4x5x8xf32> -> vector<4x5x8xf32>
    %64 = vector.extract_strided_slice %0 {offsets = [0, 0, 24], sizes = [4, 5, 8], strides = [1, 1, 1]} : vector<4x5x96xf32> to vector<4x5x8xf32>
    %65 = arith.truncf %64 : vector<4x5x8xf32> to vector<4x5x8xbf16>
    %66 = vector.extract_strided_slice %0 {offsets = [0, 0, 56], sizes = [4, 5, 8], strides = [1, 1, 1]} : vector<4x5x96xf32> to vector<4x5x8xf32>
    %67 = arith.truncf %66 : vector<4x5x8xf32> to vector<4x5x8xbf16>
    %68 = vector.extract_strided_slice %0 {offsets = [0, 0, 88], sizes = [4, 5, 8], strides = [1, 1, 1]} : vector<4x5x96xf32> to vector<4x5x8xf32>
    %69 = arith.truncf %68 : vector<4x5x8xf32> to vector<4x5x8xbf16>
    %cst_16 = arith.constant dense<0.000000e+00> : vector<4x5x5xf32>
    %70 = tpu.matmul %65, %67, %cst_16 {dimension_numbers = #tpu.dot_dimension_numbers<[2], [2], [1], [1], [0, 0, 0, 1, 1, 1], [0], [0]>} : vector<4x5x8xbf16>, vector<4x5x8xbf16>, vector<4x5x5xf32> -> vector<4x5x5xf32>
    %cst_17 = arith.constant 0.353553385 : f32
    %71 = vector.broadcast %cst_17 : f32 to vector<4x5x5xf32>
    %72 = arith.mulf %70, %71 : vector<4x5x5xf32>
    %cst_18 = arith.constant dense<0xFF800000> : vector<4x5xf32>
    %73 = vector.multi_reduction <maximumf>, %72, %cst_18 [2] : vector<4x5x5xf32> to vector<4x5xf32>
    %74 = vector.shape_cast %73 : vector<4x5xf32> to vector<4x5x1xf32>
    %75 = vector.broadcast %74 : vector<4x5x1xf32> to vector<4x5x5xf32>
    %76 = arith.subf %72, %75 : vector<4x5x5xf32>
    %77 = math.exp %76 : vector<4x5x5xf32>
    %cst_19 = arith.constant dense<0.000000e+00> : vector<4x5xf32>
    %78 = vector.multi_reduction <add>, %77, %cst_19 [2] : vector<4x5x5xf32> to vector<4x5xf32>
    %79 = vector.shape_cast %78 : vector<4x5xf32> to vector<4x5x1xf32>
    %80 = tpu.reciprocal %79 {approx = true} : vector<4x5x1xf32> -> vector<4x5x1xf32>
    %81 = vector.broadcast %80 : vector<4x5x1xf32> to vector<4x5x5xf32>
    %82 = arith.mulf %77, %81 : vector<4x5x5xf32>
    %83 = arith.truncf %82 : vector<4x5x5xf32> to vector<4x5x5xbf16>
    %cst_20 = arith.constant dense<0.000000e+00> : vector<4x5x8xf32>
    %84 = tpu.matmul %83, %69, %cst_20 {dimension_numbers = #tpu.dot_dimension_numbers<[2], [1], [1], [2], [0, 0, 0, 1, 1, 2], [0], [0]>} : vector<4x5x5xbf16>, vector<4x5x8xbf16>, vector<4x5x8xf32> -> vector<4x5x8xf32>
    %85 = tpu.concatenate %21, %42, %63, %84 in 2 : vector<4x5x8xf32>, vector<4x5x8xf32>, vector<4x5x8xf32>, vector<4x5x8xf32> -> vector<4x5x32xf32>
    %c0_21 = arith.constant 0 : index
    %c0_22 = arith.constant 0 : index
    %c0_23 = arith.constant 0 : index
    %86 = vector.load %arg2[%c0_21, %c0_22, %c0_23] : memref<4x5x32xf32, #tpu.memory_space<vmem>>, vector<4x5x32xf32>
    tpu.vector_store %arg2[%c0_21, %c0_22, %c0_23], %85 {strides = array<i32>} : memref<4x5x32xf32, #tpu.memory_space<vmem>>, vector<4x5x32xf32>,
    return
  }
  func.func @transform_0(%arg0: i32) -> (i32, i32, i32) {
    %c0_i32 = arith.constant 0 : i32
    %c0_i32_0 = arith.constant 0 : i32
    %c0_i32_1 = arith.constant 0 : i32
    return %arg0, %c0_i32, %c0_i32_0 : i32, i32, i32
  }
  func.func @transform_1(%arg0: i32) -> (i32, i32, i32) {
    %c0_i32 = arith.constant 0 : i32
    %c0_i32_0 = arith.constant 0 : i32
    %c0_i32_1 = arith.constant 0 : i32
    return %arg0, %c0_i32, %c0_i32_0 : i32, i32, i32
  }
}

module attributes {stable_mosaic.version = 11 : i64} {
  func.func @_adapter_kernel(%arg0: i32, %arg1: memref<80x32xf32, #tpu.memory_space<vmem>>, %arg2: memref<1x32xf32, #tpu.memory_space<vmem>>, %arg3: memref<1x32xf32, #tpu.memory_space<vmem>>, %arg4: memref<32x8xf32, #tpu.memory_space<vmem>>, %arg5: memref<1x8xf32, #tpu.memory_space<vmem>>, %arg6: memref<8x32xf32, #tpu.memory_space<vmem>>, %arg7: memref<1x32xf32, #tpu.memory_space<vmem>>, %arg8: memref<80x32xf32, #tpu.memory_space<vmem>>) attributes {dimension_semantics = [#tpu.dimension_semantics<parallel>], iteration_bounds = array<i64: 1>, scalar_prefetch = 0 : i64, scratch_operands = 0 : i64, tpu.core_type = #tpu.core_type<tc>, window_params = [{transform_indices = @transform_0, window_bounds = array<i64: 80, 32>}, {pipeline_mode = #tpu.pipeline_mode<synchronous>, transform_indices = @transform_1, window_bounds = array<i64: 1, 32>}, {pipeline_mode = #tpu.pipeline_mode<synchronous>, transform_indices = @transform_2, window_bounds = array<i64: 1, 32>}, {pipeline_mode = #tpu.pipeline_mode<synchronous>, transform_indices = @transform_3, window_bounds = array<i64: 32, 8>}, {pipeline_mode = #tpu.pipeline_mode<synchronous>, transform_indices = @transform_4, window_bounds = array<i64: 1, 8>}, {pipeline_mode = #tpu.pipeline_mode<synchronous>, transform_indices = @transform_5, window_bounds = array<i64: 8, 32>}, {pipeline_mode = #tpu.pipeline_mode<synchronous>, transform_indices = @transform_6, window_bounds = array<i64: 1, 32>}, {transform_indices = @transform_7, window_bounds = array<i64: 80, 32>}]} {
    %c0 = arith.constant 0 : index
    %c0_0 = arith.constant 0 : index
    %0 = vector.load %arg1[%c0, %c0_0] : memref<80x32xf32, #tpu.memory_space<vmem>>, vector<80x32xf32>
    %c0_1 = arith.constant 0 : index
    %c0_2 = arith.constant 0 : index
    %1 = vector.load %arg2[%c0_1, %c0_2] : memref<1x32xf32, #tpu.memory_space<vmem>>, vector<1x32xf32>
    %c0_3 = arith.constant 0 : index
    %c0_4 = arith.constant 0 : index
    %2 = vector.load %arg3[%c0_3, %c0_4] : memref<1x32xf32, #tpu.memory_space<vmem>>, vector<1x32xf32>
    %cst = arith.constant dense<0.000000e+00> : vector<80xf32>
    %3 = vector.multi_reduction <add>, %0, %cst [1] : vector<80x32xf32> to vector<80xf32>
    %4 = vector.shape_cast %3 : vector<80xf32> to vector<80x1xf32>
    %cst_5 = arith.constant 3.200000e+01 : f32
    %5 = vector.broadcast %cst_5 : f32 to vector<80x1xf32>
    %6 = arith.divf %4, %5 : vector<80x1xf32>
    %7 = vector.broadcast %6 : vector<80x1xf32> to vector<80x32xf32>
    %8 = arith.subf %0, %7 : vector<80x32xf32>
    %9 = arith.mulf %8, %8 : vector<80x32xf32>
    %cst_6 = arith.constant dense<0.000000e+00> : vector<80xf32>
    %10 = vector.multi_reduction <add>, %9, %cst_6 [1] : vector<80x32xf32> to vector<80xf32>
    %11 = vector.shape_cast %10 : vector<80xf32> to vector<80x1xf32>
    %cst_7 = arith.constant 3.200000e+01 : f32
    %12 = vector.broadcast %cst_7 : f32 to vector<80x1xf32>
    %13 = arith.divf %11, %12 : vector<80x1xf32>
    %14 = vector.broadcast %6 : vector<80x1xf32> to vector<80x32xf32>
    %15 = arith.subf %0, %14 : vector<80x32xf32>
    %cst_8 = arith.constant 9.99999974E-6 : f32
    %16 = vector.broadcast %cst_8 : f32 to vector<80x1xf32>
    %17 = arith.addf %13, %16 : vector<80x1xf32>
    %18 = math.rsqrt %17 : vector<80x1xf32>
    %19 = vector.broadcast %18 : vector<80x1xf32> to vector<80x32xf32>
    %20 = arith.mulf %15, %19 : vector<80x32xf32>
    %21 = vector.broadcast %1 : vector<1x32xf32> to vector<80x32xf32>
    %22 = arith.mulf %20, %21 : vector<80x32xf32>
    %23 = vector.broadcast %2 : vector<1x32xf32> to vector<80x32xf32>
    %24 = arith.addf %22, %23 : vector<80x32xf32>
    %c0_9 = arith.constant 0 : index
    %c0_10 = arith.constant 0 : index
    %25 = vector.load %arg4[%c0_9, %c0_10] : memref<32x8xf32, #tpu.memory_space<vmem>>, vector<32x8xf32>
    %26 = arith.truncf %24 : vector<80x32xf32> to vector<80x32xbf16>
    %27 = arith.truncf %25 : vector<32x8xf32> to vector<32x8xbf16>
    %cst_11 = arith.constant dense<0.000000e+00> : vector<80x8xf32>
    %28 = tpu.matmul %26, %27, %cst_11 {dimension_numbers = #tpu.dot_dimension_numbers<[1], [0], [0], [1], [0, 0, 1, 1], [], []>} : vector<80x32xbf16>, vector<32x8xbf16>, vector<80x8xf32> -> vector<80x8xf32>
    %c0_12 = arith.constant 0 : index
    %c0_13 = arith.constant 0 : index
    %29 = vector.load %arg5[%c0_12, %c0_13] : memref<1x8xf32, #tpu.memory_space<vmem>>, vector<1x8xf32>
    %30 = vector.broadcast %29 : vector<1x8xf32> to vector<80x8xf32>
    %31 = arith.addf %28, %30 : vector<80x8xf32>
    %cst_14 = arith.constant 5.000000e-01 : f32
    %32 = vector.broadcast %cst_14 : f32 to vector<80x8xf32>
    %33 = arith.mulf %32, %31 : vector<80x8xf32>
    %cst_15 = arith.constant 0.707106769 : f32
    %34 = vector.broadcast %cst_15 : f32 to vector<80x8xf32>
    %35 = arith.mulf %31, %34 : vector<80x8xf32>
    %36 = math.erf %35 : vector<80x8xf32>
    %cst_16 = arith.constant 1.000000e+00 : f32
    %37 = vector.broadcast %cst_16 : f32 to vector<80x8xf32>
    %38 = arith.addf %37, %36 : vector<80x8xf32>
    %39 = arith.mulf %33, %38 : vector<80x8xf32>
    %c0_17 = arith.constant 0 : index
    %c0_18 = arith.constant 0 : index
    %40 = vector.load %arg6[%c0_17, %c0_18] : memref<8x32xf32, #tpu.memory_space<vmem>>, vector<8x32xf32>
    %41 = arith.truncf %39 : vector<80x8xf32> to vector<80x8xbf16>
    %42 = arith.truncf %40 : vector<8x32xf32> to vector<8x32xbf16>
    %cst_19 = arith.constant dense<0.000000e+00> : vector<80x32xf32>
    %43 = tpu.matmul %41, %42, %cst_19 {dimension_numbers = #tpu.dot_dimension_numbers<[1], [0], [0], [1], [0, 0, 1, 1], [], []>} : vector<80x8xbf16>, vector<8x32xbf16>, vector<80x32xf32> -> vector<80x32xf32>
    %c0_20 = arith.constant 0 : index
    %c0_21 = arith.constant 0 : index
    %44 = vector.load %arg7[%c0_20, %c0_21] : memref<1x32xf32, #tpu.memory_space<vmem>>, vector<1x32xf32>
    %45 = vector.broadcast %44 : vector<1x32xf32> to vector<80x32xf32>
    %46 = arith.addf %43, %45 : vector<80x32xf32>
    %c0_22 = arith.constant 0 : index
    %c0_23 = arith.constant 0 : index
    %47 = vector.load %arg8[%c0_22, %c0_23] : memref<80x32xf32, #tpu.memory_space<vmem>>, vector<80x32xf32>
    tpu.vector_store %arg8[%c0_22, %c0_23], %46 {strides = array<i32>} : memref<80x32xf32, #tpu.memory_space<vmem>>, vector<80x32xf32>,
    return
  }
  func.func @transform_0(%arg0: i32) -> (i32, i32) {
    %c0_i32 = arith.constant 0 : i32
    %c0_i32_0 = arith.constant 0 : i32
    return %arg0, %c0_i32 : i32, i32
  }
  func.func @transform_1(%arg0: i32) -> (i32, i32) {
    %c0_i32 = arith.constant 0 : i32
    %c0_i32_0 = arith.constant 0 : i32
    %c0_i32_1 = arith.constant 0 : i32
    return %c0_i32, %c0_i32_0 : i32, i32
  }
  func.func @transform_2(%arg0: i32) -> (i32, i32) {
    %c0_i32 = arith.constant 0 : i32
    %c0_i32_0 = arith.constant 0 : i32
    %c0_i32_1 = arith.constant 0 : i32
    return %c0_i32, %c0_i32_0 : i32, i32
  }
  func.func @transform_3(%arg0: i32) -> (i32, i32) {
    %c0_i32 = arith.constant 0 : i32
    %c0_i32_0 = arith.constant 0 : i32
    %c0_i32_1 = arith.constant 0 : i32
    return %c0_i32, %c0_i32_0 : i32, i32
  }
  func.func @transform_4(%arg0: i32) -> (i32, i32) {
    %c0_i32 = arith.constant 0 : i32
    %c0_i32_0 = arith.constant 0 : i32
    %c0_i32_1 = arith.constant 0 : i32
    return %c0_i32, %c0_i32_0 : i32, i32
  }
  func.func @transform_5(%arg0: i32) -> (i32, i32) {
    %c0_i32 = arith.constant 0 : i32
    %c0_i32_0 = arith.constant 0 : i32
    %c0_i32_1 = arith.constant 0 : i32
    return %c0_i32, %c0_i32_0 : i32, i32
  }
  func.func @transform_6(%arg0: i32) -> (i32, i32) {
    %c0_i32 = arith.constant 0 : i32
    %c0_i32_0 = arith.constant 0 : i32
    %c0_i32_1 = arith.constant 0 : i32
    return %c0_i32, %c0_i32_0 : i32, i32
  }
  func.func @transform_7(%arg0: i32) -> (i32, i32) {
    %c0_i32 = arith.constant 0 : i32
    %c0_i32_0 = arith.constant 0 : i32
    return %arg0, %c0_i32 : i32, i32
  }
}

module attributes {stable_mosaic.version = 11 : i64} {
  func.func @_linear_kernel(%arg0: i32, %arg1: i32, %arg2: i32, %arg3: memref<80x32xf32, #tpu.memory_space<vmem>>, %arg4: memref<32x32xf32, #tpu.memory_space<vmem>>, %arg5: memref<1x32xf32, #tpu.memory_space<vmem>>, %arg6: memref<80x32xf32, #tpu.memory_space<vmem>>, %arg7: memref<80x32xf32, #tpu.memory_space<vmem>>, %arg8: memref<80x32xf32, #tpu.memory_space<vmem>>, %arg9: memref<80x32xf32, #tpu.memory_space<vmem>>) attributes {dimension_semantics = [#tpu.dimension_semantics<parallel>, #tpu.dimension_semantics<parallel>, #tpu.dimension_semantics<arbitrary>], iteration_bounds = array<i64: 1, 1, 1>, scalar_prefetch = 0 : i64, scratch_operands = 1 : i64, tpu.core_type = #tpu.core_type<tc>, window_params = [{transform_indices = @transform_0, window_bounds = array<i64: 80, 32>}, {transform_indices = @transform_1, window_bounds = array<i64: 32, 32>}, {transform_indices = @transform_2, window_bounds = array<i64: 1, 32>}, {transform_indices = @transform_3, window_bounds = array<i64: 80, 32>}, {transform_indices = @transform_4, window_bounds = array<i64: 80, 32>}, {transform_indices = @transform_5, window_bounds = array<i64: 80, 32>}]} {
    %c0_i32 = arith.constant 0 : i32
    %0 = arith.cmpi eq, %arg2, %c0_i32 : i32
    %1 = arith.extui %0 : i1 to i32
    %c0_i32_0 = arith.constant 0 : i32
    %2 = arith.cmpi ne, %1, %c0_i32_0 : i32
    scf.if %2 {
      %cst_10 = arith.constant 0.000000e+00 : f32
      %14 = vector.broadcast %cst_10 : f32 to vector<80x32xf32>
      %c0_11 = arith.constant 0 : index
      %c0_12 = arith.constant 0 : index
      %15 = vector.load %arg9[%c0_11, %c0_12] : memref<80x32xf32, #tpu.memory_space<vmem>>, vector<80x32xf32>
      tpu.vector_store %arg9[%c0_11, %c0_12], %14 {strides = array<i32>} : memref<80x32xf32, #tpu.memory_space<vmem>>, vector<80x32xf32>,
    } else {
    }
    %c0 = arith.constant 0 : index
    %c0_1 = arith.constant 0 : index
    %3 = vector.load %arg9[%c0, %c0_1] : memref<80x32xf32, #tpu.memory_space<vmem>>, vector<80x32xf32>
    %c0_2 = arith.constant 0 : index
    %c0_3 = arith.constant 0 : index
    %4 = vector.load %arg3[%c0_2, %c0_3] : memref<80x32xf32, #tpu.memory_space<vmem>>, vector<80x32xf32>
    %c0_4 = arith.constant 0 : index
    %c0_5 = arith.constant 0 : index
    %5 = vector.load %arg4[%c0_4, %c0_5] : memref<32x32xf32, #tpu.memory_space<vmem>>, vector<32x32xf32>
    %6 = arith.truncf %4 : vector<80x32xf32> to vector<80x32xbf16>
    %7 = arith.truncf %5 : vector<32x32xf32> to vector<32x32xbf16>
    %cst = arith.constant dense<0.000000e+00> : vector<80x32xf32>
    %8 = tpu.matmul %6, %7, %cst {dimension_numbers = #tpu.dot_dimension_numbers<[1], [0], [0], [1], [0, 0, 1, 1], [], []>} : vector<80x32xbf16>, vector<32x32xbf16>, vector<80x32xf32> -> vector<80x32xf32>
    %9 = arith.addf %3, %8 : vector<80x32xf32>
    %c0_6 = arith.constant 0 : index
    %c0_7 = arith.constant 0 : index
    %10 = vector.load %arg9[%c0_6, %c0_7] : memref<80x32xf32, #tpu.memory_space<vmem>>, vector<80x32xf32>
    tpu.vector_store %arg9[%c0_6, %c0_7], %9 {strides = array<i32>} : memref<80x32xf32, #tpu.memory_space<vmem>>, vector<80x32xf32>,
    %c0_i32_8 = arith.constant 0 : i32
    %11 = arith.cmpi eq, %arg2, %c0_i32_8 : i32
    %12 = arith.extui %11 : i1 to i32
    %c0_i32_9 = arith.constant 0 : i32
    %13 = arith.cmpi ne, %12, %c0_i32_9 : i32
    scf.if %13 {
      %c0_10 = arith.constant 0 : index
      %c0_11 = arith.constant 0 : index
      %14 = vector.load %arg9[%c0_10, %c0_11] : memref<80x32xf32, #tpu.memory_space<vmem>>, vector<80x32xf32>
      %c0_12 = arith.constant 0 : index
      %c0_13 = arith.constant 0 : index
      %15 = vector.load %arg5[%c0_12, %c0_13] : memref<1x32xf32, #tpu.memory_space<vmem>>, vector<1x32xf32>
      %16 = vector.broadcast %15 : vector<1x32xf32> to vector<80x32xf32>
      %17 = arith.addf %14, %16 : vector<80x32xf32>
      %c0_14 = arith.constant 0 : index
      %c0_15 = arith.constant 0 : index
      %18 = vector.load %arg6[%c0_14, %c0_15] : memref<80x32xf32, #tpu.memory_space<vmem>>, vector<80x32xf32>
      %19 = arith.addf %17, %18 : vector<80x32xf32>
      %c0_16 = arith.constant 0 : index
      %c0_17 = arith.constant 0 : index
      %20 = vector.load %arg7[%c0_16, %c0_17] : memref<80x32xf32, #tpu.memory_space<vmem>>, vector<80x32xf32>
      %21 = arith.addf %19, %20 : vector<80x32xf32>
      %c0_18 = arith.constant 0 : index
      %c0_19 = arith.constant 0 : index
      %22 = vector.load %arg8[%c0_18, %c0_19] : memref<80x32xf32, #tpu.memory_space<vmem>>, vector<80x32xf32>
      tpu.vector_store %arg8[%c0_18, %c0_19], %21 {strides = array<i32>} : memref<80x32xf32, #tpu.memory_space<vmem>>, vector<80x32xf32>,
    } else {
    }
    return
  }
  func.func @transform_0(%arg0: i32, %arg1: i32, %arg2: i32) -> (i32, i32) {
    %c0_i32 = arith.constant 0 : i32
    return %arg0, %arg2 : i32, i32
  }
  func.func @transform_1(%arg0: i32, %arg1: i32, %arg2: i32) -> (i32, i32) {
    %c0_i32 = arith.constant 0 : i32
    return %arg2, %arg1 : i32, i32
  }
  func.func @transform_2(%arg0: i32, %arg1: i32, %arg2: i32) -> (i32, i32) {
    %c0_i32 = arith.constant 0 : i32
    %c0_i32_0 = arith.constant 0 : i32
    return %c0_i32, %arg1 : i32, i32
  }
  func.func @transform_3(%arg0: i32, %arg1: i32, %arg2: i32) -> (i32, i32) {
    %c0_i32 = arith.constant 0 : i32
    return %arg0, %arg1 : i32, i32
  }
  func.func @transform_4(%arg0: i32, %arg1: i32, %arg2: i32) -> (i32, i32) {
    %c0_i32 = arith.constant 0 : i32
    return %arg0, %arg1 : i32, i32
  }
  func.func @transform_5(%arg0: i32, %arg1: i32, %arg2: i32) -> (i32, i32) {
    %c0_i32 = arith.constant 0 : i32
    return %arg0, %arg1 : i32, i32
  }
}

module attributes {stable_mosaic.version = 11 : i64} {
  func.func @_mlp_kernel(%arg0: i32, %arg1: i32, %arg2: memref<80x32xf32, #tpu.memory_space<vmem>>, %arg3: memref<1x32xf32, #tpu.memory_space<vmem>>, %arg4: memref<1x32xf32, #tpu.memory_space<vmem>>, %arg5: memref<32x128xf32, #tpu.memory_space<vmem>>, %arg6: memref<1x128xf32, #tpu.memory_space<vmem>>, %arg7: memref<128x32xf32, #tpu.memory_space<vmem>>, %arg8: memref<1x32xf32, #tpu.memory_space<vmem>>, %arg9: memref<32x8xf32, #tpu.memory_space<vmem>>, %arg10: memref<1x8xf32, #tpu.memory_space<vmem>>, %arg11: memref<8x32xf32, #tpu.memory_space<vmem>>, %arg12: memref<1x32xf32, #tpu.memory_space<vmem>>, %arg13: memref<80x32xf32, #tpu.memory_space<vmem>>, %arg14: memref<80x32xf32, #tpu.memory_space<vmem>>, %arg15: memref<80x32xf32, #tpu.memory_space<vmem>>) attributes {dimension_semantics = [#tpu.dimension_semantics<parallel>, #tpu.dimension_semantics<arbitrary>], iteration_bounds = array<i64: 1, 1>, scalar_prefetch = 0 : i64, scratch_operands = 1 : i64, tpu.core_type = #tpu.core_type<tc>, window_params = [{transform_indices = @transform_0, window_bounds = array<i64: 80, 32>}, {pipeline_mode = #tpu.pipeline_mode<synchronous>, transform_indices = @transform_1, window_bounds = array<i64: 1, 32>}, {pipeline_mode = #tpu.pipeline_mode<synchronous>, transform_indices = @transform_2, window_bounds = array<i64: 1, 32>}, {transform_indices = @transform_3, window_bounds = array<i64: 32, 128>}, {transform_indices = @transform_4, window_bounds = array<i64: 1, 128>}, {transform_indices = @transform_5, window_bounds = array<i64: 128, 32>}, {pipeline_mode = #tpu.pipeline_mode<synchronous>, transform_indices = @transform_6, window_bounds = array<i64: 1, 32>}, {pipeline_mode = #tpu.pipeline_mode<synchronous>, transform_indices = @transform_7, window_bounds = array<i64: 32, 8>}, {pipeline_mode = #tpu.pipeline_mode<synchronous>, transform_indices = @transform_8, window_bounds = array<i64: 1, 8>}, {pipeline_mode = #tpu.pipeline_mode<synchronous>, transform_indices = @transform_9, window_bounds = array<i64: 8, 32>}, {pipeline_mode = #tpu.pipeline_mode<synchronous>, transform_indices = @transform_10, window_bounds = array<i64: 1, 32>}, {transform_indices = @transform_11, window_bounds = array<i64: 80, 32>}, {transform_indices = @transform_12, window_bounds = array<i64: 80, 32>}]} {
    %c0 = arith.constant 0 : index
    %c0_0 = arith.constant 0 : index
    %0 = vector.load %arg2[%c0, %c0_0] : memref<80x32xf32, #tpu.memory_space<vmem>>, vector<80x32xf32>
    %c0_1 = arith.constant 0 : index
    %c0_2 = arith.constant 0 : index
    %1 = vector.load %arg3[%c0_1, %c0_2] : memref<1x32xf32, #tpu.memory_space<vmem>>, vector<1x32xf32>
    %c0_3 = arith.constant 0 : index
    %c0_4 = arith.constant 0 : index
    %2 = vector.load %arg4[%c0_3, %c0_4] : memref<1x32xf32, #tpu.memory_space<vmem>>, vector<1x32xf32>
    %cst = arith.constant dense<0.000000e+00> : vector<80xf32>
    %3 = vector.multi_reduction <add>, %0, %cst [1] : vector<80x32xf32> to vector<80xf32>
    %4 = vector.shape_cast %3 : vector<80xf32> to vector<80x1xf32>
    %cst_5 = arith.constant 3.200000e+01 : f32
    %5 = vector.broadcast %cst_5 : f32 to vector<80x1xf32>
    %6 = arith.divf %4, %5 : vector<80x1xf32>
    %7 = vector.broadcast %6 : vector<80x1xf32> to vector<80x32xf32>
    %8 = arith.subf %0, %7 : vector<80x32xf32>
    %9 = arith.mulf %8, %8 : vector<80x32xf32>
    %cst_6 = arith.constant dense<0.000000e+00> : vector<80xf32>
    %10 = vector.multi_reduction <add>, %9, %cst_6 [1] : vector<80x32xf32> to vector<80xf32>
    %11 = vector.shape_cast %10 : vector<80xf32> to vector<80x1xf32>
    %cst_7 = arith.constant 3.200000e+01 : f32
    %12 = vector.broadcast %cst_7 : f32 to vector<80x1xf32>
    %13 = arith.divf %11, %12 : vector<80x1xf32>
    %14 = vector.broadcast %6 : vector<80x1xf32> to vector<80x32xf32>
    %15 = arith.subf %0, %14 : vector<80x32xf32>
    %cst_8 = arith.constant 9.99999974E-6 : f32
    %16 = vector.broadcast %cst_8 : f32 to vector<80x1xf32>
    %17 = arith.addf %13, %16 : vector<80x1xf32>
    %18 = math.rsqrt %17 : vector<80x1xf32>
    %19 = vector.broadcast %18 : vector<80x1xf32> to vector<80x32xf32>
    %20 = arith.mulf %15, %19 : vector<80x32xf32>
    %21 = vector.broadcast %1 : vector<1x32xf32> to vector<80x32xf32>
    %22 = arith.mulf %20, %21 : vector<80x32xf32>
    %23 = vector.broadcast %2 : vector<1x32xf32> to vector<80x32xf32>
    %24 = arith.addf %22, %23 : vector<80x32xf32>
    %c0_i32 = arith.constant 0 : i32
    %25 = arith.cmpi eq, %arg1, %c0_i32 : i32
    %26 = arith.extui %25 : i1 to i32
    %c0_i32_9 = arith.constant 0 : i32
    %27 = arith.cmpi ne, %26, %c0_i32_9 : i32
    scf.if %27 {
      %cst_26 = arith.constant 0.000000e+00 : f32
      %53 = vector.broadcast %cst_26 : f32 to vector<80x32xf32>
      %c0_27 = arith.constant 0 : index
      %c0_28 = arith.constant 0 : index
      %54 = vector.load %arg13[%c0_27, %c0_28] : memref<80x32xf32, #tpu.memory_space<vmem>>, vector<80x32xf32>
      %55 = arith.addf %53, %54 : vector<80x32xf32>
      %c0_29 = arith.constant 0 : index
      %c0_30 = arith.constant 0 : index
      %56 = vector.load %arg9[%c0_29, %c0_30] : memref<32x8xf32, #tpu.memory_space<vmem>>, vector<32x8xf32>
      %57 = arith.truncf %24 : vector<80x32xf32> to vector<80x32xbf16>
      %58 = arith.truncf %56 : vector<32x8xf32> to vector<32x8xbf16>
      %cst_31 = arith.constant dense<0.000000e+00> : vector<80x8xf32>
      %59 = tpu.matmul %57, %58, %cst_31 {dimension_numbers = #tpu.dot_dimension_numbers<[1], [0], [0], [1], [0, 0, 1, 1], [], []>} : vector<80x32xbf16>, vector<32x8xbf16>, vector<80x8xf32> -> vector<80x8xf32>
      %c0_32 = arith.constant 0 : index
      %c0_33 = arith.constant 0 : index
      %60 = vector.load %arg10[%c0_32, %c0_33] : memref<1x8xf32, #tpu.memory_space<vmem>>, vector<1x8xf32>
      %61 = vector.broadcast %60 : vector<1x8xf32> to vector<80x8xf32>
      %62 = arith.addf %59, %61 : vector<80x8xf32>
      %cst_34 = arith.constant 5.000000e-01 : f32
      %63 = vector.broadcast %cst_34 : f32 to vector<80x8xf32>
      %64 = arith.mulf %63, %62 : vector<80x8xf32>
      %cst_35 = arith.constant 0.707106769 : f32
      %65 = vector.broadcast %cst_35 : f32 to vector<80x8xf32>
      %66 = arith.mulf %62, %65 : vector<80x8xf32>
      %67 = math.erf %66 : vector<80x8xf32>
      %cst_36 = arith.constant 1.000000e+00 : f32
      %68 = vector.broadcast %cst_36 : f32 to vector<80x8xf32>
      %69 = arith.addf %68, %67 : vector<80x8xf32>
      %70 = arith.mulf %64, %69 : vector<80x8xf32>
      %c0_37 = arith.constant 0 : index
      %c0_38 = arith.constant 0 : index
      %71 = vector.load %arg11[%c0_37, %c0_38] : memref<8x32xf32, #tpu.memory_space<vmem>>, vector<8x32xf32>
      %72 = arith.truncf %70 : vector<80x8xf32> to vector<80x8xbf16>
      %73 = arith.truncf %71 : vector<8x32xf32> to vector<8x32xbf16>
      %cst_39 = arith.constant dense<0.000000e+00> : vector<80x32xf32>
      %74 = tpu.matmul %72, %73, %cst_39 {dimension_numbers = #tpu.dot_dimension_numbers<[1], [0], [0], [1], [0, 0, 1, 1], [], []>} : vector<80x8xbf16>, vector<8x32xbf16>, vector<80x32xf32> -> vector<80x32xf32>
      %75 = arith.addf %55, %74 : vector<80x32xf32>
      %c0_40 = arith.constant 0 : index
      %c0_41 = arith.constant 0 : index
      %76 = vector.load %arg12[%c0_40, %c0_41] : memref<1x32xf32, #tpu.memory_space<vmem>>, vector<1x32xf32>
      %77 = vector.broadcast %76 : vector<1x32xf32> to vector<80x32xf32>
      %78 = arith.addf %75, %77 : vector<80x32xf32>
      %c0_42 = arith.constant 0 : index
      %c0_43 = arith.constant 0 : index
      %79 = vector.load %arg15[%c0_42, %c0_43] : memref<80x32xf32, #tpu.memory_space<vmem>>, vector<80x32xf32>
      tpu.vector_store %arg15[%c0_42, %c0_43], %78 {strides = array<i32>} : memref<80x32xf32, #tpu.memory_space<vmem>>, vector<80x32xf32>,
    } else {
    }
    %c0_10 = arith.constant 0 : index
    %c0_11 = arith.constant 0 : index
    %28 = vector.load %arg5[%c0_10, %c0_11] : memref<32x128xf32, #tpu.memory_space<vmem>>, vector<32x128xf32>
    %29 = arith.truncf %24 : vector<80x32xf32> to vector<80x32xbf16>
    %30 = arith.truncf %28 : vector<32x128xf32> to vector<32x128xbf16>
    %cst_12 = arith.constant dense<0.000000e+00> : vector<80x128xf32>
    %31 = tpu.matmul %29, %30, %cst_12 {dimension_numbers = #tpu.dot_dimension_numbers<[1], [0], [0], [1], [0, 0, 1, 1], [], []>} : vector<80x32xbf16>, vector<32x128xbf16>, vector<80x128xf32> -> vector<80x128xf32>
    %c0_13 = arith.constant 0 : index
    %c0_14 = arith.constant 0 : index
    %32 = vector.load %arg6[%c0_13, %c0_14] : memref<1x128xf32, #tpu.memory_space<vmem>>, vector<1x128xf32>
    %33 = vector.broadcast %32 : vector<1x128xf32> to vector<80x128xf32>
    %34 = arith.addf %31, %33 : vector<80x128xf32>
    %cst_15 = arith.constant 1.702000e+00 : f32
    %35 = vector.broadcast %cst_15 : f32 to vector<80x128xf32>
    %36 = arith.mulf %35, %34 : vector<80x128xf32>
    %37 = arith.negf %36 : vector<80x128xf32>
    %38 = math.exp %37 : vector<80x128xf32>
    %cst_16 = arith.constant 1.000000e+00 : f32
    %39 = vector.broadcast %cst_16 : f32 to vector<80x128xf32>
    %40 = arith.addf %39, %38 : vector<80x128xf32>
    %41 = arith.divf %39, %40 : vector<80x128xf32>
    %42 = arith.mulf %34, %41 : vector<80x128xf32>
    %c0_17 = arith.constant 0 : index
    %c0_18 = arith.constant 0 : index
    %43 = vector.load %arg15[%c0_17, %c0_18] : memref<80x32xf32, #tpu.memory_space<vmem>>, vector<80x32xf32>
    %c0_19 = arith.constant 0 : index
    %c0_20 = arith.constant 0 : index
    %44 = vector.load %arg7[%c0_19, %c0_20] : memref<128x32xf32, #tpu.memory_space<vmem>>, vector<128x32xf32>
    %45 = arith.truncf %42 : vector<80x128xf32> to vector<80x128xbf16>
    %46 = arith.truncf %44 : vector<128x32xf32> to vector<128x32xbf16>
    %cst_21 = arith.constant dense<0.000000e+00> : vector<80x32xf32>
    %47 = tpu.matmul %45, %46, %cst_21 {dimension_numbers = #tpu.dot_dimension_numbers<[1], [0], [0], [1], [0, 0, 1, 1], [], []>} : vector<80x128xbf16>, vector<128x32xbf16>, vector<80x32xf32> -> vector<80x32xf32>
    %48 = arith.addf %43, %47 : vector<80x32xf32>
    %c0_22 = arith.constant 0 : index
    %c0_23 = arith.constant 0 : index
    %49 = vector.load %arg15[%c0_22, %c0_23] : memref<80x32xf32, #tpu.memory_space<vmem>>, vector<80x32xf32>
    tpu.vector_store %arg15[%c0_22, %c0_23], %48 {strides = array<i32>} : memref<80x32xf32, #tpu.memory_space<vmem>>, vector<80x32xf32>,
    %c0_i32_24 = arith.constant 0 : i32
    %50 = arith.cmpi eq, %arg1, %c0_i32_24 : i32
    %51 = arith.extui %50 : i1 to i32
    %c0_i32_25 = arith.constant 0 : i32
    %52 = arith.cmpi ne, %51, %c0_i32_25 : i32
    scf.if %52 {
      %c0_26 = arith.constant 0 : index
      %c0_27 = arith.constant 0 : index
      %53 = vector.load %arg15[%c0_26, %c0_27] : memref<80x32xf32, #tpu.memory_space<vmem>>, vector<80x32xf32>
      %c0_28 = arith.constant 0 : index
      %c0_29 = arith.constant 0 : index
      %54 = vector.load %arg8[%c0_28, %c0_29] : memref<1x32xf32, #tpu.memory_space<vmem>>, vector<1x32xf32>
      %55 = vector.broadcast %54 : vector<1x32xf32> to vector<80x32xf32>
      %56 = arith.addf %53, %55 : vector<80x32xf32>
      %c0_30 = arith.constant 0 : index
      %c0_31 = arith.constant 0 : index
      %57 = vector.load %arg14[%c0_30, %c0_31] : memref<80x32xf32, #tpu.memory_space<vmem>>, vector<80x32xf32>
      tpu.vector_store %arg14[%c0_30, %c0_31], %56 {strides = array<i32>} : memref<80x32xf32, #tpu.memory_space<vmem>>, vector<80x32xf32>,
    } else {
    }
    return
  }
  func.func @transform_0(%arg0: i32, %arg1: i32) -> (i32, i32) {
    %c0_i32 = arith.constant 0 : i32
    %c0_i32_0 = arith.constant 0 : i32
    return %arg0, %c0_i32 : i32, i32
  }
  func.func @transform_1(%arg0: i32, %arg1: i32) -> (i32, i32) {
    %c0_i32 = arith.constant 0 : i32
    %c0_i32_0 = arith.constant 0 : i32
    %c0_i32_1 = arith.constant 0 : i32
    return %c0_i32, %c0_i32_0 : i32, i32
  }
  func.func @transform_2(%arg0: i32, %arg1: i32) -> (i32, i32) {
    %c0_i32 = arith.constant 0 : i32
    %c0_i32_0 = arith.constant 0 : i32
    %c0_i32_1 = arith.constant 0 : i32
    return %c0_i32, %c0_i32_0 : i32, i32
  }
  func.func @transform_3(%arg0: i32, %arg1: i32) -> (i32, i32) {
    %c0_i32 = arith.constant 0 : i32
    %c0_i32_0 = arith.constant 0 : i32
    return %c0_i32, %arg1 : i32, i32
  }
  func.func @transform_4(%arg0: i32, %arg1: i32) -> (i32, i32) {
    %c0_i32 = arith.constant 0 : i32
    %c0_i32_0 = arith.constant 0 : i32
    return %c0_i32, %arg1 : i32, i32
  }
  func.func @transform_5(%arg0: i32, %arg1: i32) -> (i32, i32) {
    %c0_i32 = arith.constant 0 : i32
    %c0_i32_0 = arith.constant 0 : i32
    return %arg1, %c0_i32 : i32, i32
  }
  func.func @transform_6(%arg0: i32, %arg1: i32) -> (i32, i32) {
    %c0_i32 = arith.constant 0 : i32
    %c0_i32_0 = arith.constant 0 : i32
    %c0_i32_1 = arith.constant 0 : i32
    return %c0_i32, %c0_i32_0 : i32, i32
  }
  func.func @transform_7(%arg0: i32, %arg1: i32) -> (i32, i32) {
    %c0_i32 = arith.constant 0 : i32
    %c0_i32_0 = arith.constant 0 : i32
    %c0_i32_1 = arith.constant 0 : i32
    return %c0_i32, %c0_i32_0 : i32, i32
  }
  func.func @transform_8(%arg0: i32, %arg1: i32) -> (i32, i32) {
    %c0_i32 = arith.constant 0 : i32
    %c0_i32_0 = arith.constant 0 : i32
    %c0_i32_1 = arith.constant 0 : i32
    return %c0_i32, %c0_i32_0 : i32, i32
  }
  func.func @transform_9(%arg0: i32, %arg1: i32) -> (i32, i32) {
    %c0_i32 = arith.constant 0 : i32
    %c0_i32_0 = arith.constant 0 : i32
    %c0_i32_1 = arith.constant 0 : i32
    return %c0_i32, %c0_i32_0 : i32, i32
  }
  func.func @transform_10(%arg0: i32, %arg1: i32) -> (i32, i32) {
    %c0_i32 = arith.constant 0 : i32
    %c0_i32_0 = arith.constant 0 : i32
    %c0_i32_1 = arith.constant 0 : i32
    return %c0_i32, %c0_i32_0 : i32, i32
  }
  func.func @transform_11(%arg0: i32, %arg1: i32) -> (i32, i32) {
    %c0_i32 = arith.constant 0 : i32
    %c0_i32_0 = arith.constant 0 : i32
    return %arg0, %c0_i32 : i32, i32
  }
  func.func @transform_12(%arg0: i32, %arg1: i32) -> (i32, i32) {
    %c0_i32 = arith.constant 0 : i32
    %c0_i32_0 = arith.constant 0 : i32
    return %arg0, %c0_i32 : i32, i32
  }
}

module attributes {stable_mosaic.version = 11 : i64} {
  func.func @_linear_kernel(%arg0: i32, %arg1: i32, %arg2: i32, %arg3: memref<2x32xf32, #tpu.memory_space<vmem>>, %arg4: memref<32x7xf32, #tpu.memory_space<vmem>>, %arg5: memref<1x7xf32, #tpu.memory_space<vmem>>, %arg6: memref<2x7xf32, #tpu.memory_space<vmem>>, %arg7: memref<2x7xf32, #tpu.memory_space<vmem>>) attributes {dimension_semantics = [#tpu.dimension_semantics<parallel>, #tpu.dimension_semantics<parallel>, #tpu.dimension_semantics<arbitrary>], iteration_bounds = array<i64: 1, 1, 1>, scalar_prefetch = 0 : i64, scratch_operands = 1 : i64, tpu.core_type = #tpu.core_type<tc>, window_params = [{transform_indices = @transform_0, window_bounds = array<i64: 2, 32>}, {transform_indices = @transform_1, window_bounds = array<i64: 32, 7>}, {transform_indices = @transform_2, window_bounds = array<i64: 1, 7>}, {transform_indices = @transform_3, window_bounds = array<i64: 2, 7>}]} {
    %c0_i32 = arith.constant 0 : i32
    %0 = arith.cmpi eq, %arg2, %c0_i32 : i32
    %1 = arith.extui %0 : i1 to i32
    %c0_i32_0 = arith.constant 0 : i32
    %2 = arith.cmpi ne, %1, %c0_i32_0 : i32
    scf.if %2 {
      %cst_10 = arith.constant 0.000000e+00 : f32
      %14 = vector.broadcast %cst_10 : f32 to vector<2x7xf32>
      %c0_11 = arith.constant 0 : index
      %c0_12 = arith.constant 0 : index
      %15 = vector.load %arg7[%c0_11, %c0_12] : memref<2x7xf32, #tpu.memory_space<vmem>>, vector<2x7xf32>
      tpu.vector_store %arg7[%c0_11, %c0_12], %14 {strides = array<i32>} : memref<2x7xf32, #tpu.memory_space<vmem>>, vector<2x7xf32>,
    } else {
    }
    %c0 = arith.constant 0 : index
    %c0_1 = arith.constant 0 : index
    %3 = vector.load %arg7[%c0, %c0_1] : memref<2x7xf32, #tpu.memory_space<vmem>>, vector<2x7xf32>
    %c0_2 = arith.constant 0 : index
    %c0_3 = arith.constant 0 : index
    %4 = vector.load %arg3[%c0_2, %c0_3] : memref<2x32xf32, #tpu.memory_space<vmem>>, vector<2x32xf32>
    %c0_4 = arith.constant 0 : index
    %c0_5 = arith.constant 0 : index
    %5 = vector.load %arg4[%c0_4, %c0_5] : memref<32x7xf32, #tpu.memory_space<vmem>>, vector<32x7xf32>
    %6 = arith.truncf %4 : vector<2x32xf32> to vector<2x32xbf16>
    %7 = arith.truncf %5 : vector<32x7xf32> to vector<32x7xbf16>
    %cst = arith.constant dense<0.000000e+00> : vector<2x7xf32>
    %8 = tpu.matmul %6, %7, %cst {dimension_numbers = #tpu.dot_dimension_numbers<[1], [0], [0], [1], [0, 0, 1, 1], [], []>} : vector<2x32xbf16>, vector<32x7xbf16>, vector<2x7xf32> -> vector<2x7xf32>
    %9 = arith.addf %3, %8 : vector<2x7xf32>
    %c0_6 = arith.constant 0 : index
    %c0_7 = arith.constant 0 : index
    %10 = vector.load %arg7[%c0_6, %c0_7] : memref<2x7xf32, #tpu.memory_space<vmem>>, vector<2x7xf32>
    tpu.vector_store %arg7[%c0_6, %c0_7], %9 {strides = array<i32>} : memref<2x7xf32, #tpu.memory_space<vmem>>, vector<2x7xf32>,
    %c0_i32_8 = arith.constant 0 : i32
    %11 = arith.cmpi eq, %arg2, %c0_i32_8 : i32
    %12 = arith.extui %11 : i1 to i32
    %c0_i32_9 = arith.constant 0 : i32
    %13 = arith.cmpi ne, %12, %c0_i32_9 : i32
    scf.if %13 {
      %c0_10 = arith.constant 0 : index
      %c0_11 = arith.constant 0 : index
      %14 = vector.load %arg7[%c0_10, %c0_11] : memref<2x7xf32, #tpu.memory_space<vmem>>, vector<2x7xf32>
      %c0_12 = arith.constant 0 : index
      %c0_13 = arith.constant 0 : index
      %15 = vector.load %arg5[%c0_12, %c0_13] : memref<1x7xf32, #tpu.memory_space<vmem>>, vector<1x7xf32>
      %16 = vector.broadcast %15 : vector<1x7xf32> to vector<2x7xf32>
      %17 = arith.addf %14, %16 : vector<2x7xf32>
      %c0_14 = arith.constant 0 : index
      %c0_15 = arith.constant 0 : index
      %18 = vector.load %arg6[%c0_14, %c0_15] : memref<2x7xf32, #tpu.memory_space<vmem>>, vector<2x7xf32>
      tpu.vector_store %arg6[%c0_14, %c0_15], %17 {strides = array<i32>} : memref<2x7xf32, #tpu.memory_space<vmem>>, vector<2x7xf32>,
    } else {
    }
    return
  }
  func.func @transform_0(%arg0: i32, %arg1: i32, %arg2: i32) -> (i32, i32) {
    %c0_i32 = arith.constant 0 : i32
    return %arg0, %arg2 : i32, i32
  }
  func.func @transform_1(%arg0: i32, %arg1: i32, %arg2: i32) -> (i32, i32) {
    %c0_i32 = arith.constant 0 : i32
    return %arg2, %arg1 : i32, i32
  }
  func.func @transform_2(%arg0: i32, %arg1: i32, %arg2: i32) -> (i32, i32) {
    %c0_i32 = arith.constant 0 : i32
    %c0_i32_0 = arith.constant 0 : i32
    return %c0_i32, %arg1 : i32, i32
  }
  func.func @transform_3(%arg0: i32, %arg1: i32, %arg2: i32) -> (i32, i32) {
    %c0_i32 = arith.constant 0 : i32
    return %arg0, %arg1 : i32, i32
  }
}

module attributes {stable_mosaic.version = 11 : i64} {
  func.func @_layernorm_kernel(%arg0: i32, %arg1: memref<18x32xf32, #tpu.memory_space<vmem>>, %arg2: memref<1x32xf32, #tpu.memory_space<vmem>>, %arg3: memref<1x32xf32, #tpu.memory_space<vmem>>, %arg4: memref<18x32xf32, #tpu.memory_space<vmem>>) attributes {dimension_semantics = [#tpu.dimension_semantics<parallel>], iteration_bounds = array<i64: 1>, scalar_prefetch = 0 : i64, scratch_operands = 0 : i64, tpu.core_type = #tpu.core_type<tc>, window_params = [{transform_indices = @transform_0, window_bounds = array<i64: 18, 32>}, {pipeline_mode = #tpu.pipeline_mode<synchronous>, transform_indices = @transform_1, window_bounds = array<i64: 1, 32>}, {pipeline_mode = #tpu.pipeline_mode<synchronous>, transform_indices = @transform_2, window_bounds = array<i64: 1, 32>}, {transform_indices = @transform_3, window_bounds = array<i64: 18, 32>}]} {
    %c0 = arith.constant 0 : index
    %c0_0 = arith.constant 0 : index
    %0 = vector.load %arg1[%c0, %c0_0] : memref<18x32xf32, #tpu.memory_space<vmem>>, vector<18x32xf32>
    %c0_1 = arith.constant 0 : index
    %c0_2 = arith.constant 0 : index
    %1 = vector.load %arg2[%c0_1, %c0_2] : memref<1x32xf32, #tpu.memory_space<vmem>>, vector<1x32xf32>
    %c0_3 = arith.constant 0 : index
    %c0_4 = arith.constant 0 : index
    %2 = vector.load %arg3[%c0_3, %c0_4] : memref<1x32xf32, #tpu.memory_space<vmem>>, vector<1x32xf32>
    %cst = arith.constant dense<0.000000e+00> : vector<18xf32>
    %3 = vector.multi_reduction <add>, %0, %cst [1] : vector<18x32xf32> to vector<18xf32>
    %4 = vector.shape_cast %3 : vector<18xf32> to vector<18x1xf32>
    %cst_5 = arith.constant 3.200000e+01 : f32
    %5 = vector.broadcast %cst_5 : f32 to vector<18x1xf32>
    %6 = arith.divf %4, %5 : vector<18x1xf32>
    %7 = vector.broadcast %6 : vector<18x1xf32> to vector<18x32xf32>
    %8 = arith.subf %0, %7 : vector<18x32xf32>
    %9 = arith.mulf %8, %8 : vector<18x32xf32>
    %cst_6 = arith.constant dense<0.000000e+00> : vector<18xf32>
    %10 = vector.multi_reduction <add>, %9, %cst_6 [1] : vector<18x32xf32> to vector<18xf32>
    %11 = vector.shape_cast %10 : vector<18xf32> to vector<18x1xf32>
    %cst_7 = arith.constant 3.200000e+01 : f32
    %12 = vector.broadcast %cst_7 : f32 to vector<18x1xf32>
    %13 = arith.divf %11, %12 : vector<18x1xf32>
    %14 = vector.broadcast %6 : vector<18x1xf32> to vector<18x32xf32>
    %15 = arith.subf %0, %14 : vector<18x32xf32>
    %cst_8 = arith.constant 9.99999974E-6 : f32
    %16 = vector.broadcast %cst_8 : f32 to vector<18x1xf32>
    %17 = arith.addf %13, %16 : vector<18x1xf32>
    %18 = math.rsqrt %17 : vector<18x1xf32>
    %19 = vector.broadcast %18 : vector<18x1xf32> to vector<18x32xf32>
    %20 = arith.mulf %15, %19 : vector<18x32xf32>
    %21 = vector.broadcast %1 : vector<1x32xf32> to vector<18x32xf32>
    %22 = arith.mulf %20, %21 : vector<18x32xf32>
    %23 = vector.broadcast %2 : vector<1x32xf32> to vector<18x32xf32>
    %24 = arith.addf %22, %23 : vector<18x32xf32>
    %c0_9 = arith.constant 0 : index
    %c0_10 = arith.constant 0 : index
    %25 = vector.load %arg4[%c0_9, %c0_10] : memref<18x32xf32, #tpu.memory_space<vmem>>, vector<18x32xf32>
    tpu.vector_store %arg4[%c0_9, %c0_10], %24 {strides = array<i32>} : memref<18x32xf32, #tpu.memory_space<vmem>>, vector<18x32xf32>,
    return
  }
  func.func @transform_0(%arg0: i32) -> (i32, i32) {
    %c0_i32 = arith.constant 0 : i32
    %c0_i32_0 = arith.constant 0 : i32
    return %arg0, %c0_i32 : i32, i32
  }
  func.func @transform_1(%arg0: i32) -> (i32, i32) {
    %c0_i32 = arith.constant 0 : i32
    %c0_i32_0 = arith.constant 0 : i32
    %c0_i32_1 = arith.constant 0 : i32
    return %c0_i32, %c0_i32_0 : i32, i32
  }
  func.func @transform_2(%arg0: i32) -> (i32, i32) {
    %c0_i32 = arith.constant 0 : i32
    %c0_i32_0 = arith.constant 0 : i32
    %c0_i32_1 = arith.constant 0 : i32
    return %c0_i32, %c0_i32_0 : i32, i32
  }
  func.func @transform_3(%arg0: i32) -> (i32, i32) {
    %c0_i32 = arith.constant 0 : i32
    %c0_i32_0 = arith.constant 0 : i32
    return %arg0, %c0_i32 : i32, i32
  }
}

</mosaic_0001>

<llo_original>
// kernel: _lambda_.27
$region0: #{_lambda_.27}
  #allocation0 [shape = 'u32[]', space=smem, size = 0x4, offset = 0x4, fixed_abs, tag = 'smem constant byte address 0x4 - core index']
  #allocation1 [shape = 'u32[72,128]{1,0:T(1,128)}', space=vmem, size = 0x9000, scoped, tag = 'internal scratch']
  #allocation2 [shape = 'f32[72,32]{1,0:T(8,128)}', space=vmem, size = 0x9000, scoped, tag = 'scratch operand']
  %s0 = inlined_call_operand.vmem [shape: f32[72,768], index: 0, kind: input, shape index: {}]
  %s1 = inlined_call_operand.vmem [shape: f32[768,32], index: 1, kind: input, shape index: {}]
  %s2 = inlined_call_operand.vmem [shape: f32[1,32], index: 2, kind: input, shape index: {}]
  %s3 = inlined_call_operand.vmem [shape: f32[72,32], index: 3, kind: output, shape index: {}]
  %s4 = sld [smem:[#allocation0]]
  $region76: #{_lambda_.27} parent=0
    _
  %s6 = ssub.s32 1, %s4
  %s7 = scalar_select 0, %s6, %s4
  $region1: #{_lambda_.27} parent=0
    #allocation3 [shape = 'u8[221184]{0}', space=vmem, size = 0x36000, scoped, tag = 'input window, operand 0']
    loop: start=0, step=1, limit=4
    $region2: #{_lambda_.27} parent=1 // loop_pre_header
      _
    $region3: #{_lambda_.27} parent=1 // loop_header
      %s9 = sphi 0, %s13
      %p10 = scmp.ge.s32.totalorder %s9, 4
      %s16 = sphi 0, %s35
      %s17 = sphi 0, %s31
      %s18 = sphi 0, %s27
      %s19 = sphi 0, %s16
      %s20 = sphi 0, %s17
      %s21 = sphi 0, %s18
      %s22 = sphi 0, %s19
      %s23 = sphi 0, %s20
      %s24 = sphi 0, %s21
      %s40 = sphi 0, %s42
      %s43 = sphi 0, %s40
      %s44 = sphi 0, %s43
      %s60 = sphi 0, %s44
      %s68 = sphi 0, %s70
      %s71 = sphi 0, %s68
      %s72 = sphi 0, %s71
      %s88 = sphi 0, %s72
      %s94 = sphi 0, %s96
      %s97 = sphi 0, %s94
      %s98 = sphi 0, %s97
      %s114 = sphi 0, %s98
      %s122 = sphi 0, %s124
      %s125 = sphi 0, %s122
      %s126 = sphi 0, %s125
      %s142 = sphi 0, %s126
    $region4: #{_lambda_.27} parent=1 // loop_header_branch
      %12 = sbr.rel (%p10) target = $region8
    $region5: #{_lambda_.27} parent=1 // loop_body
      %s14 = ssub.s32 %s9, 1
      %s15 = ssub.s32 %s9, 2
      %s25 = sadd.s32 1, %s18
      %p26 = scmp.ge.s32.totalorder %s25, 2
      %s27 = scalar_select %p26, 0, %s25
      %s28 = sadd.s32 1, %s17
      %s29 = scalar_select %p26, %s28, %s17
      %p30 = scmp.ge.s32.totalorder %s29, 1
      %s31 = scalar_select %p30, 0, %s29
      %s32 = sadd.s32 1, %s16
      %s33 = scalar_select %p30, %s32, %s16
      %p34 = scmp.ge.s32.totalorder %s33, 1
      %s35 = scalar_select %p34, 0, %s33
      %s36 = ssub.s32 %s16, %s35
      %s37 = ssub.s32 %s18, %s27
      %s38 = sor.u32 %s36, %s37
      %p39 = scmp.eq.s32.totalorder %s38, 0
      %s41 = sadd.s32 %s40, 1
      %s42 = scalar_select %p39, %s40, %s41
      %p45 = pneg %p39
      %p46 = scmp.eq.s32.totalorder %s9, 1
      %p47 = por %p45, %p46
      %p48 = scmp.ne.s32.totalorder %s40, %s43
      %p49 = scmp.eq.s32.totalorder %s9, 0
      %p50 = por %p48, %p49
      %p51 = scmp.ne.s32.totalorder %s40, %s43
      %p52 = scmp.eq.s32.totalorder %s14, 1
      %p53 = por %p51, %p52
      %p54 = scmp.ne.s32.totalorder %s43, %s44
      %p55 = scmp.eq.s32.totalorder %s14, 0
      %p56 = por %p54, %p55
      %p57 = scmp.ne.s32.totalorder %s43, %s44
      %p58 = scmp.eq.s32.totalorder %s15, 1
      %p59 = por %p57, %p58
      %p61 = scmp.ne.s32.totalorder %s44, %s60
      %p62 = scmp.eq.s32.totalorder %s15, 0
      %p63 = por %p61, %p62
      %s64 = ssub.s32 %s18, %s27
      %s65 = ssub.s32 %s17, %s31
      %s66 = sor.u32 %s64, %s65
      %p67 = scmp.eq.s32.totalorder %s66, 0
      %s69 = sadd.s32 %s68, 1
      %s70 = scalar_select %p67, %s68, %s69
      %p73 = pneg %p67
      %p74 = scmp.eq.s32.totalorder %s9, 1
      %p75 = por %p73, %p74
      %p76 = scmp.ne.s32.totalorder %s68, %s71
      %p77 = scmp.eq.s32.totalorder %s9, 0
      %p78 = por %p76, %p77
      %p79 = scmp.ne.s32.totalorder %s68, %s71
      %p80 = scmp.eq.s32.totalorder %s14, 1
      %p81 = por %p79, %p80
      %p82 = scmp.ne.s32.totalorder %s71, %s72
      %p83 = scmp.eq.s32.totalorder %s14, 0
      %p84 = por %p82, %p83
      %p85 = scmp.ne.s32.totalorder %s71, %s72
      %p86 = scmp.eq.s32.totalorder %s15, 1
      %p87 = por %p85, %p86
      %p89 = scmp.ne.s32.totalorder %s72, %s88
      %p90 = scmp.eq.s32.totalorder %s15, 0
      %p91 = por %p89, %p90
      %s92 = ssub.s32 %s17, %s31
      %p93 = scmp.eq.s32.totalorder %s92, 0
      %s95 = sadd.s32 %s94, 1
      %s96 = scalar_select %p93, %s94, %s95
      %p99 = pneg %p93
      %p100 = scmp.eq.s32.totalorder %s9, 1
      %p101 = por %p99, %p100
      %p102 = scmp.ne.s32.totalorder %s94, %s97
      %p103 = scmp.eq.s32.totalorder %s9, 0
      %p104 = por %p102, %p103
      %p105 = scmp.ne.s32.totalorder %s94, %s97
      %p106 = scmp.eq.s32.totalorder %s14, 1
      %p107 = por %p105, %p106
      %p108 = scmp.ne.s32.totalorder %s97, %s98
      %p109 = scmp.eq.s32.totalorder %s14, 0
      %p110 = por %p108, %p109
      %p111 = scmp.ne.s32.totalorder %s97, %s98
      %p112 = scmp.eq.s32.totalorder %s15, 1
      %p113 = por %p111, %p112
      %p115 = scmp.ne.s32.totalorder %s98, %s114
      %p116 = scmp.eq.s32.totalorder %s15, 0
      %p117 = por %p115, %p116
      %s118 = ssub.s32 %s16, %s35
      %s119 = ssub.s32 %s17, %s31
      %s120 = sor.u32 %s118, %s119
      %p121 = scmp.eq.s32.totalorder %s120, 0
      %s123 = sadd.s32 %s122, 1
      %s124 = scalar_select %p121, %s122, %s123
      %p127 = pneg %p121
      %p128 = scmp.eq.s32.totalorder %s9, 1
      %p129 = por %p127, %p128
      %p130 = scmp.ne.s32.totalorder %s122, %s125
      %p131 = scmp.eq.s32.totalorder %s9, 0
      %p132 = por %p130, %p131
      %p133 = scmp.ne.s32.totalorder %s122, %s125
      %p134 = scmp.eq.s32.totalorder %s14, 1
      %p135 = por %p133, %p134
      %p136 = scmp.ne.s32.totalorder %s125, %s126
      %p137 = scmp.eq.s32.totalorder %s14, 0
      %p138 = por %p136, %p137
      %p139 = scmp.ne.s32.totalorder %s125, %s126
      %p140 = scmp.eq.s32.totalorder %s15, 1
      %p141 = por %p139, %p140
      %p143 = scmp.ne.s32.totalorder %s126, %s142
      %p144 = scmp.eq.s32.totalorder %s15, 0
      %p145 = por %p143, %p144
      %p146 = scmp.le.s32.totalorder 1, %s9
      %p147 = scmp.lt.s32.totalorder %s9, 3
      %p148 = pnand %p146, %p147
      %p149 = pneg %p148
      // Predicated region
      $region9: #{_lambda_.27} parent=5 // pred_check
        _
      $region10: #{_lambda_.27} parent=5 // pred_check_branch
        %151 = sbr.rel (%p148) target = $region12
      $region11: #{_lambda_.27} parent=5 // pred_region
        %s152 = ssub.s32 %s9, 1
        // Predicated region
        $region13: #{_lambda_.27} parent=11 // pred_check
          %p153 = pneg %p110
        $region14: #{_lambda_.27} parent=11 // pred_check_branch
          %155 = sbr.rel (%p153) target = $region16
        $region15: #{_lambda_.27} parent=11 // pred_region
          %p156 = scmp.lt.s32.totalorder %s20, 0
          %s157 = scalar_select %p156, %s20, 0
          %s158 = scalar_lea.vmem %s2, %s157
        $region16: #{_lambda_.27} parent=11 // pred_fallthru
          _
      $region12: #{_lambda_.27} parent=5 // pred_fallthru
        _
      %p159 = scmp.lt.s32.totalorder %s9, 2
      // Predicated region
      $region17: #{_lambda_.27} parent=5 // pred_check
        %p160 = pneg %p159
      $region18: #{_lambda_.27} parent=5 // pred_check_branch
        %162 = sbr.rel (%p160) target = $region20
      $region19: #{_lambda_.27} parent=5 // pred_region
        // Predicated region
        $region21: #{_lambda_.27} parent=19 // pred_check
          %p163 = pneg %p50
        $region22: #{_lambda_.27} parent=19 // pred_check_branch
          %165 = sbr.rel (%p163) target = $region24
        $region23: #{_lambda_.27} parent=19 // pred_region
          %s166 = sand.u32 %s40, 1
          %s167 = sand.u32 %s40, 1
          %s168 = smul.addr %s167, 216
          %s169 = scalar_lea.vmem [#allocation3], %s168
          %s170 = smul.u32 9, %s16
          %s171 = smul.u32 3, %s18
          %s172 = smul.addr %s170, 6
          %s173 = sadd.s32 %s171, %s172
          %s174 = smul.addr %s173, 8
          %s175 = scalar_lea.vmem %s0, %s174
          // Predicated region
          $region25: #{_lambda_.27} parent=23 // pred_check
            _
          $region26: #{_lambda_.27} parent=23 // pred_check_branch
            %177 = sbr.rel (0) target = $region28
          $region27: #{_lambda_.27} parent=23 // pred_region
            // Predicated region
            $region29: #{_lambda_.27} parent=27 // pred_check
              _
            $region30: #{_lambda_.27} parent=27 // pred_check_branch
              %179 = sbr.rel (0) target = $region32
            $region31: #{_lambda_.27} parent=27 // pred_region
              loop: start=0, step=1, limit=1
              $region33: #{_lambda_.27} parent=31 // loop_pre_header
                _
              $region34: #{_lambda_.27} parent=31 // loop_header
                %s181 = sphi 0, %s185
                %p182 = scmp.ge.s32.totalorder %s181, 1
                %s186 = sphi %s175, %s175
                %s187 = sphi %s169, %s169
              $region35: #{_lambda_.27} parent=31 // loop_header_branch
                %184 = sbr.rel (%p182) target = $region39
              $region36: #{_lambda_.27} parent=31 // loop_body
                %v188 = vld [vmem:[%s186] sm:$0xff]
                %189 = vst [vmem:[%s187] sm:$0xff] %v188
                %v190 = vld [vmem:[%s186 + $0x8] sm:$0xff]
                %191 = vst [vmem:[%s187 + $0x8] sm:$0xff] %v190
                %v192 = vld [vmem:[%s186 + $0x10] sm:$0xff]
                %193 = vst [vmem:[%s187 + $0x10] sm:$0xff] %v192
                %v194 = vld [vmem:[%s186 + $0x30] sm:$0xff]
                %195 = vst [vmem:[%s187 + $0x18] sm:$0xff] %v194
                %v196 = vld [vmem:[%s186 + $0x38] sm:$0xff]
                %197 = vst [vmem:[%s187 + $0x20] sm:$0xff] %v196
                %v198 = vld [vmem:[%s186 + $0x40] sm:$0xff]
                %199 = vst [vmem:[%s187 + $0x28] sm:$0xff] %v198
                %v200 = vld [vmem:[%s186 + $0x60] sm:$0xff]
                %201 = vst [vmem:[%s187 + $0x30] sm:$0xff] %v200
                %v202 = vld [vmem:[%s186 + $0x68] sm:$0xff]
                %203 = vst [vmem:[%s187 + $0x38] sm:$0xff] %v202
                %v204 = vld [vmem:[%s186 + $0x70] sm:$0xff]
                %205 = vst [vmem:[%s187 + $0x40] sm:$0xff] %v204
                %v206 = vld [vmem:[%s186 + $0x90] sm:$0xff]
                %207 = vst [vmem:[%s187 + $0x48] sm:$0xff] %v206
                %v208 = vld [vmem:[%s186 + $0x98] sm:$0xff]
                %209 = vst [vmem:[%s187 + $0x50] sm:$0xff] %v208
                %v210 = vld [vmem:[%s186 + $0xa0] sm:$0xff]
                %211 = vst [vmem:[%s187 + $0x58] sm:$0xff] %v210
                %v212 = vld [vmem:[%s186 + $0xc0] sm:$0xff]
                %213 = vst [vmem:[%s187 + $0x60] sm:$0xff] %v212
                %v214 = vld [vmem:[%s186 + $0xc8] sm:$0xff]
                %215 = vst [vmem:[%s187 + $0x68] sm:$0xff] %v214
                %v216 = vld [vmem:[%s186 + $0xd0] sm:$0xff]
                %217 = vst [vmem:[%s187 + $0x70] sm:$0xff] %v216
                %v218 = vld [vmem:[%s186 + $0xf0] sm:$0xff]
                %219 = vst [vmem:[%s187 + $0x78] sm:$0xff] %v218
                %v220 = vld [vmem:[%s186 + $0xf8] sm:$0xff]
                %221 = vst [vmem:[%s187 + $0x80] sm:$0xff] %v220
                %v222 = vld [vmem:[%s186 + $0x100] sm:$0xff]
                %223 = vst [vmem:[%s187 + $0x88] sm:$0xff] %v222
                %v224 = vld [vmem:[%s186 + $0x120] sm:$0xff]
                %225 = vst [vmem:[%s187 + $0x90] sm:$0xff] %v224
                %v226 = vld [vmem:[%s186 + $0x128] sm:$0xff]
                %227 = vst [vmem:[%s187 + $0x98] sm:$0xff] %v226
                %v228 = vld [vmem:[%s186 + $0x130] sm:$0xff]
                %229 = vst [vmem:[%s187 + $0xa0] sm:$0xff] %v228
                %v230 = vld [vmem:[%s186 + $0x150] sm:$0xff]
                %231 = vst [vmem:[%s187 + $0xa8] sm:$0xff] %v230
                %v232 = vld [vmem:[%s186 + $0x158] sm:$0xff]
                %233 = vst [vmem:[%s187 + $0xb0] sm:$0xff] %v232
                %v234 = vld [vmem:[%s186 + $0x160] sm:$0xff]
                %235 = vst [vmem:[%s187 + $0xb8] sm:$0xff] %v234
                %v236 = vld [vmem:[%s186 + $0x180] sm:$0xff]
                %237 = vst [vmem:[%s187 + $0xc0] sm:$0xff] %v236
                %v238 = vld [vmem:[%s186 + $0x188] sm:$0xff]
                %239 = vst [vmem:[%s187 + $0xc8] sm:$0xff] %v238
                %v240 = vld [vmem:[%s186 + $0x190] sm:$0xff]
                %241 = vst [vmem:[%s187 + $0xd0] sm:$0xff] %v240
              $region37: #{_lambda_.27} parent=31 // loop_footer
                %s185 = sadd.s32 1, %s181
              $region38: #{_lambda_.27} parent=31 // loop_footer_branch
                %180 = sbr.rel target = $region34
              $region39: #{_lambda_.27} parent=31 // loop_exit
                _
            $region32: #{_lambda_.27} parent=27 // pred_fallthru
              _
            // Predicated region
            $region40: #{_lambda_.27} parent=27 // pred_check
              _
            $region41: #{_lambda_.27} parent=27 // pred_check_branch
              %243 = sbr.rel target = $region43
            $region42: #{_lambda_.27} parent=27 // pred_region
              _
            $region43: #{_lambda_.27} parent=27 // pred_fallthru
              _
          $region28: #{_lambda_.27} parent=23 // pred_fallthru
            _
          %244 = vnop
        $region24: #{_lambda_.27} parent=19 // pred_fallthru
          _
        // Predicated region
        $region44: #{_lambda_.27} parent=19 // pred_check
          %p245 = pneg %p78
        $region45: #{_lambda_.27} parent=19 // pred_check_branch
          %247 = sbr.rel (%p245) target = $region47
        $region46: #{_lambda_.27} parent=19 // pred_region
          %s248 = smul.u32 48, %s18
          %p249 = scmp.lt.s32.totalorder %s248, 95
          %s250 = scalar_select %p249, %s248, 95
          %p251 = scmp.lt.s32.totalorder %s17, 0
          %s252 = scalar_select %p251, %s17, 0
          %s253 = sadd.s32 %s252, %s250
          %s254 = smul.addr %s253, 8
          %s255 = scalar_lea.vmem %s1, %s254
          %s256 = smul.u32 48, %s18
        $region47: #{_lambda_.27} parent=19 // pred_fallthru
          _
      $region20: #{_lambda_.27} parent=5 // pred_fallthru
        _
      %p257 = scmp.le.s32.totalorder 1, %s9
      %p258 = scmp.lt.s32.totalorder %s9, 3
      %p259 = pnand %p257, %p258
      %p260 = pneg %p259
      // Predicated region
      $region48: #{_lambda_.27} parent=5 // pred_check
        _
      $region49: #{_lambda_.27} parent=5 // pred_check_branch
        %262 = sbr.rel (%p259) target = $region51
      $region50: #{_lambda_.27} parent=5 // pred_region
        %s263 = ssub.s32 %s9, 1
        %s264 = sand.u32 %s43, 1
        %s265 = sand.u32 %s43, 1
        %s266 = smul.addr %s265, 216
        %s267 = scalar_lea.vmem [#allocation3], %s266
        // Predicated region
        $region52: #{_lambda_.27} parent=50 // pred_check
          %p268 = pneg %p56
        $region53: #{_lambda_.27} parent=50 // pred_check_branch
          %270 = sbr.rel (%p268) target = $region55
        $region54: #{_lambda_.27} parent=50 // pred_region
          _
        $region55: #{_lambda_.27} parent=50 // pred_fallthru
          _
        %s271 = sand.u32 %s43, 1
        %s272 = sand.u32 %s43, 1
        %s273 = smul.addr %s272, 216
        %s274 = scalar_lea.vmem [#allocation3], %s273
        %p275 = pneg %p56
        %p276 = pneg %p53
        %s277 = smul.u32 48, %s21
        %p278 = scmp.lt.s32.totalorder %s277, 95
        %s279 = scalar_select %p278, %s277, 95
        %p280 = scmp.lt.s32.totalorder %s20, 0
        %s281 = scalar_select %p280, %s20, 0
        %s282 = sadd.s32 %s281, %s279
        %s283 = smul.addr %s282, 8
        %s284 = scalar_lea.vmem %s1, %s283
        %p285 = pneg %p84
        %p286 = pneg %p81
        %p287 = scmp.lt.s32.totalorder %s20, 0
        %s288 = scalar_select %p287, %s20, 0
        %s289 = scalar_lea.vmem %s2, %s288
        %p290 = pneg %p110
        %p291 = pneg %p107
        %p292 = pneg %p138
        %p293 = pneg %p135
        %s294 = smul.u32 9, %s19
        %p295 = scmp.lt.s32.totalorder %s294, 8
        %s296 = scalar_select %p295, %s294, 8
        %p297 = scmp.lt.s32.totalorder %s20, 0
        %s298 = scalar_select %p297, %s20, 0
        %s299 = sadd.s32 %s298, %s296
        %s300 = smul.addr %s299, 8
        %s301 = scalar_lea.vmem %s3, %s300
        %s302 = smul.u32 9, %s19
        %s303 = smul.u32 3, %s21
        %s304 = smul.u32 48, %s21
        %p305 = scmp.lt.s32.totalorder %s304, 95
        %s306 = scalar_select %p305, %s304, 95
        %p307 = scmp.lt.s32.totalorder %s20, 0
        %s308 = scalar_select %p307, %s20, 0
        %s309 = sadd.s32 %s308, %s306
        %s310 = smul.addr %s309, 8
        %s311 = scalar_lea.vmem %s1, %s310
        %s312 = smul.u32 48, %s21
        %p313 = scmp.lt.s32.totalorder %s20, 0
        %s314 = scalar_select %p313, %s20, 0
        %s315 = scalar_lea.vmem %s2, %s314
        %s316 = smul.u32 9, %s19
        %p317 = scmp.lt.s32.totalorder %s316, 8
        %s318 = scalar_select %p317, %s316, 8
        %p319 = scmp.lt.s32.totalorder %s20, 0
        %s320 = scalar_select %p319, %s20, 0
        %s321 = sadd.s32 %s320, %s318
        %s322 = smul.addr %s321, 8
        %s323 = scalar_lea.vmem %s3, %s322
        %s324 = smul.u32 9, %s19
        %p325 = scmp.eq.s32.totalorder %s21, 0
        // Predicated region
        $region56: #{_lambda_.27} parent=50 // pred_check
          %p326 = pneg %p325
        $region57: #{_lambda_.27} parent=50 // pred_check_branch
          %328 = sbr.rel (%p326) target = $region59
        $region58: #{_lambda_.27} parent=50 // pred_region
          %vm329 = vcmask 261120
          %330 = vst.msk [vmem:[#allocation2] sm:$0xff] %vm329, 0.0
          %331 = vst.msk [vmem:[#allocation2 + $0x8] sm:$0xff] %vm329, 0.0
          %332 = vst.msk [vmem:[#allocation2 + $0x10] sm:$0xff] %vm329, 0.0
          %333 = vst.msk [vmem:[#allocation2 + $0x18] sm:$0xff] %vm329, 0.0
          %334 = vst.msk [vmem:[#allocation2 + $0x20] sm:$0xff] %vm329, 0.0
          %335 = vst.msk [vmem:[#allocation2 + $0x28] sm:$0xff] %vm329, 0.0
          %336 = vst.msk [vmem:[#allocation2 + $0x30] sm:$0xff] %vm329, 0.0
          %337 = vst.msk [vmem:[#allocation2 + $0x38] sm:$0xff] %vm329, 0.0
          %338 = vst.msk [vmem:[#allocation2 + $0x40] sm:$0xff] %vm329, 0.0
        $region59: #{_lambda_.27} parent=50 // pred_fallthru
          _
        %v339 = vld [vmem:[#allocation2] sm:$0xff]
        %v340 = vld [vmem:[#allocation2 + $0x8] sm:$0xff]
        %v341 = vld [vmem:[#allocation2 + $0x10] sm:$0xff]
        %v342 = vld [vmem:[#allocation2 + $0x18] sm:$0xff]
        %v343 = vld [vmem:[#allocation2 + $0x20] sm:$0xff]
        %v344 = vld [vmem:[#allocation2 + $0x28] sm:$0xff]
        %v345 = vld [vmem:[#allocation2 + $0x30] sm:$0xff]
        %v346 = vld [vmem:[#allocation2 + $0x38] sm:$0xff]
        %v347 = vld [vmem:[#allocation2 + $0x40] sm:$0xff]
        %v348 = vld [vmem:[%s267] sm:$0xff]
        %v349 = vld [vmem:[%s267 + $0x8] sm:$0xff]
        %v350 = vld [vmem:[%s267 + $0x10] sm:$0xff]
        %v351 = vld [vmem:[%s267 + $0x18] sm:$0xff]
        %v352 = vld [vmem:[%s267 + $0x20] sm:$0xff]
        %v353 = vld [vmem:[%s267 + $0x28] sm:$0xff]
        %v354 = vld [vmem:[%s267 + $0x30] sm:$0xff]
        %v355 = vld [vmem:[%s267 + $0x38] sm:$0xff]
        %v356 = vld [vmem:[%s267 + $0x40] sm:$0xff]
        %v357 = vld [vmem:[%s267 + $0x48] sm:$0xff]
        %v358 = vld [vmem:[%s267 + $0x50] sm:$0xff]
        %v359 = vld [vmem:[%s267 + $0x58] sm:$0xff]
        %v360 = vld [vmem:[%s267 + $0x60] sm:$0xff]
        %v361 = vld [vmem:[%s267 + $0x68] sm:$0xff]
        %v362 = vld [vmem:[%s267 + $0x70] sm:$0xff]
        %v363 = vld [vmem:[%s267 + $0x78] sm:$0xff]
        %v364 = vld [vmem:[%s267 + $0x80] sm:$0xff]
        %v365 = vld [vmem:[%s267 + $0x88] sm:$0xff]
        %v366 = vld [vmem:[%s267 + $0x90] sm:$0xff]
        %v367 = vld [vmem:[%s267 + $0x98] sm:$0xff]
        %v368 = vld [vmem:[%s267 + $0xa0] sm:$0xff]
        %v369 = vld [vmem:[%s267 + $0xa8] sm:$0xff]
        %v370 = vld [vmem:[%s267 + $0xb0] sm:$0xff]
        %v371 = vld [vmem:[%s267 + $0xb8] sm:$0xff]
        %v372 = vld [vmem:[%s267 + $0xc0] sm:$0xff]
        %v373 = vld [vmem:[%s267 + $0xc8] sm:$0xff]
        %v374 = vld [vmem:[%s267 + $0xd0] sm:$0xff]
        %v375 = vld [vmem:[%s311] sm:$0xff]
        %v376 = vld [vmem:[%s311 + $0x8] sm:$0xff]
        %v377 = vld [vmem:[%s311 + $0x10] sm:$0xff]
        %v378 = vld [vmem:[%s311 + $0x18] sm:$0xff]
        %v379 = vld [vmem:[%s311 + $0x20] sm:$0xff]
        %v380 = vld [vmem:[%s311 + $0x28] sm:$0xff]
        %v381 = vld [vmem:[%s311 + $0x30] sm:$0xff]
        %v382 = vld [vmem:[%s311 + $0x38] sm:$0xff]
        %v383 = vld [vmem:[%s311 + $0x40] sm:$0xff]
        %v384 = vld [vmem:[%s311 + $0x48] sm:$0xff]
        %v385 = vld [vmem:[%s311 + $0x50] sm:$0xff]
        %v386 = vld [vmem:[%s311 + $0x58] sm:$0xff]
        %v387 = vld [vmem:[%s311 + $0x60] sm:$0xff]
        %v388 = vld [vmem:[%s311 + $0x68] sm:$0xff]
        %v389 = vld [vmem:[%s311 + $0x70] sm:$0xff]
        %v390 = vld [vmem:[%s311 + $0x78] sm:$0xff]
        %v391 = vld [vmem:[%s311 + $0x80] sm:$0xff]
        %v392 = vld [vmem:[%s311 + $0x88] sm:$0xff]
        %v393 = vld [vmem:[%s311 + $0x90] sm:$0xff]
        %v394 = vld [vmem:[%s311 + $0x98] sm:$0xff]
        %v395 = vld [vmem:[%s311 + $0xa0] sm:$0xff]
        %v396 = vld [vmem:[%s311 + $0xa8] sm:$0xff]
        %v397 = vld [vmem:[%s311 + $0xb0] sm:$0xff]
        %v398 = vld [vmem:[%s311 + $0xb8] sm:$0xff]
        %v399 = vld [vmem:[%s311 + $0xc0] sm:$0xff]
        %v400 = vld [vmem:[%s311 + $0xc8] sm:$0xff]
        %v401 = vld [vmem:[%s311 + $0xd0] sm:$0xff]
        %v402 = vld [vmem:[%s311 + $0xd8] sm:$0xff]
        %v403 = vld [vmem:[%s311 + $0xe0] sm:$0xff]
        %v404 = vld [vmem:[%s311 + $0xe8] sm:$0xff]
        %v405 = vld [vmem:[%s311 + $0xf0] sm:$0xff]
        %v406 = vld [vmem:[%s311 + $0xf8] sm:$0xff]
        %v407 = vld [vmem:[%s311 + $0x100] sm:$0xff]
        %v408 = vld [vmem:[%s311 + $0x108] sm:$0xff]
        %v409 = vld [vmem:[%s311 + $0x110] sm:$0xff]
        %v410 = vld [vmem:[%s311 + $0x118] sm:$0xff]
        %v411 = vld [vmem:[%s311 + $0x120] sm:$0xff]
        %v412 = vld [vmem:[%s311 + $0x128] sm:$0xff]
        %v413 = vld [vmem:[%s311 + $0x130] sm:$0xff]
        %v414 = vld [vmem:[%s311 + $0x138] sm:$0xff]
        %v415 = vld [vmem:[%s311 + $0x140] sm:$0xff]
        %v416 = vld [vmem:[%s311 + $0x148] sm:$0xff]
        %v417 = vld [vmem:[%s311 + $0x150] sm:$0xff]
        %v418 = vld [vmem:[%s311 + $0x158] sm:$0xff]
        %v419 = vld [vmem:[%s311 + $0x160] sm:$0xff]
        %v420 = vld [vmem:[%s311 + $0x168] sm:$0xff]
        %v421 = vld [vmem:[%s311 + $0x170] sm:$0xff]
        %v422 = vld [vmem:[%s311 + $0x178] sm:$0xff]
        %v423 = vpack.c.bf16 %v351, %v348
        %v424 = vpack.c.bf16 %v352, %v349
        %v425 = vpack.c.bf16 %v353, %v350
        %v426 = vpack.c.bf16 %v357, %v354
        %v427 = vpack.c.bf16 %v358, %v355
        %v428 = vpack.c.bf16 %v359, %v356
        %v429 = vpack.c.bf16 %v363, %v360
        %v430 = vpack.c.bf16 %v364, %v361
        %v431 = vpack.c.bf16 %v365, %v362
        %v432 = vpack.c.bf16 %v369, %v366
        %v433 = vpack.c.bf16 %v370, %v367
        %v434 = vpack.c.bf16 %v371, %v368
        %v435 = vpack.c.bf16 %v372, %v372
        %v436 = vpack.c.bf16 %v373, %v373
        %v437 = vpack.c.bf16 %v374, %v374
        %v438 = vpack.c.bf16 %v376, %v375
        %v439 = vpack.c.bf16 %v378, %v377
        %v440 = vpack.c.bf16 %v380, %v379
        %v441 = vpack.c.bf16 %v382, %v381
        %v442 = vpack.c.bf16 %v384, %v383
        %v443 = vpack.c.bf16 %v386, %v385
        %v444 = vpack.c.bf16 %v388, %v387
        %v445 = vpack.c.bf16 %v390, %v389
        %v446 = vpack.c.bf16 %v392, %v391
        %v447 = vpack.c.bf16 %v394, %v393
        %v448 = vpack.c.bf16 %v396, %v395
        %v449 = vpack.c.bf16 %v398, %v397
        %v450 = vpack.c.bf16 %v400, %v399
        %v451 = vpack.c.bf16 %v402, %v401
        %v452 = vpack.c.bf16 %v404, %v403
        %v453 = vpack.c.bf16 %v406, %v405
        %v454 = vpack.c.bf16 %v408, %v407
        %v455 = vpack.c.bf16 %v410, %v409
        %v456 = vpack.c.bf16 %v412, %v411
        %v457 = vpack.c.bf16 %v414, %v413
        %v458 = vpack.c.bf16 %v416, %v415
        %v459 = vpack.c.bf16 %v418, %v417
        %v460 = vpack.c.bf16 %v420, %v419
        %v461 = vpack.c.bf16 %v422, %v421
        %462 = vmatpush.bf16.msra.mxu0 %v445
        %463 = vmatpush.bf16.msra.mxu0 %v444
        %464 = vmatpush.bf16.msra.mxu0 %v443
        %465 = vmatpush.bf16.msra.mxu0 %v442
        %466 = vmatpush.bf16.msra.mxu0 %v441
        %467 = vmatpush.bf16.msra.mxu0 %v440
        %468 = vmatpush.bf16.msra.mxu0 %v439
        %469 = vmatpush.bf16.msra.mxu0 %v438
        %470 = vmatmul.bf16.gmra.mxu0 %v423
        %v471 = vpop.f32.mrf.mxu0
        %v472 = vadd.f32 0.0, %v471
        %v473 = vpop.f32.mrf.mxu0
        %v474 = vadd.f32 0.0, %v473
        %475 = vmatmul.bf16.gmra.mxu0 %v426
        %v476 = vpop.f32.mrf.mxu0
        %v477 = vadd.f32 0.0, %v476
        %v478 = vpop.f32.mrf.mxu0
        %v479 = vadd.f32 0.0, %v478
        %480 = vmatmul.bf16.gmra.mxu0 %v429
        %v481 = vpop.f32.mrf.mxu0
        %v482 = vadd.f32 0.0, %v481
        %v483 = vpop.f32.mrf.mxu0
        %v484 = vadd.f32 0.0, %v483
        %485 = vmatmul.bf16.gmra.mxu0 %v432
        %v486 = vpop.f32.mrf.mxu0
        %v487 = vadd.f32 0.0, %v486
        %v488 = vpop.f32.mrf.mxu0
        %v489 = vadd.f32 0.0, %v488
        %490 = vmatmul.bf16.gmra.mxu0 %v435
        %v491 = vpop.f32.mrf.mxu0
        %v492 = vadd.f32 0.0, %v491
        %v493 = vpop.f32.mrf.mxu0
        %494 = vdwg.mxu0
        %495 = vmatpush.bf16.msra.mxu0 %v453
        %496 = vmatpush.bf16.msra.mxu0 %v452
        %497 = vmatpush.bf16.msra.mxu0 %v451
        %498 = vmatpush.bf16.msra.mxu0 %v450
        %499 = vmatpush.bf16.msra.mxu0 %v449
        %500 = vmatpush.bf16.msra.mxu0 %v448
        %501 = vmatpush.bf16.msra.mxu0 %v447
        %502 = vmatpush.bf16.msra.mxu0 %v446
        %503 = vmatmul.bf16.gmra.mxu0 %v424
        %v504 = vpop.f32.mrf.mxu0
        %v505 = vadd.f32 %v472, %v504
        %v506 = vpop.f32.mrf.mxu0
        %v507 = vadd.f32 %v474, %v506
        %508 = vmatmul.bf16.gmra.mxu0 %v427
        %v509 = vpop.f32.mrf.mxu0
        %v510 = vadd.f32 %v477, %v509
        %v511 = vpop.f32.mrf.mxu0
        %v512 = vadd.f32 %v479, %v511
        %513 = vmatmul.bf16.gmra.mxu0 %v430
        %v514 = vpop.f32.mrf.mxu0
        %v515 = vadd.f32 %v482, %v514
        %v516 = vpop.f32.mrf.mxu0
        %v517 = vadd.f32 %v484, %v516
        %518 = vmatmul.bf16.gmra.mxu0 %v433
        %v519 = vpop.f32.mrf.mxu0
        %v520 = vadd.f32 %v487, %v519
        %v521 = vpop.f32.mrf.mxu0
        %v522 = vadd.f32 %v489, %v521
        %523 = vmatmul.bf16.gmra.mxu0 %v436
        %v524 = vpop.f32.mrf.mxu0
        %v525 = vadd.f32 %v492, %v524
        %v526 = vpop.f32.mrf.mxu0
        %527 = vdwg.mxu0
        %528 = vmatpush.bf16.msra.mxu0 %v461
        %529 = vmatpush.bf16.msra.mxu0 %v460
        %530 = vmatpush.bf16.msra.mxu0 %v459
        %531 = vmatpush.bf16.msra.mxu0 %v458
        %532 = vmatpush.bf16.msra.mxu0 %v457
        %533 = vmatpush.bf16.msra.mxu0 %v456
        %534 = vmatpush.bf16.msra.mxu0 %v455
        %535 = vmatpush.bf16.msra.mxu0 %v454
        %536 = vmatmul.bf16.gmra.mxu0 %v425
        %v537 = vpop.f32.mrf.mxu0
        %v538 = vadd.f32 %v505, %v537
        %v539 = vpop.f32.mrf.mxu0
        %v540 = vadd.f32 %v507, %v539
        %541 = vmatmul.bf16.gmra.mxu0 %v428
        %v542 = vpop.f32.mrf.mxu0
        %v543 = vadd.f32 %v510, %v542
        %v544 = vpop.f32.mrf.mxu0
        %v545 = vadd.f32 %v512, %v544
        %546 = vmatmul.bf16.gmra.mxu0 %v431
        %v547 = vpop.f32.mrf.mxu0
        %v548 = vadd.f32 %v515, %v547
        %v549 = vpop.f32.mrf.mxu0
        %v550 = vadd.f32 %v517, %v549
        %551 = vmatmul.bf16.gmra.mxu0 %v434
        %v552 = vpop.f32.mrf.mxu0
        %v553 = vadd.f32 %v520, %v552
        %v554 = vpop.f32.mrf.mxu0
        %v555 = vadd.f32 %v522, %v554
        %556 = vmatmul.bf16.gmra.mxu0 %v437
        %v557 = vpop.f32.mrf.mxu0
        %v558 = vadd.f32 %v525, %v557
        %v559 = vpop.f32.mrf.mxu0
        %560 = vdwg.mxu0
        %v561 = vadd.f32 %v339, %v538
        %v562 = vadd.f32 %v340, %v540
        %v563 = vadd.f32 %v341, %v543
        %v564 = vadd.f32 %v342, %v545
        %v565 = vadd.f32 %v343, %v548
        %v566 = vadd.f32 %v344, %v550
        %v567 = vadd.f32 %v345, %v553
        %v568 = vadd.f32 %v346, %v555
        %v569 = vadd.f32 %v347, %v558
        %vm570 = vcmask 261120
        %571 = vst.msk [vmem:[#allocation2] sm:$0xff] %vm570, %v561
        %572 = vst.msk [vmem:[#allocation2 + $0x8] sm:$0xff] %vm570, %v562
        %573 = vst.msk [vmem:[#allocation2 + $0x10] sm:$0xff] %vm570, %v563
        %574 = vst.msk [vmem:[#allocation2 + $0x18] sm:$0xff] %vm570, %v564
        %575 = vst.msk [vmem:[#allocation2 + $0x20] sm:$0xff] %vm570, %v565
        %576 = vst.msk [vmem:[#allocation2 + $0x28] sm:$0xff] %vm570, %v566
        %577 = vst.msk [vmem:[#allocation2 + $0x30] sm:$0xff] %vm570, %v567
        %578 = vst.msk [vmem:[#allocation2 + $0x38] sm:$0xff] %vm570, %v568
        %579 = vst.msk [vmem:[#allocation2 + $0x40] sm:$0xff] %vm570, %v569
        %p580 = scmp.eq.s32.totalorder %s21, 1
        // Predicated region
        $region60: #{_lambda_.27} parent=50 // pred_check
          %p581 = pneg %p580
        $region61: #{_lambda_.27} parent=50 // pred_check_branch
          %583 = sbr.rel (%p581) target = $region63
        $region62: #{_lambda_.27} parent=50 // pred_region
          %v584 = vld [vmem:[#allocation2] sm:$0xff]
          %v585 = vld [vmem:[#allocation2 + $0x8] sm:$0xff]
          %v586 = vld [vmem:[#allocation2 + $0x10] sm:$0xff]
          %v587 = vld [vmem:[#allocation2 + $0x18] sm:$0xff]
          %v588 = vld [vmem:[#allocation2 + $0x20] sm:$0xff]
          %v589 = vld [vmem:[#allocation2 + $0x28] sm:$0xff]
          %v590 = vld [vmem:[#allocation2 + $0x30] sm:$0xff]
          %v591 = vld [vmem:[#allocation2 + $0x38] sm:$0xff]
          %v592 = vld [vmem:[#allocation2 + $0x40] sm:$0xff]
          %v593 = vld [vmem:[%s315] sm:$0x1]
          %v595 = vperm.slane %v593, 0
          %v597 = vadd.f32 %v584, %v595
          %v598 = vadd.f32 %v585, %v595
          %v599 = vadd.f32 %v586, %v595
          %v600 = vadd.f32 %v587, %v595
          %v601 = vadd.f32 %v588, %v595
          %v602 = vadd.f32 %v589, %v595
          %v603 = vadd.f32 %v590, %v595
          %v604 = vadd.f32 %v591, %v595
          %v605 = vadd.f32 %v592, %v595
          %606 = vst.msk [vmem:[%s323] sm:$0xff] %vm570, %v597
          %607 = vst.msk [vmem:[%s323 + $0x8] sm:$0xff] %vm570, %v598
          %608 = vst.msk [vmem:[%s323 + $0x10] sm:$0xff] %vm570, %v599
          %609 = vst.msk [vmem:[%s323 + $0x18] sm:$0xff] %vm570, %v600
          %610 = vst.msk [vmem:[%s323 + $0x20] sm:$0xff] %vm570, %v601
          %611 = vst.msk [vmem:[%s323 + $0x28] sm:$0xff] %vm570, %v602
          %612 = vst.msk [vmem:[%s323 + $0x30] sm:$0xff] %vm570, %v603
          %613 = vst.msk [vmem:[%s323 + $0x38] sm:$0xff] %vm570, %v604
          %614 = vst.msk [vmem:[%s323 + $0x40] sm:$0xff] %vm570, %v605
        $region63: #{_lambda_.27} parent=50 // pred_fallthru
          _
        %s615 = smul.u32 9, %s19
        %p616 = scmp.lt.s32.totalorder %s615, 8
        %s617 = scalar_select %p616, %s615, 8
        %p618 = scmp.lt.s32.totalorder %s20, 0
        %s619 = scalar_select %p618, %s20, 0
        %s620 = sadd.s32 %s619, %s617
        %s621 = smul.addr %s620, 8
        %s622 = scalar_lea.vmem %s3, %s621
        // Predicated region
        $region64: #{_lambda_.27} parent=50 // pred_check
          %p623 = pneg %p135
        $region65: #{_lambda_.27} parent=50 // pred_check_branch
          %625 = sbr.rel (%p623) target = $region67
        $region66: #{_lambda_.27} parent=50 // pred_region
          %s626 = smul.u32 9, %s19
        $region67: #{_lambda_.27} parent=50 // pred_fallthru
          _
        // Predicated region
        $region68: #{_lambda_.27} parent=50 // pred_check
          %p627 = pneg %p135
        $region69: #{_lambda_.27} parent=50 // pred_check_branch
          %629 = sbr.rel (%p627) target = $region71
        $region70: #{_lambda_.27} parent=50 // pred_region
          %s630 = smul.u32 9, %s19
          %p631 = scmp.lt.s32.totalorder %s630, 8
          %s632 = scalar_select %p631, %s630, 8
          %p633 = scmp.lt.s32.totalorder %s20, 0
          %s634 = scalar_select %p633, %s20, 0
          %s635 = sadd.s32 %s634, %s632
          %s636 = smul.addr %s635, 8
          %s637 = scalar_lea.vmem %s3, %s636
        $region71: #{_lambda_.27} parent=50 // pred_fallthru
          _
      $region51: #{_lambda_.27} parent=5 // pred_fallthru
        _
      %p638 = scmp.le.s32.totalorder 2, %s9
      // Predicated region
      $region72: #{_lambda_.27} parent=5 // pred_check
        %p639 = pneg %p638
      $region73: #{_lambda_.27} parent=5 // pred_check_branch
        %641 = sbr.rel (%p639) target = $region75
      $region74: #{_lambda_.27} parent=5 // pred_region
        %s642 = ssub.s32 %s9, 2
      $region75: #{_lambda_.27} parent=5 // pred_fallthru
        _
    $region6: #{_lambda_.27} parent=1 // loop_footer
      %s13 = sadd.s32 1, %s9
    $region7: #{_lambda_.27} parent=1 // loop_footer_branch
      %8 = sbr.rel target = $region3
    $region8: #{_lambda_.27} parent=1 // loop_exit
      _

// kernel: _lambda_.28
$region0: #{_lambda_.28}
  #allocation0 [shape = 'u32[]', space=smem, size = 0x4, offset = 0x4, fixed_abs, tag = 'smem constant byte address 0x4 - core index']
  #allocation1 [shape = 'u32[72,128]{1,0:T(1,128)}', space=vmem, size = 0x9000, scoped, tag = 'internal scratch']
  %s0 = inlined_call_operand.vmem [shape: f32[10,32], index: 0, kind: input, shape index: {}]
  %s1 = inlined_call_operand.hbm [shape: f32[1,32], index: 1, kind: input, shape index: {}]
  %s2 = inlined_call_operand.hbm [shape: f32[1,32], index: 2, kind: input, shape index: {}]
  %s3 = inlined_call_operand.vmem [shape: f32[32,8], index: 3, kind: input, shape index: {}]
  %s4 = inlined_call_operand.vmem [shape: f32[1,8], index: 4, kind: input, shape index: {}]
  %s5 = inlined_call_operand.vmem [shape: f32[8,32], index: 5, kind: input, shape index: {}]
  %s6 = inlined_call_operand.vmem [shape: f32[1,32], index: 6, kind: input, shape index: {}]
  %s7 = inlined_call_operand.vmem [shape: f32[10,32], index: 7, kind: output, shape index: {}]
  %s8 = sld [smem:[#allocation0]]
  $region46: #{_lambda_.28} parent=0
    _
  %s10 = ssub.s32 1, %s8
  %s11 = scalar_select 0, %s10, %s8
  $region1: #{_lambda_.28} parent=0
    #allocation2 [shape = 'u8[512]{0}', space=vmem, size = 0x400, scoped, tag = 'input window, operand 1, single buffered']
    #allocation3 [shape = 's32[1]{0}', space=sflag, size = 0x4, scoped, tag = 'scoped memory for _lambda_.28']
    #allocation4 [shape = 'u8[512]{0}', space=vmem, size = 0x400, scoped, tag = 'input window, operand 2, single buffered']
    #allocation5 [shape = 's32[1]{0}', space=sflag, size = 0x4, scoped, tag = 'scoped memory for _lambda_.28']
    %12 = vsyncpa [#allocation3], 0
    %13 = vsyncpa [#allocation5], 0
    // Predicated region
    $region2: #{_lambda_.28} parent=1 // pred_check
      _
    $region3: #{_lambda_.28} parent=1 // pred_check_branch
      %15 = sbr.rel (0) target = $region5
    $region4: #{_lambda_.28} parent=1 // pred_region
      _
    $region5: #{_lambda_.28} parent=1 // pred_fallthru
      _
    // Predicated region
    $region6: #{_lambda_.28} parent=1 // pred_check
      _
    $region7: #{_lambda_.28} parent=1 // pred_check_branch
      %17 = sbr.rel (0) target = $region9
    $region8: #{_lambda_.28} parent=1 // pred_region
      %19 = vsyncadd [#allocation3], 0
      %s21 = sshll.u32 %s1, 4
      %s22 = int_to_ptr.hbm [resolvable:$true] %s21
      %s23 = sshll.u32 [#allocation2], 4
      %s24 = int_to_ptr.vmem [resolvable:$true] %s23
      %26 = dma.hbm_to_vmem [thread:$0]  %s22, 16, %s24, [#allocation3]
    $region9: #{_lambda_.28} parent=1 // pred_fallthru
      _
    // Predicated region
    $region10: #{_lambda_.28} parent=1 // pred_check
      _
    $region11: #{_lambda_.28} parent=1 // pred_check_branch
      %28 = sbr.rel (0) target = $region13
    $region12: #{_lambda_.28} parent=1 // pred_region
      %30 = vsyncadd [#allocation5], 0
      %s32 = sshll.u32 %s2, 4
      %s33 = int_to_ptr.hbm [resolvable:$true] %s32
      %s34 = sshll.u32 [#allocation4], 4
      %s35 = int_to_ptr.vmem [resolvable:$true] %s34
      %37 = dma.hbm_to_vmem [thread:$0]  %s33, 16, %s35, [#allocation5]
    $region13: #{_lambda_.28} parent=1 // pred_fallthru
      _
    // Predicated region
    $region14: #{_lambda_.28} parent=1 // pred_check
      _
    $region15: #{_lambda_.28} parent=1 // pred_check_branch
      %39 = sbr.rel (0) target = $region17
    $region16: #{_lambda_.28} parent=1 // pred_region
      _
    $region17: #{_lambda_.28} parent=1 // pred_fallthru
      _
    // Predicated region
    $region18: #{_lambda_.28} parent=1 // pred_check
      _
    $region19: #{_lambda_.28} parent=1 // pred_check_branch
      %41 = sbr.rel (0) target = $region21
    $region20: #{_lambda_.28} parent=1 // pred_region
      _
    $region21: #{_lambda_.28} parent=1 // pred_fallthru
      _
    // Predicated region
    $region22: #{_lambda_.28} parent=1 // pred_check
      _
    $region23: #{_lambda_.28} parent=1 // pred_check_branch
      %43 = sbr.rel (0) target = $region25
    $region24: #{_lambda_.28} parent=1 // pred_region
      _
    $region25: #{_lambda_.28} parent=1 // pred_fallthru
      _
    // Predicated region
    $region26: #{_lambda_.28} parent=1 // pred_check
      _
    $region27: #{_lambda_.28} parent=1 // pred_check_branch
      %45 = sbr.rel (0) target = $region29
    $region28: #{_lambda_.28} parent=1 // pred_region
      _
    $region29: #{_lambda_.28} parent=1 // pred_fallthru
      _
    // Predicated region
    $region30: #{_lambda_.28} parent=1 // pred_check
      _
    $region31: #{_lambda_.28} parent=1 // pred_check_branch
      %47 = sbr.rel (0) target = $region33
    $region32: #{_lambda_.28} parent=1 // pred_region
      %49 = dma.done [#allocation3], 16
    $region33: #{_lambda_.28} parent=1 // pred_fallthru
      _
    // Predicated region
    $region34: #{_lambda_.28} parent=1 // pred_check
      _
    $region35: #{_lambda_.28} parent=1 // pred_check_branch
      %51 = sbr.rel (0) target = $region37
    $region36: #{_lambda_.28} parent=1 // pred_region
      %53 = dma.done [#allocation5], 16
    $region37: #{_lambda_.28} parent=1 // pred_fallthru
      _
    %v55 = vld [vmem:[%s0] sm:$0xff]
    %v56 = vld [vmem:[%s0 + $0x8] sm:$0x3]
    %v57 = vld [vmem:[#allocation2] sm:$0x1]
    %v58 = vld [vmem:[#allocation4] sm:$0x1]
    %vm59 = vcmask 261120
    %v60 = vsel %vm59, %v55, 0.0
    %61 = vadd.xlane.f32.xlu0 %v60
    %v62 = vpop.xlane.xlu0 %61
    %vm63 = vcmask 254976
    %v64 = vsel %vm63, %v56, 0.0
    %65 = vadd.xlane.f32.xlu0 %v64
    %v66 = vpop.xlane.xlu0 %65
    %v67 = vrcp.pop 32.0
    %v68 = vmul.f32 32.0, %v67
    %v69 = vsub.f32 1.0, %v68
    %v70 = vmul.f32 %v67, %v69
    %v71 = vadd.f32 %v67, %v70
    %vm72 = vweird.f32 %v67
    %v73 = vsel %vm72, %v67, %v71
    %v74 = vmul.f32 %v62, %v73
    %v75 = vmul.f32 %v66, %v73
    %v76 = vsub.f32 %v55, %v74
    %v77 = vsub.f32 %v56, %v75
    %v78 = vmul.f32 %v76, %v76
    %v79 = vmul.f32 %v77, %v77
    %v80 = vsel %vm59, %v78, 0.0
    %81 = vadd.xlane.f32.xlu0 %v80
    %v82 = vpop.xlane.xlu0 %81
    %v83 = vsel %vm63, %v79, 0.0
    %84 = vadd.xlane.f32.xlu0 %v83
    %v85 = vpop.xlane.xlu0 %84
    %v86 = vmul.f32 %v82, %v73
    %v87 = vmul.f32 %v85, %v73
    %v88 = vadd.f32 %v86, 1e-05
    %v89 = vadd.f32 %v87, 1e-05
    %v90 = vrsqrt.pop %v88
    %v91 = vmul.f32 %v90, %v88
    %v92 = vmul.f32 %v91, %v90
    %v93 = vmul.f32 0.5, %v92
    %v94 = vsub.f32 1.5, %v93
    %v95 = vmul.f32 %v90, %v94
    %vm96 = vweird.f32 %v88
    %vm97 = vweird.f32 %v90
    %vm98 = vmor %vm96, %vm97
    %v99 = vsel %vm98, %v90, %v95
    %v100 = vrsqrt.pop %v89
    %v101 = vmul.f32 %v100, %v89
    %v102 = vmul.f32 %v101, %v100
    %v103 = vmul.f32 0.5, %v102
    %v104 = vsub.f32 1.5, %v103
    %v105 = vmul.f32 %v100, %v104
    %vm106 = vweird.f32 %v89
    %vm107 = vweird.f32 %v100
    %vm108 = vmor %vm106, %vm107
    %v109 = vsel %vm108, %v100, %v105
    %v110 = vmul.f32 %v76, %v99
    %v111 = vmul.f32 %v77, %v109
    %v113 = vperm.slane %v57, 0
    %v115 = vmul.f32 %v110, %v113
    %v116 = vmul.f32 %v111, %v113
    %v118 = vperm.slane %v58, 0
    %v120 = vadd.f32 %v115, %v118
    %v121 = vadd.f32 %v116, %v118
    %v122 = vld [vmem:[%s3] sm:$0xff]
    %v123 = vld [vmem:[%s3 + $0x8] sm:$0xff]
    %v124 = vld [vmem:[%s3 + $0x10] sm:$0xff]
    %v125 = vld [vmem:[%s3 + $0x18] sm:$0xff]
    %v126 = vpack.c.bf16 %v121, %v120
    %v127 = vpack.c.bf16 %v123, %v122
    %v128 = vpack.c.bf16 %v125, %v124
    %v129 = vld [vmem:[%s4] sm:$0x1]
    %v131 = vperm.slane %v129, 0
    %v134 = vsel %vm59, %v126, 0
    %136 = vmatpush.bf16.msra.mxu0 0
    %137 = vmatpush.bf16.msra.mxu0 0
    %138 = vmatpush.bf16.msra.mxu0 0
    %139 = vmatpush.bf16.msra.mxu0 0
    %140 = vmatpush.bf16.msra.mxu0 0
    %141 = vmatpush.bf16.msra.mxu0 0
    %142 = vmatpush.bf16.msra.mxu0 %v128
    %143 = vmatpush.bf16.msra.mxu0 %v127
    %144 = vmatmul.bf16.gmra.mxu0 %v134
    %v145 = vpop.f32.mrf.mxu0
    %v146 = vadd.f32 %v131, %v145
    %v147 = vpop.f32.mrf.mxu0
    %v148 = vadd.f32 %v131, %v147
    %149 = vdwg.mxu0
    %v150 = vmul.f32 %v146, 0.5
    %v151 = vmul.f32 %v148, 0.5
    %v152 = vmul.f32 %v146, 0.70710677
    %v153 = vmul.f32 %v148, 0.70710677
    %v154 = vmul.f32 %v152, %v152
    %v155 = vmin.f32 16.0, %v154
    %v156 = vmul.f32 %v155, 2.1237322e-06
    %v157 = vadd.f32 %v156, 0.00028619796
    %v158 = vmul.f32 %v155, %v157
    %v159 = vadd.f32 %v158, 0.0036580483
    %v160 = vmul.f32 %v155, %v159
    %v161 = vadd.f32 %v160, 0.05243302
    %v162 = vmul.f32 %v155, %v161
    %v163 = vadd.f32 %v162, 0.18741608
    %v164 = vmul.f32 %v155, %v163
    %v165 = vadd.f32 %v164, 1.1283791
    %v166 = vmul.f32 %v152, %v165
    %v167 = vmul.f32 %v155, 3.8918573e-05
    %v168 = vadd.f32 %v167, 0.001143296
    %v169 = vmul.f32 %v155, %v168
    %v170 = vadd.f32 %v169, 0.014752088
    %v171 = vmul.f32 %v155, %v170
    %v172 = vadd.f32 %v171, 0.112945676
    %v173 = vmul.f32 %v155, %v172
    %v174 = vadd.f32 %v173, 0.4994258
    %v175 = vmul.f32 %v155, %v174
    %v176 = vadd.f32 %v175, 1.0
    %v177 = vrcp.pop %v176
    %v178 = vmul.f32 %v176, %v177
    %v179 = vsub.f32 1.0, %v178
    %v180 = vmul.f32 %v177, %v179
    %v181 = vadd.f32 %v177, %v180
    %vm182 = vweird.f32 %v176
    %vm183 = vweird.f32 %v177
    %vm184 = vmor %vm182, %vm183
    %v185 = vsel %vm184, %v177, %v181
    %v186 = vand.u32 2147483647, %v176
    %vm187 = vcmp.eq.f32.partialorder %v186, 8.507059e+37
    %v188 = vand.u32 %v176, 2147483648
    %v189 = vor.u32 1.1754944e-38, %v188
    %v190 = vsel %vm187, %v189, %v185
    %v191 = vmul.f32 %v166, %v190
    %v192 = vmin.f32 %v191, 1.0
    %v193 = vmax.f32 %v192, -1.0
    %v194 = vmul.f32 %v153, %v153
    %v195 = vmin.f32 16.0, %v194
    %v196 = vmul.f32 %v195, 2.1237322e-06
    %v197 = vadd.f32 %v196, 0.00028619796
    %v198 = vmul.f32 %v195, %v197
    %v199 = vadd.f32 %v198, 0.0036580483
    %v200 = vmul.f32 %v195, %v199
    %v201 = vadd.f32 %v200, 0.05243302
    %v202 = vmul.f32 %v195, %v201
    %v203 = vadd.f32 %v202, 0.18741608
    %v204 = vmul.f32 %v195, %v203
    %v205 = vadd.f32 %v204, 1.1283791
    %v206 = vmul.f32 %v153, %v205
    %v207 = vmul.f32 %v195, 3.8918573e-05
    %v208 = vadd.f32 %v207, 0.001143296
    %v209 = vmul.f32 %v195, %v208
    %v210 = vadd.f32 %v209, 0.014752088
    %v211 = vmul.f32 %v195, %v210
    %v212 = vadd.f32 %v211, 0.112945676
    %v213 = vmul.f32 %v195, %v212
    %v214 = vadd.f32 %v213, 0.4994258
    %v215 = vmul.f32 %v195, %v214
    %v216 = vadd.f32 %v215, 1.0
    %v217 = vrcp.pop %v216
    %v218 = vmul.f32 %v216, %v217
    %v219 = vsub.f32 1.0, %v218
    %v220 = vmul.f32 %v217, %v219
    %v221 = vadd.f32 %v217, %v220
    %vm222 = vweird.f32 %v216
    %vm223 = vweird.f32 %v217
    %vm224 = vmor %vm222, %vm223
    %v225 = vsel %vm224, %v217, %v221
    %v226 = vand.u32 2147483647, %v216
    %vm227 = vcmp.eq.f32.partialorder %v226, 8.507059e+37
    %v228 = vand.u32 %v216, 2147483648
    %v229 = vor.u32 1.1754944e-38, %v228
    %v230 = vsel %vm227, %v229, %v225
    %v231 = vmul.f32 %v206, %v230
    %v232 = vmin.f32 %v231, 1.0
    %v233 = vmax.f32 %v232, -1.0
    %v234 = vadd.f32 %v193, 1.0
    %v235 = vadd.f32 %v233, 1.0
    %v236 = vmul.f32 %v150, %v234
    %v237 = vmul.f32 %v151, %v235
    %v238 = vld [vmem:[%s5] sm:$0xff]
    %v239 = vpack.c.bf16 %v237, %v236
    %v240 = vpack.c.bf16 %v238, %v238
    %v241 = vld [vmem:[%s6] sm:$0x1]
    %v243 = vperm.slane %v241, 0
    %vm245 = vcmask 64512
    %v247 = vsel %vm245, %v239, 0
    %vm249 = vcmask 1043456
    %v251 = vsel %vm249, %v240, 0
    %253 = vmatpush.bf16.msra.mxu0 0
    %254 = vmatpush.bf16.msra.mxu0 0
    %255 = vmatpush.bf16.msra.mxu0 0
    %256 = vmatpush.bf16.msra.mxu0 0
    %257 = vmatpush.bf16.msra.mxu0 0
    %258 = vmatpush.bf16.msra.mxu0 0
    %259 = vmatpush.bf16.msra.mxu0 0
    %260 = vmatpush.bf16.msra.mxu0 %v251
    %261 = vmatmul.bf16.gmra.mxu0 %v247
    %v262 = vpop.f32.mrf.mxu0
    %v263 = vadd.f32 %v243, %v262
    %v264 = vpop.f32.mrf.mxu0
    %v265 = vadd.f32 %v243, %v264
    %266 = vdwg.mxu0
    %267 = vst.msk [vmem:[%s7] sm:$0xff] %vm59, %v263
    %268 = vst.msk [vmem:[%s7 + $0x8] sm:$0x3] %vm63, %v265
    // Predicated region
    $region38: #{_lambda_.28} parent=1 // pred_check
      _
    $region39: #{_lambda_.28} parent=1 // pred_check_branch
      %270 = sbr.rel (0) target = $region41
    $region40: #{_lambda_.28} parent=1 // pred_region
      _
    $region41: #{_lambda_.28} parent=1 // pred_fallthru
      _
    // Predicated region
    $region42: #{_lambda_.28} parent=1 // pred_check
      _
    $region43: #{_lambda_.28} parent=1 // pred_check_branch
      %272 = sbr.rel (0) target = $region45
    $region44: #{_lambda_.28} parent=1 // pred_region
      _
    $region45: #{_lambda_.28} parent=1 // pred_fallthru
      _
    %273 = vsyncpa [#allocation3], 1
    %274 = vsyncpa [#allocation5], 1

// kernel: _lambda_.29
$region0: #{_lambda_.29}
  #allocation0 [shape = 'u32[]', space=smem, size = 0x4, offset = 0x4, fixed_abs, tag = 'smem constant byte address 0x4 - core index']
  #allocation1 [shape = 'u32[72,128]{1,0:T(1,128)}', space=vmem, size = 0x9000, scoped, tag = 'internal scratch']
  #allocation2 [shape = 'f32[10,96]{1,0:T(8,128)}', space=vmem, size = 0x2000, scoped, tag = 'scratch operand']
  %s0 = inlined_call_operand.vmem [shape: f32[10,32], index: 0, kind: input, shape index: {}]
  %s1 = inlined_call_operand.vmem [shape: f32[32,96], index: 1, kind: input, shape index: {}]
  %s2 = inlined_call_operand.hbm [shape: f32[1,96], index: 2, kind: input, shape index: {}]
  %s3 = inlined_call_operand.vmem [shape: f32[10,96], index: 3, kind: output, shape index: {}]
  %s4 = sld [smem:[#allocation0]]
  $region34: #{_lambda_.29} parent=0
    _
  %s6 = ssub.s32 1, %s4
  %s7 = scalar_select 0, %s6, %s4
  $region1: #{_lambda_.29} parent=0
    #allocation3 [shape = 'u8[512]{0}', space=vmem, size = 0x400, scoped, tag = 'input window, operand 2, single buffered']
    #allocation4 [shape = 's32[1]{0}', space=sflag, size = 0x4, scoped, tag = 'scoped memory for _lambda_.29']
    %8 = vsyncpa [#allocation4], 0
    // Predicated region
    $region2: #{_lambda_.29} parent=1 // pred_check
      _
    $region3: #{_lambda_.29} parent=1 // pred_check_branch
      %10 = sbr.rel (0) target = $region5
    $region4: #{_lambda_.29} parent=1 // pred_region
      _
    $region5: #{_lambda_.29} parent=1 // pred_fallthru
      _
    // Predicated region
    $region6: #{_lambda_.29} parent=1 // pred_check
      _
    $region7: #{_lambda_.29} parent=1 // pred_check_branch
      %12 = sbr.rel (0) target = $region9
    $region8: #{_lambda_.29} parent=1 // pred_region
      _
    $region9: #{_lambda_.29} parent=1 // pred_fallthru
      _
    // Predicated region
    $region10: #{_lambda_.29} parent=1 // pred_check
      _
    $region11: #{_lambda_.29} parent=1 // pred_check_branch
      %14 = sbr.rel (0) target = $region13
    $region12: #{_lambda_.29} parent=1 // pred_region
      %16 = vsyncadd [#allocation4], 0
      %s18 = sshll.u32 %s2, 4
      %s19 = int_to_ptr.hbm [resolvable:$true] %s18
      %s20 = sshll.u32 [#allocation3], 4
      %s21 = int_to_ptr.vmem [resolvable:$true] %s20
      %23 = dma.hbm_to_vmem [thread:$0]  %s19, 16, %s21, [#allocation4]
    $region13: #{_lambda_.29} parent=1 // pred_fallthru
      _
    // Predicated region
    $region14: #{_lambda_.29} parent=1 // pred_check
      _
    $region15: #{_lambda_.29} parent=1 // pred_check_branch
      %25 = sbr.rel (0) target = $region17
    $region16: #{_lambda_.29} parent=1 // pred_region
      %27 = dma.done [#allocation4], 16
    $region17: #{_lambda_.29} parent=1 // pred_fallthru
      _
    %p29 = scmp.eq.s32.totalorder 0, 0
    // Predicated region
    $region18: #{_lambda_.29} parent=1 // pred_check
      %p30 = pneg %p29
    $region19: #{_lambda_.29} parent=1 // pred_check_branch
      %32 = sbr.rel (%p30) target = $region21
    $region20: #{_lambda_.29} parent=1 // pred_region
      %vm33 = vcmask 785408
      %34 = vst.msk [vmem:[#allocation2] sm:$0xff] %vm33, 0.0
      %vm35 = vcmask 779264
      %36 = vst.msk [vmem:[#allocation2 + $0x8] sm:$0x3] %vm35, 0.0
    $region21: #{_lambda_.29} parent=1 // pred_fallthru
      _
    %v37 = vld [vmem:[#allocation2] sm:$0xff]
    %v38 = vld [vmem:[#allocation2 + $0x8] sm:$0x3]
    %v39 = vld [vmem:[%s0] sm:$0xff]
    %v40 = vld [vmem:[%s0 + $0x8] sm:$0x3]
    %v41 = vld [vmem:[%s1] sm:$0xff]
    %v42 = vld [vmem:[%s1 + $0x8] sm:$0xff]
    %v43 = vld [vmem:[%s1 + $0x10] sm:$0xff]
    %v44 = vld [vmem:[%s1 + $0x18] sm:$0xff]
    %v45 = vpack.c.bf16 %v40, %v39
    %v46 = vpack.c.bf16 %v42, %v41
    %v47 = vpack.c.bf16 %v44, %v43
    %vm48 = vcmask 261120
    %v50 = vsel %vm48, %v45, 0
    %52 = vmatpush.bf16.msra.mxu0 0
    %53 = vmatpush.bf16.msra.mxu0 0
    %54 = vmatpush.bf16.msra.mxu0 0
    %55 = vmatpush.bf16.msra.mxu0 0
    %56 = vmatpush.bf16.msra.mxu0 0
    %57 = vmatpush.bf16.msra.mxu0 0
    %58 = vmatpush.bf16.msra.mxu0 %v47
    %59 = vmatpush.bf16.msra.mxu0 %v46
    %60 = vmatmul.bf16.gmra.mxu0 %v50
    %v61 = vpop.f32.mrf.mxu0
    %v62 = vadd.f32 0.0, %v61
    %v63 = vpop.f32.mrf.mxu0
    %v64 = vadd.f32 0.0, %v63
    %65 = vdwg.mxu0
    %v66 = vadd.f32 %v37, %v62
    %v67 = vadd.f32 %v38, %v64
    %vm68 = vcmask 785408
    %69 = vst.msk [vmem:[#allocation2] sm:$0xff] %vm68, %v66
    %vm70 = vcmask 779264
    %71 = vst.msk [vmem:[#allocation2 + $0x8] sm:$0x3] %vm70, %v67
    // Predicated region
    $region22: #{_lambda_.29} parent=1 // pred_check
      %p72 = pneg %p29
    $region23: #{_lambda_.29} parent=1 // pred_check_branch
      %74 = sbr.rel (%p72) target = $region25
    $region24: #{_lambda_.29} parent=1 // pred_region
      %v75 = vld [vmem:[#allocation2] sm:$0xff]
      %v76 = vld [vmem:[#allocation2 + $0x8] sm:$0x3]
      %v77 = vld [vmem:[#allocation3] sm:$0x1]
      %v79 = vperm.slane %v77, 0
      %v81 = vadd.f32 %v75, %v79
      %v82 = vadd.f32 %v76, %v79
      %83 = vst.msk [vmem:[%s3] sm:$0xff] %vm68, %v81
      %84 = vst.msk [vmem:[%s3 + $0x8] sm:$0x3] %vm70, %v82
    $region25: #{_lambda_.29} parent=1 // pred_fallthru
      _
    // Predicated region
    $region26: #{_lambda_.29} parent=1 // pred_check
      _
    $region27: #{_lambda_.29} parent=1 // pred_check_branch
      %86 = sbr.rel (0) target = $region29
    $region28: #{_lambda_.29} parent=1 // pred_region
      _
    $region29: #{_lambda_.29} parent=1 // pred_fallthru
      _
    // Predicated region
    $region30: #{_lambda_.29} parent=1 // pred_check
      _
    $region31: #{_lambda_.29} parent=1 // pred_check_branch
      %88 = sbr.rel (0) target = $region33
    $region32: #{_lambda_.29} parent=1 // pred_region
      _
    $region33: #{_lambda_.29} parent=1 // pred_fallthru
      _
    %89 = vsyncpa [#allocation4], 1

// kernel: _lambda_.31
$region0: #{_lambda_.31}
  #allocation0 [shape = 'u32[]', space=smem, size = 0x4, offset = 0x4, fixed_abs, tag = 'smem constant byte address 0x4 - core index']
  #allocation1 [shape = 'u32[72,128]{1,0:T(1,128)}', space=vmem, size = 0x9000, scoped, tag = 'internal scratch']
  #allocation2 [shape = 'f32[10,32]{1,0:T(8,128)}', space=vmem, size = 0x2000, scoped, tag = 'scratch operand']
  %s0 = inlined_call_operand.vmem [shape: f32[10,32], index: 0, kind: input, shape index: {}]
  %s1 = inlined_call_operand.vmem [shape: f32[32,32], index: 1, kind: input, shape index: {}]
  %s2 = inlined_call_operand.hbm [shape: f32[1,32], index: 2, kind: input, shape index: {}]
  %s3 = inlined_call_operand.vmem [shape: f32[10,32], index: 3, kind: output, shape index: {}]
  %s4 = sld [smem:[#allocation0]]
  $region34: #{_lambda_.31} parent=0
    _
  %s6 = ssub.s32 1, %s4
  %s7 = scalar_select 0, %s6, %s4
  $region1: #{_lambda_.31} parent=0
    #allocation3 [shape = 'u8[512]{0}', space=vmem, size = 0x400, scoped, tag = 'input window, operand 2, single buffered']
    #allocation4 [shape = 's32[1]{0}', space=sflag, size = 0x4, scoped, tag = 'scoped memory for _lambda_.31']
    %8 = vsyncpa [#allocation4], 0
    // Predicated region
    $region2: #{_lambda_.31} parent=1 // pred_check
      _
    $region3: #{_lambda_.31} parent=1 // pred_check_branch
      %10 = sbr.rel (0) target = $region5
    $region4: #{_lambda_.31} parent=1 // pred_region
      _
    $region5: #{_lambda_.31} parent=1 // pred_fallthru
      _
    // Predicated region
    $region6: #{_lambda_.31} parent=1 // pred_check
      _
    $region7: #{_lambda_.31} parent=1 // pred_check_branch
      %12 = sbr.rel (0) target = $region9
    $region8: #{_lambda_.31} parent=1 // pred_region
      _
    $region9: #{_lambda_.31} parent=1 // pred_fallthru
      _
    // Predicated region
    $region10: #{_lambda_.31} parent=1 // pred_check
      _
    $region11: #{_lambda_.31} parent=1 // pred_check_branch
      %14 = sbr.rel (0) target = $region13
    $region12: #{_lambda_.31} parent=1 // pred_region
      %16 = vsyncadd [#allocation4], 0
      %s18 = sshll.u32 %s2, 4
      %s19 = int_to_ptr.hbm [resolvable:$true] %s18
      %s20 = sshll.u32 [#allocation3], 4
      %s21 = int_to_ptr.vmem [resolvable:$true] %s20
      %23 = dma.hbm_to_vmem [thread:$0]  %s19, 16, %s21, [#allocation4]
    $region13: #{_lambda_.31} parent=1 // pred_fallthru
      _
    // Predicated region
    $region14: #{_lambda_.31} parent=1 // pred_check
      _
    $region15: #{_lambda_.31} parent=1 // pred_check_branch
      %25 = sbr.rel (0) target = $region17
    $region16: #{_lambda_.31} parent=1 // pred_region
      %27 = dma.done [#allocation4], 16
    $region17: #{_lambda_.31} parent=1 // pred_fallthru
      _
    %p29 = scmp.eq.s32.totalorder 0, 0
    // Predicated region
    $region18: #{_lambda_.31} parent=1 // pred_check
      %p30 = pneg %p29
    $region19: #{_lambda_.31} parent=1 // pred_check_branch
      %32 = sbr.rel (%p30) target = $region21
    $region20: #{_lambda_.31} parent=1 // pred_region
      %vm33 = vcmask 261120
      %34 = vst.msk [vmem:[#allocation2] sm:$0xff] %vm33, 0.0
      %vm35 = vcmask 254976
      %36 = vst.msk [vmem:[#allocation2 + $0x8] sm:$0x3] %vm35, 0.0
    $region21: #{_lambda_.31} parent=1 // pred_fallthru
      _
    %v37 = vld [vmem:[#allocation2] sm:$0xff]
    %v38 = vld [vmem:[#allocation2 + $0x8] sm:$0x3]
    %v39 = vld [vmem:[%s0] sm:$0xff]
    %v40 = vld [vmem:[%s0 + $0x8] sm:$0x3]
    %v41 = vld [vmem:[%s1] sm:$0xff]
    %v42 = vld [vmem:[%s1 + $0x8] sm:$0xff]
    %v43 = vld [vmem:[%s1 + $0x10] sm:$0xff]
    %v44 = vld [vmem:[%s1 + $0x18] sm:$0xff]
    %v45 = vpack.c.bf16 %v40, %v39
    %v46 = vpack.c.bf16 %v42, %v41
    %v47 = vpack.c.bf16 %v44, %v43
    %vm48 = vcmask 261120
    %v50 = vsel %vm48, %v45, 0
    %52 = vmatpush.bf16.msra.mxu0 0
    %53 = vmatpush.bf16.msra.mxu0 0
    %54 = vmatpush.bf16.msra.mxu0 0
    %55 = vmatpush.bf16.msra.mxu0 0
    %56 = vmatpush.bf16.msra.mxu0 0
    %57 = vmatpush.bf16.msra.mxu0 0
    %58 = vmatpush.bf16.msra.mxu0 %v47
    %59 = vmatpush.bf16.msra.mxu0 %v46
    %60 = vmatmul.bf16.gmra.mxu0 %v50
    %v61 = vpop.f32.mrf.mxu0
    %v62 = vadd.f32 0.0, %v61
    %v63 = vpop.f32.mrf.mxu0
    %v64 = vadd.f32 0.0, %v63
    %65 = vdwg.mxu0
    %v66 = vadd.f32 %v37, %v62
    %v67 = vadd.f32 %v38, %v64
    %68 = vst.msk [vmem:[#allocation2] sm:$0xff] %vm48, %v66
    %vm69 = vcmask 254976
    %70 = vst.msk [vmem:[#allocation2 + $0x8] sm:$0x3] %vm69, %v67
    // Predicated region
    $region22: #{_lambda_.31} parent=1 // pred_check
      %p71 = pneg %p29
    $region23: #{_lambda_.31} parent=1 // pred_check_branch
      %73 = sbr.rel (%p71) target = $region25
    $region24: #{_lambda_.31} parent=1 // pred_region
      %v74 = vld [vmem:[#allocation2] sm:$0xff]
      %v75 = vld [vmem:[#allocation2 + $0x8] sm:$0x3]
      %v76 = vld [vmem:[#allocation3] sm:$0x1]
      %v78 = vperm.slane %v76, 0
      %v80 = vadd.f32 %v74, %v78
      %v81 = vadd.f32 %v75, %v78
      %82 = vst.msk [vmem:[%s3] sm:$0xff] %vm48, %v80
      %83 = vst.msk [vmem:[%s3 + $0x8] sm:$0x3] %vm69, %v81
    $region25: #{_lambda_.31} parent=1 // pred_fallthru
      _
    // Predicated region
    $region26: #{_lambda_.31} parent=1 // pred_check
      _
    $region27: #{_lambda_.31} parent=1 // pred_check_branch
      %85 = sbr.rel (0) target = $region29
    $region28: #{_lambda_.31} parent=1 // pred_region
      _
    $region29: #{_lambda_.31} parent=1 // pred_fallthru
      _
    // Predicated region
    $region30: #{_lambda_.31} parent=1 // pred_check
      _
    $region31: #{_lambda_.31} parent=1 // pred_check_branch
      %87 = sbr.rel (0) target = $region33
    $region32: #{_lambda_.31} parent=1 // pred_region
      _
    $region33: #{_lambda_.31} parent=1 // pred_fallthru
      _
    %88 = vsyncpa [#allocation4], 1

// kernel: _lambda_.30
$region0: #{_lambda_.30}
  #allocation0 [shape = 'u32[]', space=smem, size = 0x4, offset = 0x4, fixed_abs, tag = 'smem constant byte address 0x4 - core index']
  #allocation1 [shape = 'u32[72,128]{1,0:T(1,128)}', space=vmem, size = 0x9000, scoped, tag = 'internal scratch']
  %s0 = inlined_call_operand.vmem [shape: f32[2,5,96], index: 0, kind: input, shape index: {}]
  %s1 = inlined_call_operand.vmem [shape: f32[2,5,32], index: 1, kind: output, shape index: {}]
  %s2 = sld [smem:[#allocation0]]
  $region14: #{_lambda_.30} parent=0
    _
  %s4 = ssub.s32 1, %s2
  %s5 = scalar_select 0, %s4, %s2
  // Predicated region
  $region2: #{_lambda_.30} parent=0 // pred_check
    _
  $region3: #{_lambda_.30} parent=0 // pred_check_branch
    %7 = sbr.rel (0) target = $region5
  $region4: #{_lambda_.30} parent=0 // pred_region
    _
  $region5: #{_lambda_.30} parent=0 // pred_fallthru
    _
  %v9 = vld [vmem:[%s0] sm:$0x1f]
  %v10 = vld [vmem:[%s0 + $0x8] sm:$0x1f]
  %v11 = vpack.c.bf16 %v9, %v9
  %v12 = vpack.c.bf16 %v10, %v10
  %v14 = vunpack.c.l.b16 %v11
  %v15 = vpack.c.b16 %v14, %v14
  %16 = vrot.lane.b32.xlu0 %v15, 96
  %v17 = vpop.permute.xlu0 %16
  %vm18 = vcmask 64512
  %v20 = vsel %vm18, %v11, 0
  %v23 = vsel %vm18, %v17, 0
  %25 = vmatpush.bf16.xpose.msra.mxu0 0
  %26 = vmatpush.bf16.xpose.msra.mxu0 0
  %27 = vmatpush.bf16.xpose.msra.mxu0 0
  %28 = vmatpush.bf16.xpose.msra.mxu0 0
  %29 = vmatpush.bf16.xpose.msra.mxu0 0
  %30 = vmatpush.bf16.xpose.msra.mxu0 0
  %31 = vmatpush.bf16.xpose.msra.mxu0 0
  %32 = vmatpush.bf16.xpose.msra.mxu0 %v23
  %33 = vmatmul.bf16.gmra.mxu0 %v20
  %v34 = vpop.f32.mrf.mxu0
  %v35 = vadd.f32 0.0, %v34
  %v36 = vpop.f32.mrf.mxu0
  %37 = vdwg.mxu0
  %v39 = vunpack.c.l.b16 %v12
  %v40 = vpack.c.b16 %v39, %v39
  %41 = vrot.lane.b32.xlu0 %v40, 96
  %v42 = vpop.permute.xlu0 %41
  %v44 = vsel %vm18, %v12, 0
  %v47 = vsel %vm18, %v42, 0
  %49 = vmatpush.bf16.xpose.msra.mxu0 0
  %50 = vmatpush.bf16.xpose.msra.mxu0 0
  %51 = vmatpush.bf16.xpose.msra.mxu0 0
  %52 = vmatpush.bf16.xpose.msra.mxu0 0
  %53 = vmatpush.bf16.xpose.msra.mxu0 0
  %54 = vmatpush.bf16.xpose.msra.mxu0 0
  %55 = vmatpush.bf16.xpose.msra.mxu0 0
  %56 = vmatpush.bf16.xpose.msra.mxu0 %v47
  %57 = vmatmul.bf16.gmra.mxu0 %v44
  %v58 = vpop.f32.mrf.mxu0
  %v59 = vadd.f32 0.0, %v58
  %v60 = vpop.f32.mrf.mxu0
  %61 = vdwg.mxu0
  %v62 = vmul.f32 %v35, 0.35355338
  %v63 = vmul.f32 %v59, 0.35355338
  %vm64 = vcmask 36864
  %v65 = vsel %vm64, %v62, -inf
  %66 = vmax.xlane.f32.xlu0 %v65
  %v67 = vpop.xlane.xlu0 %66
  %v68 = vsel %vm64, %v63, -inf
  %69 = vmax.xlane.f32.xlu0 %v68
  %v70 = vpop.xlane.xlu0 %69
  %v71 = vsub.f32 %v62, %v67
  %v72 = vsub.f32 %v63, %v70
  %v73 = vmul.f32 %v71, 1.442695
  %v74 = vpow.pop %v73
  %v75 = vmul.f32 %v72, 1.442695
  %v76 = vpow.pop %v75
  %v77 = vsel %vm64, %v74, 0.0
  %78 = vadd.xlane.f32.xlu0 %v77
  %v79 = vpop.xlane.xlu0 %78
  %v80 = vsel %vm64, %v76, 0.0
  %81 = vadd.xlane.f32.xlu0 %v80
  %v82 = vpop.xlane.xlu0 %81
  %v83 = vrcp.pop %v79
  %v84 = vrcp.pop %v82
  %v85 = vmul.f32 %v74, %v83
  %v86 = vmul.f32 %v76, %v84
  %v87 = vpack.c.bf16 %v85, %v85
  %v88 = vpack.c.bf16 %v86, %v86
  %89 = vrot.lane.b32.xlu0 %v15, 64
  %v90 = vpop.permute.xlu0 %89
  %vm91 = vcmask 39936
  %v93 = vsel %vm91, %v87, 0
  %vm95 = vcmask 1041408
  %vm96 = vcmask 1042432
  %v97 = vsel %vm95, 4294967295, 65535
  %v98 = vsel %vm96, %v97, 0
  %v100 = vand.u32 %v90, %v98
  %102 = vmatpush.bf16.msra.mxu0 0
  %103 = vmatpush.bf16.msra.mxu0 0
  %104 = vmatpush.bf16.msra.mxu0 0
  %105 = vmatpush.bf16.msra.mxu0 0
  %106 = vmatpush.bf16.msra.mxu0 0
  %107 = vmatpush.bf16.msra.mxu0 0
  %108 = vmatpush.bf16.msra.mxu0 0
  %109 = vmatpush.bf16.msra.mxu0 %v100
  %110 = vmatmul.bf16.gmra.mxu0 %v93
  %v111 = vpop.f32.mrf.mxu0
  %v112 = vadd.f32 0.0, %v111
  %v113 = vpop.f32.mrf.mxu0
  %114 = vdwg.mxu0
  %115 = vrot.lane.b32.xlu0 %v40, 64
  %v116 = vpop.permute.xlu0 %115
  %v118 = vsel %vm91, %v88, 0
  %v121 = vand.u32 %v116, %v98
  %123 = vmatpush.bf16.msra.mxu0 0
  %124 = vmatpush.bf16.msra.mxu0 0
  %125 = vmatpush.bf16.msra.mxu0 0
  %126 = vmatpush.bf16.msra.mxu0 0
  %127 = vmatpush.bf16.msra.mxu0 0
  %128 = vmatpush.bf16.msra.mxu0 0
  %129 = vmatpush.bf16.msra.mxu0 0
  %130 = vmatpush.bf16.msra.mxu0 %v121
  %131 = vmatmul.bf16.gmra.mxu0 %v118
  %v132 = vpop.f32.mrf.mxu0
  %v133 = vadd.f32 0.0, %v132
  %v134 = vpop.f32.mrf.mxu0
  %135 = vdwg.mxu0
  %136 = vrot.lane.b32.xlu0 %v15, 120
  %v137 = vpop.permute.xlu0 %136
  %138 = vrot.lane.b32.xlu0 %v15, 88
  %v139 = vpop.permute.xlu0 %138
  %v141 = vsel %vm18, %v137, 0
  %v144 = vsel %vm18, %v139, 0
  %146 = vmatpush.bf16.xpose.msra.mxu0 0
  %147 = vmatpush.bf16.xpose.msra.mxu0 0
  %148 = vmatpush.bf16.xpose.msra.mxu0 0
  %149 = vmatpush.bf16.xpose.msra.mxu0 0
  %150 = vmatpush.bf16.xpose.msra.mxu0 0
  %151 = vmatpush.bf16.xpose.msra.mxu0 0
  %152 = vmatpush.bf16.xpose.msra.mxu0 0
  %153 = vmatpush.bf16.xpose.msra.mxu0 %v144
  %154 = vmatmul.bf16.gmra.mxu0 %v141
  %v155 = vpop.f32.mrf.mxu0
  %v156 = vadd.f32 0.0, %v155
  %v157 = vpop.f32.mrf.mxu0
  %158 = vdwg.mxu0
  %159 = vrot.lane.b32.xlu0 %v40, 120
  %v160 = vpop.permute.xlu0 %159
  %161 = vrot.lane.b32.xlu0 %v40, 88
  %v162 = vpop.permute.xlu0 %161
  %v164 = vsel %vm18, %v160, 0
  %v167 = vsel %vm18, %v162, 0
  %169 = vmatpush.bf16.xpose.msra.mxu0 0
  %170 = vmatpush.bf16.xpose.msra.mxu0 0
  %171 = vmatpush.bf16.xpose.msra.mxu0 0
  %172 = vmatpush.bf16.xpose.msra.mxu0 0
  %173 = vmatpush.bf16.xpose.msra.mxu0 0
  %174 = vmatpush.bf16.xpose.msra.mxu0 0
  %175 = vmatpush.bf16.xpose.msra.mxu0 0
  %176 = vmatpush.bf16.xpose.msra.mxu0 %v167
  %177 = vmatmul.bf16.gmra.mxu0 %v164
  %v178 = vpop.f32.mrf.mxu0
  %v179 = vadd.f32 0.0, %v178
  %v180 = vpop.f32.mrf.mxu0
  %181 = vdwg.mxu0
  %v182 = vmul.f32 %v156, 0.35355338
  %v183 = vmul.f32 %v179, 0.35355338
  %v184 = vsel %vm64, %v182, -inf
  %185 = vmax.xlane.f32.xlu0 %v184
  %v186 = vpop.xlane.xlu0 %185
  %v187 = vsel %vm64, %v183, -inf
  %188 = vmax.xlane.f32.xlu0 %v187
  %v189 = vpop.xlane.xlu0 %188
  %v190 = vsub.f32 %v182, %v186
  %v191 = vsub.f32 %v183, %v189
  %v192 = vmul.f32 %v190, 1.442695
  %v193 = vpow.pop %v192
  %v194 = vmul.f32 %v191, 1.442695
  %v195 = vpow.pop %v194
  %v196 = vsel %vm64, %v193, 0.0
  %197 = vadd.xlane.f32.xlu0 %v196
  %v198 = vpop.xlane.xlu0 %197
  %v199 = vsel %vm64, %v195, 0.0
  %200 = vadd.xlane.f32.xlu0 %v199
  %v201 = vpop.xlane.xlu0 %200
  %v202 = vrcp.pop %v198
  %v203 = vrcp.pop %v201
  %v204 = vmul.f32 %v193, %v202
  %v205 = vmul.f32 %v195, %v203
  %v206 = vpack.c.bf16 %v204, %v204
  %v207 = vpack.c.bf16 %v205, %v205
  %208 = vrot.lane.b32.xlu0 %v15, 56
  %v209 = vpop.permute.xlu0 %208
  %v211 = vsel %vm91, %v206, 0
  %v214 = vand.u32 %v209, %v98
  %216 = vmatpush.bf16.msra.mxu0 0
  %217 = vmatpush.bf16.msra.mxu0 0
  %218 = vmatpush.bf16.msra.mxu0 0
  %219 = vmatpush.bf16.msra.mxu0 0
  %220 = vmatpush.bf16.msra.mxu0 0
  %221 = vmatpush.bf16.msra.mxu0 0
  %222 = vmatpush.bf16.msra.mxu0 0
  %223 = vmatpush.bf16.msra.mxu0 %v214
  %224 = vmatmul.bf16.gmra.mxu0 %v211
  %v225 = vpop.f32.mrf.mxu0
  %v226 = vadd.f32 0.0, %v225
  %v227 = vpop.f32.mrf.mxu0
  %228 = vdwg.mxu0
  %229 = vrot.lane.b32.xlu0 %v40, 56
  %v230 = vpop.permute.xlu0 %229
  %v232 = vsel %vm91, %v207, 0
  %v235 = vand.u32 %v230, %v98
  %237 = vmatpush.bf16.msra.mxu0 0
  %238 = vmatpush.bf16.msra.mxu0 0
  %239 = vmatpush.bf16.msra.mxu0 0
  %240 = vmatpush.bf16.msra.mxu0 0
  %241 = vmatpush.bf16.msra.mxu0 0
  %242 = vmatpush.bf16.msra.mxu0 0
  %243 = vmatpush.bf16.msra.mxu0 0
  %244 = vmatpush.bf16.msra.mxu0 %v235
  %245 = vmatmul.bf16.gmra.mxu0 %v232
  %v246 = vpop.f32.mrf.mxu0
  %v247 = vadd.f32 0.0, %v246
  %v248 = vpop.f32.mrf.mxu0
  %249 = vdwg.mxu0
  %250 = vrot.lane.b32.xlu0 %v15, 112
  %v251 = vpop.permute.xlu0 %250
  %252 = vrot.lane.b32.xlu0 %v15, 80
  %v253 = vpop.permute.xlu0 %252
  %v255 = vsel %vm18, %v251, 0
  %v258 = vsel %vm18, %v253, 0
  %260 = vmatpush.bf16.xpose.msra.mxu0 0
  %261 = vmatpush.bf16.xpose.msra.mxu0 0
  %262 = vmatpush.bf16.xpose.msra.mxu0 0
  %263 = vmatpush.bf16.xpose.msra.mxu0 0
  %264 = vmatpush.bf16.xpose.msra.mxu0 0
  %265 = vmatpush.bf16.xpose.msra.mxu0 0
  %266 = vmatpush.bf16.xpose.msra.mxu0 0
  %267 = vmatpush.bf16.xpose.msra.mxu0 %v258
  %268 = vmatmul.bf16.gmra.mxu0 %v255
  %v269 = vpop.f32.mrf.mxu0
  %v270 = vadd.f32 0.0, %v269
  %v271 = vpop.f32.mrf.mxu0
  %272 = vdwg.mxu0
  %273 = vrot.lane.b32.xlu0 %v40, 112
  %v274 = vpop.permute.xlu0 %273
  %275 = vrot.lane.b32.xlu0 %v40, 80
  %v276 = vpop.permute.xlu0 %275
  %v278 = vsel %vm18, %v274, 0
  %v281 = vsel %vm18, %v276, 0
  %283 = vmatpush.bf16.xpose.msra.mxu0 0
  %284 = vmatpush.bf16.xpose.msra.mxu0 0
  %285 = vmatpush.bf16.xpose.msra.mxu0 0
  %286 = vmatpush.bf16.xpose.msra.mxu0 0
  %287 = vmatpush.bf16.xpose.msra.mxu0 0
  %288 = vmatpush.bf16.xpose.msra.mxu0 0
  %289 = vmatpush.bf16.xpose.msra.mxu0 0
  %290 = vmatpush.bf16.xpose.msra.mxu0 %v281
  %291 = vmatmul.bf16.gmra.mxu0 %v278
  %v292 = vpop.f32.mrf.mxu0
  %v293 = vadd.f32 0.0, %v292
  %v294 = vpop.f32.mrf.mxu0
  %295 = vdwg.mxu0
  %v296 = vmul.f32 %v270, 0.35355338
  %v297 = vmul.f32 %v293, 0.35355338
  %v298 = vsel %vm64, %v296, -inf
  %299 = vmax.xlane.f32.xlu0 %v298
  %v300 = vpop.xlane.xlu0 %299
  %v301 = vsel %vm64, %v297, -inf
  %302 = vmax.xlane.f32.xlu0 %v301
  %v303 = vpop.xlane.xlu0 %302
  %v304 = vsub.f32 %v296, %v300
  %v305 = vsub.f32 %v297, %v303
  %v306 = vmul.f32 %v304, 1.442695
  %v307 = vpow.pop %v306
  %v308 = vmul.f32 %v305, 1.442695
  %v309 = vpow.pop %v308
  %v310 = vsel %vm64, %v307, 0.0
  %311 = vadd.xlane.f32.xlu0 %v310
  %v312 = vpop.xlane.xlu0 %311
  %v313 = vsel %vm64, %v309, 0.0
  %314 = vadd.xlane.f32.xlu0 %v313
  %v315 = vpop.xlane.xlu0 %314
  %v316 = vrcp.pop %v312
  %v317 = vrcp.pop %v315
  %v318 = vmul.f32 %v307, %v316
  %v319 = vmul.f32 %v309, %v317
  %v320 = vpack.c.bf16 %v318, %v318
  %v321 = vpack.c.bf16 %v319, %v319
  %322 = vrot.lane.b32.xlu0 %v15, 48
  %v323 = vpop.permute.xlu0 %322
  %v325 = vsel %vm91, %v320, 0
  %v328 = vand.u32 %v323, %v98
  %330 = vmatpush.bf16.msra.mxu0 0
  %331 = vmatpush.bf16.msra.mxu0 0
  %332 = vmatpush.bf16.msra.mxu0 0
  %333 = vmatpush.bf16.msra.mxu0 0
  %334 = vmatpush.bf16.msra.mxu0 0
  %335 = vmatpush.bf16.msra.mxu0 0
  %336 = vmatpush.bf16.msra.mxu0 0
  %337 = vmatpush.bf16.msra.mxu0 %v328
  %338 = vmatmul.bf16.gmra.mxu0 %v325
  %v339 = vpop.f32.mrf.mxu0
  %v340 = vadd.f32 0.0, %v339
  %v341 = vpop.f32.mrf.mxu0
  %342 = vdwg.mxu0
  %343 = vrot.lane.b32.xlu0 %v40, 48
  %v344 = vpop.permute.xlu0 %343
  %v346 = vsel %vm91, %v321, 0
  %v349 = vand.u32 %v344, %v98
  %351 = vmatpush.bf16.msra.mxu0 0
  %352 = vmatpush.bf16.msra.mxu0 0
  %353 = vmatpush.bf16.msra.mxu0 0
  %354 = vmatpush.bf16.msra.mxu0 0
  %355 = vmatpush.bf16.msra.mxu0 0
  %356 = vmatpush.bf16.msra.mxu0 0
  %357 = vmatpush.bf16.msra.mxu0 0
  %358 = vmatpush.bf16.msra.mxu0 %v349
  %359 = vmatmul.bf16.gmra.mxu0 %v346
  %v360 = vpop.f32.mrf.mxu0
  %v361 = vadd.f32 0.0, %v360
  %v362 = vpop.f32.mrf.mxu0
  %363 = vdwg.mxu0
  %364 = vrot.lane.b32.xlu0 %v15, 104
  %v365 = vpop.permute.xlu0 %364
  %366 = vrot.lane.b32.xlu0 %v15, 72
  %v367 = vpop.permute.xlu0 %366
  %v369 = vsel %vm18, %v365, 0
  %v372 = vsel %vm18, %v367, 0
  %374 = vmatpush.bf16.xpose.msra.mxu0 0
  %375 = vmatpush.bf16.xpose.msra.mxu0 0
  %376 = vmatpush.bf16.xpose.msra.mxu0 0
  %377 = vmatpush.bf16.xpose.msra.mxu0 0
  %378 = vmatpush.bf16.xpose.msra.mxu0 0
  %379 = vmatpush.bf16.xpose.msra.mxu0 0
  %380 = vmatpush.bf16.xpose.msra.mxu0 0
  %381 = vmatpush.bf16.xpose.msra.mxu0 %v372
  %382 = vmatmul.bf16.gmra.mxu0 %v369
  %v383 = vpop.f32.mrf.mxu0
  %v384 = vadd.f32 0.0, %v383
  %v385 = vpop.f32.mrf.mxu0
  %386 = vdwg.mxu0
  %387 = vrot.lane.b32.xlu0 %v40, 104
  %v388 = vpop.permute.xlu0 %387
  %389 = vrot.lane.b32.xlu0 %v40, 72
  %v390 = vpop.permute.xlu0 %389
  %v392 = vsel %vm18, %v388, 0
  %v395 = vsel %vm18, %v390, 0
  %397 = vmatpush.bf16.xpose.msra.mxu0 0
  %398 = vmatpush.bf16.xpose.msra.mxu0 0
  %399 = vmatpush.bf16.xpose.msra.mxu0 0
  %400 = vmatpush.bf16.xpose.msra.mxu0 0
  %401 = vmatpush.bf16.xpose.msra.mxu0 0
  %402 = vmatpush.bf16.xpose.msra.mxu0 0
  %403 = vmatpush.bf16.xpose.msra.mxu0 0
  %404 = vmatpush.bf16.xpose.msra.mxu0 %v395
  %405 = vmatmul.bf16.gmra.mxu0 %v392
  %v406 = vpop.f32.mrf.mxu0
  %v407 = vadd.f32 0.0, %v406
  %v408 = vpop.f32.mrf.mxu0
  %409 = vdwg.mxu0
  %v410 = vmul.f32 %v384, 0.35355338
  %v411 = vmul.f32 %v407, 0.35355338
  %v412 = vsel %vm64, %v410, -inf
  %413 = vmax.xlane.f32.xlu0 %v412
  %v414 = vpop.xlane.xlu0 %413
  %v415 = vsel %vm64, %v411, -inf
  %416 = vmax.xlane.f32.xlu0 %v415
  %v417 = vpop.xlane.xlu0 %416
  %v418 = vsub.f32 %v410, %v414
  %v419 = vsub.f32 %v411, %v417
  %v420 = vmul.f32 %v418, 1.442695
  %v421 = vpow.pop %v420
  %v422 = vmul.f32 %v419, 1.442695
  %v423 = vpow.pop %v422
  %v424 = vsel %vm64, %v421, 0.0
  %425 = vadd.xlane.f32.xlu0 %v424
  %v426 = vpop.xlane.xlu0 %425
  %v427 = vsel %vm64, %v423, 0.0
  %428 = vadd.xlane.f32.xlu0 %v427
  %v429 = vpop.xlane.xlu0 %428
  %v430 = vrcp.pop %v426
  %v431 = vrcp.pop %v429
  %v432 = vmul.f32 %v421, %v430
  %v433 = vmul.f32 %v423, %v431
  %v434 = vpack.c.bf16 %v432, %v432
  %v435 = vpack.c.bf16 %v433, %v433
  %436 = vrot.lane.b32.xlu0 %v15, 40
  %v437 = vpop.permute.xlu0 %436
  %v439 = vsel %vm91, %v434, 0
  %v442 = vand.u32 %v437, %v98
  %444 = vmatpush.bf16.msra.mxu0 0
  %445 = vmatpush.bf16.msra.mxu0 0
  %446 = vmatpush.bf16.msra.mxu0 0
  %447 = vmatpush.bf16.msra.mxu0 0
  %448 = vmatpush.bf16.msra.mxu0 0
  %449 = vmatpush.bf16.msra.mxu0 0
  %450 = vmatpush.bf16.msra.mxu0 0
  %451 = vmatpush.bf16.msra.mxu0 %v442
  %452 = vmatmul.bf16.gmra.mxu0 %v439
  %v453 = vpop.f32.mrf.mxu0
  %v454 = vadd.f32 0.0, %v453
  %v455 = vpop.f32.mrf.mxu0
  %456 = vdwg.mxu0
  %457 = vrot.lane.b32.xlu0 %v40, 40
  %v458 = vpop.permute.xlu0 %457
  %v460 = vsel %vm91, %v435, 0
  %v463 = vand.u32 %v458, %v98
  %465 = vmatpush.bf16.msra.mxu0 0
  %466 = vmatpush.bf16.msra.mxu0 0
  %467 = vmatpush.bf16.msra.mxu0 0
  %468 = vmatpush.bf16.msra.mxu0 0
  %469 = vmatpush.bf16.msra.mxu0 0
  %470 = vmatpush.bf16.msra.mxu0 0
  %471 = vmatpush.bf16.msra.mxu0 0
  %472 = vmatpush.bf16.msra.mxu0 %v463
  %473 = vmatmul.bf16.gmra.mxu0 %v460
  %v474 = vpop.f32.mrf.mxu0
  %v475 = vadd.f32 0.0, %v474
  %v476 = vpop.f32.mrf.mxu0
  %477 = vdwg.mxu0
  %480 = vrot.lane.b32.xlu0 %v226, 8
  %v481 = vpop.permute.xlu0 %480
  %482 = vrot.lane.b32.xlu0 %v247, 8
  %v483 = vpop.permute.xlu0 %482
  %488 = vrot.lane.b32.xlu0 %v340, 16
  %v489 = vpop.permute.xlu0 %488
  %490 = vrot.lane.b32.xlu0 %v361, 16
  %v491 = vpop.permute.xlu0 %490
  %496 = vrot.lane.b32.xlu0 %v454, 24
  %v497 = vpop.permute.xlu0 %496
  %498 = vrot.lane.b32.xlu0 %v475, 24
  %v499 = vpop.permute.xlu0 %498
  %v502 = vsel %vm18, %v112, %v481
  %v503 = vsel %vm18, %v133, %v483
  %vm504 = vcmask 130048
  %v505 = vsel %vm504, %v502, %v489
  %v506 = vsel %vm504, %v503, %v491
  %vm507 = vcmask 195584
  %v508 = vsel %vm507, %v505, %v497
  %v509 = vsel %vm507, %v506, %v499
  %vm510 = vcmask 258048
  %511 = vst.msk [vmem:[%s1] sm:$0x1f] %vm510, %v508
  %512 = vst.msk [vmem:[%s1 + $0x8] sm:$0x1f] %vm510, %v509
  // Predicated region
  $region6: #{_lambda_.30} parent=0 // pred_check
    _
  $region7: #{_lambda_.30} parent=0 // pred_check_branch
    %514 = sbr.rel (0) target = $region9
  $region8: #{_lambda_.30} parent=0 // pred_region
    _
  $region9: #{_lambda_.30} parent=0 // pred_fallthru
    _
  // Predicated region
  $region10: #{_lambda_.30} parent=0 // pred_check
    _
  $region11: #{_lambda_.30} parent=0 // pred_check_branch
    %516 = sbr.rel (0) target = $region13
  $region12: #{_lambda_.30} parent=0 // pred_region
    _
  $region13: #{_lambda_.30} parent=0 // pred_fallthru
    _

// kernel: _lambda_.33
$region0: #{_lambda_.33}
  #allocation0 [shape = 'u32[]', space=smem, size = 0x4, offset = 0x4, fixed_abs, tag = 'smem constant byte address 0x4 - core index']
  #allocation1 [shape = 'u32[72,128]{1,0:T(1,128)}', space=vmem, size = 0x9000, scoped, tag = 'internal scratch']
  #allocation2 [shape = 'f32[10,32]{1,0:T(8,128)}', space=vmem, size = 0x2000, scoped, tag = 'scratch operand']
  %s0 = inlined_call_operand.vmem [shape: f32[10,32], index: 0, kind: input, shape index: {}]
  %s1 = inlined_call_operand.hbm [shape: f32[1,32], index: 1, kind: input, shape index: {}]
  %s2 = inlined_call_operand.hbm [shape: f32[1,32], index: 2, kind: input, shape index: {}]
  %s3 = inlined_call_operand.vmem [shape: f32[32,128], index: 3, kind: input, shape index: {}]
  %s4 = inlined_call_operand.hbm [shape: f32[1,128], index: 4, kind: input, shape index: {}]
  %s5 = inlined_call_operand.vmem [shape: f32[128,32], index: 5, kind: input, shape index: {}]
  %s6 = inlined_call_operand.hbm [shape: f32[1,32], index: 6, kind: input, shape index: {}]
  %s7 = inlined_call_operand.vmem [shape: f32[10,32], index: 7, kind: output, shape index: {}]
  %s8 = sld [smem:[#allocation0]]
  $region62: #{_lambda_.33} parent=0
    _
  %s10 = ssub.s32 1, %s8
  %s11 = scalar_select 0, %s10, %s8
  $region1: #{_lambda_.33} parent=0
    #allocation3 [shape = 'u8[512]{0}', space=vmem, size = 0x400, scoped, tag = 'input window, operand 1, single buffered']
    #allocation4 [shape = 's32[1]{0}', space=sflag, size = 0x4, scoped, tag = 'scoped memory for _lambda_.33']
    #allocation5 [shape = 'u8[512]{0}', space=vmem, size = 0x400, scoped, tag = 'input window, operand 2, single buffered']
    #allocation6 [shape = 's32[1]{0}', space=sflag, size = 0x4, scoped, tag = 'scoped memory for _lambda_.33']
    #allocation7 [shape = 'u8[512]{0}', space=vmem, size = 0x400, scoped, tag = 'input window, operand 4, single buffered']
    #allocation8 [shape = 'u8[512]{0}', space=vmem, size = 0x400, scoped, tag = 'input window, operand 6, single buffered']
    #allocation9 [shape = 's32[1]{0}', space=sflag, size = 0x4, scoped, tag = 'scoped memory for _lambda_.33']
    %12 = vsyncpa [#allocation4], 0
    %13 = vsyncpa [#allocation6], 0
    %14 = vsyncpa [#allocation9], 0
    // Predicated region
    $region2: #{_lambda_.33} parent=1 // pred_check
      _
    $region3: #{_lambda_.33} parent=1 // pred_check_branch
      %16 = sbr.rel (0) target = $region5
    $region4: #{_lambda_.33} parent=1 // pred_region
      _
    $region5: #{_lambda_.33} parent=1 // pred_fallthru
      _
    // Predicated region
    $region6: #{_lambda_.33} parent=1 // pred_check
      _
    $region7: #{_lambda_.33} parent=1 // pred_check_branch
      %18 = sbr.rel (0) target = $region9
    $region8: #{_lambda_.33} parent=1 // pred_region
      %20 = vsyncadd [#allocation4], 0
      %s22 = sshll.u32 %s1, 4
      %s23 = int_to_ptr.hbm [resolvable:$true] %s22
      %s24 = sshll.u32 [#allocation3], 4
      %s25 = int_to_ptr.vmem [resolvable:$true] %s24
      %27 = dma.hbm_to_vmem [thread:$0]  %s23, 16, %s25, [#allocation4]
    $region9: #{_lambda_.33} parent=1 // pred_fallthru
      _
    // Predicated region
    $region10: #{_lambda_.33} parent=1 // pred_check
      _
    $region11: #{_lambda_.33} parent=1 // pred_check_branch
      %29 = sbr.rel (0) target = $region13
    $region12: #{_lambda_.33} parent=1 // pred_region
      %31 = vsyncadd [#allocation6], 0
      %s33 = sshll.u32 %s2, 4
      %s34 = int_to_ptr.hbm [resolvable:$true] %s33
      %s35 = sshll.u32 [#allocation5], 4
      %s36 = int_to_ptr.vmem [resolvable:$true] %s35
      %38 = dma.hbm_to_vmem [thread:$0]  %s34, 16, %s36, [#allocation6]
    $region13: #{_lambda_.33} parent=1 // pred_fallthru
      _
    // Predicated region
    $region14: #{_lambda_.33} parent=1 // pred_check
      _
    $region15: #{_lambda_.33} parent=1 // pred_check_branch
      %40 = sbr.rel (0) target = $region17
    $region16: #{_lambda_.33} parent=1 // pred_region
      _
    $region17: #{_lambda_.33} parent=1 // pred_fallthru
      _
    // Predicated region
    $region18: #{_lambda_.33} parent=1 // pred_check
      _
    $region19: #{_lambda_.33} parent=1 // pred_check_branch
      %42 = sbr.rel (0) target = $region21
    $region20: #{_lambda_.33} parent=1 // pred_region
      %44 = vsyncadd [#allocation6], 0
      %s46 = sshll.u32 %s4, 4
      %s47 = int_to_ptr.hbm [resolvable:$true] %s46
      %s48 = sshll.u32 [#allocation7], 4
      %s49 = int_to_ptr.vmem [resolvable:$true] %s48
      %51 = dma.hbm_to_vmem [thread:$0]  %s47, 16, %s49, [#allocation6]
    $region21: #{_lambda_.33} parent=1 // pred_fallthru
      _
    // Predicated region
    $region22: #{_lambda_.33} parent=1 // pred_check
      _
    $region23: #{_lambda_.33} parent=1 // pred_check_branch
      %53 = sbr.rel (0) target = $region25
    $region24: #{_lambda_.33} parent=1 // pred_region
      _
    $region25: #{_lambda_.33} parent=1 // pred_fallthru
      _
    // Predicated region
    $region26: #{_lambda_.33} parent=1 // pred_check
      _
    $region27: #{_lambda_.33} parent=1 // pred_check_branch
      %55 = sbr.rel (0) target = $region29
    $region28: #{_lambda_.33} parent=1 // pred_region
      %57 = vsyncadd [#allocation9], 0
      %s59 = sshll.u32 %s6, 4
      %s60 = int_to_ptr.hbm [resolvable:$true] %s59
      %s61 = sshll.u32 [#allocation8], 4
      %s62 = int_to_ptr.vmem [resolvable:$true] %s61
      %64 = dma.hbm_to_vmem [thread:$0]  %s60, 16, %s62, [#allocation9]
    $region29: #{_lambda_.33} parent=1 // pred_fallthru
      _
    // Predicated region
    $region30: #{_lambda_.33} parent=1 // pred_check
      _
    $region31: #{_lambda_.33} parent=1 // pred_check_branch
      %66 = sbr.rel (0) target = $region33
    $region32: #{_lambda_.33} parent=1 // pred_region
      %68 = dma.done [#allocation4], 16
    $region33: #{_lambda_.33} parent=1 // pred_fallthru
      _
    // Predicated region
    $region34: #{_lambda_.33} parent=1 // pred_check
      _
    $region35: #{_lambda_.33} parent=1 // pred_check_branch
      %70 = sbr.rel (0) target = $region37
    $region36: #{_lambda_.33} parent=1 // pred_region
      %72 = dma.done [#allocation6], 16
    $region37: #{_lambda_.33} parent=1 // pred_fallthru
      _
    // Predicated region
    $region38: #{_lambda_.33} parent=1 // pred_check
      _
    $region39: #{_lambda_.33} parent=1 // pred_check_branch
      %74 = sbr.rel (0) target = $region41
    $region40: #{_lambda_.33} parent=1 // pred_region
      %76 = dma.done [#allocation6], 16
    $region41: #{_lambda_.33} parent=1 // pred_fallthru
      _
    // Predicated region
    $region42: #{_lambda_.33} parent=1 // pred_check
      _
    $region43: #{_lambda_.33} parent=1 // pred_check_branch
      %78 = sbr.rel (0) target = $region45
    $region44: #{_lambda_.33} parent=1 // pred_region
      %80 = dma.done [#allocation9], 16
    $region45: #{_lambda_.33} parent=1 // pred_fallthru
      _
    %v82 = vld [vmem:[%s0] sm:$0xff]
    %v83 = vld [vmem:[%s0 + $0x8] sm:$0x3]
    %v84 = vld [vmem:[#allocation3] sm:$0x1]
    %v85 = vld [vmem:[#allocation5] sm:$0x1]
    %vm86 = vcmask 261120
    %v87 = vsel %vm86, %v82, 0.0
    %88 = vadd.xlane.f32.xlu0 %v87
    %v89 = vpop.xlane.xlu0 %88
    %vm90 = vcmask 254976
    %v91 = vsel %vm90, %v83, 0.0
    %92 = vadd.xlane.f32.xlu0 %v91
    %v93 = vpop.xlane.xlu0 %92
    %v94 = vrcp.pop 32.0
    %v95 = vmul.f32 32.0, %v94
    %v96 = vsub.f32 1.0, %v95
    %v97 = vmul.f32 %v94, %v96
    %v98 = vadd.f32 %v94, %v97
    %vm99 = vweird.f32 %v94
    %v100 = vsel %vm99, %v94, %v98
    %v101 = vmul.f32 %v89, %v100
    %v102 = vmul.f32 %v93, %v100
    %v103 = vsub.f32 %v82, %v101
    %v104 = vsub.f32 %v83, %v102
    %v105 = vmul.f32 %v103, %v103
    %v106 = vmul.f32 %v104, %v104
    %v107 = vsel %vm86, %v105, 0.0
    %108 = vadd.xlane.f32.xlu0 %v107
    %v109 = vpop.xlane.xlu0 %108
    %v110 = vsel %vm90, %v106, 0.0
    %111 = vadd.xlane.f32.xlu0 %v110
    %v112 = vpop.xlane.xlu0 %111
    %v113 = vmul.f32 %v109, %v100
    %v114 = vmul.f32 %v112, %v100
    %v115 = vadd.f32 %v113, 1e-05
    %v116 = vadd.f32 %v114, 1e-05
    %v117 = vrsqrt.pop %v115
    %v118 = vmul.f32 %v117, %v115
    %v119 = vmul.f32 %v118, %v117
    %v120 = vmul.f32 0.5, %v119
    %v121 = vsub.f32 1.5, %v120
    %v122 = vmul.f32 %v117, %v121
    %vm123 = vweird.f32 %v115
    %vm124 = vweird.f32 %v117
    %vm125 = vmor %vm123, %vm124
    %v126 = vsel %vm125, %v117, %v122
    %v127 = vrsqrt.pop %v116
    %v128 = vmul.f32 %v127, %v116
    %v129 = vmul.f32 %v128, %v127
    %v130 = vmul.f32 0.5, %v129
    %v131 = vsub.f32 1.5, %v130
    %v132 = vmul.f32 %v127, %v131
    %vm133 = vweird.f32 %v116
    %vm134 = vweird.f32 %v127
    %vm135 = vmor %vm133, %vm134
    %v136 = vsel %vm135, %v127, %v132
    %v137 = vmul.f32 %v103, %v126
    %v138 = vmul.f32 %v104, %v136
    %v140 = vperm.slane %v84, 0
    %v142 = vmul.f32 %v137, %v140
    %v143 = vmul.f32 %v138, %v140
    %v145 = vperm.slane %v85, 0
    %v147 = vadd.f32 %v142, %v145
    %v148 = vadd.f32 %v143, %v145
    %p149 = scmp.eq.s32.totalorder 0, 0
    // Predicated region
    $region46: #{_lambda_.33} parent=1 // pred_check
      %p150 = pneg %p149
    $region47: #{_lambda_.33} parent=1 // pred_check_branch
      %152 = sbr.rel (%p150) target = $region49
    $region48: #{_lambda_.33} parent=1 // pred_region
      %153 = vst.msk [vmem:[#allocation2] sm:$0xff] %vm86, 0.0
      %154 = vst.msk [vmem:[#allocation2 + $0x8] sm:$0x3] %vm90, 0.0
    $region49: #{_lambda_.33} parent=1 // pred_fallthru
      _
    %v155 = vld [vmem:[%s3] sm:$0xff]
    %v156 = vld [vmem:[%s3 + $0x8] sm:$0xff]
    %v157 = vld [vmem:[%s3 + $0x10] sm:$0xff]
    %v158 = vld [vmem:[%s3 + $0x18] sm:$0xff]
    %v159 = vpack.c.bf16 %v148, %v147
    %v160 = vpack.c.bf16 %v156, %v155
    %v161 = vpack.c.bf16 %v158, %v157
    %v162 = vld [vmem:[#allocation7] sm:$0x1]
    %v164 = vperm.slane %v162, 0
    %v167 = vsel %vm86, %v159, 0
    %169 = vmatpush.bf16.msra.mxu0 0
    %170 = vmatpush.bf16.msra.mxu0 0
    %171 = vmatpush.bf16.msra.mxu0 0
    %172 = vmatpush.bf16.msra.mxu0 0
    %173 = vmatpush.bf16.msra.mxu0 0
    %174 = vmatpush.bf16.msra.mxu0 0
    %175 = vmatpush.bf16.msra.mxu0 %v161
    %176 = vmatpush.bf16.msra.mxu0 %v160
    %177 = vmatmul.bf16.gmra.mxu0 %v167
    %v178 = vpop.f32.mrf.mxu0
    %v179 = vadd.f32 %v164, %v178
    %v180 = vpop.f32.mrf.mxu0
    %v181 = vadd.f32 %v164, %v180
    %182 = vdwg.mxu0
    %v183 = vmul.f32 %v179, 1.702
    %v184 = vmul.f32 %v181, 1.702
    %v185 = vxor.u32 %v183, 2147483648
    %v186 = vxor.u32 %v184, 2147483648
    %v187 = vmul.f32 %v185, 1.442695
    %v188 = vpow.pop %v187
    %v189 = vmul.f32 %v186, 1.442695
    %v190 = vpow.pop %v189
    %v191 = vadd.f32 %v188, 1.0
    %v192 = vadd.f32 %v190, 1.0
    %v193 = vrcp.pop %v191
    %v194 = vmul.f32 %v191, %v193
    %v195 = vsub.f32 1.0, %v194
    %v196 = vmul.f32 %v193, %v195
    %v197 = vadd.f32 %v193, %v196
    %vm198 = vweird.f32 %v191
    %vm199 = vweird.f32 %v193
    %vm200 = vmor %vm198, %vm199
    %v201 = vsel %vm200, %v193, %v197
    %v202 = vand.u32 2147483647, %v191
    %vm203 = vcmp.eq.f32.partialorder %v202, 8.507059e+37
    %v204 = vand.u32 %v191, 2147483648
    %v205 = vor.u32 1.1754944e-38, %v204
    %v206 = vsel %vm203, %v205, %v201
    %v207 = vmul.f32 1.0, %v206
    %v208 = vrcp.pop %v192
    %v209 = vmul.f32 %v192, %v208
    %v210 = vsub.f32 1.0, %v209
    %v211 = vmul.f32 %v208, %v210
    %v212 = vadd.f32 %v208, %v211
    %vm213 = vweird.f32 %v192
    %vm214 = vweird.f32 %v208
    %vm215 = vmor %vm213, %vm214
    %v216 = vsel %vm215, %v208, %v212
    %v217 = vand.u32 2147483647, %v192
    %vm218 = vcmp.eq.f32.partialorder %v217, 8.507059e+37
    %v219 = vand.u32 %v192, 2147483648
    %v220 = vor.u32 1.1754944e-38, %v219
    %v221 = vsel %vm218, %v220, %v216
    %v222 = vmul.f32 1.0, %v221
    %v223 = vmul.f32 %v179, %v207
    %v224 = vmul.f32 %v181, %v222
    %v225 = vld [vmem:[#allocation2] sm:$0xff]
    %v226 = vld [vmem:[#allocation2 + $0x8] sm:$0x3]
    %v227 = vld [vmem:[%s5] sm:$0xff]
    %v228 = vld [vmem:[%s5 + $0x8] sm:$0xff]
    %v229 = vld [vmem:[%s5 + $0x10] sm:$0xff]
    %v230 = vld [vmem:[%s5 + $0x18] sm:$0xff]
    %v231 = vld [vmem:[%s5 + $0x20] sm:$0xff]
    %v232 = vld [vmem:[%s5 + $0x28] sm:$0xff]
    %v233 = vld [vmem:[%s5 + $0x30] sm:$0xff]
    %v234 = vld [vmem:[%s5 + $0x38] sm:$0xff]
    %v235 = vld [vmem:[%s5 + $0x40] sm:$0xff]
    %v236 = vld [vmem:[%s5 + $0x48] sm:$0xff]
    %v237 = vld [vmem:[%s5 + $0x50] sm:$0xff]
    %v238 = vld [vmem:[%s5 + $0x58] sm:$0xff]
    %v239 = vld [vmem:[%s5 + $0x60] sm:$0xff]
    %v240 = vld [vmem:[%s5 + $0x68] sm:$0xff]
    %v241 = vld [vmem:[%s5 + $0x70] sm:$0xff]
    %v242 = vld [vmem:[%s5 + $0x78] sm:$0xff]
    %v243 = vpack.c.bf16 %v224, %v223
    %v244 = vpack.c.bf16 %v228, %v227
    %v245 = vpack.c.bf16 %v230, %v229
    %v246 = vpack.c.bf16 %v232, %v231
    %v247 = vpack.c.bf16 %v234, %v233
    %v248 = vpack.c.bf16 %v236, %v235
    %v249 = vpack.c.bf16 %v238, %v237
    %v250 = vpack.c.bf16 %v240, %v239
    %v251 = vpack.c.bf16 %v242, %v241
    %252 = vmatpush.bf16.msra.mxu0 %v251
    %253 = vmatpush.bf16.msra.mxu0 %v250
    %254 = vmatpush.bf16.msra.mxu0 %v249
    %255 = vmatpush.bf16.msra.mxu0 %v248
    %256 = vmatpush.bf16.msra.mxu0 %v247
    %257 = vmatpush.bf16.msra.mxu0 %v246
    %258 = vmatpush.bf16.msra.mxu0 %v245
    %259 = vmatpush.bf16.msra.mxu0 %v244
    %260 = vmatmul.bf16.gmra.mxu0 %v243
    %v261 = vpop.f32.mrf.mxu0
    %v262 = vadd.f32 0.0, %v261
    %v263 = vpop.f32.mrf.mxu0
    %v264 = vadd.f32 0.0, %v263
    %265 = vdwg.mxu0
    %v266 = vadd.f32 %v225, %v262
    %v267 = vadd.f32 %v226, %v264
    %268 = vst.msk [vmem:[#allocation2] sm:$0xff] %vm86, %v266
    %269 = vst.msk [vmem:[#allocation2 + $0x8] sm:$0x3] %vm90, %v267
    // Predicated region
    $region50: #{_lambda_.33} parent=1 // pred_check
      %p270 = pneg %p149
    $region51: #{_lambda_.33} parent=1 // pred_check_branch
      %272 = sbr.rel (%p270) target = $region53
    $region52: #{_lambda_.33} parent=1 // pred_region
      %v273 = vld [vmem:[#allocation2] sm:$0xff]
      %v274 = vld [vmem:[#allocation2 + $0x8] sm:$0x3]
      %v275 = vld [vmem:[#allocation8] sm:$0x1]
      %v277 = vperm.slane %v275, 0
      %v279 = vadd.f32 %v273, %v277
      %v280 = vadd.f32 %v274, %v277
      %281 = vst.msk [vmem:[%s7] sm:$0xff] %vm86, %v279
      %282 = vst.msk [vmem:[%s7 + $0x8] sm:$0x3] %vm90, %v280
    $region53: #{_lambda_.33} parent=1 // pred_fallthru
      _
    // Predicated region
    $region54: #{_lambda_.33} parent=1 // pred_check
      _
    $region55: #{_lambda_.33} parent=1 // pred_check_branch
      %284 = sbr.rel (0) target = $region57
    $region56: #{_lambda_.33} parent=1 // pred_region
      _
    $region57: #{_lambda_.33} parent=1 // pred_fallthru
      _
    // Predicated region
    $region58: #{_lambda_.33} parent=1 // pred_check
      _
    $region59: #{_lambda_.33} parent=1 // pred_check_branch
      %286 = sbr.rel (0) target = $region61
    $region60: #{_lambda_.33} parent=1 // pred_region
      _
    $region61: #{_lambda_.33} parent=1 // pred_fallthru
      _
    %287 = vsyncpa [#allocation4], 1
    %288 = vsyncpa [#allocation6], 1
    %289 = vsyncpa [#allocation9], 1

// kernel: _lambda_.32
$region0: #{_lambda_.32}
  #allocation0 [shape = 'u32[]', space=smem, size = 0x4, offset = 0x4, fixed_abs, tag = 'smem constant byte address 0x4 - core index']
  #allocation1 [shape = 'u32[72,128]{1,0:T(1,128)}', space=vmem, size = 0x9000, scoped, tag = 'internal scratch']
  %s0 = inlined_call_operand.vmem [shape: f32[10,32], index: 0, kind: input, shape index: {}]
  %s1 = inlined_call_operand.vmem [shape: f32[32,8], index: 1, kind: input, shape index: {}]
  %s2 = inlined_call_operand.vmem [shape: f32[1,8], index: 2, kind: input, shape index: {}]
  %s3 = inlined_call_operand.vmem [shape: f32[8,32], index: 3, kind: input, shape index: {}]
  %s4 = inlined_call_operand.vmem [shape: f32[1,32], index: 4, kind: input, shape index: {}]
  %s5 = inlined_call_operand.vmem [shape: f32[10,32], index: 5, kind: input, shape index: {}]
  %s6 = inlined_call_operand.vmem [shape: f32[10,32], index: 6, kind: output, shape index: {}]
  %s7 = sld [smem:[#allocation0]]
  $region34: #{_lambda_.32} parent=0
    _
  %s9 = ssub.s32 1, %s7
  %s10 = scalar_select 0, %s9, %s7
  // Predicated region
  $region2: #{_lambda_.32} parent=0 // pred_check
    _
  $region3: #{_lambda_.32} parent=0 // pred_check_branch
    %12 = sbr.rel (0) target = $region5
  $region4: #{_lambda_.32} parent=0 // pred_region
    _
  $region5: #{_lambda_.32} parent=0 // pred_fallthru
    _
  // Predicated region
  $region6: #{_lambda_.32} parent=0 // pred_check
    _
  $region7: #{_lambda_.32} parent=0 // pred_check_branch
    %14 = sbr.rel (0) target = $region9
  $region8: #{_lambda_.32} parent=0 // pred_region
    _
  $region9: #{_lambda_.32} parent=0 // pred_fallthru
    _
  // Predicated region
  $region10: #{_lambda_.32} parent=0 // pred_check
    _
  $region11: #{_lambda_.32} parent=0 // pred_check_branch
    %16 = sbr.rel (0) target = $region13
  $region12: #{_lambda_.32} parent=0 // pred_region
    _
  $region13: #{_lambda_.32} parent=0 // pred_fallthru
    _
  // Predicated region
  $region14: #{_lambda_.32} parent=0 // pred_check
    _
  $region15: #{_lambda_.32} parent=0 // pred_check_branch
    %18 = sbr.rel (0) target = $region17
  $region16: #{_lambda_.32} parent=0 // pred_region
    _
  $region17: #{_lambda_.32} parent=0 // pred_fallthru
    _
  // Predicated region
  $region18: #{_lambda_.32} parent=0 // pred_check
    _
  $region19: #{_lambda_.32} parent=0 // pred_check_branch
    %20 = sbr.rel (0) target = $region21
  $region20: #{_lambda_.32} parent=0 // pred_region
    _
  $region21: #{_lambda_.32} parent=0 // pred_fallthru
    _
  // Predicated region
  $region22: #{_lambda_.32} parent=0 // pred_check
    _
  $region23: #{_lambda_.32} parent=0 // pred_check_branch
    %22 = sbr.rel (0) target = $region25
  $region24: #{_lambda_.32} parent=0 // pred_region
    _
  $region25: #{_lambda_.32} parent=0 // pred_fallthru
    _
  %v24 = vld [vmem:[%s0] sm:$0xff]
  %v25 = vld [vmem:[%s0 + $0x8] sm:$0x3]
  %v26 = vld [vmem:[%s1] sm:$0xff]
  %v27 = vld [vmem:[%s1 + $0x8] sm:$0xff]
  %v28 = vld [vmem:[%s1 + $0x10] sm:$0xff]
  %v29 = vld [vmem:[%s1 + $0x18] sm:$0xff]
  %v30 = vpack.c.bf16 %v25, %v24
  %v31 = vpack.c.bf16 %v27, %v26
  %v32 = vpack.c.bf16 %v29, %v28
  %v33 = vld [vmem:[%s2] sm:$0x1]
  %v35 = vperm.slane %v33, 0
  %vm37 = vcmask 261120
  %v39 = vsel %vm37, %v30, 0
  %41 = vmatpush.bf16.msra.mxu0 0
  %42 = vmatpush.bf16.msra.mxu0 0
  %43 = vmatpush.bf16.msra.mxu0 0
  %44 = vmatpush.bf16.msra.mxu0 0
  %45 = vmatpush.bf16.msra.mxu0 0
  %46 = vmatpush.bf16.msra.mxu0 0
  %47 = vmatpush.bf16.msra.mxu0 %v32
  %48 = vmatpush.bf16.msra.mxu0 %v31
  %49 = vmatmul.bf16.gmra.mxu0 %v39
  %v50 = vpop.f32.mrf.mxu0
  %v51 = vadd.f32 %v35, %v50
  %v52 = vpop.f32.mrf.mxu0
  %v53 = vadd.f32 %v35, %v52
  %54 = vdwg.mxu0
  %v55 = vmul.f32 %v51, 0.5
  %v56 = vmul.f32 %v53, 0.5
  %v57 = vmul.f32 %v51, 0.70710677
  %v58 = vmul.f32 %v53, 0.70710677
  %v59 = vmul.f32 %v57, %v57
  %v60 = vmin.f32 16.0, %v59
  %v61 = vmul.f32 %v60, 2.1237322e-06
  %v62 = vadd.f32 %v61, 0.00028619796
  %v63 = vmul.f32 %v60, %v62
  %v64 = vadd.f32 %v63, 0.0036580483
  %v65 = vmul.f32 %v60, %v64
  %v66 = vadd.f32 %v65, 0.05243302
  %v67 = vmul.f32 %v60, %v66
  %v68 = vadd.f32 %v67, 0.18741608
  %v69 = vmul.f32 %v60, %v68
  %v70 = vadd.f32 %v69, 1.1283791
  %v71 = vmul.f32 %v57, %v70
  %v72 = vmul.f32 %v60, 3.8918573e-05
  %v73 = vadd.f32 %v72, 0.001143296
  %v74 = vmul.f32 %v60, %v73
  %v75 = vadd.f32 %v74, 0.014752088
  %v76 = vmul.f32 %v60, %v75
  %v77 = vadd.f32 %v76, 0.112945676
  %v78 = vmul.f32 %v60, %v77
  %v79 = vadd.f32 %v78, 0.4994258
  %v80 = vmul.f32 %v60, %v79
  %v81 = vadd.f32 %v80, 1.0
  %v82 = vrcp.pop %v81
  %v83 = vmul.f32 %v81, %v82
  %v84 = vsub.f32 1.0, %v83
  %v85 = vmul.f32 %v82, %v84
  %v86 = vadd.f32 %v82, %v85
  %vm87 = vweird.f32 %v81
  %vm88 = vweird.f32 %v82
  %vm89 = vmor %vm87, %vm88
  %v90 = vsel %vm89, %v82, %v86
  %v91 = vand.u32 2147483647, %v81
  %vm92 = vcmp.eq.f32.partialorder %v91, 8.507059e+37
  %v93 = vand.u32 %v81, 2147483648
  %v94 = vor.u32 1.1754944e-38, %v93
  %v95 = vsel %vm92, %v94, %v90
  %v96 = vmul.f32 %v71, %v95
  %v97 = vmin.f32 %v96, 1.0
  %v98 = vmax.f32 %v97, -1.0
  %v99 = vmul.f32 %v58, %v58
  %v100 = vmin.f32 16.0, %v99
  %v101 = vmul.f32 %v100, 2.1237322e-06
  %v102 = vadd.f32 %v101, 0.00028619796
  %v103 = vmul.f32 %v100, %v102
  %v104 = vadd.f32 %v103, 0.0036580483
  %v105 = vmul.f32 %v100, %v104
  %v106 = vadd.f32 %v105, 0.05243302
  %v107 = vmul.f32 %v100, %v106
  %v108 = vadd.f32 %v107, 0.18741608
  %v109 = vmul.f32 %v100, %v108
  %v110 = vadd.f32 %v109, 1.1283791
  %v111 = vmul.f32 %v58, %v110
  %v112 = vmul.f32 %v100, 3.8918573e-05
  %v113 = vadd.f32 %v112, 0.001143296
  %v114 = vmul.f32 %v100, %v113
  %v115 = vadd.f32 %v114, 0.014752088
  %v116 = vmul.f32 %v100, %v115
  %v117 = vadd.f32 %v116, 0.112945676
  %v118 = vmul.f32 %v100, %v117
  %v119 = vadd.f32 %v118, 0.4994258
  %v120 = vmul.f32 %v100, %v119
  %v121 = vadd.f32 %v120, 1.0
  %v122 = vrcp.pop %v121
  %v123 = vmul.f32 %v121, %v122
  %v124 = vsub.f32 1.0, %v123
  %v125 = vmul.f32 %v122, %v124
  %v126 = vadd.f32 %v122, %v125
  %vm127 = vweird.f32 %v121
  %vm128 = vweird.f32 %v122
  %vm129 = vmor %vm127, %vm128
  %v130 = vsel %vm129, %v122, %v126
  %v131 = vand.u32 2147483647, %v121
  %vm132 = vcmp.eq.f32.partialorder %v131, 8.507059e+37
  %v133 = vand.u32 %v121, 2147483648
  %v134 = vor.u32 1.1754944e-38, %v133
  %v135 = vsel %vm132, %v134, %v130
  %v136 = vmul.f32 %v111, %v135
  %v137 = vmin.f32 %v136, 1.0
  %v138 = vmax.f32 %v137, -1.0
  %v139 = vadd.f32 %v98, 1.0
  %v140 = vadd.f32 %v138, 1.0
  %v141 = vmul.f32 %v55, %v139
  %v142 = vmul.f32 %v56, %v140
  %v143 = vld [vmem:[%s3] sm:$0xff]
  %v144 = vpack.c.bf16 %v142, %v141
  %v145 = vpack.c.bf16 %v143, %v143
  %v146 = vld [vmem:[%s4] sm:$0x1]
  %v148 = vperm.slane %v146, 0
  %vm150 = vcmask 64512
  %v152 = vsel %vm150, %v144, 0
  %vm154 = vcmask 1043456
  %v156 = vsel %vm154, %v145, 0
  %158 = vmatpush.bf16.msra.mxu0 0
  %159 = vmatpush.bf16.msra.mxu0 0
  %160 = vmatpush.bf16.msra.mxu0 0
  %161 = vmatpush.bf16.msra.mxu0 0
  %162 = vmatpush.bf16.msra.mxu0 0
  %163 = vmatpush.bf16.msra.mxu0 0
  %164 = vmatpush.bf16.msra.mxu0 0
  %165 = vmatpush.bf16.msra.mxu0 %v156
  %166 = vmatmul.bf16.gmra.mxu0 %v152
  %v167 = vpop.f32.mrf.mxu0
  %v168 = vadd.f32 %v148, %v167
  %v169 = vpop.f32.mrf.mxu0
  %v170 = vadd.f32 %v148, %v169
  %171 = vdwg.mxu0
  %v172 = vld [vmem:[%s5] sm:$0xff]
  %v173 = vld [vmem:[%s5 + $0x8] sm:$0x3]
  %v174 = vadd.f32 %v168, %v172
  %v175 = vadd.f32 %v170, %v173
  %176 = vst.msk [vmem:[%s6] sm:$0xff] %vm37, %v174
  %vm177 = vcmask 254976
  %178 = vst.msk [vmem:[%s6 + $0x8] sm:$0x3] %vm177, %v175
  // Predicated region
  $region26: #{_lambda_.32} parent=0 // pred_check
    _
  $region27: #{_lambda_.32} parent=0 // pred_check_branch
    %180 = sbr.rel (0) target = $region29
  $region28: #{_lambda_.32} parent=0 // pred_region
    _
  $region29: #{_lambda_.32} parent=0 // pred_fallthru
    _
  // Predicated region
  $region30: #{_lambda_.32} parent=0 // pred_check
    _
  $region31: #{_lambda_.32} parent=0 // pred_check_branch
    %182 = sbr.rel (0) target = $region33
  $region32: #{_lambda_.32} parent=0 // pred_region
    _
  $region33: #{_lambda_.32} parent=0 // pred_fallthru
    _

// kernel: _lambda_.40
$region0: #{_lambda_.40}
  #allocation0 [shape = 'u32[]', space=smem, size = 0x4, offset = 0x4, fixed_abs, tag = 'smem constant byte address 0x4 - core index']
  #allocation1 [shape = 'u32[72,128]{1,0:T(1,128)}', space=vmem, size = 0x9000, scoped, tag = 'internal scratch']
  %s0 = inlined_call_operand.vmem [shape: f32[10,32], index: 0, kind: input, shape index: {}]
  %s1 = inlined_call_operand.hbm [shape: f32[1,32], index: 1, kind: input, shape index: {}]
  %s2 = inlined_call_operand.hbm [shape: f32[1,32], index: 2, kind: input, shape index: {}]
  %s3 = inlined_call_operand.vmem [shape: f32[32,8], index: 3, kind: input, shape index: {}]
  %s4 = inlined_call_operand.hbm [shape: f32[1,8], index: 4, kind: input, shape index: {}]
  %s5 = inlined_call_operand.vmem [shape: f32[8,32], index: 5, kind: input, shape index: {}]
  %s6 = inlined_call_operand.hbm [shape: f32[1,32], index: 6, kind: input, shape index: {}]
  %s7 = inlined_call_operand.vmem [shape: f32[10,32], index: 7, kind: output, shape index: {}]
  %s8 = sld [smem:[#allocation0]]
  $region54: #{_lambda_.40} parent=0
    _
  %s10 = ssub.s32 1, %s8
  %s11 = scalar_select 0, %s10, %s8
  $region1: #{_lambda_.40} parent=0
    #allocation2 [shape = 'u8[512]{0}', space=vmem, size = 0x400, scoped, tag = 'input window, operand 1, single buffered']
    #allocation3 [shape = 's32[1]{0}', space=sflag, size = 0x4, scoped, tag = 'scoped memory for _lambda_.40']
    #allocation4 [shape = 'u8[512]{0}', space=vmem, size = 0x400, scoped, tag = 'input window, operand 2, single buffered']
    #allocation5 [shape = 's32[1]{0}', space=sflag, size = 0x4, scoped, tag = 'scoped memory for _lambda_.40']
    #allocation6 [shape = 'u8[512]{0}', space=vmem, size = 0x400, scoped, tag = 'input window, operand 4, single buffered']
    #allocation7 [shape = 'u8[512]{0}', space=vmem, size = 0x400, scoped, tag = 'input window, operand 6, single buffered']
    #allocation8 [shape = 's32[1]{0}', space=sflag, size = 0x4, scoped, tag = 'scoped memory for _lambda_.40']
    %12 = vsyncpa [#allocation3], 0
    %13 = vsyncpa [#allocation5], 0
    %14 = vsyncpa [#allocation8], 0
    // Predicated region
    $region2: #{_lambda_.40} parent=1 // pred_check
      _
    $region3: #{_lambda_.40} parent=1 // pred_check_branch
      %16 = sbr.rel (0) target = $region5
    $region4: #{_lambda_.40} parent=1 // pred_region
      _
    $region5: #{_lambda_.40} parent=1 // pred_fallthru
      _
    // Predicated region
    $region6: #{_lambda_.40} parent=1 // pred_check
      _
    $region7: #{_lambda_.40} parent=1 // pred_check_branch
      %18 = sbr.rel (0) target = $region9
    $region8: #{_lambda_.40} parent=1 // pred_region
      %20 = vsyncadd [#allocation3], 0
      %s22 = sshll.u32 %s1, 4
      %s23 = int_to_ptr.hbm [resolvable:$true] %s22
      %s24 = sshll.u32 [#allocation2], 4
      %s25 = int_to_ptr.vmem [resolvable:$true] %s24
      %27 = dma.hbm_to_vmem [thread:$0]  %s23, 16, %s25, [#allocation3]
    $region9: #{_lambda_.40} parent=1 // pred_fallthru
      _
    // Predicated region
    $region10: #{_lambda_.40} parent=1 // pred_check
      _
    $region11: #{_lambda_.40} parent=1 // pred_check_branch
      %29 = sbr.rel (0) target = $region13
    $region12: #{_lambda_.40} parent=1 // pred_region
      %31 = vsyncadd [#allocation5], 0
      %s33 = sshll.u32 %s2, 4
      %s34 = int_to_ptr.hbm [resolvable:$true] %s33
      %s35 = sshll.u32 [#allocation4], 4
      %s36 = int_to_ptr.vmem [resolvable:$true] %s35
      %38 = dma.hbm_to_vmem [thread:$0]  %s34, 16, %s36, [#allocation5]
    $region13: #{_lambda_.40} parent=1 // pred_fallthru
      _
    // Predicated region
    $region14: #{_lambda_.40} parent=1 // pred_check
      _
    $region15: #{_lambda_.40} parent=1 // pred_check_branch
      %40 = sbr.rel (0) target = $region17
    $region16: #{_lambda_.40} parent=1 // pred_region
      _
    $region17: #{_lambda_.40} parent=1 // pred_fallthru
      _
    // Predicated region
    $region18: #{_lambda_.40} parent=1 // pred_check
      _
    $region19: #{_lambda_.40} parent=1 // pred_check_branch
      %42 = sbr.rel (0) target = $region21
    $region20: #{_lambda_.40} parent=1 // pred_region
      %44 = vsyncadd [#allocation5], 0
      %s46 = sshll.u32 %s4, 4
      %s47 = int_to_ptr.hbm [resolvable:$true] %s46
      %s48 = sshll.u32 [#allocation6], 4
      %s49 = int_to_ptr.vmem [resolvable:$true] %s48
      %51 = dma.hbm_to_vmem [thread:$0]  %s47, 16, %s49, [#allocation5]
    $region21: #{_lambda_.40} parent=1 // pred_fallthru
      _
    // Predicated region
    $region22: #{_lambda_.40} parent=1 // pred_check
      _
    $region23: #{_lambda_.40} parent=1 // pred_check_branch
      %53 = sbr.rel (0) target = $region25
    $region24: #{_lambda_.40} parent=1 // pred_region
      _
    $region25: #{_lambda_.40} parent=1 // pred_fallthru
      _
    // Predicated region
    $region26: #{_lambda_.40} parent=1 // pred_check
      _
    $region27: #{_lambda_.40} parent=1 // pred_check_branch
      %55 = sbr.rel (0) target = $region29
    $region28: #{_lambda_.40} parent=1 // pred_region
      %57 = vsyncadd [#allocation8], 0
      %s59 = sshll.u32 %s6, 4
      %s60 = int_to_ptr.hbm [resolvable:$true] %s59
      %s61 = sshll.u32 [#allocation7], 4
      %s62 = int_to_ptr.vmem [resolvable:$true] %s61
      %64 = dma.hbm_to_vmem [thread:$0]  %s60, 16, %s62, [#allocation8]
    $region29: #{_lambda_.40} parent=1 // pred_fallthru
      _
    // Predicated region
    $region30: #{_lambda_.40} parent=1 // pred_check
      _
    $region31: #{_lambda_.40} parent=1 // pred_check_branch
      %66 = sbr.rel (0) target = $region33
    $region32: #{_lambda_.40} parent=1 // pred_region
      %68 = dma.done [#allocation3], 16
    $region33: #{_lambda_.40} parent=1 // pred_fallthru
      _
    // Predicated region
    $region34: #{_lambda_.40} parent=1 // pred_check
      _
    $region35: #{_lambda_.40} parent=1 // pred_check_branch
      %70 = sbr.rel (0) target = $region37
    $region36: #{_lambda_.40} parent=1 // pred_region
      %72 = dma.done [#allocation5], 16
    $region37: #{_lambda_.40} parent=1 // pred_fallthru
      _
    // Predicated region
    $region38: #{_lambda_.40} parent=1 // pred_check
      _
    $region39: #{_lambda_.40} parent=1 // pred_check_branch
      %74 = sbr.rel (0) target = $region41
    $region40: #{_lambda_.40} parent=1 // pred_region
      %76 = dma.done [#allocation5], 16
    $region41: #{_lambda_.40} parent=1 // pred_fallthru
      _
    // Predicated region
    $region42: #{_lambda_.40} parent=1 // pred_check
      _
    $region43: #{_lambda_.40} parent=1 // pred_check_branch
      %78 = sbr.rel (0) target = $region45
    $region44: #{_lambda_.40} parent=1 // pred_region
      %80 = dma.done [#allocation8], 16
    $region45: #{_lambda_.40} parent=1 // pred_fallthru
      _
    %v82 = vld [vmem:[%s0] sm:$0xff]
    %v83 = vld [vmem:[%s0 + $0x8] sm:$0x3]
    %v84 = vld [vmem:[#allocation2] sm:$0x1]
    %v85 = vld [vmem:[#allocation4] sm:$0x1]
    %vm86 = vcmask 261120
    %v87 = vsel %vm86, %v82, 0.0
    %88 = vadd.xlane.f32.xlu0 %v87
    %v89 = vpop.xlane.xlu0 %88
    %vm90 = vcmask 254976
    %v91 = vsel %vm90, %v83, 0.0
    %92 = vadd.xlane.f32.xlu0 %v91
    %v93 = vpop.xlane.xlu0 %92
    %v94 = vrcp.pop 32.0
    %v95 = vmul.f32 32.0, %v94
    %v96 = vsub.f32 1.0, %v95
    %v97 = vmul.f32 %v94, %v96
    %v98 = vadd.f32 %v94, %v97
    %vm99 = vweird.f32 %v94
    %v100 = vsel %vm99, %v94, %v98
    %v101 = vmul.f32 %v89, %v100
    %v102 = vmul.f32 %v93, %v100
    %v103 = vsub.f32 %v82, %v101
    %v104 = vsub.f32 %v83, %v102
    %v105 = vmul.f32 %v103, %v103
    %v106 = vmul.f32 %v104, %v104
    %v107 = vsel %vm86, %v105, 0.0
    %108 = vadd.xlane.f32.xlu0 %v107
    %v109 = vpop.xlane.xlu0 %108
    %v110 = vsel %vm90, %v106, 0.0
    %111 = vadd.xlane.f32.xlu0 %v110
    %v112 = vpop.xlane.xlu0 %111
    %v113 = vmul.f32 %v109, %v100
    %v114 = vmul.f32 %v112, %v100
    %v115 = vadd.f32 %v113, 1e-05
    %v116 = vadd.f32 %v114, 1e-05
    %v117 = vrsqrt.pop %v115
    %v118 = vmul.f32 %v117, %v115
    %v119 = vmul.f32 %v118, %v117
    %v120 = vmul.f32 0.5, %v119
    %v121 = vsub.f32 1.5, %v120
    %v122 = vmul.f32 %v117, %v121
    %vm123 = vweird.f32 %v115
    %vm124 = vweird.f32 %v117
    %vm125 = vmor %vm123, %vm124
    %v126 = vsel %vm125, %v117, %v122
    %v127 = vrsqrt.pop %v116
    %v128 = vmul.f32 %v127, %v116
    %v129 = vmul.f32 %v128, %v127
    %v130 = vmul.f32 0.5, %v129
    %v131 = vsub.f32 1.5, %v130
    %v132 = vmul.f32 %v127, %v131
    %vm133 = vweird.f32 %v116
    %vm134 = vweird.f32 %v127
    %vm135 = vmor %vm133, %vm134
    %v136 = vsel %vm135, %v127, %v132
    %v137 = vmul.f32 %v103, %v126
    %v138 = vmul.f32 %v104, %v136
    %v140 = vperm.slane %v84, 0
    %v142 = vmul.f32 %v137, %v140
    %v143 = vmul.f32 %v138, %v140
    %v145 = vperm.slane %v85, 0
    %v147 = vadd.f32 %v142, %v145
    %v148 = vadd.f32 %v143, %v145
    %v149 = vld [vmem:[%s3] sm:$0xff]
    %v150 = vld [vmem:[%s3 + $0x8] sm:$0xff]
    %v151 = vld [vmem:[%s3 + $0x10] sm:$0xff]
    %v152 = vld [vmem:[%s3 + $0x18] sm:$0xff]
    %v153 = vpack.c.bf16 %v148, %v147
    %v154 = vpack.c.bf16 %v150, %v149
    %v155 = vpack.c.bf16 %v152, %v151
    %v156 = vld [vmem:[#allocation6] sm:$0x1]
    %v158 = vperm.slane %v156, 0
    %v161 = vsel %vm86, %v153, 0
    %163 = vmatpush.bf16.msra.mxu0 0
    %164 = vmatpush.bf16.msra.mxu0 0
    %165 = vmatpush.bf16.msra.mxu0 0
    %166 = vmatpush.bf16.msra.mxu0 0
    %167 = vmatpush.bf16.msra.mxu0 0
    %168 = vmatpush.bf16.msra.mxu0 0
    %169 = vmatpush.bf16.msra.mxu0 %v155
    %170 = vmatpush.bf16.msra.mxu0 %v154
    %171 = vmatmul.bf16.gmra.mxu0 %v161
    %v172 = vpop.f32.mrf.mxu0
    %v173 = vadd.f32 %v158, %v172
    %v174 = vpop.f32.mrf.mxu0
    %v175 = vadd.f32 %v158, %v174
    %176 = vdwg.mxu0
    %v177 = vmul.f32 %v173, 0.5
    %v178 = vmul.f32 %v175, 0.5
    %v179 = vmul.f32 %v173, 0.70710677
    %v180 = vmul.f32 %v175, 0.70710677
    %v181 = vmul.f32 %v179, %v179
    %v182 = vmin.f32 16.0, %v181
    %v183 = vmul.f32 %v182, 2.1237322e-06
    %v184 = vadd.f32 %v183, 0.00028619796
    %v185 = vmul.f32 %v182, %v184
    %v186 = vadd.f32 %v185, 0.0036580483
    %v187 = vmul.f32 %v182, %v186
    %v188 = vadd.f32 %v187, 0.05243302
    %v189 = vmul.f32 %v182, %v188
    %v190 = vadd.f32 %v189, 0.18741608
    %v191 = vmul.f32 %v182, %v190
    %v192 = vadd.f32 %v191, 1.1283791
    %v193 = vmul.f32 %v179, %v192
    %v194 = vmul.f32 %v182, 3.8918573e-05
    %v195 = vadd.f32 %v194, 0.001143296
    %v196 = vmul.f32 %v182, %v195
    %v197 = vadd.f32 %v196, 0.014752088
    %v198 = vmul.f32 %v182, %v197
    %v199 = vadd.f32 %v198, 0.112945676
    %v200 = vmul.f32 %v182, %v199
    %v201 = vadd.f32 %v200, 0.4994258
    %v202 = vmul.f32 %v182, %v201
    %v203 = vadd.f32 %v202, 1.0
    %v204 = vrcp.pop %v203
    %v205 = vmul.f32 %v203, %v204
    %v206 = vsub.f32 1.0, %v205
    %v207 = vmul.f32 %v204, %v206
    %v208 = vadd.f32 %v204, %v207
    %vm209 = vweird.f32 %v203
    %vm210 = vweird.f32 %v204
    %vm211 = vmor %vm209, %vm210
    %v212 = vsel %vm211, %v204, %v208
    %v213 = vand.u32 2147483647, %v203
    %vm214 = vcmp.eq.f32.partialorder %v213, 8.507059e+37
    %v215 = vand.u32 %v203, 2147483648
    %v216 = vor.u32 1.1754944e-38, %v215
    %v217 = vsel %vm214, %v216, %v212
    %v218 = vmul.f32 %v193, %v217
    %v219 = vmin.f32 %v218, 1.0
    %v220 = vmax.f32 %v219, -1.0
    %v221 = vmul.f32 %v180, %v180
    %v222 = vmin.f32 16.0, %v221
    %v223 = vmul.f32 %v222, 2.1237322e-06
    %v224 = vadd.f32 %v223, 0.00028619796
    %v225 = vmul.f32 %v222, %v224
    %v226 = vadd.f32 %v225, 0.0036580483
    %v227 = vmul.f32 %v222, %v226
    %v228 = vadd.f32 %v227, 0.05243302
    %v229 = vmul.f32 %v222, %v228
    %v230 = vadd.f32 %v229, 0.18741608
    %v231 = vmul.f32 %v222, %v230
    %v232 = vadd.f32 %v231, 1.1283791
    %v233 = vmul.f32 %v180, %v232
    %v234 = vmul.f32 %v222, 3.8918573e-05
    %v235 = vadd.f32 %v234, 0.001143296
    %v236 = vmul.f32 %v222, %v235
    %v237 = vadd.f32 %v236, 0.014752088
    %v238 = vmul.f32 %v222, %v237
    %v239 = vadd.f32 %v238, 0.112945676
    %v240 = vmul.f32 %v222, %v239
    %v241 = vadd.f32 %v240, 0.4994258
    %v242 = vmul.f32 %v222, %v241
    %v243 = vadd.f32 %v242, 1.0
    %v244 = vrcp.pop %v243
    %v245 = vmul.f32 %v243, %v244
    %v246 = vsub.f32 1.0, %v245
    %v247 = vmul.f32 %v244, %v246
    %v248 = vadd.f32 %v244, %v247
    %vm249 = vweird.f32 %v243
    %vm250 = vweird.f32 %v244
    %vm251 = vmor %vm249, %vm250
    %v252 = vsel %vm251, %v244, %v248
    %v253 = vand.u32 2147483647, %v243
    %vm254 = vcmp.eq.f32.partialorder %v253, 8.507059e+37
    %v255 = vand.u32 %v243, 2147483648
    %v256 = vor.u32 1.1754944e-38, %v255
    %v257 = vsel %vm254, %v256, %v252
    %v258 = vmul.f32 %v233, %v257
    %v259 = vmin.f32 %v258, 1.0
    %v260 = vmax.f32 %v259, -1.0
    %v261 = vadd.f32 %v220, 1.0
    %v262 = vadd.f32 %v260, 1.0
    %v263 = vmul.f32 %v177, %v261
    %v264 = vmul.f32 %v178, %v262
    %v265 = vld [vmem:[%s5] sm:$0xff]
    %v266 = vpack.c.bf16 %v264, %v263
    %v267 = vpack.c.bf16 %v265, %v265
    %v268 = vld [vmem:[#allocation7] sm:$0x1]
    %v270 = vperm.slane %v268, 0
    %vm272 = vcmask 64512
    %v274 = vsel %vm272, %v266, 0
    %vm276 = vcmask 1043456
    %v278 = vsel %vm276, %v267, 0
    %280 = vmatpush.bf16.msra.mxu0 0
    %281 = vmatpush.bf16.msra.mxu0 0
    %282 = vmatpush.bf16.msra.mxu0 0
    %283 = vmatpush.bf16.msra.mxu0 0
    %284 = vmatpush.bf16.msra.mxu0 0
    %285 = vmatpush.bf16.msra.mxu0 0
    %286 = vmatpush.bf16.msra.mxu0 0
    %287 = vmatpush.bf16.msra.mxu0 %v278
    %288 = vmatmul.bf16.gmra.mxu0 %v274
    %v289 = vpop.f32.mrf.mxu0
    %v290 = vadd.f32 %v270, %v289
    %v291 = vpop.f32.mrf.mxu0
    %v292 = vadd.f32 %v270, %v291
    %293 = vdwg.mxu0
    %294 = vst.msk [vmem:[%s7] sm:$0xff] %vm86, %v290
    %295 = vst.msk [vmem:[%s7 + $0x8] sm:$0x3] %vm90, %v292
    // Predicated region
    $region46: #{_lambda_.40} parent=1 // pred_check
      _
    $region47: #{_lambda_.40} parent=1 // pred_check_branch
      %297 = sbr.rel (0) target = $region49
    $region48: #{_lambda_.40} parent=1 // pred_region
      _
    $region49: #{_lambda_.40} parent=1 // pred_fallthru
      _
    // Predicated region
    $region50: #{_lambda_.40} parent=1 // pred_check
      _
    $region51: #{_lambda_.40} parent=1 // pred_check_branch
      %299 = sbr.rel (0) target = $region53
    $region52: #{_lambda_.40} parent=1 // pred_region
      _
    $region53: #{_lambda_.40} parent=1 // pred_fallthru
      _
    %300 = vsyncpa [#allocation3], 1
    %301 = vsyncpa [#allocation5], 1
    %302 = vsyncpa [#allocation8], 1

// kernel: _lambda_.44
$region0: #{_lambda_.44}
  #allocation0 [shape = 'u32[]', space=smem, size = 0x4, offset = 0x4, fixed_abs, tag = 'smem constant byte address 0x4 - core index']
  #allocation1 [shape = 'u32[72,128]{1,0:T(1,128)}', space=vmem, size = 0x9000, scoped, tag = 'internal scratch']
  %s0 = inlined_call_operand.vmem [shape: f32[10,32], index: 0, kind: input, shape index: {}]
  %s1 = inlined_call_operand.vmem [shape: f32[32,8], index: 1, kind: input, shape index: {}]
  %s2 = inlined_call_operand.hbm [shape: f32[1,8], index: 2, kind: input, shape index: {}]
  %s3 = inlined_call_operand.vmem [shape: f32[8,32], index: 3, kind: input, shape index: {}]
  %s4 = inlined_call_operand.hbm [shape: f32[1,32], index: 4, kind: input, shape index: {}]
  %s5 = inlined_call_operand.vmem [shape: f32[10,32], index: 5, kind: input, shape index: {}]
  %s6 = inlined_call_operand.vmem [shape: f32[10,32], index: 6, kind: output, shape index: {}]
  %s7 = sld [smem:[#allocation0]]
  $region42: #{_lambda_.44} parent=0
    _
  %s9 = ssub.s32 1, %s7
  %s10 = scalar_select 0, %s9, %s7
  $region1: #{_lambda_.44} parent=0
    #allocation2 [shape = 'u8[512]{0}', space=vmem, size = 0x400, scoped, tag = 'input window, operand 2, single buffered']
    #allocation3 [shape = 's32[1]{0}', space=sflag, size = 0x4, scoped, tag = 'scoped memory for _lambda_.44']
    #allocation4 [shape = 'u8[512]{0}', space=vmem, size = 0x400, scoped, tag = 'input window, operand 4, single buffered']
    #allocation5 [shape = 's32[1]{0}', space=sflag, size = 0x4, scoped, tag = 'scoped memory for _lambda_.44']
    %11 = vsyncpa [#allocation3], 0
    %12 = vsyncpa [#allocation5], 0
    // Predicated region
    $region2: #{_lambda_.44} parent=1 // pred_check
      _
    $region3: #{_lambda_.44} parent=1 // pred_check_branch
      %14 = sbr.rel (0) target = $region5
    $region4: #{_lambda_.44} parent=1 // pred_region
      _
    $region5: #{_lambda_.44} parent=1 // pred_fallthru
      _
    // Predicated region
    $region6: #{_lambda_.44} parent=1 // pred_check
      _
    $region7: #{_lambda_.44} parent=1 // pred_check_branch
      %16 = sbr.rel (0) target = $region9
    $region8: #{_lambda_.44} parent=1 // pred_region
      _
    $region9: #{_lambda_.44} parent=1 // pred_fallthru
      _
    // Predicated region
    $region10: #{_lambda_.44} parent=1 // pred_check
      _
    $region11: #{_lambda_.44} parent=1 // pred_check_branch
      %18 = sbr.rel (0) target = $region13
    $region12: #{_lambda_.44} parent=1 // pred_region
      %20 = vsyncadd [#allocation3], 0
      %s22 = sshll.u32 %s2, 4
      %s23 = int_to_ptr.hbm [resolvable:$true] %s22
      %s24 = sshll.u32 [#allocation2], 4
      %s25 = int_to_ptr.vmem [resolvable:$true] %s24
      %27 = dma.hbm_to_vmem [thread:$0]  %s23, 16, %s25, [#allocation3]
    $region13: #{_lambda_.44} parent=1 // pred_fallthru
      _
    // Predicated region
    $region14: #{_lambda_.44} parent=1 // pred_check
      _
    $region15: #{_lambda_.44} parent=1 // pred_check_branch
      %29 = sbr.rel (0) target = $region17
    $region16: #{_lambda_.44} parent=1 // pred_region
      _
    $region17: #{_lambda_.44} parent=1 // pred_fallthru
      _
    // Predicated region
    $region18: #{_lambda_.44} parent=1 // pred_check
      _
    $region19: #{_lambda_.44} parent=1 // pred_check_branch
      %31 = sbr.rel (0) target = $region21
    $region20: #{_lambda_.44} parent=1 // pred_region
      %33 = vsyncadd [#allocation5], 0
      %s35 = sshll.u32 %s4, 4
      %s36 = int_to_ptr.hbm [resolvable:$true] %s35
      %s37 = sshll.u32 [#allocation4], 4
      %s38 = int_to_ptr.vmem [resolvable:$true] %s37
      %40 = dma.hbm_to_vmem [thread:$0]  %s36, 16, %s38, [#allocation5]
    $region21: #{_lambda_.44} parent=1 // pred_fallthru
      _
    // Predicated region
    $region22: #{_lambda_.44} parent=1 // pred_check
      _
    $region23: #{_lambda_.44} parent=1 // pred_check_branch
      %42 = sbr.rel (0) target = $region25
    $region24: #{_lambda_.44} parent=1 // pred_region
      _
    $region25: #{_lambda_.44} parent=1 // pred_fallthru
      _
    // Predicated region
    $region26: #{_lambda_.44} parent=1 // pred_check
      _
    $region27: #{_lambda_.44} parent=1 // pred_check_branch
      %44 = sbr.rel (0) target = $region29
    $region28: #{_lambda_.44} parent=1 // pred_region
      %46 = dma.done [#allocation3], 16
    $region29: #{_lambda_.44} parent=1 // pred_fallthru
      _
    // Predicated region
    $region30: #{_lambda_.44} parent=1 // pred_check
      _
    $region31: #{_lambda_.44} parent=1 // pred_check_branch
      %48 = sbr.rel (0) target = $region33
    $region32: #{_lambda_.44} parent=1 // pred_region
      %50 = dma.done [#allocation5], 16
    $region33: #{_lambda_.44} parent=1 // pred_fallthru
      _
    %v52 = vld [vmem:[%s0] sm:$0xff]
    %v53 = vld [vmem:[%s0 + $0x8] sm:$0x3]
    %v54 = vld [vmem:[%s1] sm:$0xff]
    %v55 = vld [vmem:[%s1 + $0x8] sm:$0xff]
    %v56 = vld [vmem:[%s1 + $0x10] sm:$0xff]
    %v57 = vld [vmem:[%s1 + $0x18] sm:$0xff]
    %v58 = vpack.c.bf16 %v53, %v52
    %v59 = vpack.c.bf16 %v55, %v54
    %v60 = vpack.c.bf16 %v57, %v56
    %v61 = vld [vmem:[#allocation2] sm:$0x1]
    %v63 = vperm.slane %v61, 0
    %vm65 = vcmask 261120
    %v67 = vsel %vm65, %v58, 0
    %69 = vmatpush.bf16.msra.mxu0 0
    %70 = vmatpush.bf16.msra.mxu0 0
    %71 = vmatpush.bf16.msra.mxu0 0
    %72 = vmatpush.bf16.msra.mxu0 0
    %73 = vmatpush.bf16.msra.mxu0 0
    %74 = vmatpush.bf16.msra.mxu0 0
    %75 = vmatpush.bf16.msra.mxu0 %v60
    %76 = vmatpush.bf16.msra.mxu0 %v59
    %77 = vmatmul.bf16.gmra.mxu0 %v67
    %v78 = vpop.f32.mrf.mxu0
    %v79 = vadd.f32 %v63, %v78
    %v80 = vpop.f32.mrf.mxu0
    %v81 = vadd.f32 %v63, %v80
    %82 = vdwg.mxu0
    %v83 = vmul.f32 %v79, 0.5
    %v84 = vmul.f32 %v81, 0.5
    %v85 = vmul.f32 %v79, 0.70710677
    %v86 = vmul.f32 %v81, 0.70710677
    %v87 = vmul.f32 %v85, %v85
    %v88 = vmin.f32 16.0, %v87
    %v89 = vmul.f32 %v88, 2.1237322e-06
    %v90 = vadd.f32 %v89, 0.00028619796
    %v91 = vmul.f32 %v88, %v90
    %v92 = vadd.f32 %v91, 0.0036580483
    %v93 = vmul.f32 %v88, %v92
    %v94 = vadd.f32 %v93, 0.05243302
    %v95 = vmul.f32 %v88, %v94
    %v96 = vadd.f32 %v95, 0.18741608
    %v97 = vmul.f32 %v88, %v96
    %v98 = vadd.f32 %v97, 1.1283791
    %v99 = vmul.f32 %v85, %v98
    %v100 = vmul.f32 %v88, 3.8918573e-05
    %v101 = vadd.f32 %v100, 0.001143296
    %v102 = vmul.f32 %v88, %v101
    %v103 = vadd.f32 %v102, 0.014752088
    %v104 = vmul.f32 %v88, %v103
    %v105 = vadd.f32 %v104, 0.112945676
    %v106 = vmul.f32 %v88, %v105
    %v107 = vadd.f32 %v106, 0.4994258
    %v108 = vmul.f32 %v88, %v107
    %v109 = vadd.f32 %v108, 1.0
    %v110 = vrcp.pop %v109
    %v111 = vmul.f32 %v109, %v110
    %v112 = vsub.f32 1.0, %v111
    %v113 = vmul.f32 %v110, %v112
    %v114 = vadd.f32 %v110, %v113
    %vm115 = vweird.f32 %v109
    %vm116 = vweird.f32 %v110
    %vm117 = vmor %vm115, %vm116
    %v118 = vsel %vm117, %v110, %v114
    %v119 = vand.u32 2147483647, %v109
    %vm120 = vcmp.eq.f32.partialorder %v119, 8.507059e+37
    %v121 = vand.u32 %v109, 2147483648
    %v122 = vor.u32 1.1754944e-38, %v121
    %v123 = vsel %vm120, %v122, %v118
    %v124 = vmul.f32 %v99, %v123
    %v125 = vmin.f32 %v124, 1.0
    %v126 = vmax.f32 %v125, -1.0
    %v127 = vmul.f32 %v86, %v86
    %v128 = vmin.f32 16.0, %v127
    %v129 = vmul.f32 %v128, 2.1237322e-06
    %v130 = vadd.f32 %v129, 0.00028619796
    %v131 = vmul.f32 %v128, %v130
    %v132 = vadd.f32 %v131, 0.0036580483
    %v133 = vmul.f32 %v128, %v132
    %v134 = vadd.f32 %v133, 0.05243302
    %v135 = vmul.f32 %v128, %v134
    %v136 = vadd.f32 %v135, 0.18741608
    %v137 = vmul.f32 %v128, %v136
    %v138 = vadd.f32 %v137, 1.1283791
    %v139 = vmul.f32 %v86, %v138
    %v140 = vmul.f32 %v128, 3.8918573e-05
    %v141 = vadd.f32 %v140, 0.001143296
    %v142 = vmul.f32 %v128, %v141
    %v143 = vadd.f32 %v142, 0.014752088
    %v144 = vmul.f32 %v128, %v143
    %v145 = vadd.f32 %v144, 0.112945676
    %v146 = vmul.f32 %v128, %v145
    %v147 = vadd.f32 %v146, 0.4994258
    %v148 = vmul.f32 %v128, %v147
    %v149 = vadd.f32 %v148, 1.0
    %v150 = vrcp.pop %v149
    %v151 = vmul.f32 %v149, %v150
    %v152 = vsub.f32 1.0, %v151
    %v153 = vmul.f32 %v150, %v152
    %v154 = vadd.f32 %v150, %v153
    %vm155 = vweird.f32 %v149
    %vm156 = vweird.f32 %v150
    %vm157 = vmor %vm155, %vm156
    %v158 = vsel %vm157, %v150, %v154
    %v159 = vand.u32 2147483647, %v149
    %vm160 = vcmp.eq.f32.partialorder %v159, 8.507059e+37
    %v161 = vand.u32 %v149, 2147483648
    %v162 = vor.u32 1.1754944e-38, %v161
    %v163 = vsel %vm160, %v162, %v158
    %v164 = vmul.f32 %v139, %v163
    %v165 = vmin.f32 %v164, 1.0
    %v166 = vmax.f32 %v165, -1.0
    %v167 = vadd.f32 %v126, 1.0
    %v168 = vadd.f32 %v166, 1.0
    %v169 = vmul.f32 %v83, %v167
    %v170 = vmul.f32 %v84, %v168
    %v171 = vld [vmem:[%s3] sm:$0xff]
    %v172 = vpack.c.bf16 %v170, %v169
    %v173 = vpack.c.bf16 %v171, %v171
    %v174 = vld [vmem:[#allocation4] sm:$0x1]
    %v176 = vperm.slane %v174, 0
    %vm178 = vcmask 64512
    %v180 = vsel %vm178, %v172, 0
    %vm182 = vcmask 1043456
    %v184 = vsel %vm182, %v173, 0
    %186 = vmatpush.bf16.msra.mxu0 0
    %187 = vmatpush.bf16.msra.mxu0 0
    %188 = vmatpush.bf16.msra.mxu0 0
    %189 = vmatpush.bf16.msra.mxu0 0
    %190 = vmatpush.bf16.msra.mxu0 0
    %191 = vmatpush.bf16.msra.mxu0 0
    %192 = vmatpush.bf16.msra.mxu0 0
    %193 = vmatpush.bf16.msra.mxu0 %v184
    %194 = vmatmul.bf16.gmra.mxu0 %v180
    %v195 = vpop.f32.mrf.mxu0
    %v196 = vadd.f32 %v176, %v195
    %v197 = vpop.f32.mrf.mxu0
    %v198 = vadd.f32 %v176, %v197
    %199 = vdwg.mxu0
    %v200 = vld [vmem:[%s5] sm:$0xff]
    %v201 = vld [vmem:[%s5 + $0x8] sm:$0x3]
    %v202 = vadd.f32 %v196, %v200
    %v203 = vadd.f32 %v198, %v201
    %204 = vst.msk [vmem:[%s6] sm:$0xff] %vm65, %v202
    %vm205 = vcmask 254976
    %206 = vst.msk [vmem:[%s6 + $0x8] sm:$0x3] %vm205, %v203
    // Predicated region
    $region34: #{_lambda_.44} parent=1 // pred_check
      _
    $region35: #{_lambda_.44} parent=1 // pred_check_branch
      %208 = sbr.rel (0) target = $region37
    $region36: #{_lambda_.44} parent=1 // pred_region
      _
    $region37: #{_lambda_.44} parent=1 // pred_fallthru
      _
    // Predicated region
    $region38: #{_lambda_.44} parent=1 // pred_check
      _
    $region39: #{_lambda_.44} parent=1 // pred_check_branch
      %210 = sbr.rel (0) target = $region41
    $region40: #{_lambda_.44} parent=1 // pred_region
      _
    $region41: #{_lambda_.44} parent=1 // pred_fallthru
      _
    %211 = vsyncpa [#allocation3], 1
    %212 = vsyncpa [#allocation5], 1

// kernel: _lambda_.36
$region0: #{_lambda_.36}
  #allocation0 [shape = 'u32[]', space=smem, size = 0x4, offset = 0x4, fixed_abs, tag = 'smem constant byte address 0x4 - core index']
  #allocation1 [shape = 'u32[72,128]{1,0:T(1,128)}', space=vmem, size = 0x9000, scoped, tag = 'internal scratch']
  %s0 = inlined_call_operand.vmem [shape: f32[80,32], index: 0, kind: input, shape index: {}]
  %s1 = inlined_call_operand.hbm [shape: f32[1,32], index: 1, kind: input, shape index: {}]
  %s2 = inlined_call_operand.hbm [shape: f32[1,32], index: 2, kind: input, shape index: {}]
  %s3 = inlined_call_operand.vmem [shape: f32[32,96], index: 3, kind: input, shape index: {}]
  %s4 = inlined_call_operand.hbm [shape: f32[1,96], index: 4, kind: input, shape index: {}]
  %s5 = inlined_call_operand.vmem [shape: f32[80,96], index: 5, kind: output, shape index: {}]
  %s6 = sld [smem:[#allocation0]]
  $region42: #{_lambda_.36} parent=0
    _
  %s8 = ssub.s32 1, %s6
  %s9 = scalar_select 0, %s8, %s6
  $region1: #{_lambda_.36} parent=0
    #allocation2 [shape = 'u8[512]{0}', space=vmem, size = 0x400, scoped, tag = 'input window, operand 1, single buffered']
    #allocation3 [shape = 's32[1]{0}', space=sflag, size = 0x4, scoped, tag = 'scoped memory for _lambda_.36']
    #allocation4 [shape = 'u8[512]{0}', space=vmem, size = 0x400, scoped, tag = 'input window, operand 2, single buffered']
    #allocation5 [shape = 's32[1]{0}', space=sflag, size = 0x4, scoped, tag = 'scoped memory for _lambda_.36']
    #allocation6 [shape = 'u8[512]{0}', space=vmem, size = 0x400, scoped, tag = 'input window, operand 4, single buffered']
    %10 = vsyncpa [#allocation3], 0
    %11 = vsyncpa [#allocation5], 0
    // Predicated region
    $region2: #{_lambda_.36} parent=1 // pred_check
      _
    $region3: #{_lambda_.36} parent=1 // pred_check_branch
      %13 = sbr.rel (0) target = $region5
    $region4: #{_lambda_.36} parent=1 // pred_region
      _
    $region5: #{_lambda_.36} parent=1 // pred_fallthru
      _
    // Predicated region
    $region6: #{_lambda_.36} parent=1 // pred_check
      _
    $region7: #{_lambda_.36} parent=1 // pred_check_branch
      %15 = sbr.rel (0) target = $region9
    $region8: #{_lambda_.36} parent=1 // pred_region
      %17 = vsyncadd [#allocation3], 0
      %s19 = sshll.u32 %s1, 4
      %s20 = int_to_ptr.hbm [resolvable:$true] %s19
      %s21 = sshll.u32 [#allocation2], 4
      %s22 = int_to_ptr.vmem [resolvable:$true] %s21
      %24 = dma.hbm_to_vmem [thread:$0]  %s20, 16, %s22, [#allocation3]
    $region9: #{_lambda_.36} parent=1 // pred_fallthru
      _
    // Predicated region
    $region10: #{_lambda_.36} parent=1 // pred_check
      _
    $region11: #{_lambda_.36} parent=1 // pred_check_branch
      %26 = sbr.rel (0) target = $region13
    $region12: #{_lambda_.36} parent=1 // pred_region
      %28 = vsyncadd [#allocation5], 0
      %s30 = sshll.u32 %s2, 4
      %s31 = int_to_ptr.hbm [resolvable:$true] %s30
      %s32 = sshll.u32 [#allocation4], 4
      %s33 = int_to_ptr.vmem [resolvable:$true] %s32
      %35 = dma.hbm_to_vmem [thread:$0]  %s31, 16, %s33, [#allocation5]
    $region13: #{_lambda_.36} parent=1 // pred_fallthru
      _
    // Predicated region
    $region14: #{_lambda_.36} parent=1 // pred_check
      _
    $region15: #{_lambda_.36} parent=1 // pred_check_branch
      %37 = sbr.rel (0) target = $region17
    $region16: #{_lambda_.36} parent=1 // pred_region
      _
    $region17: #{_lambda_.36} parent=1 // pred_fallthru
      _
    // Predicated region
    $region18: #{_lambda_.36} parent=1 // pred_check
      _
    $region19: #{_lambda_.36} parent=1 // pred_check_branch
      %39 = sbr.rel (0) target = $region21
    $region20: #{_lambda_.36} parent=1 // pred_region
      %41 = vsyncadd [#allocation5], 0
      %s43 = sshll.u32 %s4, 4
      %s44 = int_to_ptr.hbm [resolvable:$true] %s43
      %s45 = sshll.u32 [#allocation6], 4
      %s46 = int_to_ptr.vmem [resolvable:$true] %s45
      %48 = dma.hbm_to_vmem [thread:$0]  %s44, 16, %s46, [#allocation5]
    $region21: #{_lambda_.36} parent=1 // pred_fallthru
      _
    // Predicated region
    $region22: #{_lambda_.36} parent=1 // pred_check
      _
    $region23: #{_lambda_.36} parent=1 // pred_check_branch
      %50 = sbr.rel (0) target = $region25
    $region24: #{_lambda_.36} parent=1 // pred_region
      %52 = dma.done [#allocation3], 16
    $region25: #{_lambda_.36} parent=1 // pred_fallthru
      _
    // Predicated region
    $region26: #{_lambda_.36} parent=1 // pred_check
      _
    $region27: #{_lambda_.36} parent=1 // pred_check_branch
      %54 = sbr.rel (0) target = $region29
    $region28: #{_lambda_.36} parent=1 // pred_region
      %56 = dma.done [#allocation5], 16
    $region29: #{_lambda_.36} parent=1 // pred_fallthru
      _
    // Predicated region
    $region30: #{_lambda_.36} parent=1 // pred_check
      _
    $region31: #{_lambda_.36} parent=1 // pred_check_branch
      %58 = sbr.rel (0) target = $region33
    $region32: #{_lambda_.36} parent=1 // pred_region
      %60 = dma.done [#allocation5], 16
    $region33: #{_lambda_.36} parent=1 // pred_fallthru
      _
    %v62 = vld [vmem:[%s0] sm:$0xff]
    %v63 = vld [vmem:[%s0 + $0x8] sm:$0xff]
    %v64 = vld [vmem:[%s0 + $0x10] sm:$0xff]
    %v65 = vld [vmem:[%s0 + $0x18] sm:$0xff]
    %v66 = vld [vmem:[%s0 + $0x20] sm:$0xff]
    %v67 = vld [vmem:[%s0 + $0x28] sm:$0xff]
    %v68 = vld [vmem:[%s0 + $0x30] sm:$0xff]
    %v69 = vld [vmem:[%s0 + $0x38] sm:$0xff]
    %v70 = vld [vmem:[%s0 + $0x40] sm:$0xff]
    %v71 = vld [vmem:[%s0 + $0x48] sm:$0xff]
    %v72 = vld [vmem:[#allocation2] sm:$0x1]
    %v73 = vld [vmem:[#allocation4] sm:$0x1]
    %vm74 = vcmask 261120
    %v75 = vsel %vm74, %v62, 0.0
    %76 = vadd.xlane.f32.xlu0 %v75
    %v77 = vpop.xlane.xlu0 %76
    %v78 = vsel %vm74, %v63, 0.0
    %79 = vadd.xlane.f32.xlu0 %v78
    %v80 = vpop.xlane.xlu0 %79
    %v81 = vsel %vm74, %v64, 0.0
    %82 = vadd.xlane.f32.xlu0 %v81
    %v83 = vpop.xlane.xlu0 %82
    %v84 = vsel %vm74, %v65, 0.0
    %85 = vadd.xlane.f32.xlu0 %v84
    %v86 = vpop.xlane.xlu0 %85
    %v87 = vsel %vm74, %v66, 0.0
    %88 = vadd.xlane.f32.xlu0 %v87
    %v89 = vpop.xlane.xlu0 %88
    %v90 = vsel %vm74, %v67, 0.0
    %91 = vadd.xlane.f32.xlu0 %v90
    %v92 = vpop.xlane.xlu0 %91
    %v93 = vsel %vm74, %v68, 0.0
    %94 = vadd.xlane.f32.xlu0 %v93
    %v95 = vpop.xlane.xlu0 %94
    %v96 = vsel %vm74, %v69, 0.0
    %97 = vadd.xlane.f32.xlu0 %v96
    %v98 = vpop.xlane.xlu0 %97
    %v99 = vsel %vm74, %v70, 0.0
    %100 = vadd.xlane.f32.xlu0 %v99
    %v101 = vpop.xlane.xlu0 %100
    %v102 = vsel %vm74, %v71, 0.0
    %103 = vadd.xlane.f32.xlu0 %v102
    %v104 = vpop.xlane.xlu0 %103
    %v105 = vrcp.pop 32.0
    %v106 = vmul.f32 32.0, %v105
    %v107 = vsub.f32 1.0, %v106
    %v108 = vmul.f32 %v105, %v107
    %v109 = vadd.f32 %v105, %v108
    %vm110 = vweird.f32 %v105
    %v111 = vsel %vm110, %v105, %v109
    %v112 = vmul.f32 %v77, %v111
    %v113 = vmul.f32 %v80, %v111
    %v114 = vmul.f32 %v83, %v111
    %v115 = vmul.f32 %v86, %v111
    %v116 = vmul.f32 %v89, %v111
    %v117 = vmul.f32 %v92, %v111
    %v118 = vmul.f32 %v95, %v111
    %v119 = vmul.f32 %v98, %v111
    %v120 = vmul.f32 %v101, %v111
    %v121 = vmul.f32 %v104, %v111
    %v122 = vsub.f32 %v62, %v112
    %v123 = vsub.f32 %v63, %v113
    %v124 = vsub.f32 %v64, %v114
    %v125 = vsub.f32 %v65, %v115
    %v126 = vsub.f32 %v66, %v116
    %v127 = vsub.f32 %v67, %v117
    %v128 = vsub.f32 %v68, %v118
    %v129 = vsub.f32 %v69, %v119
    %v130 = vsub.f32 %v70, %v120
    %v131 = vsub.f32 %v71, %v121
    %v132 = vmul.f32 %v122, %v122
    %v133 = vmul.f32 %v123, %v123
    %v134 = vmul.f32 %v124, %v124
    %v135 = vmul.f32 %v125, %v125
    %v136 = vmul.f32 %v126, %v126
    %v137 = vmul.f32 %v127, %v127
    %v138 = vmul.f32 %v128, %v128
    %v139 = vmul.f32 %v129, %v129
    %v140 = vmul.f32 %v130, %v130
    %v141 = vmul.f32 %v131, %v131
    %v142 = vsel %vm74, %v132, 0.0
    %143 = vadd.xlane.f32.xlu0 %v142
    %v144 = vpop.xlane.xlu0 %143
    %v145 = vsel %vm74, %v133, 0.0
    %146 = vadd.xlane.f32.xlu0 %v145
    %v147 = vpop.xlane.xlu0 %146
    %v148 = vsel %vm74, %v134, 0.0
    %149 = vadd.xlane.f32.xlu0 %v148
    %v150 = vpop.xlane.xlu0 %149
    %v151 = vsel %vm74, %v135, 0.0
    %152 = vadd.xlane.f32.xlu0 %v151
    %v153 = vpop.xlane.xlu0 %152
    %v154 = vsel %vm74, %v136, 0.0
    %155 = vadd.xlane.f32.xlu0 %v154
    %v156 = vpop.xlane.xlu0 %155
    %v157 = vsel %vm74, %v137, 0.0
    %158 = vadd.xlane.f32.xlu0 %v157
    %v159 = vpop.xlane.xlu0 %158
    %v160 = vsel %vm74, %v138, 0.0
    %161 = vadd.xlane.f32.xlu0 %v160
    %v162 = vpop.xlane.xlu0 %161
    %v163 = vsel %vm74, %v139, 0.0
    %164 = vadd.xlane.f32.xlu0 %v163
    %v165 = vpop.xlane.xlu0 %164
    %v166 = vsel %vm74, %v140, 0.0
    %167 = vadd.xlane.f32.xlu0 %v166
    %v168 = vpop.xlane.xlu0 %167
    %v169 = vsel %vm74, %v141, 0.0
    %170 = vadd.xlane.f32.xlu0 %v169
    %v171 = vpop.xlane.xlu0 %170
    %v172 = vmul.f32 %v144, %v111
    %v173 = vmul.f32 %v147, %v111
    %v174 = vmul.f32 %v150, %v111
    %v175 = vmul.f32 %v153, %v111
    %v176 = vmul.f32 %v156, %v111
    %v177 = vmul.f32 %v159, %v111
    %v178 = vmul.f32 %v162, %v111
    %v179 = vmul.f32 %v165, %v111
    %v180 = vmul.f32 %v168, %v111
    %v181 = vmul.f32 %v171, %v111
    %v182 = vadd.f32 %v172, 1e-05
    %v183 = vadd.f32 %v173, 1e-05
    %v184 = vadd.f32 %v174, 1e-05
    %v185 = vadd.f32 %v175, 1e-05
    %v186 = vadd.f32 %v176, 1e-05
    %v187 = vadd.f32 %v177, 1e-05
    %v188 = vadd.f32 %v178, 1e-05
    %v189 = vadd.f32 %v179, 1e-05
    %v190 = vadd.f32 %v180, 1e-05
    %v191 = vadd.f32 %v181, 1e-05
    %v192 = vrsqrt.pop %v182
    %v193 = vmul.f32 %v192, %v182
    %v194 = vmul.f32 %v193, %v192
    %v195 = vmul.f32 0.5, %v194
    %v196 = vsub.f32 1.5, %v195
    %v197 = vmul.f32 %v192, %v196
    %vm198 = vweird.f32 %v182
    %vm199 = vweird.f32 %v192
    %vm200 = vmor %vm198, %vm199
    %v201 = vsel %vm200, %v192, %v197
    %v202 = vrsqrt.pop %v183
    %v203 = vmul.f32 %v202, %v183
    %v204 = vmul.f32 %v203, %v202
    %v205 = vmul.f32 0.5, %v204
    %v206 = vsub.f32 1.5, %v205
    %v207 = vmul.f32 %v202, %v206
    %vm208 = vweird.f32 %v183
    %vm209 = vweird.f32 %v202
    %vm210 = vmor %vm208, %vm209
    %v211 = vsel %vm210, %v202, %v207
    %v212 = vrsqrt.pop %v184
    %v213 = vmul.f32 %v212, %v184
    %v214 = vmul.f32 %v213, %v212
    %v215 = vmul.f32 0.5, %v214
    %v216 = vsub.f32 1.5, %v215
    %v217 = vmul.f32 %v212, %v216
    %vm218 = vweird.f32 %v184
    %vm219 = vweird.f32 %v212
    %vm220 = vmor %vm218, %vm219
    %v221 = vsel %vm220, %v212, %v217
    %v222 = vrsqrt.pop %v185
    %v223 = vmul.f32 %v222, %v185
    %v224 = vmul.f32 %v223, %v222
    %v225 = vmul.f32 0.5, %v224
    %v226 = vsub.f32 1.5, %v225
    %v227 = vmul.f32 %v222, %v226
    %vm228 = vweird.f32 %v185
    %vm229 = vweird.f32 %v222
    %vm230 = vmor %vm228, %vm229
    %v231 = vsel %vm230, %v222, %v227
    %v232 = vrsqrt.pop %v186
    %v233 = vmul.f32 %v232, %v186
    %v234 = vmul.f32 %v233, %v232
    %v235 = vmul.f32 0.5, %v234
    %v236 = vsub.f32 1.5, %v235
    %v237 = vmul.f32 %v232, %v236
    %vm238 = vweird.f32 %v186
    %vm239 = vweird.f32 %v232
    %vm240 = vmor %vm238, %vm239
    %v241 = vsel %vm240, %v232, %v237
    %v242 = vrsqrt.pop %v187
    %v243 = vmul.f32 %v242, %v187
    %v244 = vmul.f32 %v243, %v242
    %v245 = vmul.f32 0.5, %v244
    %v246 = vsub.f32 1.5, %v245
    %v247 = vmul.f32 %v242, %v246
    %vm248 = vweird.f32 %v187
    %vm249 = vweird.f32 %v242
    %vm250 = vmor %vm248, %vm249
    %v251 = vsel %vm250, %v242, %v247
    %v252 = vrsqrt.pop %v188
    %v253 = vmul.f32 %v252, %v188
    %v254 = vmul.f32 %v253, %v252
    %v255 = vmul.f32 0.5, %v254
    %v256 = vsub.f32 1.5, %v255
    %v257 = vmul.f32 %v252, %v256
    %vm258 = vweird.f32 %v188
    %vm259 = vweird.f32 %v252
    %vm260 = vmor %vm258, %vm259
    %v261 = vsel %vm260, %v252, %v257
    %v262 = vrsqrt.pop %v189
    %v263 = vmul.f32 %v262, %v189
    %v264 = vmul.f32 %v263, %v262
    %v265 = vmul.f32 0.5, %v264
    %v266 = vsub.f32 1.5, %v265
    %v267 = vmul.f32 %v262, %v266
    %vm268 = vweird.f32 %v189
    %vm269 = vweird.f32 %v262
    %vm270 = vmor %vm268, %vm269
    %v271 = vsel %vm270, %v262, %v267
    %v272 = vrsqrt.pop %v190
    %v273 = vmul.f32 %v272, %v190
    %v274 = vmul.f32 %v273, %v272
    %v275 = vmul.f32 0.5, %v274
    %v276 = vsub.f32 1.5, %v275
    %v277 = vmul.f32 %v272, %v276
    %vm278 = vweird.f32 %v190
    %vm279 = vweird.f32 %v272
    %vm280 = vmor %vm278, %vm279
    %v281 = vsel %vm280, %v272, %v277
    %v282 = vrsqrt.pop %v191
    %v283 = vmul.f32 %v282, %v191
    %v284 = vmul.f32 %v283, %v282
    %v285 = vmul.f32 0.5, %v284
    %v286 = vsub.f32 1.5, %v285
    %v287 = vmul.f32 %v282, %v286
    %vm288 = vweird.f32 %v191
    %vm289 = vweird.f32 %v282
    %vm290 = vmor %vm288, %vm289
    %v291 = vsel %vm290, %v282, %v287
    %v292 = vmul.f32 %v122, %v201
    %v293 = vmul.f32 %v123, %v211
    %v294 = vmul.f32 %v124, %v221
    %v295 = vmul.f32 %v125, %v231
    %v296 = vmul.f32 %v126, %v241
    %v297 = vmul.f32 %v127, %v251
    %v298 = vmul.f32 %v128, %v261
    %v299 = vmul.f32 %v129, %v271
    %v300 = vmul.f32 %v130, %v281
    %v301 = vmul.f32 %v131, %v291
    %v303 = vperm.slane %v72, 0
    %v305 = vmul.f32 %v292, %v303
    %v306 = vmul.f32 %v293, %v303
    %v307 = vmul.f32 %v294, %v303
    %v308 = vmul.f32 %v295, %v303
    %v309 = vmul.f32 %v296, %v303
    %v310 = vmul.f32 %v297, %v303
    %v311 = vmul.f32 %v298, %v303
    %v312 = vmul.f32 %v299, %v303
    %v313 = vmul.f32 %v300, %v303
    %v314 = vmul.f32 %v301, %v303
    %v316 = vperm.slane %v73, 0
    %v318 = vadd.f32 %v305, %v316
    %v319 = vadd.f32 %v306, %v316
    %v320 = vadd.f32 %v307, %v316
    %v321 = vadd.f32 %v308, %v316
    %v322 = vadd.f32 %v309, %v316
    %v323 = vadd.f32 %v310, %v316
    %v324 = vadd.f32 %v311, %v316
    %v325 = vadd.f32 %v312, %v316
    %v326 = vadd.f32 %v313, %v316
    %v327 = vadd.f32 %v314, %v316
    %v328 = vld [vmem:[%s3] sm:$0xff]
    %v329 = vld [vmem:[%s3 + $0x8] sm:$0xff]
    %v330 = vld [vmem:[%s3 + $0x10] sm:$0xff]
    %v331 = vld [vmem:[%s3 + $0x18] sm:$0xff]
    %v332 = vpack.c.bf16 %v319, %v318
    %v333 = vpack.c.bf16 %v321, %v320
    %v334 = vpack.c.bf16 %v323, %v322
    %v335 = vpack.c.bf16 %v325, %v324
    %v336 = vpack.c.bf16 %v327, %v326
    %v337 = vpack.c.bf16 %v329, %v328
    %v338 = vpack.c.bf16 %v331, %v330
    %v339 = vld [vmem:[#allocation6] sm:$0x1]
    %v341 = vperm.slane %v339, 0
    %v344 = vsel %vm74, %v332, 0
    %v347 = vsel %vm74, %v333, 0
    %v350 = vsel %vm74, %v334, 0
    %v353 = vsel %vm74, %v335, 0
    %v356 = vsel %vm74, %v336, 0
    %358 = vmatpush.bf16.msra.mxu0 0
    %359 = vmatpush.bf16.msra.mxu0 0
    %360 = vmatpush.bf16.msra.mxu0 0
    %361 = vmatpush.bf16.msra.mxu0 0
    %362 = vmatpush.bf16.msra.mxu0 0
    %363 = vmatpush.bf16.msra.mxu0 0
    %364 = vmatpush.bf16.msra.mxu0 %v338
    %365 = vmatpush.bf16.msra.mxu0 %v337
    %366 = vmatmul.bf16.gmra.mxu0 %v344
    %v367 = vpop.f32.mrf.mxu0
    %v368 = vadd.f32 %v341, %v367
    %v369 = vpop.f32.mrf.mxu0
    %v370 = vadd.f32 %v341, %v369
    %371 = vmatmul.bf16.gmra.mxu0 %v347
    %v372 = vpop.f32.mrf.mxu0
    %v373 = vadd.f32 %v341, %v372
    %v374 = vpop.f32.mrf.mxu0
    %v375 = vadd.f32 %v341, %v374
    %376 = vmatmul.bf16.gmra.mxu0 %v350
    %v377 = vpop.f32.mrf.mxu0
    %v378 = vadd.f32 %v341, %v377
    %v379 = vpop.f32.mrf.mxu0
    %v380 = vadd.f32 %v341, %v379
    %381 = vmatmul.bf16.gmra.mxu0 %v353
    %v382 = vpop.f32.mrf.mxu0
    %v383 = vadd.f32 %v341, %v382
    %v384 = vpop.f32.mrf.mxu0
    %v385 = vadd.f32 %v341, %v384
    %386 = vmatmul.bf16.gmra.mxu0 %v356
    %v387 = vpop.f32.mrf.mxu0
    %v388 = vadd.f32 %v341, %v387
    %v389 = vpop.f32.mrf.mxu0
    %v390 = vadd.f32 %v341, %v389
    %391 = vdwg.mxu0
    %vm392 = vcmask 785408
    %393 = vst.msk [vmem:[%s5] sm:$0xff] %vm392, %v368
    %394 = vst.msk [vmem:[%s5 + $0x8] sm:$0xff] %vm392, %v370
    %395 = vst.msk [vmem:[%s5 + $0x10] sm:$0xff] %vm392, %v373
    %396 = vst.msk [vmem:[%s5 + $0x18] sm:$0xff] %vm392, %v375
    %397 = vst.msk [vmem:[%s5 + $0x20] sm:$0xff] %vm392, %v378
    %398 = vst.msk [vmem:[%s5 + $0x28] sm:$0xff] %vm392, %v380
    %399 = vst.msk [vmem:[%s5 + $0x30] sm:$0xff] %vm392, %v383
    %400 = vst.msk [vmem:[%s5 + $0x38] sm:$0xff] %vm392, %v385
    %401 = vst.msk [vmem:[%s5 + $0x40] sm:$0xff] %vm392, %v388
    %402 = vst.msk [vmem:[%s5 + $0x48] sm:$0xff] %vm392, %v390
    // Predicated region
    $region34: #{_lambda_.36} parent=1 // pred_check
      _
    $region35: #{_lambda_.36} parent=1 // pred_check_branch
      %404 = sbr.rel (0) target = $region37
    $region36: #{_lambda_.36} parent=1 // pred_region
      _
    $region37: #{_lambda_.36} parent=1 // pred_fallthru
      _
    // Predicated region
    $region38: #{_lambda_.36} parent=1 // pred_check
      _
    $region39: #{_lambda_.36} parent=1 // pred_check_branch
      %406 = sbr.rel (0) target = $region41
    $region40: #{_lambda_.36} parent=1 // pred_region
      _
    $region41: #{_lambda_.36} parent=1 // pred_fallthru
      _
    %407 = vsyncpa [#allocation3], 1
    %408 = vsyncpa [#allocation5], 1

// kernel: _lambda_.37
$region0: #{_lambda_.37}
  #allocation0 [shape = 'u32[]', space=smem, size = 0x4, offset = 0x4, fixed_abs, tag = 'smem constant byte address 0x4 - core index']
  #allocation1 [shape = 'u32[72,128]{1,0:T(1,128)}', space=vmem, size = 0x9000, scoped, tag = 'internal scratch']
  %s0 = inlined_call_operand.vmem [shape: f32[16,5,96], index: 0, kind: input, shape index: {}]
  %s1 = inlined_call_operand.vmem [shape: f32[16,5,32], index: 1, kind: output, shape index: {}]
  %s2 = sld [smem:[#allocation0]]
  $region37: #{_lambda_.37} parent=0
    _
  %s4 = ssub.s32 1, %s2
  %s5 = scalar_select 0, %s4, %s2
  loop: start=0, step=1, limit=6
  $region2: #{_lambda_.37} parent=0 // loop_pre_header
    _
  $region3: #{_lambda_.37} parent=0 // loop_header
    %s7 = sphi 0, %s11
    %p8 = scmp.ge.s32.totalorder %s7, 6
    %s17 = sphi 0, %s19
    %s20 = sphi 0, %s17
    %s21 = sphi 0, %s20
    %s37 = sphi 0, %s21
    %s43 = sphi 0, %s45
    %s46 = sphi 0, %s43
    %s47 = sphi 0, %s46
    %s63 = sphi 0, %s47
  $region4: #{_lambda_.37} parent=0 // loop_header_branch
    %10 = sbr.rel (%p8) target = $region8
  $region5: #{_lambda_.37} parent=0 // loop_body
    %s12 = ssub.s32 %s7, 1
    %s13 = ssub.s32 %s7, 2
    %s14 = sadd.s32 %s7, 1
    %s15 = ssub.s32 %s7, %s14
    %p16 = scmp.eq.s32.totalorder %s15, 0
    %s18 = sadd.s32 %s17, 1
    %s19 = scalar_select %p16, %s17, %s18
    %p22 = pneg %p16
    %p23 = scmp.eq.s32.totalorder %s7, 3
    %p24 = por %p22, %p23
    %p25 = scmp.ne.s32.totalorder %s17, %s20
    %p26 = scmp.eq.s32.totalorder %s7, 0
    %p27 = por %p25, %p26
    %p28 = scmp.ne.s32.totalorder %s17, %s20
    %p29 = scmp.eq.s32.totalorder %s12, 3
    %p30 = por %p28, %p29
    %p31 = scmp.ne.s32.totalorder %s20, %s21
    %p32 = scmp.eq.s32.totalorder %s12, 0
    %p33 = por %p31, %p32
    %p34 = scmp.ne.s32.totalorder %s20, %s21
    %p35 = scmp.eq.s32.totalorder %s13, 3
    %p36 = por %p34, %p35
    %p38 = scmp.ne.s32.totalorder %s21, %s37
    %p39 = scmp.eq.s32.totalorder %s13, 0
    %p40 = por %p38, %p39
    %s41 = ssub.s32 %s7, %s14
    %p42 = scmp.eq.s32.totalorder %s41, 0
    %s44 = sadd.s32 %s43, 1
    %s45 = scalar_select %p42, %s43, %s44
    %p48 = pneg %p42
    %p49 = scmp.eq.s32.totalorder %s7, 3
    %p50 = por %p48, %p49
    %p51 = scmp.ne.s32.totalorder %s43, %s46
    %p52 = scmp.eq.s32.totalorder %s7, 0
    %p53 = por %p51, %p52
    %p54 = scmp.ne.s32.totalorder %s43, %s46
    %p55 = scmp.eq.s32.totalorder %s12, 3
    %p56 = por %p54, %p55
    %p57 = scmp.ne.s32.totalorder %s46, %s47
    %p58 = scmp.eq.s32.totalorder %s12, 0
    %p59 = por %p57, %p58
    %p60 = scmp.ne.s32.totalorder %s46, %s47
    %p61 = scmp.eq.s32.totalorder %s13, 3
    %p62 = por %p60, %p61
    %p64 = scmp.ne.s32.totalorder %s47, %s63
    %p65 = scmp.eq.s32.totalorder %s13, 0
    %p66 = por %p64, %p65
    %p67 = scmp.le.s32.totalorder 1, %s7
    %p68 = scmp.lt.s32.totalorder %s7, 5
    %p69 = pnand %p67, %p68
    %p70 = pneg %p69
    // Predicated region
    $region9: #{_lambda_.37} parent=5 // pred_check
      _
    $region10: #{_lambda_.37} parent=5 // pred_check_branch
      %72 = sbr.rel (%p69) target = $region12
    $region11: #{_lambda_.37} parent=5 // pred_region
      %s73 = ssub.s32 %s7, 1
    $region12: #{_lambda_.37} parent=5 // pred_fallthru
      _
    %p74 = scmp.lt.s32.totalorder %s7, 4
    // Predicated region
    $region13: #{_lambda_.37} parent=5 // pred_check
      %p75 = pneg %p74
    $region14: #{_lambda_.37} parent=5 // pred_check_branch
      %77 = sbr.rel (%p75) target = $region16
    $region15: #{_lambda_.37} parent=5 // pred_region
      // Predicated region
      $region17: #{_lambda_.37} parent=15 // pred_check
        %p78 = pneg %p27
      $region18: #{_lambda_.37} parent=15 // pred_check_branch
        %80 = sbr.rel (%p78) target = $region20
      $region19: #{_lambda_.37} parent=15 // pred_region
        %s81 = smul.u32 4, %s7
        %p82 = scmp.lt.s32.totalorder %s81, 15
        %s83 = scalar_select %p82, %s81, 15
        %s84 = smul.addr %s83, 8
        %s85 = scalar_lea.vmem %s0, %s84
        %s86 = smul.u32 4, %s7
      $region20: #{_lambda_.37} parent=15 // pred_fallthru
        _
    $region16: #{_lambda_.37} parent=5 // pred_fallthru
      _
    %p87 = scmp.le.s32.totalorder 1, %s7
    %p88 = scmp.lt.s32.totalorder %s7, 5
    %p89 = pnand %p87, %p88
    %p90 = pneg %p89
    // Predicated region
    $region21: #{_lambda_.37} parent=5 // pred_check
      _
    $region22: #{_lambda_.37} parent=5 // pred_check_branch
      %92 = sbr.rel (%p89) target = $region24
    $region23: #{_lambda_.37} parent=5 // pred_region
      %s93 = ssub.s32 %s7, 1
      %s94 = smul.u32 4, %s12
      %p95 = scmp.lt.s32.totalorder %s94, 15
      %s96 = scalar_select %p95, %s94, 15
      %s97 = smul.addr %s96, 8
      %s98 = scalar_lea.vmem %s0, %s97
      %p99 = pneg %p33
      %p100 = pneg %p30
      %p101 = pneg %p59
      %p102 = pneg %p56
      %s103 = smul.u32 4, %s12
      %p104 = scmp.lt.s32.totalorder %s103, 15
      %s105 = scalar_select %p104, %s103, 15
      %s106 = smul.addr %s105, 8
      %s107 = scalar_lea.vmem %s1, %s106
      %s108 = smul.u32 4, %s12
      %p109 = scmp.lt.s32.totalorder %s108, 15
      %s110 = scalar_select %p109, %s108, 15
      %s111 = smul.addr %s110, 8
      %s112 = scalar_lea.vmem %s0, %s111
      %s113 = smul.u32 4, %s12
      %s114 = smul.u32 4, %s12
      %p115 = scmp.lt.s32.totalorder %s114, 15
      %s116 = scalar_select %p115, %s114, 15
      %s117 = smul.addr %s116, 8
      %s118 = scalar_lea.vmem %s1, %s117
      %s119 = smul.u32 4, %s12
      %v121 = vld [vmem:[%s112] sm:$0x1f]
      %v122 = vld [vmem:[%s112 + $0x8] sm:$0x1f]
      %v123 = vld [vmem:[%s112 + $0x10] sm:$0x1f]
      %v124 = vld [vmem:[%s112 + $0x18] sm:$0x1f]
      %v125 = vpack.c.bf16 %v121, %v121
      %v126 = vpack.c.bf16 %v122, %v122
      %v127 = vpack.c.bf16 %v123, %v123
      %v128 = vpack.c.bf16 %v124, %v124
      %v130 = vunpack.c.l.b16 %v125
      %v131 = vpack.c.b16 %v130, %v130
      %132 = vrot.lane.b32.xlu0 %v131, 96
      %v133 = vpop.permute.xlu0 %132
      %vm134 = vcmask 64512
      %v136 = vsel %vm134, %v125, 0
      %v139 = vsel %vm134, %v133, 0
      %141 = vmatpush.bf16.xpose.msra.mxu0 0
      %142 = vmatpush.bf16.xpose.msra.mxu0 0
      %143 = vmatpush.bf16.xpose.msra.mxu0 0
      %144 = vmatpush.bf16.xpose.msra.mxu0 0
      %145 = vmatpush.bf16.xpose.msra.mxu0 0
      %146 = vmatpush.bf16.xpose.msra.mxu0 0
      %147 = vmatpush.bf16.xpose.msra.mxu0 0
      %148 = vmatpush.bf16.xpose.msra.mxu0 %v139
      %149 = vmatmul.bf16.gmra.mxu0 %v136
      %v150 = vpop.f32.mrf.mxu0
      %v151 = vadd.f32 0.0, %v150
      %v152 = vpop.f32.mrf.mxu0
      %153 = vdwg.mxu0
      %v155 = vunpack.c.l.b16 %v126
      %v156 = vpack.c.b16 %v155, %v155
      %157 = vrot.lane.b32.xlu0 %v156, 96
      %v158 = vpop.permute.xlu0 %157
      %v160 = vsel %vm134, %v126, 0
      %v163 = vsel %vm134, %v158, 0
      %165 = vmatpush.bf16.xpose.msra.mxu0 0
      %166 = vmatpush.bf16.xpose.msra.mxu0 0
      %167 = vmatpush.bf16.xpose.msra.mxu0 0
      %168 = vmatpush.bf16.xpose.msra.mxu0 0
      %169 = vmatpush.bf16.xpose.msra.mxu0 0
      %170 = vmatpush.bf16.xpose.msra.mxu0 0
      %171 = vmatpush.bf16.xpose.msra.mxu0 0
      %172 = vmatpush.bf16.xpose.msra.mxu0 %v163
      %173 = vmatmul.bf16.gmra.mxu0 %v160
      %v174 = vpop.f32.mrf.mxu0
      %v175 = vadd.f32 0.0, %v174
      %v176 = vpop.f32.mrf.mxu0
      %177 = vdwg.mxu0
      %v179 = vunpack.c.l.b16 %v127
      %v180 = vpack.c.b16 %v179, %v179
      %181 = vrot.lane.b32.xlu0 %v180, 96
      %v182 = vpop.permute.xlu0 %181
      %v184 = vsel %vm134, %v127, 0
      %v187 = vsel %vm134, %v182, 0
      %189 = vmatpush.bf16.xpose.msra.mxu0 0
      %190 = vmatpush.bf16.xpose.msra.mxu0 0
      %191 = vmatpush.bf16.xpose.msra.mxu0 0
      %192 = vmatpush.bf16.xpose.msra.mxu0 0
      %193 = vmatpush.bf16.xpose.msra.mxu0 0
      %194 = vmatpush.bf16.xpose.msra.mxu0 0
      %195 = vmatpush.bf16.xpose.msra.mxu0 0
      %196 = vmatpush.bf16.xpose.msra.mxu0 %v187
      %197 = vmatmul.bf16.gmra.mxu0 %v184
      %v198 = vpop.f32.mrf.mxu0
      %v199 = vadd.f32 0.0, %v198
      %v200 = vpop.f32.mrf.mxu0
      %201 = vdwg.mxu0
      %v203 = vunpack.c.l.b16 %v128
      %v204 = vpack.c.b16 %v203, %v203
      %205 = vrot.lane.b32.xlu0 %v204, 96
      %v206 = vpop.permute.xlu0 %205
      %v208 = vsel %vm134, %v128, 0
      %v211 = vsel %vm134, %v206, 0
      %213 = vmatpush.bf16.xpose.msra.mxu0 0
      %214 = vmatpush.bf16.xpose.msra.mxu0 0
      %215 = vmatpush.bf16.xpose.msra.mxu0 0
      %216 = vmatpush.bf16.xpose.msra.mxu0 0
      %217 = vmatpush.bf16.xpose.msra.mxu0 0
      %218 = vmatpush.bf16.xpose.msra.mxu0 0
      %219 = vmatpush.bf16.xpose.msra.mxu0 0
      %220 = vmatpush.bf16.xpose.msra.mxu0 %v211
      %221 = vmatmul.bf16.gmra.mxu0 %v208
      %v222 = vpop.f32.mrf.mxu0
      %v223 = vadd.f32 0.0, %v222
      %v224 = vpop.f32.mrf.mxu0
      %225 = vdwg.mxu0
      %v226 = vmul.f32 %v151, 0.35355338
      %v227 = vmul.f32 %v175, 0.35355338
      %v228 = vmul.f32 %v199, 0.35355338
      %v229 = vmul.f32 %v223, 0.35355338
      %vm230 = vcmask 36864
      %v231 = vsel %vm230, %v226, -inf
      %232 = vmax.xlane.f32.xlu0 %v231
      %v233 = vpop.xlane.xlu0 %232
      %v234 = vsel %vm230, %v227, -inf
      %235 = vmax.xlane.f32.xlu0 %v234
      %v236 = vpop.xlane.xlu0 %235
      %v237 = vsel %vm230, %v228, -inf
      %238 = vmax.xlane.f32.xlu0 %v237
      %v239 = vpop.xlane.xlu0 %238
      %v240 = vsel %vm230, %v229, -inf
      %241 = vmax.xlane.f32.xlu0 %v240
      %v242 = vpop.xlane.xlu0 %241
      %v243 = vsub.f32 %v226, %v233
      %v244 = vsub.f32 %v227, %v236
      %v245 = vsub.f32 %v228, %v239
      %v246 = vsub.f32 %v229, %v242
      %v247 = vmul.f32 %v243, 1.442695
      %v248 = vpow.pop %v247
      %v249 = vmul.f32 %v244, 1.442695
      %v250 = vpow.pop %v249
      %v251 = vmul.f32 %v245, 1.442695
      %v252 = vpow.pop %v251
      %v253 = vmul.f32 %v246, 1.442695
      %v254 = vpow.pop %v253
      %v255 = vsel %vm230, %v248, 0.0
      %256 = vadd.xlane.f32.xlu0 %v255
      %v257 = vpop.xlane.xlu0 %256
      %v258 = vsel %vm230, %v250, 0.0
      %259 = vadd.xlane.f32.xlu0 %v258
      %v260 = vpop.xlane.xlu0 %259
      %v261 = vsel %vm230, %v252, 0.0
      %262 = vadd.xlane.f32.xlu0 %v261
      %v263 = vpop.xlane.xlu0 %262
      %v264 = vsel %vm230, %v254, 0.0
      %265 = vadd.xlane.f32.xlu0 %v264
      %v266 = vpop.xlane.xlu0 %265
      %v267 = vrcp.pop %v257
      %v268 = vrcp.pop %v260
      %v269 = vrcp.pop %v263
      %v270 = vrcp.pop %v266
      %v271 = vmul.f32 %v248, %v267
      %v272 = vmul.f32 %v250, %v268
      %v273 = vmul.f32 %v252, %v269
      %v274 = vmul.f32 %v254, %v270
      %v275 = vpack.c.bf16 %v271, %v271
      %v276 = vpack.c.bf16 %v272, %v272
      %v277 = vpack.c.bf16 %v273, %v273
      %v278 = vpack.c.bf16 %v274, %v274
      %279 = vrot.lane.b32.xlu0 %v131, 64
      %v280 = vpop.permute.xlu0 %279
      %vm281 = vcmask 39936
      %v283 = vsel %vm281, %v275, 0
      %vm285 = vcmask 1041408
      %vm286 = vcmask 1042432
      %v287 = vsel %vm285, 4294967295, 65535
      %v288 = vsel %vm286, %v287, 0
      %v290 = vand.u32 %v280, %v288
      %292 = vmatpush.bf16.msra.mxu0 0
      %293 = vmatpush.bf16.msra.mxu0 0
      %294 = vmatpush.bf16.msra.mxu0 0
      %295 = vmatpush.bf16.msra.mxu0 0
      %296 = vmatpush.bf16.msra.mxu0 0
      %297 = vmatpush.bf16.msra.mxu0 0
      %298 = vmatpush.bf16.msra.mxu0 0
      %299 = vmatpush.bf16.msra.mxu0 %v290
      %300 = vmatmul.bf16.gmra.mxu0 %v283
      %v301 = vpop.f32.mrf.mxu0
      %v302 = vadd.f32 0.0, %v301
      %v303 = vpop.f32.mrf.mxu0
      %304 = vdwg.mxu0
      %305 = vrot.lane.b32.xlu0 %v156, 64
      %v306 = vpop.permute.xlu0 %305
      %v308 = vsel %vm281, %v276, 0
      %v311 = vand.u32 %v306, %v288
      %313 = vmatpush.bf16.msra.mxu0 0
      %314 = vmatpush.bf16.msra.mxu0 0
      %315 = vmatpush.bf16.msra.mxu0 0
      %316 = vmatpush.bf16.msra.mxu0 0
      %317 = vmatpush.bf16.msra.mxu0 0
      %318 = vmatpush.bf16.msra.mxu0 0
      %319 = vmatpush.bf16.msra.mxu0 0
      %320 = vmatpush.bf16.msra.mxu0 %v311
      %321 = vmatmul.bf16.gmra.mxu0 %v308
      %v322 = vpop.f32.mrf.mxu0
      %v323 = vadd.f32 0.0, %v322
      %v324 = vpop.f32.mrf.mxu0
      %325 = vdwg.mxu0
      %326 = vrot.lane.b32.xlu0 %v180, 64
      %v327 = vpop.permute.xlu0 %326
      %v329 = vsel %vm281, %v277, 0
      %v332 = vand.u32 %v327, %v288
      %334 = vmatpush.bf16.msra.mxu0 0
      %335 = vmatpush.bf16.msra.mxu0 0
      %336 = vmatpush.bf16.msra.mxu0 0
      %337 = vmatpush.bf16.msra.mxu0 0
      %338 = vmatpush.bf16.msra.mxu0 0
      %339 = vmatpush.bf16.msra.mxu0 0
      %340 = vmatpush.bf16.msra.mxu0 0
      %341 = vmatpush.bf16.msra.mxu0 %v332
      %342 = vmatmul.bf16.gmra.mxu0 %v329
      %v343 = vpop.f32.mrf.mxu0
      %v344 = vadd.f32 0.0, %v343
      %v345 = vpop.f32.mrf.mxu0
      %346 = vdwg.mxu0
      %347 = vrot.lane.b32.xlu0 %v204, 64
      %v348 = vpop.permute.xlu0 %347
      %v350 = vsel %vm281, %v278, 0
      %v353 = vand.u32 %v348, %v288
      %355 = vmatpush.bf16.msra.mxu0 0
      %356 = vmatpush.bf16.msra.mxu0 0
      %357 = vmatpush.bf16.msra.mxu0 0
      %358 = vmatpush.bf16.msra.mxu0 0
      %359 = vmatpush.bf16.msra.mxu0 0
      %360 = vmatpush.bf16.msra.mxu0 0
      %361 = vmatpush.bf16.msra.mxu0 0
      %362 = vmatpush.bf16.msra.mxu0 %v353
      %363 = vmatmul.bf16.gmra.mxu0 %v350
      %v364 = vpop.f32.mrf.mxu0
      %v365 = vadd.f32 0.0, %v364
      %v366 = vpop.f32.mrf.mxu0
      %367 = vdwg.mxu0
      %368 = vrot.lane.b32.xlu0 %v131, 120
      %v369 = vpop.permute.xlu0 %368
      %370 = vrot.lane.b32.xlu0 %v131, 88
      %v371 = vpop.permute.xlu0 %370
      %v373 = vsel %vm134, %v369, 0
      %v376 = vsel %vm134, %v371, 0
      %378 = vmatpush.bf16.xpose.msra.mxu0 0
      %379 = vmatpush.bf16.xpose.msra.mxu0 0
      %380 = vmatpush.bf16.xpose.msra.mxu0 0
      %381 = vmatpush.bf16.xpose.msra.mxu0 0
      %382 = vmatpush.bf16.xpose.msra.mxu0 0
      %383 = vmatpush.bf16.xpose.msra.mxu0 0
      %384 = vmatpush.bf16.xpose.msra.mxu0 0
      %385 = vmatpush.bf16.xpose.msra.mxu0 %v376
      %386 = vmatmul.bf16.gmra.mxu0 %v373
      %v387 = vpop.f32.mrf.mxu0
      %v388 = vadd.f32 0.0, %v387
      %v389 = vpop.f32.mrf.mxu0
      %390 = vdwg.mxu0
      %391 = vrot.lane.b32.xlu0 %v156, 120
      %v392 = vpop.permute.xlu0 %391
      %393 = vrot.lane.b32.xlu0 %v156, 88
      %v394 = vpop.permute.xlu0 %393
      %v396 = vsel %vm134, %v392, 0
      %v399 = vsel %vm134, %v394, 0
      %401 = vmatpush.bf16.xpose.msra.mxu0 0
      %402 = vmatpush.bf16.xpose.msra.mxu0 0
      %403 = vmatpush.bf16.xpose.msra.mxu0 0
      %404 = vmatpush.bf16.xpose.msra.mxu0 0
      %405 = vmatpush.bf16.xpose.msra.mxu0 0
      %406 = vmatpush.bf16.xpose.msra.mxu0 0
      %407 = vmatpush.bf16.xpose.msra.mxu0 0
      %408 = vmatpush.bf16.xpose.msra.mxu0 %v399
      %409 = vmatmul.bf16.gmra.mxu0 %v396
      %v410 = vpop.f32.mrf.mxu0
      %v411 = vadd.f32 0.0, %v410
      %v412 = vpop.f32.mrf.mxu0
      %413 = vdwg.mxu0
      %414 = vrot.lane.b32.xlu0 %v180, 120
      %v415 = vpop.permute.xlu0 %414
      %416 = vrot.lane.b32.xlu0 %v180, 88
      %v417 = vpop.permute.xlu0 %416
      %v419 = vsel %vm134, %v415, 0
      %v422 = vsel %vm134, %v417, 0
      %424 = vmatpush.bf16.xpose.msra.mxu0 0
      %425 = vmatpush.bf16.xpose.msra.mxu0 0
      %426 = vmatpush.bf16.xpose.msra.mxu0 0
      %427 = vmatpush.bf16.xpose.msra.mxu0 0
      %428 = vmatpush.bf16.xpose.msra.mxu0 0
      %429 = vmatpush.bf16.xpose.msra.mxu0 0
      %430 = vmatpush.bf16.xpose.msra.mxu0 0
      %431 = vmatpush.bf16.xpose.msra.mxu0 %v422
      %432 = vmatmul.bf16.gmra.mxu0 %v419
      %v433 = vpop.f32.mrf.mxu0
      %v434 = vadd.f32 0.0, %v433
      %v435 = vpop.f32.mrf.mxu0
      %436 = vdwg.mxu0
      %437 = vrot.lane.b32.xlu0 %v204, 120
      %v438 = vpop.permute.xlu0 %437
      %439 = vrot.lane.b32.xlu0 %v204, 88
      %v440 = vpop.permute.xlu0 %439
      %v442 = vsel %vm134, %v438, 0
      %v445 = vsel %vm134, %v440, 0
      %447 = vmatpush.bf16.xpose.msra.mxu0 0
      %448 = vmatpush.bf16.xpose.msra.mxu0 0
      %449 = vmatpush.bf16.xpose.msra.mxu0 0
      %450 = vmatpush.bf16.xpose.msra.mxu0 0
      %451 = vmatpush.bf16.xpose.msra.mxu0 0
      %452 = vmatpush.bf16.xpose.msra.mxu0 0
      %453 = vmatpush.bf16.xpose.msra.mxu0 0
      %454 = vmatpush.bf16.xpose.msra.mxu0 %v445
      %455 = vmatmul.bf16.gmra.mxu0 %v442
      %v456 = vpop.f32.mrf.mxu0
      %v457 = vadd.f32 0.0, %v456
      %v458 = vpop.f32.mrf.mxu0
      %459 = vdwg.mxu0
      %v460 = vmul.f32 %v388, 0.35355338
      %v461 = vmul.f32 %v411, 0.35355338
      %v462 = vmul.f32 %v434, 0.35355338
      %v463 = vmul.f32 %v457, 0.35355338
      %v464 = vsel %vm230, %v460, -inf
      %465 = vmax.xlane.f32.xlu0 %v464
      %v466 = vpop.xlane.xlu0 %465
      %v467 = vsel %vm230, %v461, -inf
      %468 = vmax.xlane.f32.xlu0 %v467
      %v469 = vpop.xlane.xlu0 %468
      %v470 = vsel %vm230, %v462, -inf
      %471 = vmax.xlane.f32.xlu0 %v470
      %v472 = vpop.xlane.xlu0 %471
      %v473 = vsel %vm230, %v463, -inf
      %474 = vmax.xlane.f32.xlu0 %v473
      %v475 = vpop.xlane.xlu0 %474
      %v476 = vsub.f32 %v460, %v466
      %v477 = vsub.f32 %v461, %v469
      %v478 = vsub.f32 %v462, %v472
      %v479 = vsub.f32 %v463, %v475
      %v480 = vmul.f32 %v476, 1.442695
      %v481 = vpow.pop %v480
      %v482 = vmul.f32 %v477, 1.442695
      %v483 = vpow.pop %v482
      %v484 = vmul.f32 %v478, 1.442695
      %v485 = vpow.pop %v484
      %v486 = vmul.f32 %v479, 1.442695
      %v487 = vpow.pop %v486
      %v488 = vsel %vm230, %v481, 0.0
      %489 = vadd.xlane.f32.xlu0 %v488
      %v490 = vpop.xlane.xlu0 %489
      %v491 = vsel %vm230, %v483, 0.0
      %492 = vadd.xlane.f32.xlu0 %v491
      %v493 = vpop.xlane.xlu0 %492
      %v494 = vsel %vm230, %v485, 0.0
      %495 = vadd.xlane.f32.xlu0 %v494
      %v496 = vpop.xlane.xlu0 %495
      %v497 = vsel %vm230, %v487, 0.0
      %498 = vadd.xlane.f32.xlu0 %v497
      %v499 = vpop.xlane.xlu0 %498
      %v500 = vrcp.pop %v490
      %v501 = vrcp.pop %v493
      %v502 = vrcp.pop %v496
      %v503 = vrcp.pop %v499
      %v504 = vmul.f32 %v481, %v500
      %v505 = vmul.f32 %v483, %v501
      %v506 = vmul.f32 %v485, %v502
      %v507 = vmul.f32 %v487, %v503
      %v508 = vpack.c.bf16 %v504, %v504
      %v509 = vpack.c.bf16 %v505, %v505
      %v510 = vpack.c.bf16 %v506, %v506
      %v511 = vpack.c.bf16 %v507, %v507
      %512 = vrot.lane.b32.xlu0 %v131, 56
      %v513 = vpop.permute.xlu0 %512
      %v515 = vsel %vm281, %v508, 0
      %v518 = vand.u32 %v513, %v288
      %520 = vmatpush.bf16.msra.mxu0 0
      %521 = vmatpush.bf16.msra.mxu0 0
      %522 = vmatpush.bf16.msra.mxu0 0
      %523 = vmatpush.bf16.msra.mxu0 0
      %524 = vmatpush.bf16.msra.mxu0 0
      %525 = vmatpush.bf16.msra.mxu0 0
      %526 = vmatpush.bf16.msra.mxu0 0
      %527 = vmatpush.bf16.msra.mxu0 %v518
      %528 = vmatmul.bf16.gmra.mxu0 %v515
      %v529 = vpop.f32.mrf.mxu0
      %v530 = vadd.f32 0.0, %v529
      %v531 = vpop.f32.mrf.mxu0
      %532 = vdwg.mxu0
      %533 = vrot.lane.b32.xlu0 %v156, 56
      %v534 = vpop.permute.xlu0 %533
      %v536 = vsel %vm281, %v509, 0
      %v539 = vand.u32 %v534, %v288
      %541 = vmatpush.bf16.msra.mxu0 0
      %542 = vmatpush.bf16.msra.mxu0 0
      %543 = vmatpush.bf16.msra.mxu0 0
      %544 = vmatpush.bf16.msra.mxu0 0
      %545 = vmatpush.bf16.msra.mxu0 0
      %546 = vmatpush.bf16.msra.mxu0 0
      %547 = vmatpush.bf16.msra.mxu0 0
      %548 = vmatpush.bf16.msra.mxu0 %v539
      %549 = vmatmul.bf16.gmra.mxu0 %v536
      %v550 = vpop.f32.mrf.mxu0
      %v551 = vadd.f32 0.0, %v550
      %v552 = vpop.f32.mrf.mxu0
      %553 = vdwg.mxu0
      %554 = vrot.lane.b32.xlu0 %v180, 56
      %v555 = vpop.permute.xlu0 %554
      %v557 = vsel %vm281, %v510, 0
      %v560 = vand.u32 %v555, %v288
      %562 = vmatpush.bf16.msra.mxu0 0
      %563 = vmatpush.bf16.msra.mxu0 0
      %564 = vmatpush.bf16.msra.mxu0 0
      %565 = vmatpush.bf16.msra.mxu0 0
      %566 = vmatpush.bf16.msra.mxu0 0
      %567 = vmatpush.bf16.msra.mxu0 0
      %568 = vmatpush.bf16.msra.mxu0 0
      %569 = vmatpush.bf16.msra.mxu0 %v560
      %570 = vmatmul.bf16.gmra.mxu0 %v557
      %v571 = vpop.f32.mrf.mxu0
      %v572 = vadd.f32 0.0, %v571
      %v573 = vpop.f32.mrf.mxu0
      %574 = vdwg.mxu0
      %575 = vrot.lane.b32.xlu0 %v204, 56
      %v576 = vpop.permute.xlu0 %575
      %v578 = vsel %vm281, %v511, 0
      %v581 = vand.u32 %v576, %v288
      %583 = vmatpush.bf16.msra.mxu0 0
      %584 = vmatpush.bf16.msra.mxu0 0
      %585 = vmatpush.bf16.msra.mxu0 0
      %586 = vmatpush.bf16.msra.mxu0 0
      %587 = vmatpush.bf16.msra.mxu0 0
      %588 = vmatpush.bf16.msra.mxu0 0
      %589 = vmatpush.bf16.msra.mxu0 0
      %590 = vmatpush.bf16.msra.mxu0 %v581
      %591 = vmatmul.bf16.gmra.mxu0 %v578
      %v592 = vpop.f32.mrf.mxu0
      %v593 = vadd.f32 0.0, %v592
      %v594 = vpop.f32.mrf.mxu0
      %595 = vdwg.mxu0
      %596 = vrot.lane.b32.xlu0 %v131, 112
      %v597 = vpop.permute.xlu0 %596
      %598 = vrot.lane.b32.xlu0 %v131, 80
      %v599 = vpop.permute.xlu0 %598
      %v601 = vsel %vm134, %v597, 0
      %v604 = vsel %vm134, %v599, 0
      %606 = vmatpush.bf16.xpose.msra.mxu0 0
      %607 = vmatpush.bf16.xpose.msra.mxu0 0
      %608 = vmatpush.bf16.xpose.msra.mxu0 0
      %609 = vmatpush.bf16.xpose.msra.mxu0 0
      %610 = vmatpush.bf16.xpose.msra.mxu0 0
      %611 = vmatpush.bf16.xpose.msra.mxu0 0
      %612 = vmatpush.bf16.xpose.msra.mxu0 0
      %613 = vmatpush.bf16.xpose.msra.mxu0 %v604
      %614 = vmatmul.bf16.gmra.mxu0 %v601
      %v615 = vpop.f32.mrf.mxu0
      %v616 = vadd.f32 0.0, %v615
      %v617 = vpop.f32.mrf.mxu0
      %618 = vdwg.mxu0
      %619 = vrot.lane.b32.xlu0 %v156, 112
      %v620 = vpop.permute.xlu0 %619
      %621 = vrot.lane.b32.xlu0 %v156, 80
      %v622 = vpop.permute.xlu0 %621
      %v624 = vsel %vm134, %v620, 0
      %v627 = vsel %vm134, %v622, 0
      %629 = vmatpush.bf16.xpose.msra.mxu0 0
      %630 = vmatpush.bf16.xpose.msra.mxu0 0
      %631 = vmatpush.bf16.xpose.msra.mxu0 0
      %632 = vmatpush.bf16.xpose.msra.mxu0 0
      %633 = vmatpush.bf16.xpose.msra.mxu0 0
      %634 = vmatpush.bf16.xpose.msra.mxu0 0
      %635 = vmatpush.bf16.xpose.msra.mxu0 0
      %636 = vmatpush.bf16.xpose.msra.mxu0 %v627
      %637 = vmatmul.bf16.gmra.mxu0 %v624
      %v638 = vpop.f32.mrf.mxu0
      %v639 = vadd.f32 0.0, %v638
      %v640 = vpop.f32.mrf.mxu0
      %641 = vdwg.mxu0
      %642 = vrot.lane.b32.xlu0 %v180, 112
      %v643 = vpop.permute.xlu0 %642
      %644 = vrot.lane.b32.xlu0 %v180, 80
      %v645 = vpop.permute.xlu0 %644
      %v647 = vsel %vm134, %v643, 0
      %v650 = vsel %vm134, %v645, 0
      %652 = vmatpush.bf16.xpose.msra.mxu0 0
      %653 = vmatpush.bf16.xpose.msra.mxu0 0
      %654 = vmatpush.bf16.xpose.msra.mxu0 0
      %655 = vmatpush.bf16.xpose.msra.mxu0 0
      %656 = vmatpush.bf16.xpose.msra.mxu0 0
      %657 = vmatpush.bf16.xpose.msra.mxu0 0
      %658 = vmatpush.bf16.xpose.msra.mxu0 0
      %659 = vmatpush.bf16.xpose.msra.mxu0 %v650
      %660 = vmatmul.bf16.gmra.mxu0 %v647
      %v661 = vpop.f32.mrf.mxu0
      %v662 = vadd.f32 0.0, %v661
      %v663 = vpop.f32.mrf.mxu0
      %664 = vdwg.mxu0
      %665 = vrot.lane.b32.xlu0 %v204, 112
      %v666 = vpop.permute.xlu0 %665
      %667 = vrot.lane.b32.xlu0 %v204, 80
      %v668 = vpop.permute.xlu0 %667
      %v670 = vsel %vm134, %v666, 0
      %v673 = vsel %vm134, %v668, 0
      %675 = vmatpush.bf16.xpose.msra.mxu0 0
      %676 = vmatpush.bf16.xpose.msra.mxu0 0
      %677 = vmatpush.bf16.xpose.msra.mxu0 0
      %678 = vmatpush.bf16.xpose.msra.mxu0 0
      %679 = vmatpush.bf16.xpose.msra.mxu0 0
      %680 = vmatpush.bf16.xpose.msra.mxu0 0
      %681 = vmatpush.bf16.xpose.msra.mxu0 0
      %682 = vmatpush.bf16.xpose.msra.mxu0 %v673
      %683 = vmatmul.bf16.gmra.mxu0 %v670
      %v684 = vpop.f32.mrf.mxu0
      %v685 = vadd.f32 0.0, %v684
      %v686 = vpop.f32.mrf.mxu0
      %687 = vdwg.mxu0
      %v688 = vmul.f32 %v616, 0.35355338
      %v689 = vmul.f32 %v639, 0.35355338
      %v690 = vmul.f32 %v662, 0.35355338
      %v691 = vmul.f32 %v685, 0.35355338
      %v692 = vsel %vm230, %v688, -inf
      %693 = vmax.xlane.f32.xlu0 %v692
      %v694 = vpop.xlane.xlu0 %693
      %v695 = vsel %vm230, %v689, -inf
      %696 = vmax.xlane.f32.xlu0 %v695
      %v697 = vpop.xlane.xlu0 %696
      %v698 = vsel %vm230, %v690, -inf
      %699 = vmax.xlane.f32.xlu0 %v698
      %v700 = vpop.xlane.xlu0 %699
      %v701 = vsel %vm230, %v691, -inf
      %702 = vmax.xlane.f32.xlu0 %v701
      %v703 = vpop.xlane.xlu0 %702
      %v704 = vsub.f32 %v688, %v694
      %v705 = vsub.f32 %v689, %v697
      %v706 = vsub.f32 %v690, %v700
      %v707 = vsub.f32 %v691, %v703
      %v708 = vmul.f32 %v704, 1.442695
      %v709 = vpow.pop %v708
      %v710 = vmul.f32 %v705, 1.442695
      %v711 = vpow.pop %v710
      %v712 = vmul.f32 %v706, 1.442695
      %v713 = vpow.pop %v712
      %v714 = vmul.f32 %v707, 1.442695
      %v715 = vpow.pop %v714
      %v716 = vsel %vm230, %v709, 0.0
      %717 = vadd.xlane.f32.xlu0 %v716
      %v718 = vpop.xlane.xlu0 %717
      %v719 = vsel %vm230, %v711, 0.0
      %720 = vadd.xlane.f32.xlu0 %v719
      %v721 = vpop.xlane.xlu0 %720
      %v722 = vsel %vm230, %v713, 0.0
      %723 = vadd.xlane.f32.xlu0 %v722
      %v724 = vpop.xlane.xlu0 %723
      %v725 = vsel %vm230, %v715, 0.0
      %726 = vadd.xlane.f32.xlu0 %v725
      %v727 = vpop.xlane.xlu0 %726
      %v728 = vrcp.pop %v718
      %v729 = vrcp.pop %v721
      %v730 = vrcp.pop %v724
      %v731 = vrcp.pop %v727
      %v732 = vmul.f32 %v709, %v728
      %v733 = vmul.f32 %v711, %v729
      %v734 = vmul.f32 %v713, %v730
      %v735 = vmul.f32 %v715, %v731
      %v736 = vpack.c.bf16 %v732, %v732
      %v737 = vpack.c.bf16 %v733, %v733
      %v738 = vpack.c.bf16 %v734, %v734
      %v739 = vpack.c.bf16 %v735, %v735
      %740 = vrot.lane.b32.xlu0 %v131, 48
      %v741 = vpop.permute.xlu0 %740
      %v743 = vsel %vm281, %v736, 0
      %v746 = vand.u32 %v741, %v288
      %748 = vmatpush.bf16.msra.mxu0 0
      %749 = vmatpush.bf16.msra.mxu0 0
      %750 = vmatpush.bf16.msra.mxu0 0
      %751 = vmatpush.bf16.msra.mxu0 0
      %752 = vmatpush.bf16.msra.mxu0 0
      %753 = vmatpush.bf16.msra.mxu0 0
      %754 = vmatpush.bf16.msra.mxu0 0
      %755 = vmatpush.bf16.msra.mxu0 %v746
      %756 = vmatmul.bf16.gmra.mxu0 %v743
      %v757 = vpop.f32.mrf.mxu0
      %v758 = vadd.f32 0.0, %v757
      %v759 = vpop.f32.mrf.mxu0
      %760 = vdwg.mxu0
      %761 = vrot.lane.b32.xlu0 %v156, 48
      %v762 = vpop.permute.xlu0 %761
      %v764 = vsel %vm281, %v737, 0
      %v767 = vand.u32 %v762, %v288
      %769 = vmatpush.bf16.msra.mxu0 0
      %770 = vmatpush.bf16.msra.mxu0 0
      %771 = vmatpush.bf16.msra.mxu0 0
      %772 = vmatpush.bf16.msra.mxu0 0
      %773 = vmatpush.bf16.msra.mxu0 0
      %774 = vmatpush.bf16.msra.mxu0 0
      %775 = vmatpush.bf16.msra.mxu0 0
      %776 = vmatpush.bf16.msra.mxu0 %v767
      %777 = vmatmul.bf16.gmra.mxu0 %v764
      %v778 = vpop.f32.mrf.mxu0
      %v779 = vadd.f32 0.0, %v778
      %v780 = vpop.f32.mrf.mxu0
      %781 = vdwg.mxu0
      %782 = vrot.lane.b32.xlu0 %v180, 48
      %v783 = vpop.permute.xlu0 %782
      %v785 = vsel %vm281, %v738, 0
      %v788 = vand.u32 %v783, %v288
      %790 = vmatpush.bf16.msra.mxu0 0
      %791 = vmatpush.bf16.msra.mxu0 0
      %792 = vmatpush.bf16.msra.mxu0 0
      %793 = vmatpush.bf16.msra.mxu0 0
      %794 = vmatpush.bf16.msra.mxu0 0
      %795 = vmatpush.bf16.msra.mxu0 0
      %796 = vmatpush.bf16.msra.mxu0 0
      %797 = vmatpush.bf16.msra.mxu0 %v788
      %798 = vmatmul.bf16.gmra.mxu0 %v785
      %v799 = vpop.f32.mrf.mxu0
      %v800 = vadd.f32 0.0, %v799
      %v801 = vpop.f32.mrf.mxu0
      %802 = vdwg.mxu0
      %803 = vrot.lane.b32.xlu0 %v204, 48
      %v804 = vpop.permute.xlu0 %803
      %v806 = vsel %vm281, %v739, 0
      %v809 = vand.u32 %v804, %v288
      %811 = vmatpush.bf16.msra.mxu0 0
      %812 = vmatpush.bf16.msra.mxu0 0
      %813 = vmatpush.bf16.msra.mxu0 0
      %814 = vmatpush.bf16.msra.mxu0 0
      %815 = vmatpush.bf16.msra.mxu0 0
      %816 = vmatpush.bf16.msra.mxu0 0
      %817 = vmatpush.bf16.msra.mxu0 0
      %818 = vmatpush.bf16.msra.mxu0 %v809
      %819 = vmatmul.bf16.gmra.mxu0 %v806
      %v820 = vpop.f32.mrf.mxu0
      %v821 = vadd.f32 0.0, %v820
      %v822 = vpop.f32.mrf.mxu0
      %823 = vdwg.mxu0
      %824 = vrot.lane.b32.xlu0 %v131, 104
      %v825 = vpop.permute.xlu0 %824
      %826 = vrot.lane.b32.xlu0 %v131, 72
      %v827 = vpop.permute.xlu0 %826
      %v829 = vsel %vm134, %v825, 0
      %v832 = vsel %vm134, %v827, 0
      %834 = vmatpush.bf16.xpose.msra.mxu0 0
      %835 = vmatpush.bf16.xpose.msra.mxu0 0
      %836 = vmatpush.bf16.xpose.msra.mxu0 0
      %837 = vmatpush.bf16.xpose.msra.mxu0 0
      %838 = vmatpush.bf16.xpose.msra.mxu0 0
      %839 = vmatpush.bf16.xpose.msra.mxu0 0
      %840 = vmatpush.bf16.xpose.msra.mxu0 0
      %841 = vmatpush.bf16.xpose.msra.mxu0 %v832
      %842 = vmatmul.bf16.gmra.mxu0 %v829
      %v843 = vpop.f32.mrf.mxu0
      %v844 = vadd.f32 0.0, %v843
      %v845 = vpop.f32.mrf.mxu0
      %846 = vdwg.mxu0
      %847 = vrot.lane.b32.xlu0 %v156, 104
      %v848 = vpop.permute.xlu0 %847
      %849 = vrot.lane.b32.xlu0 %v156, 72
      %v850 = vpop.permute.xlu0 %849
      %v852 = vsel %vm134, %v848, 0
      %v855 = vsel %vm134, %v850, 0
      %857 = vmatpush.bf16.xpose.msra.mxu0 0
      %858 = vmatpush.bf16.xpose.msra.mxu0 0
      %859 = vmatpush.bf16.xpose.msra.mxu0 0
      %860 = vmatpush.bf16.xpose.msra.mxu0 0
      %861 = vmatpush.bf16.xpose.msra.mxu0 0
      %862 = vmatpush.bf16.xpose.msra.mxu0 0
      %863 = vmatpush.bf16.xpose.msra.mxu0 0
      %864 = vmatpush.bf16.xpose.msra.mxu0 %v855
      %865 = vmatmul.bf16.gmra.mxu0 %v852
      %v866 = vpop.f32.mrf.mxu0
      %v867 = vadd.f32 0.0, %v866
      %v868 = vpop.f32.mrf.mxu0
      %869 = vdwg.mxu0
      %870 = vrot.lane.b32.xlu0 %v180, 104
      %v871 = vpop.permute.xlu0 %870
      %872 = vrot.lane.b32.xlu0 %v180, 72
      %v873 = vpop.permute.xlu0 %872
      %v875 = vsel %vm134, %v871, 0
      %v878 = vsel %vm134, %v873, 0
      %880 = vmatpush.bf16.xpose.msra.mxu0 0
      %881 = vmatpush.bf16.xpose.msra.mxu0 0
      %882 = vmatpush.bf16.xpose.msra.mxu0 0
      %883 = vmatpush.bf16.xpose.msra.mxu0 0
      %884 = vmatpush.bf16.xpose.msra.mxu0 0
      %885 = vmatpush.bf16.xpose.msra.mxu0 0
      %886 = vmatpush.bf16.xpose.msra.mxu0 0
      %887 = vmatpush.bf16.xpose.msra.mxu0 %v878
      %888 = vmatmul.bf16.gmra.mxu0 %v875
      %v889 = vpop.f32.mrf.mxu0
      %v890 = vadd.f32 0.0, %v889
      %v891 = vpop.f32.mrf.mxu0
      %892 = vdwg.mxu0
      %893 = vrot.lane.b32.xlu0 %v204, 104
      %v894 = vpop.permute.xlu0 %893
      %895 = vrot.lane.b32.xlu0 %v204, 72
      %v896 = vpop.permute.xlu0 %895
      %v898 = vsel %vm134, %v894, 0
      %v901 = vsel %vm134, %v896, 0
      %903 = vmatpush.bf16.xpose.msra.mxu0 0
      %904 = vmatpush.bf16.xpose.msra.mxu0 0
      %905 = vmatpush.bf16.xpose.msra.mxu0 0
      %906 = vmatpush.bf16.xpose.msra.mxu0 0
      %907 = vmatpush.bf16.xpose.msra.mxu0 0
      %908 = vmatpush.bf16.xpose.msra.mxu0 0
      %909 = vmatpush.bf16.xpose.msra.mxu0 0
      %910 = vmatpush.bf16.xpose.msra.mxu0 %v901
      %911 = vmatmul.bf16.gmra.mxu0 %v898
      %v912 = vpop.f32.mrf.mxu0
      %v913 = vadd.f32 0.0, %v912
      %v914 = vpop.f32.mrf.mxu0
      %915 = vdwg.mxu0
      %v916 = vmul.f32 %v844, 0.35355338
      %v917 = vmul.f32 %v867, 0.35355338
      %v918 = vmul.f32 %v890, 0.35355338
      %v919 = vmul.f32 %v913, 0.35355338
      %v920 = vsel %vm230, %v916, -inf
      %921 = vmax.xlane.f32.xlu0 %v920
      %v922 = vpop.xlane.xlu0 %921
      %v923 = vsel %vm230, %v917, -inf
      %924 = vmax.xlane.f32.xlu0 %v923
      %v925 = vpop.xlane.xlu0 %924
      %v926 = vsel %vm230, %v918, -inf
      %927 = vmax.xlane.f32.xlu0 %v926
      %v928 = vpop.xlane.xlu0 %927
      %v929 = vsel %vm230, %v919, -inf
      %930 = vmax.xlane.f32.xlu0 %v929
      %v931 = vpop.xlane.xlu0 %930
      %v932 = vsub.f32 %v916, %v922
      %v933 = vsub.f32 %v917, %v925
      %v934 = vsub.f32 %v918, %v928
      %v935 = vsub.f32 %v919, %v931
      %v936 = vmul.f32 %v932, 1.442695
      %v937 = vpow.pop %v936
      %v938 = vmul.f32 %v933, 1.442695
      %v939 = vpow.pop %v938
      %v940 = vmul.f32 %v934, 1.442695
      %v941 = vpow.pop %v940
      %v942 = vmul.f32 %v935, 1.442695
      %v943 = vpow.pop %v942
      %v944 = vsel %vm230, %v937, 0.0
      %945 = vadd.xlane.f32.xlu0 %v944
      %v946 = vpop.xlane.xlu0 %945
      %v947 = vsel %vm230, %v939, 0.0
      %948 = vadd.xlane.f32.xlu0 %v947
      %v949 = vpop.xlane.xlu0 %948
      %v950 = vsel %vm230, %v941, 0.0
      %951 = vadd.xlane.f32.xlu0 %v950
      %v952 = vpop.xlane.xlu0 %951
      %v953 = vsel %vm230, %v943, 0.0
      %954 = vadd.xlane.f32.xlu0 %v953
      %v955 = vpop.xlane.xlu0 %954
      %v956 = vrcp.pop %v946
      %v957 = vrcp.pop %v949
      %v958 = vrcp.pop %v952
      %v959 = vrcp.pop %v955
      %v960 = vmul.f32 %v937, %v956
      %v961 = vmul.f32 %v939, %v957
      %v962 = vmul.f32 %v941, %v958
      %v963 = vmul.f32 %v943, %v959
      %v964 = vpack.c.bf16 %v960, %v960
      %v965 = vpack.c.bf16 %v961, %v961
      %v966 = vpack.c.bf16 %v962, %v962
      %v967 = vpack.c.bf16 %v963, %v963
      %968 = vrot.lane.b32.xlu0 %v131, 40
      %v969 = vpop.permute.xlu0 %968
      %v971 = vsel %vm281, %v964, 0
      %v974 = vand.u32 %v969, %v288
      %976 = vmatpush.bf16.msra.mxu0 0
      %977 = vmatpush.bf16.msra.mxu0 0
      %978 = vmatpush.bf16.msra.mxu0 0
      %979 = vmatpush.bf16.msra.mxu0 0
      %980 = vmatpush.bf16.msra.mxu0 0
      %981 = vmatpush.bf16.msra.mxu0 0
      %982 = vmatpush.bf16.msra.mxu0 0
      %983 = vmatpush.bf16.msra.mxu0 %v974
      %984 = vmatmul.bf16.gmra.mxu0 %v971
      %v985 = vpop.f32.mrf.mxu0
      %v986 = vadd.f32 0.0, %v985
      %v987 = vpop.f32.mrf.mxu0
      %988 = vdwg.mxu0
      %989 = vrot.lane.b32.xlu0 %v156, 40
      %v990 = vpop.permute.xlu0 %989
      %v992 = vsel %vm281, %v965, 0
      %v995 = vand.u32 %v990, %v288
      %997 = vmatpush.bf16.msra.mxu0 0
      %998 = vmatpush.bf16.msra.mxu0 0
      %999 = vmatpush.bf16.msra.mxu0 0
      %1000 = vmatpush.bf16.msra.mxu0 0
      %1001 = vmatpush.bf16.msra.mxu0 0
      %1002 = vmatpush.bf16.msra.mxu0 0
      %1003 = vmatpush.bf16.msra.mxu0 0
      %1004 = vmatpush.bf16.msra.mxu0 %v995
      %1005 = vmatmul.bf16.gmra.mxu0 %v992
      %v1006 = vpop.f32.mrf.mxu0
      %v1007 = vadd.f32 0.0, %v1006
      %v1008 = vpop.f32.mrf.mxu0
      %1009 = vdwg.mxu0
      %1010 = vrot.lane.b32.xlu0 %v180, 40
      %v1011 = vpop.permute.xlu0 %1010
      %v1013 = vsel %vm281, %v966, 0
      %v1016 = vand.u32 %v1011, %v288
      %1018 = vmatpush.bf16.msra.mxu0 0
      %1019 = vmatpush.bf16.msra.mxu0 0
      %1020 = vmatpush.bf16.msra.mxu0 0
      %1021 = vmatpush.bf16.msra.mxu0 0
      %1022 = vmatpush.bf16.msra.mxu0 0
      %1023 = vmatpush.bf16.msra.mxu0 0
      %1024 = vmatpush.bf16.msra.mxu0 0
      %1025 = vmatpush.bf16.msra.mxu0 %v1016
      %1026 = vmatmul.bf16.gmra.mxu0 %v1013
      %v1027 = vpop.f32.mrf.mxu0
      %v1028 = vadd.f32 0.0, %v1027
      %v1029 = vpop.f32.mrf.mxu0
      %1030 = vdwg.mxu0
      %1031 = vrot.lane.b32.xlu0 %v204, 40
      %v1032 = vpop.permute.xlu0 %1031
      %v1034 = vsel %vm281, %v967, 0
      %v1037 = vand.u32 %v1032, %v288
      %1039 = vmatpush.bf16.msra.mxu0 0
      %1040 = vmatpush.bf16.msra.mxu0 0
      %1041 = vmatpush.bf16.msra.mxu0 0
      %1042 = vmatpush.bf16.msra.mxu0 0
      %1043 = vmatpush.bf16.msra.mxu0 0
      %1044 = vmatpush.bf16.msra.mxu0 0
      %1045 = vmatpush.bf16.msra.mxu0 0
      %1046 = vmatpush.bf16.msra.mxu0 %v1037
      %1047 = vmatmul.bf16.gmra.mxu0 %v1034
      %v1048 = vpop.f32.mrf.mxu0
      %v1049 = vadd.f32 0.0, %v1048
      %v1050 = vpop.f32.mrf.mxu0
      %1051 = vdwg.mxu0
      %1056 = vrot.lane.b32.xlu0 %v530, 8
      %v1057 = vpop.permute.xlu0 %1056
      %1058 = vrot.lane.b32.xlu0 %v551, 8
      %v1059 = vpop.permute.xlu0 %1058
      %1060 = vrot.lane.b32.xlu0 %v572, 8
      %v1061 = vpop.permute.xlu0 %1060
      %1062 = vrot.lane.b32.xlu0 %v593, 8
      %v1063 = vpop.permute.xlu0 %1062
      %1072 = vrot.lane.b32.xlu0 %v758, 16
      %v1073 = vpop.permute.xlu0 %1072
      %1074 = vrot.lane.b32.xlu0 %v779, 16
      %v1075 = vpop.permute.xlu0 %1074
      %1076 = vrot.lane.b32.xlu0 %v800, 16
      %v1077 = vpop.permute.xlu0 %1076
      %1078 = vrot.lane.b32.xlu0 %v821, 16
      %v1079 = vpop.permute.xlu0 %1078
      %1088 = vrot.lane.b32.xlu0 %v986, 24
      %v1089 = vpop.permute.xlu0 %1088
      %1090 = vrot.lane.b32.xlu0 %v1007, 24
      %v1091 = vpop.permute.xlu0 %1090
      %1092 = vrot.lane.b32.xlu0 %v1028, 24
      %v1093 = vpop.permute.xlu0 %1092
      %1094 = vrot.lane.b32.xlu0 %v1049, 24
      %v1095 = vpop.permute.xlu0 %1094
      %v1100 = vsel %vm134, %v302, %v1057
      %v1101 = vsel %vm134, %v323, %v1059
      %v1102 = vsel %vm134, %v344, %v1061
      %v1103 = vsel %vm134, %v365, %v1063
      %vm1104 = vcmask 130048
      %v1105 = vsel %vm1104, %v1100, %v1073
      %v1106 = vsel %vm1104, %v1101, %v1075
      %v1107 = vsel %vm1104, %v1102, %v1077
      %v1108 = vsel %vm1104, %v1103, %v1079
      %vm1109 = vcmask 195584
      %v1110 = vsel %vm1109, %v1105, %v1089
      %v1111 = vsel %vm1109, %v1106, %v1091
      %v1112 = vsel %vm1109, %v1107, %v1093
      %v1113 = vsel %vm1109, %v1108, %v1095
      %vm1114 = vcmask 258048
      %1115 = vst.msk [vmem:[%s118] sm:$0x1f] %vm1114, %v1110
      %1116 = vst.msk [vmem:[%s118 + $0x8] sm:$0x1f] %vm1114, %v1111
      %1117 = vst.msk [vmem:[%s118 + $0x10] sm:$0x1f] %vm1114, %v1112
      %1118 = vst.msk [vmem:[%s118 + $0x18] sm:$0x1f] %vm1114, %v1113
      %s1119 = smul.u32 4, %s12
      %p1120 = scmp.lt.s32.totalorder %s1119, 15
      %s1121 = scalar_select %p1120, %s1119, 15
      %s1122 = smul.addr %s1121, 8
      %s1123 = scalar_lea.vmem %s1, %s1122
      // Predicated region
      $region25: #{_lambda_.37} parent=23 // pred_check
        %p1124 = pneg %p56
      $region26: #{_lambda_.37} parent=23 // pred_check_branch
        %1126 = sbr.rel (%p1124) target = $region28
      $region27: #{_lambda_.37} parent=23 // pred_region
        %s1127 = smul.u32 4, %s12
      $region28: #{_lambda_.37} parent=23 // pred_fallthru
        _
    $region24: #{_lambda_.37} parent=5 // pred_fallthru
      _
    %p1128 = scmp.le.s32.totalorder 2, %s7
    // Predicated region
    $region29: #{_lambda_.37} parent=5 // pred_check
      %p1129 = pneg %p1128
    $region30: #{_lambda_.37} parent=5 // pred_check_branch
      %1131 = sbr.rel (%p1129) target = $region32
    $region31: #{_lambda_.37} parent=5 // pred_region
      %s1132 = ssub.s32 %s7, 2
      // Predicated region
      $region33: #{_lambda_.37} parent=31 // pred_check
        %p1133 = pneg %p62
      $region34: #{_lambda_.37} parent=31 // pred_check_branch
        %1135 = sbr.rel (%p1133) target = $region36
      $region35: #{_lambda_.37} parent=31 // pred_region
        %s1136 = smul.u32 4, %s13
        %p1137 = scmp.lt.s32.totalorder %s1136, 15
        %s1138 = scalar_select %p1137, %s1136, 15
        %s1139 = smul.addr %s1138, 8
        %s1140 = scalar_lea.vmem %s1, %s1139
      $region36: #{_lambda_.37} parent=31 // pred_fallthru
        _
    $region32: #{_lambda_.37} parent=5 // pred_fallthru
      _
  $region6: #{_lambda_.37} parent=0 // loop_footer
    %s11 = sadd.s32 1, %s7
  $region7: #{_lambda_.37} parent=0 // loop_footer_branch
    %6 = sbr.rel target = $region3
  $region8: #{_lambda_.37} parent=0 // loop_exit
    _

// kernel: _lambda_.35
$region0: #{_lambda_.35}
  #allocation0 [shape = 'u32[]', space=smem, size = 0x4, offset = 0x4, fixed_abs, tag = 'smem constant byte address 0x4 - core index']
  #allocation1 [shape = 'u32[72,128]{1,0:T(1,128)}', space=vmem, size = 0x9000, scoped, tag = 'internal scratch']
  %s0 = inlined_call_operand.vmem [shape: f32[80,32], index: 0, kind: input, shape index: {}]
  %s1 = inlined_call_operand.hbm [shape: f32[1,32], index: 1, kind: input, shape index: {}]
  %s2 = inlined_call_operand.hbm [shape: f32[1,32], index: 2, kind: input, shape index: {}]
  %s3 = inlined_call_operand.vmem [shape: f32[32,8], index: 3, kind: input, shape index: {}]
  %s4 = inlined_call_operand.hbm [shape: f32[1,8], index: 4, kind: input, shape index: {}]
  %s5 = inlined_call_operand.vmem [shape: f32[8,32], index: 5, kind: input, shape index: {}]
  %s6 = inlined_call_operand.hbm [shape: f32[1,32], index: 6, kind: input, shape index: {}]
  %s7 = inlined_call_operand.vmem [shape: f32[80,32], index: 7, kind: output, shape index: {}]
  %s8 = sld [smem:[#allocation0]]
  $region54: #{_lambda_.35} parent=0
    _
  %s10 = ssub.s32 1, %s8
  %s11 = scalar_select 0, %s10, %s8
  $region1: #{_lambda_.35} parent=0
    #allocation2 [shape = 'u8[512]{0}', space=vmem, size = 0x400, scoped, tag = 'input window, operand 1, single buffered']
    #allocation3 [shape = 's32[1]{0}', space=sflag, size = 0x4, scoped, tag = 'scoped memory for _lambda_.35']
    #allocation4 [shape = 'u8[512]{0}', space=vmem, size = 0x400, scoped, tag = 'input window, operand 2, single buffered']
    #allocation5 [shape = 's32[1]{0}', space=sflag, size = 0x4, scoped, tag = 'scoped memory for _lambda_.35']
    #allocation6 [shape = 'u8[512]{0}', space=vmem, size = 0x400, scoped, tag = 'input window, operand 4, single buffered']
    #allocation7 [shape = 'u8[512]{0}', space=vmem, size = 0x400, scoped, tag = 'input window, operand 6, single buffered']
    #allocation8 [shape = 's32[1]{0}', space=sflag, size = 0x4, scoped, tag = 'scoped memory for _lambda_.35']
    %12 = vsyncpa [#allocation3], 0
    %13 = vsyncpa [#allocation5], 0
    %14 = vsyncpa [#allocation8], 0
    // Predicated region
    $region2: #{_lambda_.35} parent=1 // pred_check
      _
    $region3: #{_lambda_.35} parent=1 // pred_check_branch
      %16 = sbr.rel (0) target = $region5
    $region4: #{_lambda_.35} parent=1 // pred_region
      _
    $region5: #{_lambda_.35} parent=1 // pred_fallthru
      _
    // Predicated region
    $region6: #{_lambda_.35} parent=1 // pred_check
      _
    $region7: #{_lambda_.35} parent=1 // pred_check_branch
      %18 = sbr.rel (0) target = $region9
    $region8: #{_lambda_.35} parent=1 // pred_region
      %20 = vsyncadd [#allocation3], 0
      %s22 = sshll.u32 %s1, 4
      %s23 = int_to_ptr.hbm [resolvable:$true] %s22
      %s24 = sshll.u32 [#allocation2], 4
      %s25 = int_to_ptr.vmem [resolvable:$true] %s24
      %27 = dma.hbm_to_vmem [thread:$0]  %s23, 16, %s25, [#allocation3]
    $region9: #{_lambda_.35} parent=1 // pred_fallthru
      _
    // Predicated region
    $region10: #{_lambda_.35} parent=1 // pred_check
      _
    $region11: #{_lambda_.35} parent=1 // pred_check_branch
      %29 = sbr.rel (0) target = $region13
    $region12: #{_lambda_.35} parent=1 // pred_region
      %31 = vsyncadd [#allocation5], 0
      %s33 = sshll.u32 %s2, 4
      %s34 = int_to_ptr.hbm [resolvable:$true] %s33
      %s35 = sshll.u32 [#allocation4], 4
      %s36 = int_to_ptr.vmem [resolvable:$true] %s35
      %38 = dma.hbm_to_vmem [thread:$0]  %s34, 16, %s36, [#allocation5]
    $region13: #{_lambda_.35} parent=1 // pred_fallthru
      _
    // Predicated region
    $region14: #{_lambda_.35} parent=1 // pred_check
      _
    $region15: #{_lambda_.35} parent=1 // pred_check_branch
      %40 = sbr.rel (0) target = $region17
    $region16: #{_lambda_.35} parent=1 // pred_region
      _
    $region17: #{_lambda_.35} parent=1 // pred_fallthru
      _
    // Predicated region
    $region18: #{_lambda_.35} parent=1 // pred_check
      _
    $region19: #{_lambda_.35} parent=1 // pred_check_branch
      %42 = sbr.rel (0) target = $region21
    $region20: #{_lambda_.35} parent=1 // pred_region
      %44 = vsyncadd [#allocation5], 0
      %s46 = sshll.u32 %s4, 4
      %s47 = int_to_ptr.hbm [resolvable:$true] %s46
      %s48 = sshll.u32 [#allocation6], 4
      %s49 = int_to_ptr.vmem [resolvable:$true] %s48
      %51 = dma.hbm_to_vmem [thread:$0]  %s47, 16, %s49, [#allocation5]
    $region21: #{_lambda_.35} parent=1 // pred_fallthru
      _
    // Predicated region
    $region22: #{_lambda_.35} parent=1 // pred_check
      _
    $region23: #{_lambda_.35} parent=1 // pred_check_branch
      %53 = sbr.rel (0) target = $region25
    $region24: #{_lambda_.35} parent=1 // pred_region
      _
    $region25: #{_lambda_.35} parent=1 // pred_fallthru
      _
    // Predicated region
    $region26: #{_lambda_.35} parent=1 // pred_check
      _
    $region27: #{_lambda_.35} parent=1 // pred_check_branch
      %55 = sbr.rel (0) target = $region29
    $region28: #{_lambda_.35} parent=1 // pred_region
      %57 = vsyncadd [#allocation8], 0
      %s59 = sshll.u32 %s6, 4
      %s60 = int_to_ptr.hbm [resolvable:$true] %s59
      %s61 = sshll.u32 [#allocation7], 4
      %s62 = int_to_ptr.vmem [resolvable:$true] %s61
      %64 = dma.hbm_to_vmem [thread:$0]  %s60, 16, %s62, [#allocation8]
    $region29: #{_lambda_.35} parent=1 // pred_fallthru
      _
    // Predicated region
    $region30: #{_lambda_.35} parent=1 // pred_check
      _
    $region31: #{_lambda_.35} parent=1 // pred_check_branch
      %66 = sbr.rel (0) target = $region33
    $region32: #{_lambda_.35} parent=1 // pred_region
      %68 = dma.done [#allocation3], 16
    $region33: #{_lambda_.35} parent=1 // pred_fallthru
      _
    // Predicated region
    $region34: #{_lambda_.35} parent=1 // pred_check
      _
    $region35: #{_lambda_.35} parent=1 // pred_check_branch
      %70 = sbr.rel (0) target = $region37
    $region36: #{_lambda_.35} parent=1 // pred_region
      %72 = dma.done [#allocation5], 16
    $region37: #{_lambda_.35} parent=1 // pred_fallthru
      _
    // Predicated region
    $region38: #{_lambda_.35} parent=1 // pred_check
      _
    $region39: #{_lambda_.35} parent=1 // pred_check_branch
      %74 = sbr.rel (0) target = $region41
    $region40: #{_lambda_.35} parent=1 // pred_region
      %76 = dma.done [#allocation5], 16
    $region41: #{_lambda_.35} parent=1 // pred_fallthru
      _
    // Predicated region
    $region42: #{_lambda_.35} parent=1 // pred_check
      _
    $region43: #{_lambda_.35} parent=1 // pred_check_branch
      %78 = sbr.rel (0) target = $region45
    $region44: #{_lambda_.35} parent=1 // pred_region
      %80 = dma.done [#allocation8], 16
    $region45: #{_lambda_.35} parent=1 // pred_fallthru
      _
    %v82 = vld [vmem:[%s0] sm:$0xff]
    %v83 = vld [vmem:[%s0 + $0x8] sm:$0xff]
    %v84 = vld [vmem:[%s0 + $0x10] sm:$0xff]
    %v85 = vld [vmem:[%s0 + $0x18] sm:$0xff]
    %v86 = vld [vmem:[%s0 + $0x20] sm:$0xff]
    %v87 = vld [vmem:[%s0 + $0x28] sm:$0xff]
    %v88 = vld [vmem:[%s0 + $0x30] sm:$0xff]
    %v89 = vld [vmem:[%s0 + $0x38] sm:$0xff]
    %v90 = vld [vmem:[%s0 + $0x40] sm:$0xff]
    %v91 = vld [vmem:[%s0 + $0x48] sm:$0xff]
    %v92 = vld [vmem:[#allocation2] sm:$0x1]
    %v93 = vld [vmem:[#allocation4] sm:$0x1]
    %vm94 = vcmask 261120
    %v95 = vsel %vm94, %v82, 0.0
    %96 = vadd.xlane.f32.xlu0 %v95
    %v97 = vpop.xlane.xlu0 %96
    %v98 = vsel %vm94, %v83, 0.0
    %99 = vadd.xlane.f32.xlu0 %v98
    %v100 = vpop.xlane.xlu0 %99
    %v101 = vsel %vm94, %v84, 0.0
    %102 = vadd.xlane.f32.xlu0 %v101
    %v103 = vpop.xlane.xlu0 %102
    %v104 = vsel %vm94, %v85, 0.0
    %105 = vadd.xlane.f32.xlu0 %v104
    %v106 = vpop.xlane.xlu0 %105
    %v107 = vsel %vm94, %v86, 0.0
    %108 = vadd.xlane.f32.xlu0 %v107
    %v109 = vpop.xlane.xlu0 %108
    %v110 = vsel %vm94, %v87, 0.0
    %111 = vadd.xlane.f32.xlu0 %v110
    %v112 = vpop.xlane.xlu0 %111
    %v113 = vsel %vm94, %v88, 0.0
    %114 = vadd.xlane.f32.xlu0 %v113
    %v115 = vpop.xlane.xlu0 %114
    %v116 = vsel %vm94, %v89, 0.0
    %117 = vadd.xlane.f32.xlu0 %v116
    %v118 = vpop.xlane.xlu0 %117
    %v119 = vsel %vm94, %v90, 0.0
    %120 = vadd.xlane.f32.xlu0 %v119
    %v121 = vpop.xlane.xlu0 %120
    %v122 = vsel %vm94, %v91, 0.0
    %123 = vadd.xlane.f32.xlu0 %v122
    %v124 = vpop.xlane.xlu0 %123
    %v125 = vrcp.pop 32.0
    %v126 = vmul.f32 32.0, %v125
    %v127 = vsub.f32 1.0, %v126
    %v128 = vmul.f32 %v125, %v127
    %v129 = vadd.f32 %v125, %v128
    %vm130 = vweird.f32 %v125
    %v131 = vsel %vm130, %v125, %v129
    %v132 = vmul.f32 %v97, %v131
    %v133 = vmul.f32 %v100, %v131
    %v134 = vmul.f32 %v103, %v131
    %v135 = vmul.f32 %v106, %v131
    %v136 = vmul.f32 %v109, %v131
    %v137 = vmul.f32 %v112, %v131
    %v138 = vmul.f32 %v115, %v131
    %v139 = vmul.f32 %v118, %v131
    %v140 = vmul.f32 %v121, %v131
    %v141 = vmul.f32 %v124, %v131
    %v142 = vsub.f32 %v82, %v132
    %v143 = vsub.f32 %v83, %v133
    %v144 = vsub.f32 %v84, %v134
    %v145 = vsub.f32 %v85, %v135
    %v146 = vsub.f32 %v86, %v136
    %v147 = vsub.f32 %v87, %v137
    %v148 = vsub.f32 %v88, %v138
    %v149 = vsub.f32 %v89, %v139
    %v150 = vsub.f32 %v90, %v140
    %v151 = vsub.f32 %v91, %v141
    %v152 = vmul.f32 %v142, %v142
    %v153 = vmul.f32 %v143, %v143
    %v154 = vmul.f32 %v144, %v144
    %v155 = vmul.f32 %v145, %v145
    %v156 = vmul.f32 %v146, %v146
    %v157 = vmul.f32 %v147, %v147
    %v158 = vmul.f32 %v148, %v148
    %v159 = vmul.f32 %v149, %v149
    %v160 = vmul.f32 %v150, %v150
    %v161 = vmul.f32 %v151, %v151
    %v162 = vsel %vm94, %v152, 0.0
    %163 = vadd.xlane.f32.xlu0 %v162
    %v164 = vpop.xlane.xlu0 %163
    %v165 = vsel %vm94, %v153, 0.0
    %166 = vadd.xlane.f32.xlu0 %v165
    %v167 = vpop.xlane.xlu0 %166
    %v168 = vsel %vm94, %v154, 0.0
    %169 = vadd.xlane.f32.xlu0 %v168
    %v170 = vpop.xlane.xlu0 %169
    %v171 = vsel %vm94, %v155, 0.0
    %172 = vadd.xlane.f32.xlu0 %v171
    %v173 = vpop.xlane.xlu0 %172
    %v174 = vsel %vm94, %v156, 0.0
    %175 = vadd.xlane.f32.xlu0 %v174
    %v176 = vpop.xlane.xlu0 %175
    %v177 = vsel %vm94, %v157, 0.0
    %178 = vadd.xlane.f32.xlu0 %v177
    %v179 = vpop.xlane.xlu0 %178
    %v180 = vsel %vm94, %v158, 0.0
    %181 = vadd.xlane.f32.xlu0 %v180
    %v182 = vpop.xlane.xlu0 %181
    %v183 = vsel %vm94, %v159, 0.0
    %184 = vadd.xlane.f32.xlu0 %v183
    %v185 = vpop.xlane.xlu0 %184
    %v186 = vsel %vm94, %v160, 0.0
    %187 = vadd.xlane.f32.xlu0 %v186
    %v188 = vpop.xlane.xlu0 %187
    %v189 = vsel %vm94, %v161, 0.0
    %190 = vadd.xlane.f32.xlu0 %v189
    %v191 = vpop.xlane.xlu0 %190
    %v192 = vmul.f32 %v164, %v131
    %v193 = vmul.f32 %v167, %v131
    %v194 = vmul.f32 %v170, %v131
    %v195 = vmul.f32 %v173, %v131
    %v196 = vmul.f32 %v176, %v131
    %v197 = vmul.f32 %v179, %v131
    %v198 = vmul.f32 %v182, %v131
    %v199 = vmul.f32 %v185, %v131
    %v200 = vmul.f32 %v188, %v131
    %v201 = vmul.f32 %v191, %v131
    %v202 = vadd.f32 %v192, 1e-05
    %v203 = vadd.f32 %v193, 1e-05
    %v204 = vadd.f32 %v194, 1e-05
    %v205 = vadd.f32 %v195, 1e-05
    %v206 = vadd.f32 %v196, 1e-05
    %v207 = vadd.f32 %v197, 1e-05
    %v208 = vadd.f32 %v198, 1e-05
    %v209 = vadd.f32 %v199, 1e-05
    %v210 = vadd.f32 %v200, 1e-05
    %v211 = vadd.f32 %v201, 1e-05
    %v212 = vrsqrt.pop %v202
    %v213 = vmul.f32 %v212, %v202
    %v214 = vmul.f32 %v213, %v212
    %v215 = vmul.f32 0.5, %v214
    %v216 = vsub.f32 1.5, %v215
    %v217 = vmul.f32 %v212, %v216
    %vm218 = vweird.f32 %v202
    %vm219 = vweird.f32 %v212
    %vm220 = vmor %vm218, %vm219
    %v221 = vsel %vm220, %v212, %v217
    %v222 = vrsqrt.pop %v203
    %v223 = vmul.f32 %v222, %v203
    %v224 = vmul.f32 %v223, %v222
    %v225 = vmul.f32 0.5, %v224
    %v226 = vsub.f32 1.5, %v225
    %v227 = vmul.f32 %v222, %v226
    %vm228 = vweird.f32 %v203
    %vm229 = vweird.f32 %v222
    %vm230 = vmor %vm228, %vm229
    %v231 = vsel %vm230, %v222, %v227
    %v232 = vrsqrt.pop %v204
    %v233 = vmul.f32 %v232, %v204
    %v234 = vmul.f32 %v233, %v232
    %v235 = vmul.f32 0.5, %v234
    %v236 = vsub.f32 1.5, %v235
    %v237 = vmul.f32 %v232, %v236
    %vm238 = vweird.f32 %v204
    %vm239 = vweird.f32 %v232
    %vm240 = vmor %vm238, %vm239
    %v241 = vsel %vm240, %v232, %v237
    %v242 = vrsqrt.pop %v205
    %v243 = vmul.f32 %v242, %v205
    %v244 = vmul.f32 %v243, %v242
    %v245 = vmul.f32 0.5, %v244
    %v246 = vsub.f32 1.5, %v245
    %v247 = vmul.f32 %v242, %v246
    %vm248 = vweird.f32 %v205
    %vm249 = vweird.f32 %v242
    %vm250 = vmor %vm248, %vm249
    %v251 = vsel %vm250, %v242, %v247
    %v252 = vrsqrt.pop %v206
    %v253 = vmul.f32 %v252, %v206
    %v254 = vmul.f32 %v253, %v252
    %v255 = vmul.f32 0.5, %v254
    %v256 = vsub.f32 1.5, %v255
    %v257 = vmul.f32 %v252, %v256
    %vm258 = vweird.f32 %v206
    %vm259 = vweird.f32 %v252
    %vm260 = vmor %vm258, %vm259
    %v261 = vsel %vm260, %v252, %v257
    %v262 = vrsqrt.pop %v207
    %v263 = vmul.f32 %v262, %v207
    %v264 = vmul.f32 %v263, %v262
    %v265 = vmul.f32 0.5, %v264
    %v266 = vsub.f32 1.5, %v265
    %v267 = vmul.f32 %v262, %v266
    %vm268 = vweird.f32 %v207
    %vm269 = vweird.f32 %v262
    %vm270 = vmor %vm268, %vm269
    %v271 = vsel %vm270, %v262, %v267
    %v272 = vrsqrt.pop %v208
    %v273 = vmul.f32 %v272, %v208
    %v274 = vmul.f32 %v273, %v272
    %v275 = vmul.f32 0.5, %v274
    %v276 = vsub.f32 1.5, %v275
    %v277 = vmul.f32 %v272, %v276
    %vm278 = vweird.f32 %v208
    %vm279 = vweird.f32 %v272
    %vm280 = vmor %vm278, %vm279
    %v281 = vsel %vm280, %v272, %v277
    %v282 = vrsqrt.pop %v209
    %v283 = vmul.f32 %v282, %v209
    %v284 = vmul.f32 %v283, %v282
    %v285 = vmul.f32 0.5, %v284
    %v286 = vsub.f32 1.5, %v285
    %v287 = vmul.f32 %v282, %v286
    %vm288 = vweird.f32 %v209
    %vm289 = vweird.f32 %v282
    %vm290 = vmor %vm288, %vm289
    %v291 = vsel %vm290, %v282, %v287
    %v292 = vrsqrt.pop %v210
    %v293 = vmul.f32 %v292, %v210
    %v294 = vmul.f32 %v293, %v292
    %v295 = vmul.f32 0.5, %v294
    %v296 = vsub.f32 1.5, %v295
    %v297 = vmul.f32 %v292, %v296
    %vm298 = vweird.f32 %v210
    %vm299 = vweird.f32 %v292
    %vm300 = vmor %vm298, %vm299
    %v301 = vsel %vm300, %v292, %v297
    %v302 = vrsqrt.pop %v211
    %v303 = vmul.f32 %v302, %v211
    %v304 = vmul.f32 %v303, %v302
    %v305 = vmul.f32 0.5, %v304
    %v306 = vsub.f32 1.5, %v305
    %v307 = vmul.f32 %v302, %v306
    %vm308 = vweird.f32 %v211
    %vm309 = vweird.f32 %v302
    %vm310 = vmor %vm308, %vm309
    %v311 = vsel %vm310, %v302, %v307
    %v312 = vmul.f32 %v142, %v221
    %v313 = vmul.f32 %v143, %v231
    %v314 = vmul.f32 %v144, %v241
    %v315 = vmul.f32 %v145, %v251
    %v316 = vmul.f32 %v146, %v261
    %v317 = vmul.f32 %v147, %v271
    %v318 = vmul.f32 %v148, %v281
    %v319 = vmul.f32 %v149, %v291
    %v320 = vmul.f32 %v150, %v301
    %v321 = vmul.f32 %v151, %v311
    %v323 = vperm.slane %v92, 0
    %v325 = vmul.f32 %v312, %v323
    %v326 = vmul.f32 %v313, %v323
    %v327 = vmul.f32 %v314, %v323
    %v328 = vmul.f32 %v315, %v323
    %v329 = vmul.f32 %v316, %v323
    %v330 = vmul.f32 %v317, %v323
    %v331 = vmul.f32 %v318, %v323
    %v332 = vmul.f32 %v319, %v323
    %v333 = vmul.f32 %v320, %v323
    %v334 = vmul.f32 %v321, %v323
    %v336 = vperm.slane %v93, 0
    %v338 = vadd.f32 %v325, %v336
    %v339 = vadd.f32 %v326, %v336
    %v340 = vadd.f32 %v327, %v336
    %v341 = vadd.f32 %v328, %v336
    %v342 = vadd.f32 %v329, %v336
    %v343 = vadd.f32 %v330, %v336
    %v344 = vadd.f32 %v331, %v336
    %v345 = vadd.f32 %v332, %v336
    %v346 = vadd.f32 %v333, %v336
    %v347 = vadd.f32 %v334, %v336
    %v348 = vld [vmem:[%s3] sm:$0xff]
    %v349 = vld [vmem:[%s3 + $0x8] sm:$0xff]
    %v350 = vld [vmem:[%s3 + $0x10] sm:$0xff]
    %v351 = vld [vmem:[%s3 + $0x18] sm:$0xff]
    %v352 = vpack.c.bf16 %v339, %v338
    %v353 = vpack.c.bf16 %v341, %v340
    %v354 = vpack.c.bf16 %v343, %v342
    %v355 = vpack.c.bf16 %v345, %v344
    %v356 = vpack.c.bf16 %v347, %v346
    %v357 = vpack.c.bf16 %v349, %v348
    %v358 = vpack.c.bf16 %v351, %v350
    %v359 = vld [vmem:[#allocation6] sm:$0x1]
    %v361 = vperm.slane %v359, 0
    %v364 = vsel %vm94, %v352, 0
    %v367 = vsel %vm94, %v353, 0
    %v370 = vsel %vm94, %v354, 0
    %v373 = vsel %vm94, %v355, 0
    %v376 = vsel %vm94, %v356, 0
    %378 = vmatpush.bf16.msra.mxu0 0
    %379 = vmatpush.bf16.msra.mxu0 0
    %380 = vmatpush.bf16.msra.mxu0 0
    %381 = vmatpush.bf16.msra.mxu0 0
    %382 = vmatpush.bf16.msra.mxu0 0
    %383 = vmatpush.bf16.msra.mxu0 0
    %384 = vmatpush.bf16.msra.mxu0 %v358
    %385 = vmatpush.bf16.msra.mxu0 %v357
    %386 = vmatmul.bf16.gmra.mxu0 %v364
    %v387 = vpop.f32.mrf.mxu0
    %v388 = vadd.f32 %v361, %v387
    %v389 = vpop.f32.mrf.mxu0
    %v390 = vadd.f32 %v361, %v389
    %391 = vmatmul.bf16.gmra.mxu0 %v367
    %v392 = vpop.f32.mrf.mxu0
    %v393 = vadd.f32 %v361, %v392
    %v394 = vpop.f32.mrf.mxu0
    %v395 = vadd.f32 %v361, %v394
    %396 = vmatmul.bf16.gmra.mxu0 %v370
    %v397 = vpop.f32.mrf.mxu0
    %v398 = vadd.f32 %v361, %v397
    %v399 = vpop.f32.mrf.mxu0
    %v400 = vadd.f32 %v361, %v399
    %401 = vmatmul.bf16.gmra.mxu0 %v373
    %v402 = vpop.f32.mrf.mxu0
    %v403 = vadd.f32 %v361, %v402
    %v404 = vpop.f32.mrf.mxu0
    %v405 = vadd.f32 %v361, %v404
    %406 = vmatmul.bf16.gmra.mxu0 %v376
    %v407 = vpop.f32.mrf.mxu0
    %v408 = vadd.f32 %v361, %v407
    %v409 = vpop.f32.mrf.mxu0
    %v410 = vadd.f32 %v361, %v409
    %411 = vdwg.mxu0
    %v412 = vmul.f32 %v388, 0.5
    %v413 = vmul.f32 %v390, 0.5
    %v414 = vmul.f32 %v393, 0.5
    %v415 = vmul.f32 %v395, 0.5
    %v416 = vmul.f32 %v398, 0.5
    %v417 = vmul.f32 %v400, 0.5
    %v418 = vmul.f32 %v403, 0.5
    %v419 = vmul.f32 %v405, 0.5
    %v420 = vmul.f32 %v408, 0.5
    %v421 = vmul.f32 %v410, 0.5
    %v422 = vmul.f32 %v388, 0.70710677
    %v423 = vmul.f32 %v390, 0.70710677
    %v424 = vmul.f32 %v393, 0.70710677
    %v425 = vmul.f32 %v395, 0.70710677
    %v426 = vmul.f32 %v398, 0.70710677
    %v427 = vmul.f32 %v400, 0.70710677
    %v428 = vmul.f32 %v403, 0.70710677
    %v429 = vmul.f32 %v405, 0.70710677
    %v430 = vmul.f32 %v408, 0.70710677
    %v431 = vmul.f32 %v410, 0.70710677
    %v432 = vmul.f32 %v422, %v422
    %v433 = vmin.f32 16.0, %v432
    %v434 = vmul.f32 %v433, 2.1237322e-06
    %v435 = vadd.f32 %v434, 0.00028619796
    %v436 = vmul.f32 %v433, %v435
    %v437 = vadd.f32 %v436, 0.0036580483
    %v438 = vmul.f32 %v433, %v437
    %v439 = vadd.f32 %v438, 0.05243302
    %v440 = vmul.f32 %v433, %v439
    %v441 = vadd.f32 %v440, 0.18741608
    %v442 = vmul.f32 %v433, %v441
    %v443 = vadd.f32 %v442, 1.1283791
    %v444 = vmul.f32 %v422, %v443
    %v445 = vmul.f32 %v433, 3.8918573e-05
    %v446 = vadd.f32 %v445, 0.001143296
    %v447 = vmul.f32 %v433, %v446
    %v448 = vadd.f32 %v447, 0.014752088
    %v449 = vmul.f32 %v433, %v448
    %v450 = vadd.f32 %v449, 0.112945676
    %v451 = vmul.f32 %v433, %v450
    %v452 = vadd.f32 %v451, 0.4994258
    %v453 = vmul.f32 %v433, %v452
    %v454 = vadd.f32 %v453, 1.0
    %v455 = vrcp.pop %v454
    %v456 = vmul.f32 %v454, %v455
    %v457 = vsub.f32 1.0, %v456
    %v458 = vmul.f32 %v455, %v457
    %v459 = vadd.f32 %v455, %v458
    %vm460 = vweird.f32 %v454
    %vm461 = vweird.f32 %v455
    %vm462 = vmor %vm460, %vm461
    %v463 = vsel %vm462, %v455, %v459
    %v464 = vand.u32 2147483647, %v454
    %vm465 = vcmp.eq.f32.partialorder %v464, 8.507059e+37
    %v466 = vand.u32 %v454, 2147483648
    %v467 = vor.u32 1.1754944e-38, %v466
    %v468 = vsel %vm465, %v467, %v463
    %v469 = vmul.f32 %v444, %v468
    %v470 = vmin.f32 %v469, 1.0
    %v471 = vmax.f32 %v470, -1.0
    %v472 = vmul.f32 %v423, %v423
    %v473 = vmin.f32 16.0, %v472
    %v474 = vmul.f32 %v473, 2.1237322e-06
    %v475 = vadd.f32 %v474, 0.00028619796
    %v476 = vmul.f32 %v473, %v475
    %v477 = vadd.f32 %v476, 0.0036580483
    %v478 = vmul.f32 %v473, %v477
    %v479 = vadd.f32 %v478, 0.05243302
    %v480 = vmul.f32 %v473, %v479
    %v481 = vadd.f32 %v480, 0.18741608
    %v482 = vmul.f32 %v473, %v481
    %v483 = vadd.f32 %v482, 1.1283791
    %v484 = vmul.f32 %v423, %v483
    %v485 = vmul.f32 %v473, 3.8918573e-05
    %v486 = vadd.f32 %v485, 0.001143296
    %v487 = vmul.f32 %v473, %v486
    %v488 = vadd.f32 %v487, 0.014752088
    %v489 = vmul.f32 %v473, %v488
    %v490 = vadd.f32 %v489, 0.112945676
    %v491 = vmul.f32 %v473, %v490
    %v492 = vadd.f32 %v491, 0.4994258
    %v493 = vmul.f32 %v473, %v492
    %v494 = vadd.f32 %v493, 1.0
    %v495 = vrcp.pop %v494
    %v496 = vmul.f32 %v494, %v495
    %v497 = vsub.f32 1.0, %v496
    %v498 = vmul.f32 %v495, %v497
    %v499 = vadd.f32 %v495, %v498
    %vm500 = vweird.f32 %v494
    %vm501 = vweird.f32 %v495
    %vm502 = vmor %vm500, %vm501
    %v503 = vsel %vm502, %v495, %v499
    %v504 = vand.u32 2147483647, %v494
    %vm505 = vcmp.eq.f32.partialorder %v504, 8.507059e+37
    %v506 = vand.u32 %v494, 2147483648
    %v507 = vor.u32 1.1754944e-38, %v506
    %v508 = vsel %vm505, %v507, %v503
    %v509 = vmul.f32 %v484, %v508
    %v510 = vmin.f32 %v509, 1.0
    %v511 = vmax.f32 %v510, -1.0
    %v512 = vmul.f32 %v424, %v424
    %v513 = vmin.f32 16.0, %v512
    %v514 = vmul.f32 %v513, 2.1237322e-06
    %v515 = vadd.f32 %v514, 0.00028619796
    %v516 = vmul.f32 %v513, %v515
    %v517 = vadd.f32 %v516, 0.0036580483
    %v518 = vmul.f32 %v513, %v517
    %v519 = vadd.f32 %v518, 0.05243302
    %v520 = vmul.f32 %v513, %v519
    %v521 = vadd.f32 %v520, 0.18741608
    %v522 = vmul.f32 %v513, %v521
    %v523 = vadd.f32 %v522, 1.1283791
    %v524 = vmul.f32 %v424, %v523
    %v525 = vmul.f32 %v513, 3.8918573e-05
    %v526 = vadd.f32 %v525, 0.001143296
    %v527 = vmul.f32 %v513, %v526
    %v528 = vadd.f32 %v527, 0.014752088
    %v529 = vmul.f32 %v513, %v528
    %v530 = vadd.f32 %v529, 0.112945676
    %v531 = vmul.f32 %v513, %v530
    %v532 = vadd.f32 %v531, 0.4994258
    %v533 = vmul.f32 %v513, %v532
    %v534 = vadd.f32 %v533, 1.0
    %v535 = vrcp.pop %v534
    %v536 = vmul.f32 %v534, %v535
    %v537 = vsub.f32 1.0, %v536
    %v538 = vmul.f32 %v535, %v537
    %v539 = vadd.f32 %v535, %v538
    %vm540 = vweird.f32 %v534
    %vm541 = vweird.f32 %v535
    %vm542 = vmor %vm540, %vm541
    %v543 = vsel %vm542, %v535, %v539
    %v544 = vand.u32 2147483647, %v534
    %vm545 = vcmp.eq.f32.partialorder %v544, 8.507059e+37
    %v546 = vand.u32 %v534, 2147483648
    %v547 = vor.u32 1.1754944e-38, %v546
    %v548 = vsel %vm545, %v547, %v543
    %v549 = vmul.f32 %v524, %v548
    %v550 = vmin.f32 %v549, 1.0
    %v551 = vmax.f32 %v550, -1.0
    %v552 = vmul.f32 %v425, %v425
    %v553 = vmin.f32 16.0, %v552
    %v554 = vmul.f32 %v553, 2.1237322e-06
    %v555 = vadd.f32 %v554, 0.00028619796
    %v556 = vmul.f32 %v553, %v555
    %v557 = vadd.f32 %v556, 0.0036580483
    %v558 = vmul.f32 %v553, %v557
    %v559 = vadd.f32 %v558, 0.05243302
    %v560 = vmul.f32 %v553, %v559
    %v561 = vadd.f32 %v560, 0.18741608
    %v562 = vmul.f32 %v553, %v561
    %v563 = vadd.f32 %v562, 1.1283791
    %v564 = vmul.f32 %v425, %v563
    %v565 = vmul.f32 %v553, 3.8918573e-05
    %v566 = vadd.f32 %v565, 0.001143296
    %v567 = vmul.f32 %v553, %v566
    %v568 = vadd.f32 %v567, 0.014752088
    %v569 = vmul.f32 %v553, %v568
    %v570 = vadd.f32 %v569, 0.112945676
    %v571 = vmul.f32 %v553, %v570
    %v572 = vadd.f32 %v571, 0.4994258
    %v573 = vmul.f32 %v553, %v572
    %v574 = vadd.f32 %v573, 1.0
    %v575 = vrcp.pop %v574
    %v576 = vmul.f32 %v574, %v575
    %v577 = vsub.f32 1.0, %v576
    %v578 = vmul.f32 %v575, %v577
    %v579 = vadd.f32 %v575, %v578
    %vm580 = vweird.f32 %v574
    %vm581 = vweird.f32 %v575
    %vm582 = vmor %vm580, %vm581
    %v583 = vsel %vm582, %v575, %v579
    %v584 = vand.u32 2147483647, %v574
    %vm585 = vcmp.eq.f32.partialorder %v584, 8.507059e+37
    %v586 = vand.u32 %v574, 2147483648
    %v587 = vor.u32 1.1754944e-38, %v586
    %v588 = vsel %vm585, %v587, %v583
    %v589 = vmul.f32 %v564, %v588
    %v590 = vmin.f32 %v589, 1.0
    %v591 = vmax.f32 %v590, -1.0
    %v592 = vmul.f32 %v426, %v426
    %v593 = vmin.f32 16.0, %v592
    %v594 = vmul.f32 %v593, 2.1237322e-06
    %v595 = vadd.f32 %v594, 0.00028619796
    %v596 = vmul.f32 %v593, %v595
    %v597 = vadd.f32 %v596, 0.0036580483
    %v598 = vmul.f32 %v593, %v597
    %v599 = vadd.f32 %v598, 0.05243302
    %v600 = vmul.f32 %v593, %v599
    %v601 = vadd.f32 %v600, 0.18741608
    %v602 = vmul.f32 %v593, %v601
    %v603 = vadd.f32 %v602, 1.1283791
    %v604 = vmul.f32 %v426, %v603
    %v605 = vmul.f32 %v593, 3.8918573e-05
    %v606 = vadd.f32 %v605, 0.001143296
    %v607 = vmul.f32 %v593, %v606
    %v608 = vadd.f32 %v607, 0.014752088
    %v609 = vmul.f32 %v593, %v608
    %v610 = vadd.f32 %v609, 0.112945676
    %v611 = vmul.f32 %v593, %v610
    %v612 = vadd.f32 %v611, 0.4994258
    %v613 = vmul.f32 %v593, %v612
    %v614 = vadd.f32 %v613, 1.0
    %v615 = vrcp.pop %v614
    %v616 = vmul.f32 %v614, %v615
    %v617 = vsub.f32 1.0, %v616
    %v618 = vmul.f32 %v615, %v617
    %v619 = vadd.f32 %v615, %v618
    %vm620 = vweird.f32 %v614
    %vm621 = vweird.f32 %v615
    %vm622 = vmor %vm620, %vm621
    %v623 = vsel %vm622, %v615, %v619
    %v624 = vand.u32 2147483647, %v614
    %vm625 = vcmp.eq.f32.partialorder %v624, 8.507059e+37
    %v626 = vand.u32 %v614, 2147483648
    %v627 = vor.u32 1.1754944e-38, %v626
    %v628 = vsel %vm625, %v627, %v623
    %v629 = vmul.f32 %v604, %v628
    %v630 = vmin.f32 %v629, 1.0
    %v631 = vmax.f32 %v630, -1.0
    %v632 = vmul.f32 %v427, %v427
    %v633 = vmin.f32 16.0, %v632
    %v634 = vmul.f32 %v633, 2.1237322e-06
    %v635 = vadd.f32 %v634, 0.00028619796
    %v636 = vmul.f32 %v633, %v635
    %v637 = vadd.f32 %v636, 0.0036580483
    %v638 = vmul.f32 %v633, %v637
    %v639 = vadd.f32 %v638, 0.05243302
    %v640 = vmul.f32 %v633, %v639
    %v641 = vadd.f32 %v640, 0.18741608
    %v642 = vmul.f32 %v633, %v641
    %v643 = vadd.f32 %v642, 1.1283791
    %v644 = vmul.f32 %v427, %v643
    %v645 = vmul.f32 %v633, 3.8918573e-05
    %v646 = vadd.f32 %v645, 0.001143296
    %v647 = vmul.f32 %v633, %v646
    %v648 = vadd.f32 %v647, 0.014752088
    %v649 = vmul.f32 %v633, %v648
    %v650 = vadd.f32 %v649, 0.112945676
    %v651 = vmul.f32 %v633, %v650
    %v652 = vadd.f32 %v651, 0.4994258
    %v653 = vmul.f32 %v633, %v652
    %v654 = vadd.f32 %v653, 1.0
    %v655 = vrcp.pop %v654
    %v656 = vmul.f32 %v654, %v655
    %v657 = vsub.f32 1.0, %v656
    %v658 = vmul.f32 %v655, %v657
    %v659 = vadd.f32 %v655, %v658
    %vm660 = vweird.f32 %v654
    %vm661 = vweird.f32 %v655
    %vm662 = vmor %vm660, %vm661
    %v663 = vsel %vm662, %v655, %v659
    %v664 = vand.u32 2147483647, %v654
    %vm665 = vcmp.eq.f32.partialorder %v664, 8.507059e+37
    %v666 = vand.u32 %v654, 2147483648
    %v667 = vor.u32 1.1754944e-38, %v666
    %v668 = vsel %vm665, %v667, %v663
    %v669 = vmul.f32 %v644, %v668
    %v670 = vmin.f32 %v669, 1.0
    %v671 = vmax.f32 %v670, -1.0
    %v672 = vmul.f32 %v428, %v428
    %v673 = vmin.f32 16.0, %v672
    %v674 = vmul.f32 %v673, 2.1237322e-06
    %v675 = vadd.f32 %v674, 0.00028619796
    %v676 = vmul.f32 %v673, %v675
    %v677 = vadd.f32 %v676, 0.0036580483
    %v678 = vmul.f32 %v673, %v677
    %v679 = vadd.f32 %v678, 0.05243302
    %v680 = vmul.f32 %v673, %v679
    %v681 = vadd.f32 %v680, 0.18741608
    %v682 = vmul.f32 %v673, %v681
    %v683 = vadd.f32 %v682, 1.1283791
    %v684 = vmul.f32 %v428, %v683
    %v685 = vmul.f32 %v673, 3.8918573e-05
    %v686 = vadd.f32 %v685, 0.001143296
    %v687 = vmul.f32 %v673, %v686
    %v688 = vadd.f32 %v687, 0.014752088
    %v689 = vmul.f32 %v673, %v688
    %v690 = vadd.f32 %v689, 0.112945676
    %v691 = vmul.f32 %v673, %v690
    %v692 = vadd.f32 %v691, 0.4994258
    %v693 = vmul.f32 %v673, %v692
    %v694 = vadd.f32 %v693, 1.0
    %v695 = vrcp.pop %v694
    %v696 = vmul.f32 %v694, %v695
    %v697 = vsub.f32 1.0, %v696
    %v698 = vmul.f32 %v695, %v697
    %v699 = vadd.f32 %v695, %v698
    %vm700 = vweird.f32 %v694
    %vm701 = vweird.f32 %v695
    %vm702 = vmor %vm700, %vm701
    %v703 = vsel %vm702, %v695, %v699
    %v704 = vand.u32 2147483647, %v694
    %vm705 = vcmp.eq.f32.partialorder %v704, 8.507059e+37
    %v706 = vand.u32 %v694, 2147483648
    %v707 = vor.u32 1.1754944e-38, %v706
    %v708 = vsel %vm705, %v707, %v703
    %v709 = vmul.f32 %v684, %v708
    %v710 = vmin.f32 %v709, 1.0
    %v711 = vmax.f32 %v710, -1.0
    %v712 = vmul.f32 %v429, %v429
    %v713 = vmin.f32 16.0, %v712
    %v714 = vmul.f32 %v713, 2.1237322e-06
    %v715 = vadd.f32 %v714, 0.00028619796
    %v716 = vmul.f32 %v713, %v715
    %v717 = vadd.f32 %v716, 0.0036580483
    %v718 = vmul.f32 %v713, %v717
    %v719 = vadd.f32 %v718, 0.05243302
    %v720 = vmul.f32 %v713, %v719
    %v721 = vadd.f32 %v720, 0.18741608
    %v722 = vmul.f32 %v713, %v721
    %v723 = vadd.f32 %v722, 1.1283791
    %v724 = vmul.f32 %v429, %v723
    %v725 = vmul.f32 %v713, 3.8918573e-05
    %v726 = vadd.f32 %v725, 0.001143296
    %v727 = vmul.f32 %v713, %v726
    %v728 = vadd.f32 %v727, 0.014752088
    %v729 = vmul.f32 %v713, %v728
    %v730 = vadd.f32 %v729, 0.112945676
    %v731 = vmul.f32 %v713, %v730
    %v732 = vadd.f32 %v731, 0.4994258
    %v733 = vmul.f32 %v713, %v732
    %v734 = vadd.f32 %v733, 1.0
    %v735 = vrcp.pop %v734
    %v736 = vmul.f32 %v734, %v735
    %v737 = vsub.f32 1.0, %v736
    %v738 = vmul.f32 %v735, %v737
    %v739 = vadd.f32 %v735, %v738
    %vm740 = vweird.f32 %v734
    %vm741 = vweird.f32 %v735
    %vm742 = vmor %vm740, %vm741
    %v743 = vsel %vm742, %v735, %v739
    %v744 = vand.u32 2147483647, %v734
    %vm745 = vcmp.eq.f32.partialorder %v744, 8.507059e+37
    %v746 = vand.u32 %v734, 2147483648
    %v747 = vor.u32 1.1754944e-38, %v746
    %v748 = vsel %vm745, %v747, %v743
    %v749 = vmul.f32 %v724, %v748
    %v750 = vmin.f32 %v749, 1.0
    %v751 = vmax.f32 %v750, -1.0
    %v752 = vmul.f32 %v430, %v430
    %v753 = vmin.f32 16.0, %v752
    %v754 = vmul.f32 %v753, 2.1237322e-06
    %v755 = vadd.f32 %v754, 0.00028619796
    %v756 = vmul.f32 %v753, %v755
    %v757 = vadd.f32 %v756, 0.0036580483
    %v758 = vmul.f32 %v753, %v757
    %v759 = vadd.f32 %v758, 0.05243302
    %v760 = vmul.f32 %v753, %v759
    %v761 = vadd.f32 %v760, 0.18741608
    %v762 = vmul.f32 %v753, %v761
    %v763 = vadd.f32 %v762, 1.1283791
    %v764 = vmul.f32 %v430, %v763
    %v765 = vmul.f32 %v753, 3.8918573e-05
    %v766 = vadd.f32 %v765, 0.001143296
    %v767 = vmul.f32 %v753, %v766
    %v768 = vadd.f32 %v767, 0.014752088
    %v769 = vmul.f32 %v753, %v768
    %v770 = vadd.f32 %v769, 0.112945676
    %v771 = vmul.f32 %v753, %v770
    %v772 = vadd.f32 %v771, 0.4994258
    %v773 = vmul.f32 %v753, %v772
    %v774 = vadd.f32 %v773, 1.0
    %v775 = vrcp.pop %v774
    %v776 = vmul.f32 %v774, %v775
    %v777 = vsub.f32 1.0, %v776
    %v778 = vmul.f32 %v775, %v777
    %v779 = vadd.f32 %v775, %v778
    %vm780 = vweird.f32 %v774
    %vm781 = vweird.f32 %v775
    %vm782 = vmor %vm780, %vm781
    %v783 = vsel %vm782, %v775, %v779
    %v784 = vand.u32 2147483647, %v774
    %vm785 = vcmp.eq.f32.partialorder %v784, 8.507059e+37
    %v786 = vand.u32 %v774, 2147483648
    %v787 = vor.u32 1.1754944e-38, %v786
    %v788 = vsel %vm785, %v787, %v783
    %v789 = vmul.f32 %v764, %v788
    %v790 = vmin.f32 %v789, 1.0
    %v791 = vmax.f32 %v790, -1.0
    %v792 = vmul.f32 %v431, %v431
    %v793 = vmin.f32 16.0, %v792
    %v794 = vmul.f32 %v793, 2.1237322e-06
    %v795 = vadd.f32 %v794, 0.00028619796
    %v796 = vmul.f32 %v793, %v795
    %v797 = vadd.f32 %v796, 0.0036580483
    %v798 = vmul.f32 %v793, %v797
    %v799 = vadd.f32 %v798, 0.05243302
    %v800 = vmul.f32 %v793, %v799
    %v801 = vadd.f32 %v800, 0.18741608
    %v802 = vmul.f32 %v793, %v801
    %v803 = vadd.f32 %v802, 1.1283791
    %v804 = vmul.f32 %v431, %v803
    %v805 = vmul.f32 %v793, 3.8918573e-05
    %v806 = vadd.f32 %v805, 0.001143296
    %v807 = vmul.f32 %v793, %v806
    %v808 = vadd.f32 %v807, 0.014752088
    %v809 = vmul.f32 %v793, %v808
    %v810 = vadd.f32 %v809, 0.112945676
    %v811 = vmul.f32 %v793, %v810
    %v812 = vadd.f32 %v811, 0.4994258
    %v813 = vmul.f32 %v793, %v812
    %v814 = vadd.f32 %v813, 1.0
    %v815 = vrcp.pop %v814
    %v816 = vmul.f32 %v814, %v815
    %v817 = vsub.f32 1.0, %v816
    %v818 = vmul.f32 %v815, %v817
    %v819 = vadd.f32 %v815, %v818
    %vm820 = vweird.f32 %v814
    %vm821 = vweird.f32 %v815
    %vm822 = vmor %vm820, %vm821
    %v823 = vsel %vm822, %v815, %v819
    %v824 = vand.u32 2147483647, %v814
    %vm825 = vcmp.eq.f32.partialorder %v824, 8.507059e+37
    %v826 = vand.u32 %v814, 2147483648
    %v827 = vor.u32 1.1754944e-38, %v826
    %v828 = vsel %vm825, %v827, %v823
    %v829 = vmul.f32 %v804, %v828
    %v830 = vmin.f32 %v829, 1.0
    %v831 = vmax.f32 %v830, -1.0
    %v832 = vadd.f32 %v471, 1.0
    %v833 = vadd.f32 %v511, 1.0
    %v834 = vadd.f32 %v551, 1.0
    %v835 = vadd.f32 %v591, 1.0
    %v836 = vadd.f32 %v631, 1.0
    %v837 = vadd.f32 %v671, 1.0
    %v838 = vadd.f32 %v711, 1.0
    %v839 = vadd.f32 %v751, 1.0
    %v840 = vadd.f32 %v791, 1.0
    %v841 = vadd.f32 %v831, 1.0
    %v842 = vmul.f32 %v412, %v832
    %v843 = vmul.f32 %v413, %v833
    %v844 = vmul.f32 %v414, %v834
    %v845 = vmul.f32 %v415, %v835
    %v846 = vmul.f32 %v416, %v836
    %v847 = vmul.f32 %v417, %v837
    %v848 = vmul.f32 %v418, %v838
    %v849 = vmul.f32 %v419, %v839
    %v850 = vmul.f32 %v420, %v840
    %v851 = vmul.f32 %v421, %v841
    %v852 = vld [vmem:[%s5] sm:$0xff]
    %v853 = vpack.c.bf16 %v843, %v842
    %v854 = vpack.c.bf16 %v845, %v844
    %v855 = vpack.c.bf16 %v847, %v846
    %v856 = vpack.c.bf16 %v849, %v848
    %v857 = vpack.c.bf16 %v851, %v850
    %v858 = vpack.c.bf16 %v852, %v852
    %v859 = vld [vmem:[#allocation7] sm:$0x1]
    %v861 = vperm.slane %v859, 0
    %vm863 = vcmask 64512
    %v865 = vsel %vm863, %v853, 0
    %v868 = vsel %vm863, %v854, 0
    %v871 = vsel %vm863, %v855, 0
    %v874 = vsel %vm863, %v856, 0
    %v877 = vsel %vm863, %v857, 0
    %vm879 = vcmask 1043456
    %v881 = vsel %vm879, %v858, 0
    %883 = vmatpush.bf16.msra.mxu0 0
    %884 = vmatpush.bf16.msra.mxu0 0
    %885 = vmatpush.bf16.msra.mxu0 0
    %886 = vmatpush.bf16.msra.mxu0 0
    %887 = vmatpush.bf16.msra.mxu0 0
    %888 = vmatpush.bf16.msra.mxu0 0
    %889 = vmatpush.bf16.msra.mxu0 0
    %890 = vmatpush.bf16.msra.mxu0 %v881
    %891 = vmatmul.bf16.gmra.mxu0 %v865
    %v892 = vpop.f32.mrf.mxu0
    %v893 = vadd.f32 %v861, %v892
    %v894 = vpop.f32.mrf.mxu0
    %v895 = vadd.f32 %v861, %v894
    %896 = vmatmul.bf16.gmra.mxu0 %v868
    %v897 = vpop.f32.mrf.mxu0
    %v898 = vadd.f32 %v861, %v897
    %v899 = vpop.f32.mrf.mxu0
    %v900 = vadd.f32 %v861, %v899
    %901 = vmatmul.bf16.gmra.mxu0 %v871
    %v902 = vpop.f32.mrf.mxu0
    %v903 = vadd.f32 %v861, %v902
    %v904 = vpop.f32.mrf.mxu0
    %v905 = vadd.f32 %v861, %v904
    %906 = vmatmul.bf16.gmra.mxu0 %v874
    %v907 = vpop.f32.mrf.mxu0
    %v908 = vadd.f32 %v861, %v907
    %v909 = vpop.f32.mrf.mxu0
    %v910 = vadd.f32 %v861, %v909
    %911 = vmatmul.bf16.gmra.mxu0 %v877
    %v912 = vpop.f32.mrf.mxu0
    %v913 = vadd.f32 %v861, %v912
    %v914 = vpop.f32.mrf.mxu0
    %v915 = vadd.f32 %v861, %v914
    %916 = vdwg.mxu0
    %917 = vst.msk [vmem:[%s7] sm:$0xff] %vm94, %v893
    %918 = vst.msk [vmem:[%s7 + $0x8] sm:$0xff] %vm94, %v895
    %919 = vst.msk [vmem:[%s7 + $0x10] sm:$0xff] %vm94, %v898
    %920 = vst.msk [vmem:[%s7 + $0x18] sm:$0xff] %vm94, %v900
    %921 = vst.msk [vmem:[%s7 + $0x20] sm:$0xff] %vm94, %v903
    %922 = vst.msk [vmem:[%s7 + $0x28] sm:$0xff] %vm94, %v905
    %923 = vst.msk [vmem:[%s7 + $0x30] sm:$0xff] %vm94, %v908
    %924 = vst.msk [vmem:[%s7 + $0x38] sm:$0xff] %vm94, %v910
    %925 = vst.msk [vmem:[%s7 + $0x40] sm:$0xff] %vm94, %v913
    %926 = vst.msk [vmem:[%s7 + $0x48] sm:$0xff] %vm94, %v915
    // Predicated region
    $region46: #{_lambda_.35} parent=1 // pred_check
      _
    $region47: #{_lambda_.35} parent=1 // pred_check_branch
      %928 = sbr.rel (0) target = $region49
    $region48: #{_lambda_.35} parent=1 // pred_region
      _
    $region49: #{_lambda_.35} parent=1 // pred_fallthru
      _
    // Predicated region
    $region50: #{_lambda_.35} parent=1 // pred_check
      _
    $region51: #{_lambda_.35} parent=1 // pred_check_branch
      %930 = sbr.rel (0) target = $region53
    $region52: #{_lambda_.35} parent=1 // pred_region
      _
    $region53: #{_lambda_.35} parent=1 // pred_fallthru
      _
    %931 = vsyncpa [#allocation3], 1
    %932 = vsyncpa [#allocation5], 1
    %933 = vsyncpa [#allocation8], 1

// kernel: _lambda_.38
$region0: #{_lambda_.38}
  #allocation0 [shape = 'u32[]', space=smem, size = 0x4, offset = 0x4, fixed_abs, tag = 'smem constant byte address 0x4 - core index']
  #allocation1 [shape = 'u32[72,128]{1,0:T(1,128)}', space=vmem, size = 0x9000, scoped, tag = 'internal scratch']
  #allocation2 [shape = 'f32[80,32]{1,0:T(8,128)}', space=vmem, size = 0xa000, scoped, tag = 'scratch operand']
  %s0 = inlined_call_operand.vmem [shape: f32[80,32], index: 0, kind: input, shape index: {}]
  %s1 = inlined_call_operand.vmem [shape: f32[32,32], index: 1, kind: input, shape index: {}]
  %s2 = inlined_call_operand.hbm [shape: f32[1,32], index: 2, kind: input, shape index: {}]
  %s3 = inlined_call_operand.vmem [shape: f32[80,32], index: 3, kind: input, shape index: {}]
  %s4 = inlined_call_operand.vmem [shape: f32[80,32], index: 4, kind: input, shape index: {}]
  %s5 = inlined_call_operand.vmem [shape: f32[80,32], index: 5, kind: output, shape index: {}]
  %s6 = sld [smem:[#allocation0]]
  $region42: #{_lambda_.38} parent=0
    _
  %s8 = ssub.s32 1, %s6
  %s9 = scalar_select 0, %s8, %s6
  $region1: #{_lambda_.38} parent=0
    #allocation3 [shape = 'u8[512]{0}', space=vmem, size = 0x400, scoped, tag = 'input window, operand 2, single buffered']
    #allocation4 [shape = 's32[1]{0}', space=sflag, size = 0x4, scoped, tag = 'scoped memory for _lambda_.38']
    %10 = vsyncpa [#allocation4], 0
    // Predicated region
    $region2: #{_lambda_.38} parent=1 // pred_check
      _
    $region3: #{_lambda_.38} parent=1 // pred_check_branch
      %12 = sbr.rel (0) target = $region5
    $region4: #{_lambda_.38} parent=1 // pred_region
      _
    $region5: #{_lambda_.38} parent=1 // pred_fallthru
      _
    // Predicated region
    $region6: #{_lambda_.38} parent=1 // pred_check
      _
    $region7: #{_lambda_.38} parent=1 // pred_check_branch
      %14 = sbr.rel (0) target = $region9
    $region8: #{_lambda_.38} parent=1 // pred_region
      _
    $region9: #{_lambda_.38} parent=1 // pred_fallthru
      _
    // Predicated region
    $region10: #{_lambda_.38} parent=1 // pred_check
      _
    $region11: #{_lambda_.38} parent=1 // pred_check_branch
      %16 = sbr.rel (0) target = $region13
    $region12: #{_lambda_.38} parent=1 // pred_region
      %18 = vsyncadd [#allocation4], 0
      %s20 = sshll.u32 %s2, 4
      %s21 = int_to_ptr.hbm [resolvable:$true] %s20
      %s22 = sshll.u32 [#allocation3], 4
      %s23 = int_to_ptr.vmem [resolvable:$true] %s22
      %25 = dma.hbm_to_vmem [thread:$0]  %s21, 16, %s23, [#allocation4]
    $region13: #{_lambda_.38} parent=1 // pred_fallthru
      _
    // Predicated region
    $region14: #{_lambda_.38} parent=1 // pred_check
      _
    $region15: #{_lambda_.38} parent=1 // pred_check_branch
      %27 = sbr.rel (0) target = $region17
    $region16: #{_lambda_.38} parent=1 // pred_region
      _
    $region17: #{_lambda_.38} parent=1 // pred_fallthru
      _
    // Predicated region
    $region18: #{_lambda_.38} parent=1 // pred_check
      _
    $region19: #{_lambda_.38} parent=1 // pred_check_branch
      %29 = sbr.rel (0) target = $region21
    $region20: #{_lambda_.38} parent=1 // pred_region
      _
    $region21: #{_lambda_.38} parent=1 // pred_fallthru
      _
    // Predicated region
    $region22: #{_lambda_.38} parent=1 // pred_check
      _
    $region23: #{_lambda_.38} parent=1 // pred_check_branch
      %31 = sbr.rel (0) target = $region25
    $region24: #{_lambda_.38} parent=1 // pred_region
      %33 = dma.done [#allocation4], 16
    $region25: #{_lambda_.38} parent=1 // pred_fallthru
      _
    %p35 = scmp.eq.s32.totalorder 0, 0
    // Predicated region
    $region26: #{_lambda_.38} parent=1 // pred_check
      %p36 = pneg %p35
    $region27: #{_lambda_.38} parent=1 // pred_check_branch
      %38 = sbr.rel (%p36) target = $region29
    $region28: #{_lambda_.38} parent=1 // pred_region
      %vm39 = vcmask 261120
      %40 = vst.msk [vmem:[#allocation2] sm:$0xff] %vm39, 0.0
      %41 = vst.msk [vmem:[#allocation2 + $0x8] sm:$0xff] %vm39, 0.0
      %42 = vst.msk [vmem:[#allocation2 + $0x10] sm:$0xff] %vm39, 0.0
      %43 = vst.msk [vmem:[#allocation2 + $0x18] sm:$0xff] %vm39, 0.0
      %44 = vst.msk [vmem:[#allocation2 + $0x20] sm:$0xff] %vm39, 0.0
      %45 = vst.msk [vmem:[#allocation2 + $0x28] sm:$0xff] %vm39, 0.0
      %46 = vst.msk [vmem:[#allocation2 + $0x30] sm:$0xff] %vm39, 0.0
      %47 = vst.msk [vmem:[#allocation2 + $0x38] sm:$0xff] %vm39, 0.0
      %48 = vst.msk [vmem:[#allocation2 + $0x40] sm:$0xff] %vm39, 0.0
      %49 = vst.msk [vmem:[#allocation2 + $0x48] sm:$0xff] %vm39, 0.0
    $region29: #{_lambda_.38} parent=1 // pred_fallthru
      _
    %v50 = vld [vmem:[#allocation2] sm:$0xff]
    %v51 = vld [vmem:[#allocation2 + $0x8] sm:$0xff]
    %v52 = vld [vmem:[#allocation2 + $0x10] sm:$0xff]
    %v53 = vld [vmem:[#allocation2 + $0x18] sm:$0xff]
    %v54 = vld [vmem:[#allocation2 + $0x20] sm:$0xff]
    %v55 = vld [vmem:[#allocation2 + $0x28] sm:$0xff]
    %v56 = vld [vmem:[#allocation2 + $0x30] sm:$0xff]
    %v57 = vld [vmem:[#allocation2 + $0x38] sm:$0xff]
    %v58 = vld [vmem:[#allocation2 + $0x40] sm:$0xff]
    %v59 = vld [vmem:[#allocation2 + $0x48] sm:$0xff]
    %v60 = vld [vmem:[%s0] sm:$0xff]
    %v61 = vld [vmem:[%s0 + $0x8] sm:$0xff]
    %v62 = vld [vmem:[%s0 + $0x10] sm:$0xff]
    %v63 = vld [vmem:[%s0 + $0x18] sm:$0xff]
    %v64 = vld [vmem:[%s0 + $0x20] sm:$0xff]
    %v65 = vld [vmem:[%s0 + $0x28] sm:$0xff]
    %v66 = vld [vmem:[%s0 + $0x30] sm:$0xff]
    %v67 = vld [vmem:[%s0 + $0x38] sm:$0xff]
    %v68 = vld [vmem:[%s0 + $0x40] sm:$0xff]
    %v69 = vld [vmem:[%s0 + $0x48] sm:$0xff]
    %v70 = vld [vmem:[%s1] sm:$0xff]
    %v71 = vld [vmem:[%s1 + $0x8] sm:$0xff]
    %v72 = vld [vmem:[%s1 + $0x10] sm:$0xff]
    %v73 = vld [vmem:[%s1 + $0x18] sm:$0xff]
    %v74 = vpack.c.bf16 %v61, %v60
    %v75 = vpack.c.bf16 %v63, %v62
    %v76 = vpack.c.bf16 %v65, %v64
    %v77 = vpack.c.bf16 %v67, %v66
    %v78 = vpack.c.bf16 %v69, %v68
    %v79 = vpack.c.bf16 %v71, %v70
    %v80 = vpack.c.bf16 %v73, %v72
    %vm81 = vcmask 261120
    %v83 = vsel %vm81, %v74, 0
    %v86 = vsel %vm81, %v75, 0
    %v89 = vsel %vm81, %v76, 0
    %v92 = vsel %vm81, %v77, 0
    %v95 = vsel %vm81, %v78, 0
    %97 = vmatpush.bf16.msra.mxu0 0
    %98 = vmatpush.bf16.msra.mxu0 0
    %99 = vmatpush.bf16.msra.mxu0 0
    %100 = vmatpush.bf16.msra.mxu0 0
    %101 = vmatpush.bf16.msra.mxu0 0
    %102 = vmatpush.bf16.msra.mxu0 0
    %103 = vmatpush.bf16.msra.mxu0 %v80
    %104 = vmatpush.bf16.msra.mxu0 %v79
    %105 = vmatmul.bf16.gmra.mxu0 %v83
    %v106 = vpop.f32.mrf.mxu0
    %v107 = vadd.f32 0.0, %v106
    %v108 = vpop.f32.mrf.mxu0
    %v109 = vadd.f32 0.0, %v108
    %110 = vmatmul.bf16.gmra.mxu0 %v86
    %v111 = vpop.f32.mrf.mxu0
    %v112 = vadd.f32 0.0, %v111
    %v113 = vpop.f32.mrf.mxu0
    %v114 = vadd.f32 0.0, %v113
    %115 = vmatmul.bf16.gmra.mxu0 %v89
    %v116 = vpop.f32.mrf.mxu0
    %v117 = vadd.f32 0.0, %v116
    %v118 = vpop.f32.mrf.mxu0
    %v119 = vadd.f32 0.0, %v118
    %120 = vmatmul.bf16.gmra.mxu0 %v92
    %v121 = vpop.f32.mrf.mxu0
    %v122 = vadd.f32 0.0, %v121
    %v123 = vpop.f32.mrf.mxu0
    %v124 = vadd.f32 0.0, %v123
    %125 = vmatmul.bf16.gmra.mxu0 %v95
    %v126 = vpop.f32.mrf.mxu0
    %v127 = vadd.f32 0.0, %v126
    %v128 = vpop.f32.mrf.mxu0
    %v129 = vadd.f32 0.0, %v128
    %130 = vdwg.mxu0
    %v131 = vadd.f32 %v50, %v107
    %v132 = vadd.f32 %v51, %v109
    %v133 = vadd.f32 %v52, %v112
    %v134 = vadd.f32 %v53, %v114
    %v135 = vadd.f32 %v54, %v117
    %v136 = vadd.f32 %v55, %v119
    %v137 = vadd.f32 %v56, %v122
    %v138 = vadd.f32 %v57, %v124
    %v139 = vadd.f32 %v58, %v127
    %v140 = vadd.f32 %v59, %v129
    %141 = vst.msk [vmem:[#allocation2] sm:$0xff] %vm81, %v131
    %142 = vst.msk [vmem:[#allocation2 + $0x8] sm:$0xff] %vm81, %v132
    %143 = vst.msk [vmem:[#allocation2 + $0x10] sm:$0xff] %vm81, %v133
    %144 = vst.msk [vmem:[#allocation2 + $0x18] sm:$0xff] %vm81, %v134
    %145 = vst.msk [vmem:[#allocation2 + $0x20] sm:$0xff] %vm81, %v135
    %146 = vst.msk [vmem:[#allocation2 + $0x28] sm:$0xff] %vm81, %v136
    %147 = vst.msk [vmem:[#allocation2 + $0x30] sm:$0xff] %vm81, %v137
    %148 = vst.msk [vmem:[#allocation2 + $0x38] sm:$0xff] %vm81, %v138
    %149 = vst.msk [vmem:[#allocation2 + $0x40] sm:$0xff] %vm81, %v139
    %150 = vst.msk [vmem:[#allocation2 + $0x48] sm:$0xff] %vm81, %v140
    // Predicated region
    $region30: #{_lambda_.38} parent=1 // pred_check
      %p151 = pneg %p35
    $region31: #{_lambda_.38} parent=1 // pred_check_branch
      %153 = sbr.rel (%p151) target = $region33
    $region32: #{_lambda_.38} parent=1 // pred_region
      %v154 = vld [vmem:[#allocation2] sm:$0xff]
      %v155 = vld [vmem:[#allocation2 + $0x8] sm:$0xff]
      %v156 = vld [vmem:[#allocation2 + $0x10] sm:$0xff]
      %v157 = vld [vmem:[#allocation2 + $0x18] sm:$0xff]
      %v158 = vld [vmem:[#allocation2 + $0x20] sm:$0xff]
      %v159 = vld [vmem:[#allocation2 + $0x28] sm:$0xff]
      %v160 = vld [vmem:[#allocation2 + $0x30] sm:$0xff]
      %v161 = vld [vmem:[#allocation2 + $0x38] sm:$0xff]
      %v162 = vld [vmem:[#allocation2 + $0x40] sm:$0xff]
      %v163 = vld [vmem:[#allocation2 + $0x48] sm:$0xff]
      %v164 = vld [vmem:[#allocation3] sm:$0x1]
      %v166 = vperm.slane %v164, 0
      %v168 = vadd.f32 %v154, %v166
      %v169 = vadd.f32 %v155, %v166
      %v170 = vadd.f32 %v156, %v166
      %v171 = vadd.f32 %v157, %v166
      %v172 = vadd.f32 %v158, %v166
      %v173 = vadd.f32 %v159, %v166
      %v174 = vadd.f32 %v160, %v166
      %v175 = vadd.f32 %v161, %v166
      %v176 = vadd.f32 %v162, %v166
      %v177 = vadd.f32 %v163, %v166
      %v178 = vld [vmem:[%s3] sm:$0xff]
      %v179 = vld [vmem:[%s3 + $0x8] sm:$0xff]
      %v180 = vld [vmem:[%s3 + $0x10] sm:$0xff]
      %v181 = vld [vmem:[%s3 + $0x18] sm:$0xff]
      %v182 = vld [vmem:[%s3 + $0x20] sm:$0xff]
      %v183 = vld [vmem:[%s3 + $0x28] sm:$0xff]
      %v184 = vld [vmem:[%s3 + $0x30] sm:$0xff]
      %v185 = vld [vmem:[%s3 + $0x38] sm:$0xff]
      %v186 = vld [vmem:[%s3 + $0x40] sm:$0xff]
      %v187 = vld [vmem:[%s3 + $0x48] sm:$0xff]
      %v188 = vadd.f32 %v168, %v178
      %v189 = vadd.f32 %v169, %v179
      %v190 = vadd.f32 %v170, %v180
      %v191 = vadd.f32 %v171, %v181
      %v192 = vadd.f32 %v172, %v182
      %v193 = vadd.f32 %v173, %v183
      %v194 = vadd.f32 %v174, %v184
      %v195 = vadd.f32 %v175, %v185
      %v196 = vadd.f32 %v176, %v186
      %v197 = vadd.f32 %v177, %v187
      %v198 = vld [vmem:[%s4] sm:$0xff]
      %v199 = vld [vmem:[%s4 + $0x8] sm:$0xff]
      %v200 = vld [vmem:[%s4 + $0x10] sm:$0xff]
      %v201 = vld [vmem:[%s4 + $0x18] sm:$0xff]
      %v202 = vld [vmem:[%s4 + $0x20] sm:$0xff]
      %v203 = vld [vmem:[%s4 + $0x28] sm:$0xff]
      %v204 = vld [vmem:[%s4 + $0x30] sm:$0xff]
      %v205 = vld [vmem:[%s4 + $0x38] sm:$0xff]
      %v206 = vld [vmem:[%s4 + $0x40] sm:$0xff]
      %v207 = vld [vmem:[%s4 + $0x48] sm:$0xff]
      %v208 = vadd.f32 %v188, %v198
      %v209 = vadd.f32 %v189, %v199
      %v210 = vadd.f32 %v190, %v200
      %v211 = vadd.f32 %v191, %v201
      %v212 = vadd.f32 %v192, %v202
      %v213 = vadd.f32 %v193, %v203
      %v214 = vadd.f32 %v194, %v204
      %v215 = vadd.f32 %v195, %v205
      %v216 = vadd.f32 %v196, %v206
      %v217 = vadd.f32 %v197, %v207
      %218 = vst.msk [vmem:[%s5] sm:$0xff] %vm81, %v208
      %219 = vst.msk [vmem:[%s5 + $0x8] sm:$0xff] %vm81, %v209
      %220 = vst.msk [vmem:[%s5 + $0x10] sm:$0xff] %vm81, %v210
      %221 = vst.msk [vmem:[%s5 + $0x18] sm:$0xff] %vm81, %v211
      %222 = vst.msk [vmem:[%s5 + $0x20] sm:$0xff] %vm81, %v212
      %223 = vst.msk [vmem:[%s5 + $0x28] sm:$0xff] %vm81, %v213
      %224 = vst.msk [vmem:[%s5 + $0x30] sm:$0xff] %vm81, %v214
      %225 = vst.msk [vmem:[%s5 + $0x38] sm:$0xff] %vm81, %v215
      %226 = vst.msk [vmem:[%s5 + $0x40] sm:$0xff] %vm81, %v216
      %227 = vst.msk [vmem:[%s5 + $0x48] sm:$0xff] %vm81, %v217
    $region33: #{_lambda_.38} parent=1 // pred_fallthru
      _
    // Predicated region
    $region34: #{_lambda_.38} parent=1 // pred_check
      _
    $region35: #{_lambda_.38} parent=1 // pred_check_branch
      %229 = sbr.rel (0) target = $region37
    $region36: #{_lambda_.38} parent=1 // pred_region
      _
    $region37: #{_lambda_.38} parent=1 // pred_fallthru
      _
    // Predicated region
    $region38: #{_lambda_.38} parent=1 // pred_check
      _
    $region39: #{_lambda_.38} parent=1 // pred_check_branch
      %231 = sbr.rel (0) target = $region41
    $region40: #{_lambda_.38} parent=1 // pred_region
      _
    $region41: #{_lambda_.38} parent=1 // pred_fallthru
      _
    %232 = vsyncpa [#allocation4], 1

// kernel: _lambda_.39
$region0: #{_lambda_.39}
  #allocation0 [shape = 'u32[]', space=smem, size = 0x4, offset = 0x4, fixed_abs, tag = 'smem constant byte address 0x4 - core index']
  #allocation1 [shape = 'u32[72,128]{1,0:T(1,128)}', space=vmem, size = 0x9000, scoped, tag = 'internal scratch']
  #allocation2 [shape = 'f32[80,32]{1,0:T(8,128)}', space=vmem, size = 0xa000, scoped, tag = 'scratch operand']
  %s0 = inlined_call_operand.vmem [shape: f32[80,32], index: 0, kind: input, shape index: {}, may-alias: {0,11}]
  %s1 = inlined_call_operand.hbm [shape: f32[1,32], index: 1, kind: input, shape index: {}]
  %s2 = inlined_call_operand.hbm [shape: f32[1,32], index: 2, kind: input, shape index: {}]
  %s3 = inlined_call_operand.vmem [shape: f32[32,128], index: 3, kind: input, shape index: {}]
  %s4 = inlined_call_operand.hbm [shape: f32[1,128], index: 4, kind: input, shape index: {}]
  %s5 = inlined_call_operand.vmem [shape: f32[128,32], index: 5, kind: input, shape index: {}]
  %s6 = inlined_call_operand.hbm [shape: f32[1,32], index: 6, kind: input, shape index: {}]
  %s7 = inlined_call_operand.vmem [shape: f32[32,8], index: 7, kind: input, shape index: {}]
  %s8 = inlined_call_operand.hbm [shape: f32[1,8], index: 8, kind: input, shape index: {}]
  %s9 = inlined_call_operand.vmem [shape: f32[8,32], index: 9, kind: input, shape index: {}]
  %s10 = inlined_call_operand.hbm [shape: f32[1,32], index: 10, kind: input, shape index: {}]
  %s11 = inlined_call_operand.vmem [shape: f32[80,32], index: 11, kind: input, shape index: {}, may-alias: {0,11}]
  %s12 = inlined_call_operand.vmem [shape: f32[80,32], index: 12, kind: output, shape index: {}]
  %s13 = sld [smem:[#allocation0]]
  $region90: #{_lambda_.39} parent=0
    _
  %s15 = ssub.s32 1, %s13
  %s16 = scalar_select 0, %s15, %s13
  $region1: #{_lambda_.39} parent=0
    #allocation3 [shape = 'u8[512]{0}', space=vmem, size = 0x400, scoped, tag = 'input window, operand 1, single buffered']
    #allocation4 [shape = 's32[1]{0}', space=sflag, size = 0x4, scoped, tag = 'scoped memory for _lambda_.39']
    #allocation5 [shape = 'u8[512]{0}', space=vmem, size = 0x400, scoped, tag = 'input window, operand 2, single buffered']
    #allocation6 [shape = 's32[1]{0}', space=sflag, size = 0x4, scoped, tag = 'scoped memory for _lambda_.39']
    #allocation7 [shape = 'u8[512]{0}', space=vmem, size = 0x400, scoped, tag = 'input window, operand 4, single buffered']
    #allocation8 [shape = 'u8[512]{0}', space=vmem, size = 0x400, scoped, tag = 'input window, operand 6, single buffered']
    #allocation9 [shape = 's32[1]{0}', space=sflag, size = 0x4, scoped, tag = 'scoped memory for _lambda_.39']
    #allocation10 [shape = 'u8[512]{0}', space=vmem, size = 0x400, scoped, tag = 'input window, operand 8, single buffered']
    #allocation11 [shape = 'u8[512]{0}', space=vmem, size = 0x400, scoped, tag = 'input window, operand 10, single buffered']
    #allocation12 [shape = 's32[1]{0}', space=sflag, size = 0x4, scoped, tag = 'scoped memory for _lambda_.39']
    %17 = vsyncpa [#allocation4], 0
    %18 = vsyncpa [#allocation6], 0
    %19 = vsyncpa [#allocation9], 0
    %20 = vsyncpa [#allocation12], 0
    // Predicated region
    $region2: #{_lambda_.39} parent=1 // pred_check
      _
    $region3: #{_lambda_.39} parent=1 // pred_check_branch
      %22 = sbr.rel (0) target = $region5
    $region4: #{_lambda_.39} parent=1 // pred_region
      _
    $region5: #{_lambda_.39} parent=1 // pred_fallthru
      _
    // Predicated region
    $region6: #{_lambda_.39} parent=1 // pred_check
      _
    $region7: #{_lambda_.39} parent=1 // pred_check_branch
      %24 = sbr.rel (0) target = $region9
    $region8: #{_lambda_.39} parent=1 // pred_region
      %26 = vsyncadd [#allocation4], 0
      %s28 = sshll.u32 %s1, 4
      %s29 = int_to_ptr.hbm [resolvable:$true] %s28
      %s30 = sshll.u32 [#allocation3], 4
      %s31 = int_to_ptr.vmem [resolvable:$true] %s30
      %33 = dma.hbm_to_vmem [thread:$0]  %s29, 16, %s31, [#allocation4]
    $region9: #{_lambda_.39} parent=1 // pred_fallthru
      _
    // Predicated region
    $region10: #{_lambda_.39} parent=1 // pred_check
      _
    $region11: #{_lambda_.39} parent=1 // pred_check_branch
      %35 = sbr.rel (0) target = $region13
    $region12: #{_lambda_.39} parent=1 // pred_region
      %37 = vsyncadd [#allocation6], 0
      %s39 = sshll.u32 %s2, 4
      %s40 = int_to_ptr.hbm [resolvable:$true] %s39
      %s41 = sshll.u32 [#allocation5], 4
      %s42 = int_to_ptr.vmem [resolvable:$true] %s41
      %44 = dma.hbm_to_vmem [thread:$0]  %s40, 16, %s42, [#allocation6]
    $region13: #{_lambda_.39} parent=1 // pred_fallthru
      _
    // Predicated region
    $region14: #{_lambda_.39} parent=1 // pred_check
      _
    $region15: #{_lambda_.39} parent=1 // pred_check_branch
      %46 = sbr.rel (0) target = $region17
    $region16: #{_lambda_.39} parent=1 // pred_region
      _
    $region17: #{_lambda_.39} parent=1 // pred_fallthru
      _
    // Predicated region
    $region18: #{_lambda_.39} parent=1 // pred_check
      _
    $region19: #{_lambda_.39} parent=1 // pred_check_branch
      %48 = sbr.rel (0) target = $region21
    $region20: #{_lambda_.39} parent=1 // pred_region
      %50 = vsyncadd [#allocation6], 0
      %s52 = sshll.u32 %s4, 4
      %s53 = int_to_ptr.hbm [resolvable:$true] %s52
      %s54 = sshll.u32 [#allocation7], 4
      %s55 = int_to_ptr.vmem [resolvable:$true] %s54
      %57 = dma.hbm_to_vmem [thread:$0]  %s53, 16, %s55, [#allocation6]
    $region21: #{_lambda_.39} parent=1 // pred_fallthru
      _
    // Predicated region
    $region22: #{_lambda_.39} parent=1 // pred_check
      _
    $region23: #{_lambda_.39} parent=1 // pred_check_branch
      %59 = sbr.rel (0) target = $region25
    $region24: #{_lambda_.39} parent=1 // pred_region
      _
    $region25: #{_lambda_.39} parent=1 // pred_fallthru
      _
    // Predicated region
    $region26: #{_lambda_.39} parent=1 // pred_check
      _
    $region27: #{_lambda_.39} parent=1 // pred_check_branch
      %61 = sbr.rel (0) target = $region29
    $region28: #{_lambda_.39} parent=1 // pred_region
      %63 = vsyncadd [#allocation9], 0
      %s65 = sshll.u32 %s6, 4
      %s66 = int_to_ptr.hbm [resolvable:$true] %s65
      %s67 = sshll.u32 [#allocation8], 4
      %s68 = int_to_ptr.vmem [resolvable:$true] %s67
      %70 = dma.hbm_to_vmem [thread:$0]  %s66, 16, %s68, [#allocation9]
    $region29: #{_lambda_.39} parent=1 // pred_fallthru
      _
    // Predicated region
    $region30: #{_lambda_.39} parent=1 // pred_check
      _
    $region31: #{_lambda_.39} parent=1 // pred_check_branch
      %72 = sbr.rel (0) target = $region33
    $region32: #{_lambda_.39} parent=1 // pred_region
      _
    $region33: #{_lambda_.39} parent=1 // pred_fallthru
      _
    // Predicated region
    $region34: #{_lambda_.39} parent=1 // pred_check
      _
    $region35: #{_lambda_.39} parent=1 // pred_check_branch
      %74 = sbr.rel (0) target = $region37
    $region36: #{_lambda_.39} parent=1 // pred_region
      %76 = vsyncadd [#allocation9], 0
      %s78 = sshll.u32 %s8, 4
      %s79 = int_to_ptr.hbm [resolvable:$true] %s78
      %s80 = sshll.u32 [#allocation10], 4
      %s81 = int_to_ptr.vmem [resolvable:$true] %s80
      %83 = dma.hbm_to_vmem [thread:$0]  %s79, 16, %s81, [#allocation9]
    $region37: #{_lambda_.39} parent=1 // pred_fallthru
      _
    // Predicated region
    $region38: #{_lambda_.39} parent=1 // pred_check
      _
    $region39: #{_lambda_.39} parent=1 // pred_check_branch
      %85 = sbr.rel (0) target = $region41
    $region40: #{_lambda_.39} parent=1 // pred_region
      _
    $region41: #{_lambda_.39} parent=1 // pred_fallthru
      _
    // Predicated region
    $region42: #{_lambda_.39} parent=1 // pred_check
      _
    $region43: #{_lambda_.39} parent=1 // pred_check_branch
      %87 = sbr.rel (0) target = $region45
    $region44: #{_lambda_.39} parent=1 // pred_region
      %89 = vsyncadd [#allocation12], 0
      %s91 = sshll.u32 %s10, 4
      %s92 = int_to_ptr.hbm [resolvable:$true] %s91
      %s93 = sshll.u32 [#allocation11], 4
      %s94 = int_to_ptr.vmem [resolvable:$true] %s93
      %96 = dma.hbm_to_vmem [thread:$0]  %s92, 16, %s94, [#allocation12]
    $region45: #{_lambda_.39} parent=1 // pred_fallthru
      _
    // Predicated region
    $region46: #{_lambda_.39} parent=1 // pred_check
      _
    $region47: #{_lambda_.39} parent=1 // pred_check_branch
      %98 = sbr.rel (0) target = $region49
    $region48: #{_lambda_.39} parent=1 // pred_region
      _
    $region49: #{_lambda_.39} parent=1 // pred_fallthru
      _
    // Predicated region
    $region50: #{_lambda_.39} parent=1 // pred_check
      _
    $region51: #{_lambda_.39} parent=1 // pred_check_branch
      %100 = sbr.rel (0) target = $region53
    $region52: #{_lambda_.39} parent=1 // pred_region
      %102 = dma.done [#allocation4], 16
    $region53: #{_lambda_.39} parent=1 // pred_fallthru
      _
    // Predicated region
    $region54: #{_lambda_.39} parent=1 // pred_check
      _
    $region55: #{_lambda_.39} parent=1 // pred_check_branch
      %104 = sbr.rel (0) target = $region57
    $region56: #{_lambda_.39} parent=1 // pred_region
      %106 = dma.done [#allocation6], 16
    $region57: #{_lambda_.39} parent=1 // pred_fallthru
      _
    // Predicated region
    $region58: #{_lambda_.39} parent=1 // pred_check
      _
    $region59: #{_lambda_.39} parent=1 // pred_check_branch
      %108 = sbr.rel (0) target = $region61
    $region60: #{_lambda_.39} parent=1 // pred_region
      %110 = dma.done [#allocation6], 16
    $region61: #{_lambda_.39} parent=1 // pred_fallthru
      _
    // Predicated region
    $region62: #{_lambda_.39} parent=1 // pred_check
      _
    $region63: #{_lambda_.39} parent=1 // pred_check_branch
      %112 = sbr.rel (0) target = $region65
    $region64: #{_lambda_.39} parent=1 // pred_region
      %114 = dma.done [#allocation9], 16
    $region65: #{_lambda_.39} parent=1 // pred_fallthru
      _
    // Predicated region
    $region66: #{_lambda_.39} parent=1 // pred_check
      _
    $region67: #{_lambda_.39} parent=1 // pred_check_branch
      %116 = sbr.rel (0) target = $region69
    $region68: #{_lambda_.39} parent=1 // pred_region
      %118 = dma.done [#allocation9], 16
    $region69: #{_lambda_.39} parent=1 // pred_fallthru
      _
    // Predicated region
    $region70: #{_lambda_.39} parent=1 // pred_check
      _
    $region71: #{_lambda_.39} parent=1 // pred_check_branch
      %120 = sbr.rel (0) target = $region73
    $region72: #{_lambda_.39} parent=1 // pred_region
      %122 = dma.done [#allocation12], 16
    $region73: #{_lambda_.39} parent=1 // pred_fallthru
      _
    %v124 = vld [vmem:[%s0] sm:$0xff]
    %v125 = vld [vmem:[%s0 + $0x8] sm:$0xff]
    %v126 = vld [vmem:[%s0 + $0x10] sm:$0xff]
    %v127 = vld [vmem:[%s0 + $0x18] sm:$0xff]
    %v128 = vld [vmem:[%s0 + $0x20] sm:$0xff]
    %v129 = vld [vmem:[%s0 + $0x28] sm:$0xff]
    %v130 = vld [vmem:[%s0 + $0x30] sm:$0xff]
    %v131 = vld [vmem:[%s0 + $0x38] sm:$0xff]
    %v132 = vld [vmem:[%s0 + $0x40] sm:$0xff]
    %v133 = vld [vmem:[%s0 + $0x48] sm:$0xff]
    %v134 = vld [vmem:[#allocation3] sm:$0x1]
    %v135 = vld [vmem:[#allocation5] sm:$0x1]
    %vm136 = vcmask 261120
    %v137 = vsel %vm136, %v124, 0.0
    %138 = vadd.xlane.f32.xlu0 %v137
    %v139 = vpop.xlane.xlu0 %138
    %v140 = vsel %vm136, %v125, 0.0
    %141 = vadd.xlane.f32.xlu0 %v140
    %v142 = vpop.xlane.xlu0 %141
    %v143 = vsel %vm136, %v126, 0.0
    %144 = vadd.xlane.f32.xlu0 %v143
    %v145 = vpop.xlane.xlu0 %144
    %v146 = vsel %vm136, %v127, 0.0
    %147 = vadd.xlane.f32.xlu0 %v146
    %v148 = vpop.xlane.xlu0 %147
    %v149 = vsel %vm136, %v128, 0.0
    %150 = vadd.xlane.f32.xlu0 %v149
    %v151 = vpop.xlane.xlu0 %150
    %v152 = vsel %vm136, %v129, 0.0
    %153 = vadd.xlane.f32.xlu0 %v152
    %v154 = vpop.xlane.xlu0 %153
    %v155 = vsel %vm136, %v130, 0.0
    %156 = vadd.xlane.f32.xlu0 %v155
    %v157 = vpop.xlane.xlu0 %156
    %v158 = vsel %vm136, %v131, 0.0
    %159 = vadd.xlane.f32.xlu0 %v158
    %v160 = vpop.xlane.xlu0 %159
    %v161 = vsel %vm136, %v132, 0.0
    %162 = vadd.xlane.f32.xlu0 %v161
    %v163 = vpop.xlane.xlu0 %162
    %v164 = vsel %vm136, %v133, 0.0
    %165 = vadd.xlane.f32.xlu0 %v164
    %v166 = vpop.xlane.xlu0 %165
    %v167 = vrcp.pop 32.0
    %v168 = vmul.f32 32.0, %v167
    %v169 = vsub.f32 1.0, %v168
    %v170 = vmul.f32 %v167, %v169
    %v171 = vadd.f32 %v167, %v170
    %vm172 = vweird.f32 %v167
    %v173 = vsel %vm172, %v167, %v171
    %v174 = vmul.f32 %v139, %v173
    %v175 = vmul.f32 %v142, %v173
    %v176 = vmul.f32 %v145, %v173
    %v177 = vmul.f32 %v148, %v173
    %v178 = vmul.f32 %v151, %v173
    %v179 = vmul.f32 %v154, %v173
    %v180 = vmul.f32 %v157, %v173
    %v181 = vmul.f32 %v160, %v173
    %v182 = vmul.f32 %v163, %v173
    %v183 = vmul.f32 %v166, %v173
    %v184 = vsub.f32 %v124, %v174
    %v185 = vsub.f32 %v125, %v175
    %v186 = vsub.f32 %v126, %v176
    %v187 = vsub.f32 %v127, %v177
    %v188 = vsub.f32 %v128, %v178
    %v189 = vsub.f32 %v129, %v179
    %v190 = vsub.f32 %v130, %v180
    %v191 = vsub.f32 %v131, %v181
    %v192 = vsub.f32 %v132, %v182
    %v193 = vsub.f32 %v133, %v183
    %v194 = vmul.f32 %v184, %v184
    %v195 = vmul.f32 %v185, %v185
    %v196 = vmul.f32 %v186, %v186
    %v197 = vmul.f32 %v187, %v187
    %v198 = vmul.f32 %v188, %v188
    %v199 = vmul.f32 %v189, %v189
    %v200 = vmul.f32 %v190, %v190
    %v201 = vmul.f32 %v191, %v191
    %v202 = vmul.f32 %v192, %v192
    %v203 = vmul.f32 %v193, %v193
    %v204 = vsel %vm136, %v194, 0.0
    %205 = vadd.xlane.f32.xlu0 %v204
    %v206 = vpop.xlane.xlu0 %205
    %v207 = vsel %vm136, %v195, 0.0
    %208 = vadd.xlane.f32.xlu0 %v207
    %v209 = vpop.xlane.xlu0 %208
    %v210 = vsel %vm136, %v196, 0.0
    %211 = vadd.xlane.f32.xlu0 %v210
    %v212 = vpop.xlane.xlu0 %211
    %v213 = vsel %vm136, %v197, 0.0
    %214 = vadd.xlane.f32.xlu0 %v213
    %v215 = vpop.xlane.xlu0 %214
    %v216 = vsel %vm136, %v198, 0.0
    %217 = vadd.xlane.f32.xlu0 %v216
    %v218 = vpop.xlane.xlu0 %217
    %v219 = vsel %vm136, %v199, 0.0
    %220 = vadd.xlane.f32.xlu0 %v219
    %v221 = vpop.xlane.xlu0 %220
    %v222 = vsel %vm136, %v200, 0.0
    %223 = vadd.xlane.f32.xlu0 %v222
    %v224 = vpop.xlane.xlu0 %223
    %v225 = vsel %vm136, %v201, 0.0
    %226 = vadd.xlane.f32.xlu0 %v225
    %v227 = vpop.xlane.xlu0 %226
    %v228 = vsel %vm136, %v202, 0.0
    %229 = vadd.xlane.f32.xlu0 %v228
    %v230 = vpop.xlane.xlu0 %229
    %v231 = vsel %vm136, %v203, 0.0
    %232 = vadd.xlane.f32.xlu0 %v231
    %v233 = vpop.xlane.xlu0 %232
    %v234 = vmul.f32 %v206, %v173
    %v235 = vmul.f32 %v209, %v173
    %v236 = vmul.f32 %v212, %v173
    %v237 = vmul.f32 %v215, %v173
    %v238 = vmul.f32 %v218, %v173
    %v239 = vmul.f32 %v221, %v173
    %v240 = vmul.f32 %v224, %v173
    %v241 = vmul.f32 %v227, %v173
    %v242 = vmul.f32 %v230, %v173
    %v243 = vmul.f32 %v233, %v173
    %v244 = vadd.f32 %v234, 1e-05
    %v245 = vadd.f32 %v235, 1e-05
    %v246 = vadd.f32 %v236, 1e-05
    %v247 = vadd.f32 %v237, 1e-05
    %v248 = vadd.f32 %v238, 1e-05
    %v249 = vadd.f32 %v239, 1e-05
    %v250 = vadd.f32 %v240, 1e-05
    %v251 = vadd.f32 %v241, 1e-05
    %v252 = vadd.f32 %v242, 1e-05
    %v253 = vadd.f32 %v243, 1e-05
    %v254 = vrsqrt.pop %v244
    %v255 = vmul.f32 %v254, %v244
    %v256 = vmul.f32 %v255, %v254
    %v257 = vmul.f32 0.5, %v256
    %v258 = vsub.f32 1.5, %v257
    %v259 = vmul.f32 %v254, %v258
    %vm260 = vweird.f32 %v244
    %vm261 = vweird.f32 %v254
    %vm262 = vmor %vm260, %vm261
    %v263 = vsel %vm262, %v254, %v259
    %v264 = vrsqrt.pop %v245
    %v265 = vmul.f32 %v264, %v245
    %v266 = vmul.f32 %v265, %v264
    %v267 = vmul.f32 0.5, %v266
    %v268 = vsub.f32 1.5, %v267
    %v269 = vmul.f32 %v264, %v268
    %vm270 = vweird.f32 %v245
    %vm271 = vweird.f32 %v264
    %vm272 = vmor %vm270, %vm271
    %v273 = vsel %vm272, %v264, %v269
    %v274 = vrsqrt.pop %v246
    %v275 = vmul.f32 %v274, %v246
    %v276 = vmul.f32 %v275, %v274
    %v277 = vmul.f32 0.5, %v276
    %v278 = vsub.f32 1.5, %v277
    %v279 = vmul.f32 %v274, %v278
    %vm280 = vweird.f32 %v246
    %vm281 = vweird.f32 %v274
    %vm282 = vmor %vm280, %vm281
    %v283 = vsel %vm282, %v274, %v279
    %v284 = vrsqrt.pop %v247
    %v285 = vmul.f32 %v284, %v247
    %v286 = vmul.f32 %v285, %v284
    %v287 = vmul.f32 0.5, %v286
    %v288 = vsub.f32 1.5, %v287
    %v289 = vmul.f32 %v284, %v288
    %vm290 = vweird.f32 %v247
    %vm291 = vweird.f32 %v284
    %vm292 = vmor %vm290, %vm291
    %v293 = vsel %vm292, %v284, %v289
    %v294 = vrsqrt.pop %v248
    %v295 = vmul.f32 %v294, %v248
    %v296 = vmul.f32 %v295, %v294
    %v297 = vmul.f32 0.5, %v296
    %v298 = vsub.f32 1.5, %v297
    %v299 = vmul.f32 %v294, %v298
    %vm300 = vweird.f32 %v248
    %vm301 = vweird.f32 %v294
    %vm302 = vmor %vm300, %vm301
    %v303 = vsel %vm302, %v294, %v299
    %v304 = vrsqrt.pop %v249
    %v305 = vmul.f32 %v304, %v249
    %v306 = vmul.f32 %v305, %v304
    %v307 = vmul.f32 0.5, %v306
    %v308 = vsub.f32 1.5, %v307
    %v309 = vmul.f32 %v304, %v308
    %vm310 = vweird.f32 %v249
    %vm311 = vweird.f32 %v304
    %vm312 = vmor %vm310, %vm311
    %v313 = vsel %vm312, %v304, %v309
    %v314 = vrsqrt.pop %v250
    %v315 = vmul.f32 %v314, %v250
    %v316 = vmul.f32 %v315, %v314
    %v317 = vmul.f32 0.5, %v316
    %v318 = vsub.f32 1.5, %v317
    %v319 = vmul.f32 %v314, %v318
    %vm320 = vweird.f32 %v250
    %vm321 = vweird.f32 %v314
    %vm322 = vmor %vm320, %vm321
    %v323 = vsel %vm322, %v314, %v319
    %v324 = vrsqrt.pop %v251
    %v325 = vmul.f32 %v324, %v251
    %v326 = vmul.f32 %v325, %v324
    %v327 = vmul.f32 0.5, %v326
    %v328 = vsub.f32 1.5, %v327
    %v329 = vmul.f32 %v324, %v328
    %vm330 = vweird.f32 %v251
    %vm331 = vweird.f32 %v324
    %vm332 = vmor %vm330, %vm331
    %v333 = vsel %vm332, %v324, %v329
    %v334 = vrsqrt.pop %v252
    %v335 = vmul.f32 %v334, %v252
    %v336 = vmul.f32 %v335, %v334
    %v337 = vmul.f32 0.5, %v336
    %v338 = vsub.f32 1.5, %v337
    %v339 = vmul.f32 %v334, %v338
    %vm340 = vweird.f32 %v252
    %vm341 = vweird.f32 %v334
    %vm342 = vmor %vm340, %vm341
    %v343 = vsel %vm342, %v334, %v339
    %v344 = vrsqrt.pop %v253
    %v345 = vmul.f32 %v344, %v253
    %v346 = vmul.f32 %v345, %v344
    %v347 = vmul.f32 0.5, %v346
    %v348 = vsub.f32 1.5, %v347
    %v349 = vmul.f32 %v344, %v348
    %vm350 = vweird.f32 %v253
    %vm351 = vweird.f32 %v344
    %vm352 = vmor %vm350, %vm351
    %v353 = vsel %vm352, %v344, %v349
    %v354 = vmul.f32 %v184, %v263
    %v355 = vmul.f32 %v185, %v273
    %v356 = vmul.f32 %v186, %v283
    %v357 = vmul.f32 %v187, %v293
    %v358 = vmul.f32 %v188, %v303
    %v359 = vmul.f32 %v189, %v313
    %v360 = vmul.f32 %v190, %v323
    %v361 = vmul.f32 %v191, %v333
    %v362 = vmul.f32 %v192, %v343
    %v363 = vmul.f32 %v193, %v353
    %v365 = vperm.slane %v134, 0
    %v367 = vmul.f32 %v354, %v365
    %v368 = vmul.f32 %v355, %v365
    %v369 = vmul.f32 %v356, %v365
    %v370 = vmul.f32 %v357, %v365
    %v371 = vmul.f32 %v358, %v365
    %v372 = vmul.f32 %v359, %v365
    %v373 = vmul.f32 %v360, %v365
    %v374 = vmul.f32 %v361, %v365
    %v375 = vmul.f32 %v362, %v365
    %v376 = vmul.f32 %v363, %v365
    %v378 = vperm.slane %v135, 0
    %v380 = vadd.f32 %v367, %v378
    %v381 = vadd.f32 %v368, %v378
    %v382 = vadd.f32 %v369, %v378
    %v383 = vadd.f32 %v370, %v378
    %v384 = vadd.f32 %v371, %v378
    %v385 = vadd.f32 %v372, %v378
    %v386 = vadd.f32 %v373, %v378
    %v387 = vadd.f32 %v374, %v378
    %v388 = vadd.f32 %v375, %v378
    %v389 = vadd.f32 %v376, %v378
    %p390 = scmp.eq.s32.totalorder 0, 0
    // Predicated region
    $region74: #{_lambda_.39} parent=1 // pred_check
      %p391 = pneg %p390
    $region75: #{_lambda_.39} parent=1 // pred_check_branch
      %393 = sbr.rel (%p391) target = $region77
    $region76: #{_lambda_.39} parent=1 // pred_region
      %v394 = vld [vmem:[%s11] sm:$0xff]
      %v395 = vld [vmem:[%s11 + $0x8] sm:$0xff]
      %v396 = vld [vmem:[%s11 + $0x10] sm:$0xff]
      %v397 = vld [vmem:[%s11 + $0x18] sm:$0xff]
      %v398 = vld [vmem:[%s11 + $0x20] sm:$0xff]
      %v399 = vld [vmem:[%s11 + $0x28] sm:$0xff]
      %v400 = vld [vmem:[%s11 + $0x30] sm:$0xff]
      %v401 = vld [vmem:[%s11 + $0x38] sm:$0xff]
      %v402 = vld [vmem:[%s11 + $0x40] sm:$0xff]
      %v403 = vld [vmem:[%s11 + $0x48] sm:$0xff]
      %v404 = vadd.f32 %v394, 0.0
      %v405 = vadd.f32 %v395, 0.0
      %v406 = vadd.f32 %v396, 0.0
      %v407 = vadd.f32 %v397, 0.0
      %v408 = vadd.f32 %v398, 0.0
      %v409 = vadd.f32 %v399, 0.0
      %v410 = vadd.f32 %v400, 0.0
      %v411 = vadd.f32 %v401, 0.0
      %v412 = vadd.f32 %v402, 0.0
      %v413 = vadd.f32 %v403, 0.0
      %v414 = vld [vmem:[%s7] sm:$0xff]
      %v415 = vld [vmem:[%s7 + $0x8] sm:$0xff]
      %v416 = vld [vmem:[%s7 + $0x10] sm:$0xff]
      %v417 = vld [vmem:[%s7 + $0x18] sm:$0xff]
      %v418 = vpack.c.bf16 %v381, %v380
      %v419 = vpack.c.bf16 %v383, %v382
      %v420 = vpack.c.bf16 %v385, %v384
      %v421 = vpack.c.bf16 %v387, %v386
      %v422 = vpack.c.bf16 %v389, %v388
      %v423 = vpack.c.bf16 %v415, %v414
      %v424 = vpack.c.bf16 %v417, %v416
      %v425 = vld [vmem:[#allocation10] sm:$0x1]
      %v427 = vperm.slane %v425, 0
      %v430 = vsel %vm136, %v418, 0
      %v433 = vsel %vm136, %v419, 0
      %v436 = vsel %vm136, %v420, 0
      %v439 = vsel %vm136, %v421, 0
      %v442 = vsel %vm136, %v422, 0
      %444 = vmatpush.bf16.msra.mxu0 0
      %445 = vmatpush.bf16.msra.mxu0 0
      %446 = vmatpush.bf16.msra.mxu0 0
      %447 = vmatpush.bf16.msra.mxu0 0
      %448 = vmatpush.bf16.msra.mxu0 0
      %449 = vmatpush.bf16.msra.mxu0 0
      %450 = vmatpush.bf16.msra.mxu0 %v424
      %451 = vmatpush.bf16.msra.mxu0 %v423
      %452 = vmatmul.bf16.gmra.mxu0 %v430
      %v453 = vpop.f32.mrf.mxu0
      %v454 = vadd.f32 %v427, %v453
      %v455 = vpop.f32.mrf.mxu0
      %v456 = vadd.f32 %v427, %v455
      %457 = vmatmul.bf16.gmra.mxu0 %v433
      %v458 = vpop.f32.mrf.mxu0
      %v459 = vadd.f32 %v427, %v458
      %v460 = vpop.f32.mrf.mxu0
      %v461 = vadd.f32 %v427, %v460
      %462 = vmatmul.bf16.gmra.mxu0 %v436
      %v463 = vpop.f32.mrf.mxu0
      %v464 = vadd.f32 %v427, %v463
      %v465 = vpop.f32.mrf.mxu0
      %v466 = vadd.f32 %v427, %v465
      %467 = vmatmul.bf16.gmra.mxu0 %v439
      %v468 = vpop.f32.mrf.mxu0
      %v469 = vadd.f32 %v427, %v468
      %v470 = vpop.f32.mrf.mxu0
      %v471 = vadd.f32 %v427, %v470
      %472 = vmatmul.bf16.gmra.mxu0 %v442
      %v473 = vpop.f32.mrf.mxu0
      %v474 = vadd.f32 %v427, %v473
      %v475 = vpop.f32.mrf.mxu0
      %v476 = vadd.f32 %v427, %v475
      %477 = vdwg.mxu0
      %v478 = vmul.f32 %v454, 0.5
      %v479 = vmul.f32 %v456, 0.5
      %v480 = vmul.f32 %v459, 0.5
      %v481 = vmul.f32 %v461, 0.5
      %v482 = vmul.f32 %v464, 0.5
      %v483 = vmul.f32 %v466, 0.5
      %v484 = vmul.f32 %v469, 0.5
      %v485 = vmul.f32 %v471, 0.5
      %v486 = vmul.f32 %v474, 0.5
      %v487 = vmul.f32 %v476, 0.5
      %v488 = vmul.f32 %v454, 0.70710677
      %v489 = vmul.f32 %v456, 0.70710677
      %v490 = vmul.f32 %v459, 0.70710677
      %v491 = vmul.f32 %v461, 0.70710677
      %v492 = vmul.f32 %v464, 0.70710677
      %v493 = vmul.f32 %v466, 0.70710677
      %v494 = vmul.f32 %v469, 0.70710677
      %v495 = vmul.f32 %v471, 0.70710677
      %v496 = vmul.f32 %v474, 0.70710677
      %v497 = vmul.f32 %v476, 0.70710677
      %v498 = vmul.f32 %v488, %v488
      %v499 = vmin.f32 16.0, %v498
      %v500 = vmul.f32 %v499, 2.1237322e-06
      %v501 = vadd.f32 %v500, 0.00028619796
      %v502 = vmul.f32 %v499, %v501
      %v503 = vadd.f32 %v502, 0.0036580483
      %v504 = vmul.f32 %v499, %v503
      %v505 = vadd.f32 %v504, 0.05243302
      %v506 = vmul.f32 %v499, %v505
      %v507 = vadd.f32 %v506, 0.18741608
      %v508 = vmul.f32 %v499, %v507
      %v509 = vadd.f32 %v508, 1.1283791
      %v510 = vmul.f32 %v488, %v509
      %v511 = vmul.f32 %v499, 3.8918573e-05
      %v512 = vadd.f32 %v511, 0.001143296
      %v513 = vmul.f32 %v499, %v512
      %v514 = vadd.f32 %v513, 0.014752088
      %v515 = vmul.f32 %v499, %v514
      %v516 = vadd.f32 %v515, 0.112945676
      %v517 = vmul.f32 %v499, %v516
      %v518 = vadd.f32 %v517, 0.4994258
      %v519 = vmul.f32 %v499, %v518
      %v520 = vadd.f32 %v519, 1.0
      %v521 = vrcp.pop %v520
      %v522 = vmul.f32 %v520, %v521
      %v523 = vsub.f32 1.0, %v522
      %v524 = vmul.f32 %v521, %v523
      %v525 = vadd.f32 %v521, %v524
      %vm526 = vweird.f32 %v520
      %vm527 = vweird.f32 %v521
      %vm528 = vmor %vm526, %vm527
      %v529 = vsel %vm528, %v521, %v525
      %v530 = vand.u32 2147483647, %v520
      %vm531 = vcmp.eq.f32.partialorder %v530, 8.507059e+37
      %v532 = vand.u32 %v520, 2147483648
      %v533 = vor.u32 1.1754944e-38, %v532
      %v534 = vsel %vm531, %v533, %v529
      %v535 = vmul.f32 %v510, %v534
      %v536 = vmin.f32 %v535, 1.0
      %v537 = vmax.f32 %v536, -1.0
      %v538 = vmul.f32 %v489, %v489
      %v539 = vmin.f32 16.0, %v538
      %v540 = vmul.f32 %v539, 2.1237322e-06
      %v541 = vadd.f32 %v540, 0.00028619796
      %v542 = vmul.f32 %v539, %v541
      %v543 = vadd.f32 %v542, 0.0036580483
      %v544 = vmul.f32 %v539, %v543
      %v545 = vadd.f32 %v544, 0.05243302
      %v546 = vmul.f32 %v539, %v545
      %v547 = vadd.f32 %v546, 0.18741608
      %v548 = vmul.f32 %v539, %v547
      %v549 = vadd.f32 %v548, 1.1283791
      %v550 = vmul.f32 %v489, %v549
      %v551 = vmul.f32 %v539, 3.8918573e-05
      %v552 = vadd.f32 %v551, 0.001143296
      %v553 = vmul.f32 %v539, %v552
      %v554 = vadd.f32 %v553, 0.014752088
      %v555 = vmul.f32 %v539, %v554
      %v556 = vadd.f32 %v555, 0.112945676
      %v557 = vmul.f32 %v539, %v556
      %v558 = vadd.f32 %v557, 0.4994258
      %v559 = vmul.f32 %v539, %v558
      %v560 = vadd.f32 %v559, 1.0
      %v561 = vrcp.pop %v560
      %v562 = vmul.f32 %v560, %v561
      %v563 = vsub.f32 1.0, %v562
      %v564 = vmul.f32 %v561, %v563
      %v565 = vadd.f32 %v561, %v564
      %vm566 = vweird.f32 %v560
      %vm567 = vweird.f32 %v561
      %vm568 = vmor %vm566, %vm567
      %v569 = vsel %vm568, %v561, %v565
      %v570 = vand.u32 2147483647, %v560
      %vm571 = vcmp.eq.f32.partialorder %v570, 8.507059e+37
      %v572 = vand.u32 %v560, 2147483648
      %v573 = vor.u32 1.1754944e-38, %v572
      %v574 = vsel %vm571, %v573, %v569
      %v575 = vmul.f32 %v550, %v574
      %v576 = vmin.f32 %v575, 1.0
      %v577 = vmax.f32 %v576, -1.0
      %v578 = vmul.f32 %v490, %v490
      %v579 = vmin.f32 16.0, %v578
      %v580 = vmul.f32 %v579, 2.1237322e-06
      %v581 = vadd.f32 %v580, 0.00028619796
      %v582 = vmul.f32 %v579, %v581
      %v583 = vadd.f32 %v582, 0.0036580483
      %v584 = vmul.f32 %v579, %v583
      %v585 = vadd.f32 %v584, 0.05243302
      %v586 = vmul.f32 %v579, %v585
      %v587 = vadd.f32 %v586, 0.18741608
      %v588 = vmul.f32 %v579, %v587
      %v589 = vadd.f32 %v588, 1.1283791
      %v590 = vmul.f32 %v490, %v589
      %v591 = vmul.f32 %v579, 3.8918573e-05
      %v592 = vadd.f32 %v591, 0.001143296
      %v593 = vmul.f32 %v579, %v592
      %v594 = vadd.f32 %v593, 0.014752088
      %v595 = vmul.f32 %v579, %v594
      %v596 = vadd.f32 %v595, 0.112945676
      %v597 = vmul.f32 %v579, %v596
      %v598 = vadd.f32 %v597, 0.4994258
      %v599 = vmul.f32 %v579, %v598
      %v600 = vadd.f32 %v599, 1.0
      %v601 = vrcp.pop %v600
      %v602 = vmul.f32 %v600, %v601
      %v603 = vsub.f32 1.0, %v602
      %v604 = vmul.f32 %v601, %v603
      %v605 = vadd.f32 %v601, %v604
      %vm606 = vweird.f32 %v600
      %vm607 = vweird.f32 %v601
      %vm608 = vmor %vm606, %vm607
      %v609 = vsel %vm608, %v601, %v605
      %v610 = vand.u32 2147483647, %v600
      %vm611 = vcmp.eq.f32.partialorder %v610, 8.507059e+37
      %v612 = vand.u32 %v600, 2147483648
      %v613 = vor.u32 1.1754944e-38, %v612
      %v614 = vsel %vm611, %v613, %v609
      %v615 = vmul.f32 %v590, %v614
      %v616 = vmin.f32 %v615, 1.0
      %v617 = vmax.f32 %v616, -1.0
      %v618 = vmul.f32 %v491, %v491
      %v619 = vmin.f32 16.0, %v618
      %v620 = vmul.f32 %v619, 2.1237322e-06
      %v621 = vadd.f32 %v620, 0.00028619796
      %v622 = vmul.f32 %v619, %v621
      %v623 = vadd.f32 %v622, 0.0036580483
      %v624 = vmul.f32 %v619, %v623
      %v625 = vadd.f32 %v624, 0.05243302
      %v626 = vmul.f32 %v619, %v625
      %v627 = vadd.f32 %v626, 0.18741608
      %v628 = vmul.f32 %v619, %v627
      %v629 = vadd.f32 %v628, 1.1283791
      %v630 = vmul.f32 %v491, %v629
      %v631 = vmul.f32 %v619, 3.8918573e-05
      %v632 = vadd.f32 %v631, 0.001143296
      %v633 = vmul.f32 %v619, %v632
      %v634 = vadd.f32 %v633, 0.014752088
      %v635 = vmul.f32 %v619, %v634
      %v636 = vadd.f32 %v635, 0.112945676
      %v637 = vmul.f32 %v619, %v636
      %v638 = vadd.f32 %v637, 0.4994258
      %v639 = vmul.f32 %v619, %v638
      %v640 = vadd.f32 %v639, 1.0
      %v641 = vrcp.pop %v640
      %v642 = vmul.f32 %v640, %v641
      %v643 = vsub.f32 1.0, %v642
      %v644 = vmul.f32 %v641, %v643
      %v645 = vadd.f32 %v641, %v644
      %vm646 = vweird.f32 %v640
      %vm647 = vweird.f32 %v641
      %vm648 = vmor %vm646, %vm647
      %v649 = vsel %vm648, %v641, %v645
      %v650 = vand.u32 2147483647, %v640
      %vm651 = vcmp.eq.f32.partialorder %v650, 8.507059e+37
      %v652 = vand.u32 %v640, 2147483648
      %v653 = vor.u32 1.1754944e-38, %v652
      %v654 = vsel %vm651, %v653, %v649
      %v655 = vmul.f32 %v630, %v654
      %v656 = vmin.f32 %v655, 1.0
      %v657 = vmax.f32 %v656, -1.0
      %v658 = vmul.f32 %v492, %v492
      %v659 = vmin.f32 16.0, %v658
      %v660 = vmul.f32 %v659, 2.1237322e-06
      %v661 = vadd.f32 %v660, 0.00028619796
      %v662 = vmul.f32 %v659, %v661
      %v663 = vadd.f32 %v662, 0.0036580483
      %v664 = vmul.f32 %v659, %v663
      %v665 = vadd.f32 %v664, 0.05243302
      %v666 = vmul.f32 %v659, %v665
      %v667 = vadd.f32 %v666, 0.18741608
      %v668 = vmul.f32 %v659, %v667
      %v669 = vadd.f32 %v668, 1.1283791
      %v670 = vmul.f32 %v492, %v669
      %v671 = vmul.f32 %v659, 3.8918573e-05
      %v672 = vadd.f32 %v671, 0.001143296
      %v673 = vmul.f32 %v659, %v672
      %v674 = vadd.f32 %v673, 0.014752088
      %v675 = vmul.f32 %v659, %v674
      %v676 = vadd.f32 %v675, 0.112945676
      %v677 = vmul.f32 %v659, %v676
      %v678 = vadd.f32 %v677, 0.4994258
      %v679 = vmul.f32 %v659, %v678
      %v680 = vadd.f32 %v679, 1.0
      %v681 = vrcp.pop %v680
      %v682 = vmul.f32 %v680, %v681
      %v683 = vsub.f32 1.0, %v682
      %v684 = vmul.f32 %v681, %v683
      %v685 = vadd.f32 %v681, %v684
      %vm686 = vweird.f32 %v680
      %vm687 = vweird.f32 %v681
      %vm688 = vmor %vm686, %vm687
      %v689 = vsel %vm688, %v681, %v685
      %v690 = vand.u32 2147483647, %v680
      %vm691 = vcmp.eq.f32.partialorder %v690, 8.507059e+37
      %v692 = vand.u32 %v680, 2147483648
      %v693 = vor.u32 1.1754944e-38, %v692
      %v694 = vsel %vm691, %v693, %v689
      %v695 = vmul.f32 %v670, %v694
      %v696 = vmin.f32 %v695, 1.0
      %v697 = vmax.f32 %v696, -1.0
      %v698 = vmul.f32 %v493, %v493
      %v699 = vmin.f32 16.0, %v698
      %v700 = vmul.f32 %v699, 2.1237322e-06
      %v701 = vadd.f32 %v700, 0.00028619796
      %v702 = vmul.f32 %v699, %v701
      %v703 = vadd.f32 %v702, 0.0036580483
      %v704 = vmul.f32 %v699, %v703
      %v705 = vadd.f32 %v704, 0.05243302
      %v706 = vmul.f32 %v699, %v705
      %v707 = vadd.f32 %v706, 0.18741608
      %v708 = vmul.f32 %v699, %v707
      %v709 = vadd.f32 %v708, 1.1283791
      %v710 = vmul.f32 %v493, %v709
      %v711 = vmul.f32 %v699, 3.8918573e-05
      %v712 = vadd.f32 %v711, 0.001143296
      %v713 = vmul.f32 %v699, %v712
      %v714 = vadd.f32 %v713, 0.014752088
      %v715 = vmul.f32 %v699, %v714
      %v716 = vadd.f32 %v715, 0.112945676
      %v717 = vmul.f32 %v699, %v716
      %v718 = vadd.f32 %v717, 0.4994258
      %v719 = vmul.f32 %v699, %v718
      %v720 = vadd.f32 %v719, 1.0
      %v721 = vrcp.pop %v720
      %v722 = vmul.f32 %v720, %v721
      %v723 = vsub.f32 1.0, %v722
      %v724 = vmul.f32 %v721, %v723
      %v725 = vadd.f32 %v721, %v724
      %vm726 = vweird.f32 %v720
      %vm727 = vweird.f32 %v721
      %vm728 = vmor %vm726, %vm727
      %v729 = vsel %vm728, %v721, %v725
      %v730 = vand.u32 2147483647, %v720
      %vm731 = vcmp.eq.f32.partialorder %v730, 8.507059e+37
      %v732 = vand.u32 %v720, 2147483648
      %v733 = vor.u32 1.1754944e-38, %v732
      %v734 = vsel %vm731, %v733, %v729
      %v735 = vmul.f32 %v710, %v734
      %v736 = vmin.f32 %v735, 1.0
      %v737 = vmax.f32 %v736, -1.0
      %v738 = vmul.f32 %v494, %v494
      %v739 = vmin.f32 16.0, %v738
      %v740 = vmul.f32 %v739, 2.1237322e-06
      %v741 = vadd.f32 %v740, 0.00028619796
      %v742 = vmul.f32 %v739, %v741
      %v743 = vadd.f32 %v742, 0.0036580483
      %v744 = vmul.f32 %v739, %v743
      %v745 = vadd.f32 %v744, 0.05243302
      %v746 = vmul.f32 %v739, %v745
      %v747 = vadd.f32 %v746, 0.18741608
      %v748 = vmul.f32 %v739, %v747
      %v749 = vadd.f32 %v748, 1.1283791
      %v750 = vmul.f32 %v494, %v749
      %v751 = vmul.f32 %v739, 3.8918573e-05
      %v752 = vadd.f32 %v751, 0.001143296
      %v753 = vmul.f32 %v739, %v752
      %v754 = vadd.f32 %v753, 0.014752088
      %v755 = vmul.f32 %v739, %v754
      %v756 = vadd.f32 %v755, 0.112945676
      %v757 = vmul.f32 %v739, %v756
      %v758 = vadd.f32 %v757, 0.4994258
      %v759 = vmul.f32 %v739, %v758
      %v760 = vadd.f32 %v759, 1.0
      %v761 = vrcp.pop %v760
      %v762 = vmul.f32 %v760, %v761
      %v763 = vsub.f32 1.0, %v762
      %v764 = vmul.f32 %v761, %v763
      %v765 = vadd.f32 %v761, %v764
      %vm766 = vweird.f32 %v760
      %vm767 = vweird.f32 %v761
      %vm768 = vmor %vm766, %vm767
      %v769 = vsel %vm768, %v761, %v765
      %v770 = vand.u32 2147483647, %v760
      %vm771 = vcmp.eq.f32.partialorder %v770, 8.507059e+37
      %v772 = vand.u32 %v760, 2147483648
      %v773 = vor.u32 1.1754944e-38, %v772
      %v774 = vsel %vm771, %v773, %v769
      %v775 = vmul.f32 %v750, %v774
      %v776 = vmin.f32 %v775, 1.0
      %v777 = vmax.f32 %v776, -1.0
      %v778 = vmul.f32 %v495, %v495
      %v779 = vmin.f32 16.0, %v778
      %v780 = vmul.f32 %v779, 2.1237322e-06
      %v781 = vadd.f32 %v780, 0.00028619796
      %v782 = vmul.f32 %v779, %v781
      %v783 = vadd.f32 %v782, 0.0036580483
      %v784 = vmul.f32 %v779, %v783
      %v785 = vadd.f32 %v784, 0.05243302
      %v786 = vmul.f32 %v779, %v785
      %v787 = vadd.f32 %v786, 0.18741608
      %v788 = vmul.f32 %v779, %v787
      %v789 = vadd.f32 %v788, 1.1283791
      %v790 = vmul.f32 %v495, %v789
      %v791 = vmul.f32 %v779, 3.8918573e-05
      %v792 = vadd.f32 %v791, 0.001143296
      %v793 = vmul.f32 %v779, %v792
      %v794 = vadd.f32 %v793, 0.014752088
      %v795 = vmul.f32 %v779, %v794
      %v796 = vadd.f32 %v795, 0.112945676
      %v797 = vmul.f32 %v779, %v796
      %v798 = vadd.f32 %v797, 0.4994258
      %v799 = vmul.f32 %v779, %v798
      %v800 = vadd.f32 %v799, 1.0
      %v801 = vrcp.pop %v800
      %v802 = vmul.f32 %v800, %v801
      %v803 = vsub.f32 1.0, %v802
      %v804 = vmul.f32 %v801, %v803
      %v805 = vadd.f32 %v801, %v804
      %vm806 = vweird.f32 %v800
      %vm807 = vweird.f32 %v801
      %vm808 = vmor %vm806, %vm807
      %v809 = vsel %vm808, %v801, %v805
      %v810 = vand.u32 2147483647, %v800
      %vm811 = vcmp.eq.f32.partialorder %v810, 8.507059e+37
      %v812 = vand.u32 %v800, 2147483648
      %v813 = vor.u32 1.1754944e-38, %v812
      %v814 = vsel %vm811, %v813, %v809
      %v815 = vmul.f32 %v790, %v814
      %v816 = vmin.f32 %v815, 1.0
      %v817 = vmax.f32 %v816, -1.0
      %v818 = vmul.f32 %v496, %v496
      %v819 = vmin.f32 16.0, %v818
      %v820 = vmul.f32 %v819, 2.1237322e-06
      %v821 = vadd.f32 %v820, 0.00028619796
      %v822 = vmul.f32 %v819, %v821
      %v823 = vadd.f32 %v822, 0.0036580483
      %v824 = vmul.f32 %v819, %v823
      %v825 = vadd.f32 %v824, 0.05243302
      %v826 = vmul.f32 %v819, %v825
      %v827 = vadd.f32 %v826, 0.18741608
      %v828 = vmul.f32 %v819, %v827
      %v829 = vadd.f32 %v828, 1.1283791
      %v830 = vmul.f32 %v496, %v829
      %v831 = vmul.f32 %v819, 3.8918573e-05
      %v832 = vadd.f32 %v831, 0.001143296
      %v833 = vmul.f32 %v819, %v832
      %v834 = vadd.f32 %v833, 0.014752088
      %v835 = vmul.f32 %v819, %v834
      %v836 = vadd.f32 %v835, 0.112945676
      %v837 = vmul.f32 %v819, %v836
      %v838 = vadd.f32 %v837, 0.4994258
      %v839 = vmul.f32 %v819, %v838
      %v840 = vadd.f32 %v839, 1.0
      %v841 = vrcp.pop %v840
      %v842 = vmul.f32 %v840, %v841
      %v843 = vsub.f32 1.0, %v842
      %v844 = vmul.f32 %v841, %v843
      %v845 = vadd.f32 %v841, %v844
      %vm846 = vweird.f32 %v840
      %vm847 = vweird.f32 %v841
      %vm848 = vmor %vm846, %vm847
      %v849 = vsel %vm848, %v841, %v845
      %v850 = vand.u32 2147483647, %v840
      %vm851 = vcmp.eq.f32.partialorder %v850, 8.507059e+37
      %v852 = vand.u32 %v840, 2147483648
      %v853 = vor.u32 1.1754944e-38, %v852
      %v854 = vsel %vm851, %v853, %v849
      %v855 = vmul.f32 %v830, %v854
      %v856 = vmin.f32 %v855, 1.0
      %v857 = vmax.f32 %v856, -1.0
      %v858 = vmul.f32 %v497, %v497
      %v859 = vmin.f32 16.0, %v858
      %v860 = vmul.f32 %v859, 2.1237322e-06
      %v861 = vadd.f32 %v860, 0.00028619796
      %v862 = vmul.f32 %v859, %v861
      %v863 = vadd.f32 %v862, 0.0036580483
      %v864 = vmul.f32 %v859, %v863
      %v865 = vadd.f32 %v864, 0.05243302
      %v866 = vmul.f32 %v859, %v865
      %v867 = vadd.f32 %v866, 0.18741608
      %v868 = vmul.f32 %v859, %v867
      %v869 = vadd.f32 %v868, 1.1283791
      %v870 = vmul.f32 %v497, %v869
      %v871 = vmul.f32 %v859, 3.8918573e-05
      %v872 = vadd.f32 %v871, 0.001143296
      %v873 = vmul.f32 %v859, %v872
      %v874 = vadd.f32 %v873, 0.014752088
      %v875 = vmul.f32 %v859, %v874
      %v876 = vadd.f32 %v875, 0.112945676
      %v877 = vmul.f32 %v859, %v876
      %v878 = vadd.f32 %v877, 0.4994258
      %v879 = vmul.f32 %v859, %v878
      %v880 = vadd.f32 %v879, 1.0
      %v881 = vrcp.pop %v880
      %v882 = vmul.f32 %v880, %v881
      %v883 = vsub.f32 1.0, %v882
      %v884 = vmul.f32 %v881, %v883
      %v885 = vadd.f32 %v881, %v884
      %vm886 = vweird.f32 %v880
      %vm887 = vweird.f32 %v881
      %vm888 = vmor %vm886, %vm887
      %v889 = vsel %vm888, %v881, %v885
      %v890 = vand.u32 2147483647, %v880
      %vm891 = vcmp.eq.f32.partialorder %v890, 8.507059e+37
      %v892 = vand.u32 %v880, 2147483648
      %v893 = vor.u32 1.1754944e-38, %v892
      %v894 = vsel %vm891, %v893, %v889
      %v895 = vmul.f32 %v870, %v894
      %v896 = vmin.f32 %v895, 1.0
      %v897 = vmax.f32 %v896, -1.0
      %v898 = vadd.f32 %v537, 1.0
      %v899 = vadd.f32 %v577, 1.0
      %v900 = vadd.f32 %v617, 1.0
      %v901 = vadd.f32 %v657, 1.0
      %v902 = vadd.f32 %v697, 1.0
      %v903 = vadd.f32 %v737, 1.0
      %v904 = vadd.f32 %v777, 1.0
      %v905 = vadd.f32 %v817, 1.0
      %v906 = vadd.f32 %v857, 1.0
      %v907 = vadd.f32 %v897, 1.0
      %v908 = vmul.f32 %v478, %v898
      %v909 = vmul.f32 %v479, %v899
      %v910 = vmul.f32 %v480, %v900
      %v911 = vmul.f32 %v481, %v901
      %v912 = vmul.f32 %v482, %v902
      %v913 = vmul.f32 %v483, %v903
      %v914 = vmul.f32 %v484, %v904
      %v915 = vmul.f32 %v485, %v905
      %v916 = vmul.f32 %v486, %v906
      %v917 = vmul.f32 %v487, %v907
      %v918 = vld [vmem:[%s9] sm:$0xff]
      %v919 = vpack.c.bf16 %v909, %v908
      %v920 = vpack.c.bf16 %v911, %v910
      %v921 = vpack.c.bf16 %v913, %v912
      %v922 = vpack.c.bf16 %v915, %v914
      %v923 = vpack.c.bf16 %v917, %v916
      %v924 = vpack.c.bf16 %v918, %v918
      %vm925 = vcmask 64512
      %v927 = vsel %vm925, %v919, 0
      %v930 = vsel %vm925, %v920, 0
      %v933 = vsel %vm925, %v921, 0
      %v936 = vsel %vm925, %v922, 0
      %v939 = vsel %vm925, %v923, 0
      %vm941 = vcmask 1043456
      %v943 = vsel %vm941, %v924, 0
      %945 = vmatpush.bf16.msra.mxu0 0
      %946 = vmatpush.bf16.msra.mxu0 0
      %947 = vmatpush.bf16.msra.mxu0 0
      %948 = vmatpush.bf16.msra.mxu0 0
      %949 = vmatpush.bf16.msra.mxu0 0
      %950 = vmatpush.bf16.msra.mxu0 0
      %951 = vmatpush.bf16.msra.mxu0 0
      %952 = vmatpush.bf16.msra.mxu0 %v943
      %953 = vmatmul.bf16.gmra.mxu0 %v927
      %v954 = vpop.f32.mrf.mxu0
      %v955 = vadd.f32 0.0, %v954
      %v956 = vpop.f32.mrf.mxu0
      %v957 = vadd.f32 0.0, %v956
      %958 = vmatmul.bf16.gmra.mxu0 %v930
      %v959 = vpop.f32.mrf.mxu0
      %v960 = vadd.f32 0.0, %v959
      %v961 = vpop.f32.mrf.mxu0
      %v962 = vadd.f32 0.0, %v961
      %963 = vmatmul.bf16.gmra.mxu0 %v933
      %v964 = vpop.f32.mrf.mxu0
      %v965 = vadd.f32 0.0, %v964
      %v966 = vpop.f32.mrf.mxu0
      %v967 = vadd.f32 0.0, %v966
      %968 = vmatmul.bf16.gmra.mxu0 %v936
      %v969 = vpop.f32.mrf.mxu0
      %v970 = vadd.f32 0.0, %v969
      %v971 = vpop.f32.mrf.mxu0
      %v972 = vadd.f32 0.0, %v971
      %973 = vmatmul.bf16.gmra.mxu0 %v939
      %v974 = vpop.f32.mrf.mxu0
      %v975 = vadd.f32 0.0, %v974
      %v976 = vpop.f32.mrf.mxu0
      %v977 = vadd.f32 0.0, %v976
      %978 = vdwg.mxu0
      %v979 = vadd.f32 %v404, %v955
      %v980 = vadd.f32 %v405, %v957
      %v981 = vadd.f32 %v406, %v960
      %v982 = vadd.f32 %v407, %v962
      %v983 = vadd.f32 %v408, %v965
      %v984 = vadd.f32 %v409, %v967
      %v985 = vadd.f32 %v410, %v970
      %v986 = vadd.f32 %v411, %v972
      %v987 = vadd.f32 %v412, %v975
      %v988 = vadd.f32 %v413, %v977
      %v989 = vld [vmem:[#allocation11] sm:$0x1]
      %v991 = vperm.slane %v989, 0
      %v993 = vadd.f32 %v979, %v991
      %v994 = vadd.f32 %v980, %v991
      %v995 = vadd.f32 %v981, %v991
      %v996 = vadd.f32 %v982, %v991
      %v997 = vadd.f32 %v983, %v991
      %v998 = vadd.f32 %v984, %v991
      %v999 = vadd.f32 %v985, %v991
      %v1000 = vadd.f32 %v986, %v991
      %v1001 = vadd.f32 %v987, %v991
      %v1002 = vadd.f32 %v988, %v991
      %1003 = vst.msk [vmem:[#allocation2] sm:$0xff] %vm136, %v993
      %1004 = vst.msk [vmem:[#allocation2 + $0x8] sm:$0xff] %vm136, %v994
      %1005 = vst.msk [vmem:[#allocation2 + $0x10] sm:$0xff] %vm136, %v995
      %1006 = vst.msk [vmem:[#allocation2 + $0x18] sm:$0xff] %vm136, %v996
      %1007 = vst.msk [vmem:[#allocation2 + $0x20] sm:$0xff] %vm136, %v997
      %1008 = vst.msk [vmem:[#allocation2 + $0x28] sm:$0xff] %vm136, %v998
      %1009 = vst.msk [vmem:[#allocation2 + $0x30] sm:$0xff] %vm136, %v999
      %1010 = vst.msk [vmem:[#allocation2 + $0x38] sm:$0xff] %vm136, %v1000
      %1011 = vst.msk [vmem:[#allocation2 + $0x40] sm:$0xff] %vm136, %v1001
      %1012 = vst.msk [vmem:[#allocation2 + $0x48] sm:$0xff] %vm136, %v1002
    $region77: #{_lambda_.39} parent=1 // pred_fallthru
      _
    %v1013 = vld [vmem:[%s3] sm:$0xff]
    %v1014 = vld [vmem:[%s3 + $0x8] sm:$0xff]
    %v1015 = vld [vmem:[%s3 + $0x10] sm:$0xff]
    %v1016 = vld [vmem:[%s3 + $0x18] sm:$0xff]
    %v1017 = vpack.c.bf16 %v381, %v380
    %v1018 = vpack.c.bf16 %v383, %v382
    %v1019 = vpack.c.bf16 %v385, %v384
    %v1020 = vpack.c.bf16 %v387, %v386
    %v1021 = vpack.c.bf16 %v389, %v388
    %v1022 = vpack.c.bf16 %v1014, %v1013
    %v1023 = vpack.c.bf16 %v1016, %v1015
    %v1024 = vld [vmem:[#allocation7] sm:$0x1]
    %v1026 = vperm.slane %v1024, 0
    %v1029 = vsel %vm136, %v1017, 0
    %v1032 = vsel %vm136, %v1018, 0
    %v1035 = vsel %vm136, %v1019, 0
    %v1038 = vsel %vm136, %v1020, 0
    %v1041 = vsel %vm136, %v1021, 0
    %1043 = vmatpush.bf16.msra.mxu0 0
    %1044 = vmatpush.bf16.msra.mxu0 0
    %1045 = vmatpush.bf16.msra.mxu0 0
    %1046 = vmatpush.bf16.msra.mxu0 0
    %1047 = vmatpush.bf16.msra.mxu0 0
    %1048 = vmatpush.bf16.msra.mxu0 0
    %1049 = vmatpush.bf16.msra.mxu0 %v1023
    %1050 = vmatpush.bf16.msra.mxu0 %v1022
    %1051 = vmatmul.bf16.gmra.mxu0 %v1029
    %v1052 = vpop.f32.mrf.mxu0
    %v1053 = vadd.f32 %v1026, %v1052
    %v1054 = vpop.f32.mrf.mxu0
    %v1055 = vadd.f32 %v1026, %v1054
    %1056 = vmatmul.bf16.gmra.mxu0 %v1032
    %v1057 = vpop.f32.mrf.mxu0
    %v1058 = vadd.f32 %v1026, %v1057
    %v1059 = vpop.f32.mrf.mxu0
    %v1060 = vadd.f32 %v1026, %v1059
    %1061 = vmatmul.bf16.gmra.mxu0 %v1035
    %v1062 = vpop.f32.mrf.mxu0
    %v1063 = vadd.f32 %v1026, %v1062
    %v1064 = vpop.f32.mrf.mxu0
    %v1065 = vadd.f32 %v1026, %v1064
    %1066 = vmatmul.bf16.gmra.mxu0 %v1038
    %v1067 = vpop.f32.mrf.mxu0
    %v1068 = vadd.f32 %v1026, %v1067
    %v1069 = vpop.f32.mrf.mxu0
    %v1070 = vadd.f32 %v1026, %v1069
    %1071 = vmatmul.bf16.gmra.mxu0 %v1041
    %v1072 = vpop.f32.mrf.mxu0
    %v1073 = vadd.f32 %v1026, %v1072
    %v1074 = vpop.f32.mrf.mxu0
    %v1075 = vadd.f32 %v1026, %v1074
    %1076 = vdwg.mxu0
    %v1077 = vmul.f32 %v1053, 1.702
    %v1078 = vmul.f32 %v1055, 1.702
    %v1079 = vmul.f32 %v1058, 1.702
    %v1080 = vmul.f32 %v1060, 1.702
    %v1081 = vmul.f32 %v1063, 1.702
    %v1082 = vmul.f32 %v1065, 1.702
    %v1083 = vmul.f32 %v1068, 1.702
    %v1084 = vmul.f32 %v1070, 1.702
    %v1085 = vmul.f32 %v1073, 1.702
    %v1086 = vmul.f32 %v1075, 1.702
    %v1087 = vxor.u32 %v1077, 2147483648
    %v1088 = vxor.u32 %v1078, 2147483648
    %v1089 = vxor.u32 %v1079, 2147483648
    %v1090 = vxor.u32 %v1080, 2147483648
    %v1091 = vxor.u32 %v1081, 2147483648
    %v1092 = vxor.u32 %v1082, 2147483648
    %v1093 = vxor.u32 %v1083, 2147483648
    %v1094 = vxor.u32 %v1084, 2147483648
    %v1095 = vxor.u32 %v1085, 2147483648
    %v1096 = vxor.u32 %v1086, 2147483648
    %v1097 = vmul.f32 %v1087, 1.442695
    %v1098 = vpow.pop %v1097
    %v1099 = vmul.f32 %v1088, 1.442695
    %v1100 = vpow.pop %v1099
    %v1101 = vmul.f32 %v1089, 1.442695
    %v1102 = vpow.pop %v1101
    %v1103 = vmul.f32 %v1090, 1.442695
    %v1104 = vpow.pop %v1103
    %v1105 = vmul.f32 %v1091, 1.442695
    %v1106 = vpow.pop %v1105
    %v1107 = vmul.f32 %v1092, 1.442695
    %v1108 = vpow.pop %v1107
    %v1109 = vmul.f32 %v1093, 1.442695
    %v1110 = vpow.pop %v1109
    %v1111 = vmul.f32 %v1094, 1.442695
    %v1112 = vpow.pop %v1111
    %v1113 = vmul.f32 %v1095, 1.442695
    %v1114 = vpow.pop %v1113
    %v1115 = vmul.f32 %v1096, 1.442695
    %v1116 = vpow.pop %v1115
    %v1117 = vadd.f32 %v1098, 1.0
    %v1118 = vadd.f32 %v1100, 1.0
    %v1119 = vadd.f32 %v1102, 1.0
    %v1120 = vadd.f32 %v1104, 1.0
    %v1121 = vadd.f32 %v1106, 1.0
    %v1122 = vadd.f32 %v1108, 1.0
    %v1123 = vadd.f32 %v1110, 1.0
    %v1124 = vadd.f32 %v1112, 1.0
    %v1125 = vadd.f32 %v1114, 1.0
    %v1126 = vadd.f32 %v1116, 1.0
    %v1127 = vrcp.pop %v1117
    %v1128 = vmul.f32 %v1117, %v1127
    %v1129 = vsub.f32 1.0, %v1128
    %v1130 = vmul.f32 %v1127, %v1129
    %v1131 = vadd.f32 %v1127, %v1130
    %vm1132 = vweird.f32 %v1117
    %vm1133 = vweird.f32 %v1127
    %vm1134 = vmor %vm1132, %vm1133
    %v1135 = vsel %vm1134, %v1127, %v1131
    %v1136 = vand.u32 2147483647, %v1117
    %vm1137 = vcmp.eq.f32.partialorder %v1136, 8.507059e+37
    %v1138 = vand.u32 %v1117, 2147483648
    %v1139 = vor.u32 1.1754944e-38, %v1138
    %v1140 = vsel %vm1137, %v1139, %v1135
    %v1141 = vmul.f32 1.0, %v1140
    %v1142 = vrcp.pop %v1118
    %v1143 = vmul.f32 %v1118, %v1142
    %v1144 = vsub.f32 1.0, %v1143
    %v1145 = vmul.f32 %v1142, %v1144
    %v1146 = vadd.f32 %v1142, %v1145
    %vm1147 = vweird.f32 %v1118
    %vm1148 = vweird.f32 %v1142
    %vm1149 = vmor %vm1147, %vm1148
    %v1150 = vsel %vm1149, %v1142, %v1146
    %v1151 = vand.u32 2147483647, %v1118
    %vm1152 = vcmp.eq.f32.partialorder %v1151, 8.507059e+37
    %v1153 = vand.u32 %v1118, 2147483648
    %v1154 = vor.u32 1.1754944e-38, %v1153
    %v1155 = vsel %vm1152, %v1154, %v1150
    %v1156 = vmul.f32 1.0, %v1155
    %v1157 = vrcp.pop %v1119
    %v1158 = vmul.f32 %v1119, %v1157
    %v1159 = vsub.f32 1.0, %v1158
    %v1160 = vmul.f32 %v1157, %v1159
    %v1161 = vadd.f32 %v1157, %v1160
    %vm1162 = vweird.f32 %v1119
    %vm1163 = vweird.f32 %v1157
    %vm1164 = vmor %vm1162, %vm1163
    %v1165 = vsel %vm1164, %v1157, %v1161
    %v1166 = vand.u32 2147483647, %v1119
    %vm1167 = vcmp.eq.f32.partialorder %v1166, 8.507059e+37
    %v1168 = vand.u32 %v1119, 2147483648
    %v1169 = vor.u32 1.1754944e-38, %v1168
    %v1170 = vsel %vm1167, %v1169, %v1165
    %v1171 = vmul.f32 1.0, %v1170
    %v1172 = vrcp.pop %v1120
    %v1173 = vmul.f32 %v1120, %v1172
    %v1174 = vsub.f32 1.0, %v1173
    %v1175 = vmul.f32 %v1172, %v1174
    %v1176 = vadd.f32 %v1172, %v1175
    %vm1177 = vweird.f32 %v1120
    %vm1178 = vweird.f32 %v1172
    %vm1179 = vmor %vm1177, %vm1178
    %v1180 = vsel %vm1179, %v1172, %v1176
    %v1181 = vand.u32 2147483647, %v1120
    %vm1182 = vcmp.eq.f32.partialorder %v1181, 8.507059e+37
    %v1183 = vand.u32 %v1120, 2147483648
    %v1184 = vor.u32 1.1754944e-38, %v1183
    %v1185 = vsel %vm1182, %v1184, %v1180
    %v1186 = vmul.f32 1.0, %v1185
    %v1187 = vrcp.pop %v1121
    %v1188 = vmul.f32 %v1121, %v1187
    %v1189 = vsub.f32 1.0, %v1188
    %v1190 = vmul.f32 %v1187, %v1189
    %v1191 = vadd.f32 %v1187, %v1190
    %vm1192 = vweird.f32 %v1121
    %vm1193 = vweird.f32 %v1187
    %vm1194 = vmor %vm1192, %vm1193
    %v1195 = vsel %vm1194, %v1187, %v1191
    %v1196 = vand.u32 2147483647, %v1121
    %vm1197 = vcmp.eq.f32.partialorder %v1196, 8.507059e+37
    %v1198 = vand.u32 %v1121, 2147483648
    %v1199 = vor.u32 1.1754944e-38, %v1198
    %v1200 = vsel %vm1197, %v1199, %v1195
    %v1201 = vmul.f32 1.0, %v1200
    %v1202 = vrcp.pop %v1122
    %v1203 = vmul.f32 %v1122, %v1202
    %v1204 = vsub.f32 1.0, %v1203
    %v1205 = vmul.f32 %v1202, %v1204
    %v1206 = vadd.f32 %v1202, %v1205
    %vm1207 = vweird.f32 %v1122
    %vm1208 = vweird.f32 %v1202
    %vm1209 = vmor %vm1207, %vm1208
    %v1210 = vsel %vm1209, %v1202, %v1206
    %v1211 = vand.u32 2147483647, %v1122
    %vm1212 = vcmp.eq.f32.partialorder %v1211, 8.507059e+37
    %v1213 = vand.u32 %v1122, 2147483648
    %v1214 = vor.u32 1.1754944e-38, %v1213
    %v1215 = vsel %vm1212, %v1214, %v1210
    %v1216 = vmul.f32 1.0, %v1215
    %v1217 = vrcp.pop %v1123
    %v1218 = vmul.f32 %v1123, %v1217
    %v1219 = vsub.f32 1.0, %v1218
    %v1220 = vmul.f32 %v1217, %v1219
    %v1221 = vadd.f32 %v1217, %v1220
    %vm1222 = vweird.f32 %v1123
    %vm1223 = vweird.f32 %v1217
    %vm1224 = vmor %vm1222, %vm1223
    %v1225 = vsel %vm1224, %v1217, %v1221
    %v1226 = vand.u32 2147483647, %v1123
    %vm1227 = vcmp.eq.f32.partialorder %v1226, 8.507059e+37
    %v1228 = vand.u32 %v1123, 2147483648
    %v1229 = vor.u32 1.1754944e-38, %v1228
    %v1230 = vsel %vm1227, %v1229, %v1225
    %v1231 = vmul.f32 1.0, %v1230
    %v1232 = vrcp.pop %v1124
    %v1233 = vmul.f32 %v1124, %v1232
    %v1234 = vsub.f32 1.0, %v1233
    %v1235 = vmul.f32 %v1232, %v1234
    %v1236 = vadd.f32 %v1232, %v1235
    %vm1237 = vweird.f32 %v1124
    %vm1238 = vweird.f32 %v1232
    %vm1239 = vmor %vm1237, %vm1238
    %v1240 = vsel %vm1239, %v1232, %v1236
    %v1241 = vand.u32 2147483647, %v1124
    %vm1242 = vcmp.eq.f32.partialorder %v1241, 8.507059e+37
    %v1243 = vand.u32 %v1124, 2147483648
    %v1244 = vor.u32 1.1754944e-38, %v1243
    %v1245 = vsel %vm1242, %v1244, %v1240
    %v1246 = vmul.f32 1.0, %v1245
    %v1247 = vrcp.pop %v1125
    %v1248 = vmul.f32 %v1125, %v1247
    %v1249 = vsub.f32 1.0, %v1248
    %v1250 = vmul.f32 %v1247, %v1249
    %v1251 = vadd.f32 %v1247, %v1250
    %vm1252 = vweird.f32 %v1125
    %vm1253 = vweird.f32 %v1247
    %vm1254 = vmor %vm1252, %vm1253
    %v1255 = vsel %vm1254, %v1247, %v1251
    %v1256 = vand.u32 2147483647, %v1125
    %vm1257 = vcmp.eq.f32.partialorder %v1256, 8.507059e+37
    %v1258 = vand.u32 %v1125, 2147483648
    %v1259 = vor.u32 1.1754944e-38, %v1258
    %v1260 = vsel %vm1257, %v1259, %v1255
    %v1261 = vmul.f32 1.0, %v1260
    %v1262 = vrcp.pop %v1126
    %v1263 = vmul.f32 %v1126, %v1262
    %v1264 = vsub.f32 1.0, %v1263
    %v1265 = vmul.f32 %v1262, %v1264
    %v1266 = vadd.f32 %v1262, %v1265
    %vm1267 = vweird.f32 %v1126
    %vm1268 = vweird.f32 %v1262
    %vm1269 = vmor %vm1267, %vm1268
    %v1270 = vsel %vm1269, %v1262, %v1266
    %v1271 = vand.u32 2147483647, %v1126
    %vm1272 = vcmp.eq.f32.partialorder %v1271, 8.507059e+37
    %v1273 = vand.u32 %v1126, 2147483648
    %v1274 = vor.u32 1.1754944e-38, %v1273
    %v1275 = vsel %vm1272, %v1274, %v1270
    %v1276 = vmul.f32 1.0, %v1275
    %v1277 = vmul.f32 %v1053, %v1141
    %v1278 = vmul.f32 %v1055, %v1156
    %v1279 = vmul.f32 %v1058, %v1171
    %v1280 = vmul.f32 %v1060, %v1186
    %v1281 = vmul.f32 %v1063, %v1201
    %v1282 = vmul.f32 %v1065, %v1216
    %v1283 = vmul.f32 %v1068, %v1231
    %v1284 = vmul.f32 %v1070, %v1246
    %v1285 = vmul.f32 %v1073, %v1261
    %v1286 = vmul.f32 %v1075, %v1276
    %v1287 = vld [vmem:[#allocation2] sm:$0xff]
    %v1288 = vld [vmem:[#allocation2 + $0x8] sm:$0xff]
    %v1289 = vld [vmem:[#allocation2 + $0x10] sm:$0xff]
    %v1290 = vld [vmem:[#allocation2 + $0x18] sm:$0xff]
    %v1291 = vld [vmem:[#allocation2 + $0x20] sm:$0xff]
    %v1292 = vld [vmem:[#allocation2 + $0x28] sm:$0xff]
    %v1293 = vld [vmem:[#allocation2 + $0x30] sm:$0xff]
    %v1294 = vld [vmem:[#allocation2 + $0x38] sm:$0xff]
    %v1295 = vld [vmem:[#allocation2 + $0x40] sm:$0xff]
    %v1296 = vld [vmem:[#allocation2 + $0x48] sm:$0xff]
    %v1297 = vld [vmem:[%s5] sm:$0xff]
    %v1298 = vld [vmem:[%s5 + $0x8] sm:$0xff]
    %v1299 = vld [vmem:[%s5 + $0x10] sm:$0xff]
    %v1300 = vld [vmem:[%s5 + $0x18] sm:$0xff]
    %v1301 = vld [vmem:[%s5 + $0x20] sm:$0xff]
    %v1302 = vld [vmem:[%s5 + $0x28] sm:$0xff]
    %v1303 = vld [vmem:[%s5 + $0x30] sm:$0xff]
    %v1304 = vld [vmem:[%s5 + $0x38] sm:$0xff]
    %v1305 = vld [vmem:[%s5 + $0x40] sm:$0xff]
    %v1306 = vld [vmem:[%s5 + $0x48] sm:$0xff]
    %v1307 = vld [vmem:[%s5 + $0x50] sm:$0xff]
    %v1308 = vld [vmem:[%s5 + $0x58] sm:$0xff]
    %v1309 = vld [vmem:[%s5 + $0x60] sm:$0xff]
    %v1310 = vld [vmem:[%s5 + $0x68] sm:$0xff]
    %v1311 = vld [vmem:[%s5 + $0x70] sm:$0xff]
    %v1312 = vld [vmem:[%s5 + $0x78] sm:$0xff]
    %v1313 = vpack.c.bf16 %v1278, %v1277
    %v1314 = vpack.c.bf16 %v1280, %v1279
    %v1315 = vpack.c.bf16 %v1282, %v1281
    %v1316 = vpack.c.bf16 %v1284, %v1283
    %v1317 = vpack.c.bf16 %v1286, %v1285
    %v1318 = vpack.c.bf16 %v1298, %v1297
    %v1319 = vpack.c.bf16 %v1300, %v1299
    %v1320 = vpack.c.bf16 %v1302, %v1301
    %v1321 = vpack.c.bf16 %v1304, %v1303
    %v1322 = vpack.c.bf16 %v1306, %v1305
    %v1323 = vpack.c.bf16 %v1308, %v1307
    %v1324 = vpack.c.bf16 %v1310, %v1309
    %v1325 = vpack.c.bf16 %v1312, %v1311
    %1326 = vmatpush.bf16.msra.mxu0 %v1325
    %1327 = vmatpush.bf16.msra.mxu0 %v1324
    %1328 = vmatpush.bf16.msra.mxu0 %v1323
    %1329 = vmatpush.bf16.msra.mxu0 %v1322
    %1330 = vmatpush.bf16.msra.mxu0 %v1321
    %1331 = vmatpush.bf16.msra.mxu0 %v1320
    %1332 = vmatpush.bf16.msra.mxu0 %v1319
    %1333 = vmatpush.bf16.msra.mxu0 %v1318
    %1334 = vmatmul.bf16.gmra.mxu0 %v1313
    %v1335 = vpop.f32.mrf.mxu0
    %v1336 = vadd.f32 0.0, %v1335
    %v1337 = vpop.f32.mrf.mxu0
    %v1338 = vadd.f32 0.0, %v1337
    %1339 = vmatmul.bf16.gmra.mxu0 %v1314
    %v1340 = vpop.f32.mrf.mxu0
    %v1341 = vadd.f32 0.0, %v1340
    %v1342 = vpop.f32.mrf.mxu0
    %v1343 = vadd.f32 0.0, %v1342
    %1344 = vmatmul.bf16.gmra.mxu0 %v1315
    %v1345 = vpop.f32.mrf.mxu0
    %v1346 = vadd.f32 0.0, %v1345
    %v1347 = vpop.f32.mrf.mxu0
    %v1348 = vadd.f32 0.0, %v1347
    %1349 = vmatmul.bf16.gmra.mxu0 %v1316
    %v1350 = vpop.f32.mrf.mxu0
    %v1351 = vadd.f32 0.0, %v1350
    %v1352 = vpop.f32.mrf.mxu0
    %v1353 = vadd.f32 0.0, %v1352
    %1354 = vmatmul.bf16.gmra.mxu0 %v1317
    %v1355 = vpop.f32.mrf.mxu0
    %v1356 = vadd.f32 0.0, %v1355
    %v1357 = vpop.f32.mrf.mxu0
    %v1358 = vadd.f32 0.0, %v1357
    %1359 = vdwg.mxu0
    %v1360 = vadd.f32 %v1287, %v1336
    %v1361 = vadd.f32 %v1288, %v1338
    %v1362 = vadd.f32 %v1289, %v1341
    %v1363 = vadd.f32 %v1290, %v1343
    %v1364 = vadd.f32 %v1291, %v1346
    %v1365 = vadd.f32 %v1292, %v1348
    %v1366 = vadd.f32 %v1293, %v1351
    %v1367 = vadd.f32 %v1294, %v1353
    %v1368 = vadd.f32 %v1295, %v1356
    %v1369 = vadd.f32 %v1296, %v1358
    %1370 = vst.msk [vmem:[#allocation2] sm:$0xff] %vm136, %v1360
    %1371 = vst.msk [vmem:[#allocation2 + $0x8] sm:$0xff] %vm136, %v1361
    %1372 = vst.msk [vmem:[#allocation2 + $0x10] sm:$0xff] %vm136, %v1362
    %1373 = vst.msk [vmem:[#allocation2 + $0x18] sm:$0xff] %vm136, %v1363
    %1374 = vst.msk [vmem:[#allocation2 + $0x20] sm:$0xff] %vm136, %v1364
    %1375 = vst.msk [vmem:[#allocation2 + $0x28] sm:$0xff] %vm136, %v1365
    %1376 = vst.msk [vmem:[#allocation2 + $0x30] sm:$0xff] %vm136, %v1366
    %1377 = vst.msk [vmem:[#allocation2 + $0x38] sm:$0xff] %vm136, %v1367
    %1378 = vst.msk [vmem:[#allocation2 + $0x40] sm:$0xff] %vm136, %v1368
    %1379 = vst.msk [vmem:[#allocation2 + $0x48] sm:$0xff] %vm136, %v1369
    // Predicated region
    $region78: #{_lambda_.39} parent=1 // pred_check
      %p1380 = pneg %p390
    $region79: #{_lambda_.39} parent=1 // pred_check_branch
      %1382 = sbr.rel (%p1380) target = $region81
    $region80: #{_lambda_.39} parent=1 // pred_region
      %v1383 = vld [vmem:[#allocation2] sm:$0xff]
      %v1384 = vld [vmem:[#allocation2 + $0x8] sm:$0xff]
      %v1385 = vld [vmem:[#allocation2 + $0x10] sm:$0xff]
      %v1386 = vld [vmem:[#allocation2 + $0x18] sm:$0xff]
      %v1387 = vld [vmem:[#allocation2 + $0x20] sm:$0xff]
      %v1388 = vld [vmem:[#allocation2 + $0x28] sm:$0xff]
      %v1389 = vld [vmem:[#allocation2 + $0x30] sm:$0xff]
      %v1390 = vld [vmem:[#allocation2 + $0x38] sm:$0xff]
      %v1391 = vld [vmem:[#allocation2 + $0x40] sm:$0xff]
      %v1392 = vld [vmem:[#allocation2 + $0x48] sm:$0xff]
      %v1393 = vld [vmem:[#allocation8] sm:$0x1]
      %v1395 = vperm.slane %v1393, 0
      %v1397 = vadd.f32 %v1383, %v1395
      %v1398 = vadd.f32 %v1384, %v1395
      %v1399 = vadd.f32 %v1385, %v1395
      %v1400 = vadd.f32 %v1386, %v1395
      %v1401 = vadd.f32 %v1387, %v1395
      %v1402 = vadd.f32 %v1388, %v1395
      %v1403 = vadd.f32 %v1389, %v1395
      %v1404 = vadd.f32 %v1390, %v1395
      %v1405 = vadd.f32 %v1391, %v1395
      %v1406 = vadd.f32 %v1392, %v1395
      %1407 = vst.msk [vmem:[%s12] sm:$0xff] %vm136, %v1397
      %1408 = vst.msk [vmem:[%s12 + $0x8] sm:$0xff] %vm136, %v1398
      %1409 = vst.msk [vmem:[%s12 + $0x10] sm:$0xff] %vm136, %v1399
      %1410 = vst.msk [vmem:[%s12 + $0x18] sm:$0xff] %vm136, %v1400
      %1411 = vst.msk [vmem:[%s12 + $0x20] sm:$0xff] %vm136, %v1401
      %1412 = vst.msk [vmem:[%s12 + $0x28] sm:$0xff] %vm136, %v1402
      %1413 = vst.msk [vmem:[%s12 + $0x30] sm:$0xff] %vm136, %v1403
      %1414 = vst.msk [vmem:[%s12 + $0x38] sm:$0xff] %vm136, %v1404
      %1415 = vst.msk [vmem:[%s12 + $0x40] sm:$0xff] %vm136, %v1405
      %1416 = vst.msk [vmem:[%s12 + $0x48] sm:$0xff] %vm136, %v1406
    $region81: #{_lambda_.39} parent=1 // pred_fallthru
      _
    // Predicated region
    $region82: #{_lambda_.39} parent=1 // pred_check
      _
    $region83: #{_lambda_.39} parent=1 // pred_check_branch
      %1418 = sbr.rel (0) target = $region85
    $region84: #{_lambda_.39} parent=1 // pred_region
      _
    $region85: #{_lambda_.39} parent=1 // pred_fallthru
      _
    // Predicated region
    $region86: #{_lambda_.39} parent=1 // pred_check
      _
    $region87: #{_lambda_.39} parent=1 // pred_check_branch
      %1420 = sbr.rel (0) target = $region89
    $region88: #{_lambda_.39} parent=1 // pred_region
      _
    $region89: #{_lambda_.39} parent=1 // pred_fallthru
      _
    %1421 = vsyncpa [#allocation4], 1
    %1422 = vsyncpa [#allocation6], 1
    %1423 = vsyncpa [#allocation9], 1
    %1424 = vsyncpa [#allocation12], 1

// kernel: _lambda_.53
$region0: #{_lambda_.53}
  #allocation0 [shape = 'u32[]', space=smem, size = 0x4, offset = 0x4, fixed_abs, tag = 'smem constant byte address 0x4 - core index']
  #allocation1 [shape = 'u32[72,128]{1,0:T(1,128)}', space=vmem, size = 0x9000, scoped, tag = 'internal scratch']
  #allocation2 [shape = 'f32[2,7]{1,0:T(2,128)}', space=vmem, size = 0x400, scoped, tag = 'scratch operand']
  %s0 = inlined_call_operand.vmem [shape: f32[2,32], index: 0, kind: input, shape index: {}]
  %s1 = inlined_call_operand.vmem [shape: f32[32,7], index: 1, kind: input, shape index: {}]
  %s2 = inlined_call_operand.vmem [shape: f32[1,7], index: 2, kind: input, shape index: {}]
  %s3 = inlined_call_operand.hbm [shape: f32[2,7], index: 3, kind: output, shape index: {}]
  %s4 = sld [smem:[#allocation0]]
  $region30: #{_lambda_.53} parent=0
    _
  %s6 = ssub.s32 1, %s4
  %s7 = scalar_select 0, %s6, %s4
  $region1: #{_lambda_.53} parent=0
    #allocation3 [shape = 'u8[1024]{0}', space=vmem, size = 0x400, scoped, tag = 'output window, operand 0, single buffered']
    #allocation4 [shape = 's32[1]{0}', space=sflag, size = 0x4, scoped, tag = 'scoped memory for _lambda_.53']
    %8 = vsyncpa [#allocation4], 0
    // Predicated region
    $region2: #{_lambda_.53} parent=1 // pred_check
      _
    $region3: #{_lambda_.53} parent=1 // pred_check_branch
      %10 = sbr.rel (0) target = $region5
    $region4: #{_lambda_.53} parent=1 // pred_region
      _
    $region5: #{_lambda_.53} parent=1 // pred_fallthru
      _
    // Predicated region
    $region6: #{_lambda_.53} parent=1 // pred_check
      _
    $region7: #{_lambda_.53} parent=1 // pred_check_branch
      %12 = sbr.rel (0) target = $region9
    $region8: #{_lambda_.53} parent=1 // pred_region
      _
    $region9: #{_lambda_.53} parent=1 // pred_fallthru
      _
    // Predicated region
    $region10: #{_lambda_.53} parent=1 // pred_check
      _
    $region11: #{_lambda_.53} parent=1 // pred_check_branch
      %14 = sbr.rel (0) target = $region13
    $region12: #{_lambda_.53} parent=1 // pred_region
      _
    $region13: #{_lambda_.53} parent=1 // pred_fallthru
      _
    %p16 = scmp.eq.s32.totalorder 0, 0
    // Predicated region
    $region14: #{_lambda_.53} parent=1 // pred_check
      %p17 = pneg %p16
    $region15: #{_lambda_.53} parent=1 // pred_check_branch
      %19 = sbr.rel (%p17) target = $region17
    $region16: #{_lambda_.53} parent=1 // pred_region
      %vm20 = vcmask 50176
      %21 = vst.msk [vmem:[#allocation2] sm:$0x3] %vm20, 0.0
    $region17: #{_lambda_.53} parent=1 // pred_fallthru
      _
    %v22 = vld [vmem:[#allocation2] sm:$0x3]
    %v23 = vld [vmem:[%s0] sm:$0x3]
    %v24 = vld [vmem:[%s1] sm:$0xff]
    %v25 = vld [vmem:[%s1 + $0x8] sm:$0xff]
    %v26 = vld [vmem:[%s1 + $0x10] sm:$0xff]
    %v27 = vld [vmem:[%s1 + $0x18] sm:$0xff]
    %v28 = vpack.c.bf16 %v23, %v23
    %v29 = vpack.c.bf16 %v25, %v24
    %v30 = vpack.c.bf16 %v27, %v26
    %vm31 = vcmask 261120
    %v33 = vsel %vm31, %v28, 0
    %35 = vmatpush.bf16.msra.mxu0 0
    %36 = vmatpush.bf16.msra.mxu0 0
    %37 = vmatpush.bf16.msra.mxu0 0
    %38 = vmatpush.bf16.msra.mxu0 0
    %39 = vmatpush.bf16.msra.mxu0 0
    %40 = vmatpush.bf16.msra.mxu0 0
    %41 = vmatpush.bf16.msra.mxu0 %v30
    %42 = vmatpush.bf16.msra.mxu0 %v29
    %43 = vmatmul.bf16.gmra.mxu0 %v33
    %v44 = vpop.f32.mrf.mxu0
    %v45 = vadd.f32 0.0, %v44
    %v46 = vpop.f32.mrf.mxu0
    %47 = vdwg.mxu0
    %v48 = vadd.f32 %v22, %v45
    %vm49 = vcmask 50176
    %50 = vst.msk [vmem:[#allocation2] sm:$0x3] %vm49, %v48
    // Predicated region
    $region18: #{_lambda_.53} parent=1 // pred_check
      %p51 = pneg %p16
    $region19: #{_lambda_.53} parent=1 // pred_check_branch
      %53 = sbr.rel (%p51) target = $region21
    $region20: #{_lambda_.53} parent=1 // pred_region
      %v54 = vld [vmem:[#allocation2] sm:$0x3]
      %v55 = vld [vmem:[%s2] sm:$0x1]
      %v57 = vperm.slane %v55, 0
      %v59 = vadd.f32 %v54, %v57
      %60 = vst.msk [vmem:[#allocation3] sm:$0x3] %vm49, %v59
    $region21: #{_lambda_.53} parent=1 // pred_fallthru
      _
    // Predicated region
    $region22: #{_lambda_.53} parent=1 // pred_check
      _
    $region23: #{_lambda_.53} parent=1 // pred_check_branch
      %62 = sbr.rel (0) target = $region25
    $region24: #{_lambda_.53} parent=1 // pred_region
      %64 = vsyncadd [#allocation4], 0
      %s66 = sshll.u32 [#allocation3], 4
      %s67 = int_to_ptr.vmem [resolvable:$true] %s66
      %s68 = sshll.u32 %s3, 4
      %s69 = int_to_ptr.hbm [resolvable:$true] %s68
      %71 = dma.vmem_to_hbm [thread:$0]  %s67, 32, %s69, [#allocation4]
    $region25: #{_lambda_.53} parent=1 // pred_fallthru
      _
    // Predicated region
    $region26: #{_lambda_.53} parent=1 // pred_check
      _
    $region27: #{_lambda_.53} parent=1 // pred_check_branch
      %73 = sbr.rel (0) target = $region29
    $region28: #{_lambda_.53} parent=1 // pred_region
      %75 = dma.done [#allocation4], 32
    $region29: #{_lambda_.53} parent=1 // pred_fallthru
      _
    %76 = vsyncpa [#allocation4], 1

// kernel: _lambda_.52
$region0: #{_lambda_.52}
  #allocation0 [shape = 'u32[]', space=smem, size = 0x4, offset = 0x4, fixed_abs, tag = 'smem constant byte address 0x4 - core index']
  #allocation1 [shape = 'u32[72,128]{1,0:T(1,128)}', space=vmem, size = 0x9000, scoped, tag = 'internal scratch']
  %s0 = inlined_call_operand.vmem [shape: f32[18,32], index: 0, kind: input, shape index: {}]
  %s1 = inlined_call_operand.vmem [shape: f32[1,32], index: 1, kind: input, shape index: {}]
  %s2 = inlined_call_operand.vmem [shape: f32[1,32], index: 2, kind: input, shape index: {}]
  %s3 = inlined_call_operand.vmem [shape: f32[18,32], index: 3, kind: output, shape index: {}]
  %s4 = sld [smem:[#allocation0]]
  $region22: #{_lambda_.52} parent=0
    _
  %s6 = ssub.s32 1, %s4
  %s7 = scalar_select 0, %s6, %s4
  // Predicated region
  $region2: #{_lambda_.52} parent=0 // pred_check
    _
  $region3: #{_lambda_.52} parent=0 // pred_check_branch
    %9 = sbr.rel (0) target = $region5
  $region4: #{_lambda_.52} parent=0 // pred_region
    _
  $region5: #{_lambda_.52} parent=0 // pred_fallthru
    _
  // Predicated region
  $region6: #{_lambda_.52} parent=0 // pred_check
    _
  $region7: #{_lambda_.52} parent=0 // pred_check_branch
    %11 = sbr.rel (0) target = $region9
  $region8: #{_lambda_.52} parent=0 // pred_region
    _
  $region9: #{_lambda_.52} parent=0 // pred_fallthru
    _
  // Predicated region
  $region10: #{_lambda_.52} parent=0 // pred_check
    _
  $region11: #{_lambda_.52} parent=0 // pred_check_branch
    %13 = sbr.rel (0) target = $region13
  $region12: #{_lambda_.52} parent=0 // pred_region
    _
  $region13: #{_lambda_.52} parent=0 // pred_fallthru
    _
  %v14 = vld [vmem:[%s0] sm:$0xff]
  %v15 = vld [vmem:[%s0 + $0x8] sm:$0xff]
  %v16 = vld [vmem:[%s0 + $0x10] sm:$0x3]
  %v17 = vld [vmem:[%s1] sm:$0x1]
  %v18 = vld [vmem:[%s2] sm:$0x1]
  %vm19 = vcmask 261120
  %v20 = vsel %vm19, %v14, 0.0
  %21 = vadd.xlane.f32.xlu0 %v20
  %v22 = vpop.xlane.xlu0 %21
  %v23 = vsel %vm19, %v15, 0.0
  %24 = vadd.xlane.f32.xlu0 %v23
  %v25 = vpop.xlane.xlu0 %24
  %vm26 = vcmask 254976
  %v27 = vsel %vm26, %v16, 0.0
  %28 = vadd.xlane.f32.xlu0 %v27
  %v29 = vpop.xlane.xlu0 %28
  %v30 = vrcp.pop 32.0
  %v31 = vmul.f32 32.0, %v30
  %v32 = vsub.f32 1.0, %v31
  %v33 = vmul.f32 %v30, %v32
  %v34 = vadd.f32 %v30, %v33
  %vm35 = vweird.f32 %v30
  %v36 = vsel %vm35, %v30, %v34
  %v37 = vmul.f32 %v22, %v36
  %v38 = vmul.f32 %v25, %v36
  %v39 = vmul.f32 %v29, %v36
  %v40 = vsub.f32 %v14, %v37
  %v41 = vsub.f32 %v15, %v38
  %v42 = vsub.f32 %v16, %v39
  %v43 = vmul.f32 %v40, %v40
  %v44 = vmul.f32 %v41, %v41
  %v45 = vmul.f32 %v42, %v42
  %v46 = vsel %vm19, %v43, 0.0
  %47 = vadd.xlane.f32.xlu0 %v46
  %v48 = vpop.xlane.xlu0 %47
  %v49 = vsel %vm19, %v44, 0.0
  %50 = vadd.xlane.f32.xlu0 %v49
  %v51 = vpop.xlane.xlu0 %50
  %v52 = vsel %vm26, %v45, 0.0
  %53 = vadd.xlane.f32.xlu0 %v52
  %v54 = vpop.xlane.xlu0 %53
  %v55 = vmul.f32 %v48, %v36
  %v56 = vmul.f32 %v51, %v36
  %v57 = vmul.f32 %v54, %v36
  %v58 = vadd.f32 %v55, 1e-05
  %v59 = vadd.f32 %v56, 1e-05
  %v60 = vadd.f32 %v57, 1e-05
  %v61 = vrsqrt.pop %v58
  %v62 = vmul.f32 %v61, %v58
  %v63 = vmul.f32 %v62, %v61
  %v64 = vmul.f32 0.5, %v63
  %v65 = vsub.f32 1.5, %v64
  %v66 = vmul.f32 %v61, %v65
  %vm67 = vweird.f32 %v58
  %vm68 = vweird.f32 %v61
  %vm69 = vmor %vm67, %vm68
  %v70 = vsel %vm69, %v61, %v66
  %v71 = vrsqrt.pop %v59
  %v72 = vmul.f32 %v71, %v59
  %v73 = vmul.f32 %v72, %v71
  %v74 = vmul.f32 0.5, %v73
  %v75 = vsub.f32 1.5, %v74
  %v76 = vmul.f32 %v71, %v75
  %vm77 = vweird.f32 %v59
  %vm78 = vweird.f32 %v71
  %vm79 = vmor %vm77, %vm78
  %v80 = vsel %vm79, %v71, %v76
  %v81 = vrsqrt.pop %v60
  %v82 = vmul.f32 %v81, %v60
  %v83 = vmul.f32 %v82, %v81
  %v84 = vmul.f32 0.5, %v83
  %v85 = vsub.f32 1.5, %v84
  %v86 = vmul.f32 %v81, %v85
  %vm87 = vweird.f32 %v60
  %vm88 = vweird.f32 %v81
  %vm89 = vmor %vm87, %vm88
  %v90 = vsel %vm89, %v81, %v86
  %v91 = vmul.f32 %v40, %v70
  %v92 = vmul.f32 %v41, %v80
  %v93 = vmul.f32 %v42, %v90
  %v95 = vperm.slane %v17, 0
  %v97 = vmul.f32 %v91, %v95
  %v98 = vmul.f32 %v92, %v95
  %v99 = vmul.f32 %v93, %v95
  %v101 = vperm.slane %v18, 0
  %v103 = vadd.f32 %v97, %v101
  %v104 = vadd.f32 %v98, %v101
  %v105 = vadd.f32 %v99, %v101
  %106 = vst.msk [vmem:[%s3] sm:$0xff] %vm19, %v103
  %107 = vst.msk [vmem:[%s3 + $0x8] sm:$0xff] %vm19, %v104
  %108 = vst.msk [vmem:[%s3 + $0x10] sm:$0x3] %vm26, %v105
  // Predicated region
  $region14: #{_lambda_.52} parent=0 // pred_check
    _
  $region15: #{_lambda_.52} parent=0 // pred_check_branch
    %110 = sbr.rel (0) target = $region17
  $region16: #{_lambda_.52} parent=0 // pred_region
    _
  $region17: #{_lambda_.52} parent=0 // pred_fallthru
    _
  // Predicated region
  $region18: #{_lambda_.52} parent=0 // pred_check
    _
  $region19: #{_lambda_.52} parent=0 // pred_check_branch
    %112 = sbr.rel (0) target = $region21
  $region20: #{_lambda_.52} parent=0 // pred_region
    _
  $region21: #{_lambda_.52} parent=0 // pred_fallthru
    _

</llo_original>
